<compile_context>
chip_gen: v6e
topology: v6e:2x2x1
jax: 0.10.0
libtpu: 0.0.40
codegen_flags: <defaults>
</compile_context>

<pallas_src>
import functools

import jax
import jax.numpy as jnp
import numpy as np
from jax import lax
from jax.experimental import pallas as pl
from jax.experimental.pallas import tpu as pltpu


# ----------------------------- Pallas kernel -------------------------------- #
def rnn_classifier_kernel(
    feats_ref,   # (B, TS, D) f32   current (seq-tile, layer) block of features
    lw_ref,      # (L,)       f32   SMEM: layer mixing weights (self.weight[:L])
    wpre_ref,    # (D, P)     f32   pre_linear weight (transposed)
    bpre_ref,    # (1, P)     f32
    wih_ref,     # (3, P, H)  f32   GRU W_ih^T split per gate [r, z, n]
    big_ref,     # (3, 1, H)  f32   folded gate biases: r,z = b_ih+b_hh ; n = b_in
    whh_ref,     # (3, H, H)  f32   GRU W_hh^T split per gate [r, z, n]
    bhn_ref,     # (1, H)     f32   b_hn (cannot be folded: sits inside r*(...))
    wpost_ref,   # (H, Q)     f32
    bpost_ref,   # (1, Q)     f32
    wout_ref,    # (Q, C)     f32
    bout_ref,    # (1, C)     f32
    mask_ref,    # (S, B_pad, 1) f32   1.0 while t < valid_len[b] else 0.0
    out_ref,     # (B_pad, C) f32   log-softmax output (padded rows dropped outside)
    acc_ref,     # scratch (B_pad, TS, D) f32   layer weighted-sum accumulator
    xr_ref,      # scratch (S, B_pad, H)  f32   time-major gate plane r
    xz_ref,      # scratch (S, B_pad, H)  f32   time-major gate plane z
    xn_ref,      # scratch (S, B_pad, H)  f32   time-major gate plane n
    *,
    B: int, TS: int, S: int, H: int,
):
    si = pl.program_id(0)          # which sequence tile
    li = pl.program_id(1)          # which hidden layer (reduction axis, fastest)
    n_s = pl.num_programs(0)
    n_l = pl.num_programs(1)

    # ---- phase 1: select_hidden == 'weighted_sum' as a streamed reduction ----
    @pl.when(li == 0)
    def _():
        acc_ref[...] = jnp.zeros_like(acc_ref)

    w_l = lw_ref[li]                                         # scalar from SMEM
    acc_ref[0:B, :, :] = acc_ref[0:B, :, :] + w_l * feats_ref[...]

    # ---- phase 2: at the last layer, project this tile to time-major gates ---
    @pl.when(li == n_l - 1)
    def _():
        wpre = wpre_ref[...]
        bpre = bpre_ref[...]
        wir, wiz, win = wih_ref[0], wih_ref[1], wih_ref[2]
        br, bz, bn = big_ref[0], big_ref[1], big_ref[2]
        base = si * TS
        # static unroll over the tile's timesteps (TS kept small by the wrapper);
        # all slicing here uses static offsets and is off the serial GRU path.
        for tt in range(TS):
            mixed_t = acc_ref[:, tt, :]                      # (B_pad, D)
            # pre_linears: Linear -> ReLU (dropout p=0 => identity)
            x_t = jnp.maximum(
                jnp.dot(mixed_t, wpre, preferred_element_type=jnp.float32) + bpre,
                0.0)                                         # (B_pad, P)
            xr_ref[base + tt] = jnp.dot(x_t, wir, preferred_element_type=jnp.float32) + br
            xz_ref[base + tt] = jnp.dot(x_t, wiz, preferred_element_type=jnp.float32) + bz
            xn_ref[base + tt] = jnp.dot(x_t, win, preferred_element_type=jnp.float32) + bn

    # ---- phase 3: final grid cell -- GRU recurrence + classifier head --------
    @pl.when((si == n_s - 1) & (li == n_l - 1))
    def _():
        whr, whz, whn = whh_ref[0], whh_ref[1], whh_ref[2]   # loaded once, live in vregs
        bhn = bhn_ref[...]
        b_pad = out_ref.shape[0]
        h0 = jnp.zeros((b_pad, H), jnp.float32)

        def gru_step(t, h):
            hr = jnp.dot(h, whr, preferred_element_type=jnp.float32)
            hz = jnp.dot(h, whz, preferred_element_type=jnp.float32)
            hn = jnp.dot(h, whn, preferred_element_type=jnp.float32) + bhn
            r = jax.nn.sigmoid(xr_ref[t] + hr)               # leading-axis index: free
            z = jax.nn.sigmoid(xz_ref[t] + hz)
            n = jnp.tanh(xn_ref[t] + r * hn)
            h_new = n + z * (h - n)                          # (1-z)*n + z*h
            m = mask_ref[t]                                  # (B_pad, 1)
            # pack_padded_sequence semantics: freeze once t >= valid_len[b]
            return h + m * (h_new - h)

        h = lax.fori_loop(0, S, gru_step, h0,
                          unroll=True if S <= 128 else 8)

        # post_linears: Linear -> ReLU (dropout identity)
        hid = jnp.maximum(
            jnp.dot(h, wpost_ref[...], preferred_element_type=jnp.float32)
            + bpost_ref[...], 0.0)                           # (B_pad, Q)
        # out + LogSoftmax(dim=-1)
        logits = jnp.dot(hid, wout_ref[...], preferred_element_type=jnp.float32)
        logits = logits + bout_ref[...]                      # (B_pad, C)
        mx = jnp.max(logits, axis=-1, keepdims=True)
        lse = mx + jnp.log(jnp.sum(jnp.exp(logits - mx), axis=-1, keepdims=True))
        out_ref[...] = logits - lse


# ------------------------------- helpers ------------------------------------- #
def _pick_seq_tile(S):
    # largest multiple-of-8 divisor of S capped at 32 (bounds the static unroll);
    # fall back to the full extent (always legal for a BlockSpec dim).
    for cand in (32, 16, 8):
        if S % cand == 0:
            return cand
    return S


def _tile_bytes(shape, itemsize=4):
    if len(shape) <= 1:
        n = shape[0] if shape else 1
        return max(n * itemsize, itemsize)
    lead = 1
    for d in shape[:-2]:
        lead *= d
    s_p = -(-shape[-2] // 8) * 8
    l_p = -(-shape[-1] // 128) * 128
    return lead * s_p * l_p * itemsize


# ------------------------------- wrapper ------------------------------------- #
def rnn_classifier_forward(features, valid_lengths, params, cfg):
    """features: (B, L, S, D) float32; valid_lengths: (B,) int32 (sorted desc)."""
    B, L, S0, D = features.shape
    sr = cfg["sample_rate"]
    H = cfg["hidden_size"]
    P = params["w_pre"].shape[1]
    Q = params["w_post"].shape[1]
    C = params["w_out"].shape[1]

    # sub-sampling along seq (torch.arange(0, S, sample_rate)); identity when sr==1
    feats = features if sr == 1 else features[:, :, ::sr, :]
    S = feats.shape[2]
    vlens = (valid_lengths // sr).astype(jnp.int32)

    B_pad = max(8, -(-B // 8) * 8)
    TS = _pick_seq_tile(S)
    nS = S // TS if S % TS == 0 else 1
    if S % TS != 0:
        TS = S  # full-extent fallback

    # freeze mask, precomputed once (tiny): (S, B_pad, 1), padded rows always 0
    vl_pad = jnp.zeros((B_pad,), jnp.int32).at[:B].set(vlens)
    mask = (jnp.arange(S, dtype=jnp.int32)[:, None] < vl_pad[None, :]
            ).astype(jnp.float32)[:, :, None]

    # gate-split GRU weights (tiny host-side reshapes of the weight tensors)
    wih_g = jnp.transpose(params["w_ih"].reshape(P, 3, H), (1, 0, 2))   # (3, P, H)
    whh_g = jnp.transpose(params["w_hh"].reshape(H, 3, H), (1, 0, 2))   # (3, H, H)
    b_ih = params["b_ih"].reshape(3, H)
    b_hh = params["b_hh"].reshape(3, H)
    b_gate = jnp.stack([b_ih[0] + b_hh[0],       # r: fold b_hr
                        b_ih[1] + b_hh[1],       # z: fold b_hz
                        b_ih[2]], axis=0).reshape(3, 1, H)
    b_hn = b_hh[2].reshape(1, H)

    lw = params["layer_weight"][:L].astype(jnp.float32)      # (L,)

    def rep(shape):
        n = len(shape)
        return pl.BlockSpec(shape, lambda si, li, _n=n: (0,) * _n)

    in_specs = [
        pl.BlockSpec((B, None, TS, D), lambda si, li: (0, li, si, 0)),   # feats stream
        pl.BlockSpec(memory_space=pltpu.MemorySpace.SMEM),               # layer weights
        rep((D, P)), rep((1, P)),
        rep((3, P, H)), rep((3, 1, H)),
        rep((3, H, H)), rep((1, H)),
        rep((H, Q)), rep((1, Q)),
        rep((Q, C)), rep((1, C)),
        rep((S, B_pad, 1)),                                              # mask
    ]
    out_spec = pl.BlockSpec((B_pad, C), lambda si, li: (0, 0))

    scratch_shapes = [
        pltpu.VMEM((B_pad, TS, D), jnp.float32),   # layer-sum accumulator
        pltpu.VMEM((S, B_pad, H), jnp.float32),    # gate plane r
        pltpu.VMEM((S, B_pad, H), jnp.float32),    # gate plane z
        pltpu.VMEM((S, B_pad, H), jnp.float32),    # gate plane n
    ]

    # vmem limit sized to actual usage (double-buffered inputs/outputs + scratch)
    blk_shapes = [(B, TS, D), (D, P), (1, P), (3, P, H), (3, 1, H), (3, H, H),
                  (1, H), (H, Q), (1, Q), (Q, C), (1, C), (S, B_pad, 1)]
    est = sum(2 * _tile_bytes(s) for s in blk_shapes) + 2 * _tile_bytes((B_pad, C))
    est += sum(_tile_bytes(s) for s in [(B_pad, TS, D)] + [(S, B_pad, H)] * 3)
    vmem_limit = int(min(64 * 2**20, max(4 * 2**20, 2 * est)))

    kernel = functools.partial(rnn_classifier_kernel, B=B, TS=TS, S=S, H=H)

    out_padded = pl.pallas_call(
        kernel,
        out_shape=jax.ShapeDtypeStruct((B_pad, C), jnp.float32),
        grid=(nS, L),
        in_specs=in_specs,
        out_specs=out_spec,
        scratch_shapes=scratch_shapes,
        compiler_params=pltpu.CompilerParams(
            dimension_semantics=("arbitrary", "arbitrary"),
            vmem_limit_bytes=vmem_limit),
    )(
        feats, lw,
        params["w_pre"], params["b_pre"],
        wih_g, b_gate, whh_g, b_hn,
        params["w_post"], params["b_post"],
        params["w_out"], params["b_out"],
        mask,
    )
    return out_padded[:B]


# --------------------------- pure-JAX reference ------------------------------ #
def reference_forward(features, valid_lengths, params, cfg):
    B, L, S, D = features.shape
    sr = cfg["sample_rate"]
    H = cfg["hidden_size"]
    feats = features[:, :, ::sr, :]
    vlens = valid_lengths // sr
    S2 = feats.shape[2]

    mixed = jnp.einsum("l,blsd->bsd", params["layer_weight"][:L], feats)
    x = jax.nn.relu(mixed @ params["w_pre"] + params["b_pre"])          # (B,S2,P)
    xg = x @ params["w_ih"] + params["b_ih"]                            # (B,S2,3H)

    def step(h, inp):
        xt, t = inp                                                     # (B,3H)
        hg = h @ params["w_hh"] + params["b_hh"]
        r = jax.nn.sigmoid(xt[:, :H] + hg[:, :H])
        z = jax.nn.sigmoid(xt[:, H:2 * H] + hg[:, H:2 * H])
        n = jnp.tanh(xt[:, 2 * H:] + r * hg[:, 2 * H:])
        h_new = (1.0 - z) * n + z * h
        return jnp.where((t < vlens)[:, None], h_new, h), None

    h0 = jnp.zeros((B, H), jnp.float32)
    h, _ = lax.scan(step, h0, (jnp.transpose(xg, (1, 0, 2)), jnp.arange(S2)))
    hid = jax.nn.relu(h @ params["w_post"] + params["b_post"])
    logits = hid @ params["w_out"] + params["b_out"]
    return jax.nn.log_softmax(logits, axis=-1)


# ------------------------------- __main__ ------------------------------------ #
if __name__ == "__main__":
    # small shapes consistent with the module's forward
    B, L, S, D = 2, 12, 8, 16         # batch, hidden layers, seq, input_dim
    P, H, Q, C = 32, 32, 32, 4        # pre dim, hidden_size, post dim, class_num

    cfg = dict(
        select_hidden="weighted_sum", sample_rate=1, hidden_size=H,
        pre_linear_dims=[P], post_linear_dims=[Q], drop=0.0, mode="classification",
    )

    key = jax.random.PRNGKey(0)
    ks = jax.random.split(key, 12)

    def w(k, shape, scale=0.1):
        return (scale * jax.random.normal(k, shape)).astype(jnp.float32)

    params = {
        "layer_weight": jnp.ones((12,), jnp.float32) / 12.0,   # nn.Parameter(ones(12)/12)
        "w_pre":  w(ks[0], (D, P)),  "b_pre":  w(ks[1], (1, P)),
        "w_ih":   w(ks[2], (P, 3 * H)), "b_ih": w(ks[3], (1, 3 * H)),
        "w_hh":   w(ks[4], (H, 3 * H)), "b_hh": w(ks[5], (1, 3 * H)),
        "w_post": w(ks[6], (H, Q)),  "b_post": w(ks[7], (1, Q)),
        "w_out":  w(ks[8], (Q, C)),  "b_out":  w(ks[9], (1, C)),
    }

    features = jax.random.normal(ks[10], (B, L, S, D), jnp.float32)
    valid_lengths = jnp.array([8, 5], jnp.int32)   # sorted desc (enforce_sorted=True)

    # TODO(synk): nn.Dropout (p=0.0 / eval) and the labels!=None loss branch are
    # identity / outside the labels=None inference path and are not implemented.

    out = rnn_classifier_forward(features, valid_lengths, params, cfg)
    out = jax.block_until_ready(out)

    ref = jax.block_until_ready(reference_forward(features, valid_lengths, params, cfg))
    np.testing.assert_allclose(np.asarray(out), np.asarray(ref), atol=1e-2, rtol=1e-2)

    print("KERNEL_OK")
</pallas_src>

<mosaic_0001>
module attributes {stable_mosaic.version = 11 : i64} {
  func.func @rnn_classifier_kernel(%arg0: i32, %arg1: i32, %arg2: memref<2x1x8x16xf32, #tpu.memory_space<vmem>>, %arg3: memref<12xf32, #tpu.memory_space<smem>>, %arg4: memref<16x32xf32, #tpu.memory_space<vmem>>, %arg5: memref<1x32xf32, #tpu.memory_space<vmem>>, %arg6: memref<3x32x32xf32, #tpu.memory_space<vmem>>, %arg7: memref<3x1x32xf32, #tpu.memory_space<vmem>>, %arg8: memref<3x32x32xf32, #tpu.memory_space<vmem>>, %arg9: memref<1x32xf32, #tpu.memory_space<vmem>>, %arg10: memref<32x32xf32, #tpu.memory_space<vmem>>, %arg11: memref<1x32xf32, #tpu.memory_space<vmem>>, %arg12: memref<32x4xf32, #tpu.memory_space<vmem>>, %arg13: memref<1x4xf32, #tpu.memory_space<vmem>>, %arg14: memref<8x8x1xf32, #tpu.memory_space<vmem>>, %arg15: memref<8x4xf32, #tpu.memory_space<vmem>>, %arg16: memref<8x8x16xf32, #tpu.memory_space<vmem>>, %arg17: memref<8x8x32xf32, #tpu.memory_space<vmem>>, %arg18: memref<8x8x32xf32, #tpu.memory_space<vmem>>, %arg19: memref<8x8x32xf32, #tpu.memory_space<vmem>>) attributes {dimension_semantics = [#tpu.dimension_semantics<arbitrary>, #tpu.dimension_semantics<arbitrary>], iteration_bounds = array<i64: 1, 12>, scalar_prefetch = 0 : i64, scratch_operands = 4 : i64, tpu.core_type = #tpu.core_type<tc>, window_params = [{transform_indices = @transform_0, window_bounds = array<i64: 2, 1, 8, 16>}, {transform_indices = @transform_1, window_bounds = array<i64: 12>}, {pipeline_mode = #tpu.pipeline_mode<synchronous>, transform_indices = @transform_2, window_bounds = array<i64: 16, 32>}, {pipeline_mode = #tpu.pipeline_mode<synchronous>, transform_indices = @transform_3, window_bounds = array<i64: 1, 32>}, {pipeline_mode = #tpu.pipeline_mode<synchronous>, transform_indices = @transform_4, window_bounds = array<i64: 3, 32, 32>}, {pipeline_mode = #tpu.pipeline_mode<synchronous>, transform_indices = @transform_5, window_bounds = array<i64: 3, 1, 32>}, {pipeline_mode = #tpu.pipeline_mode<synchronous>, transform_indices = @transform_6, window_bounds = array<i64: 3, 32, 32>}, {pipeline_mode = #tpu.pipeline_mode<synchronous>, transform_indices = @transform_7, window_bounds = array<i64: 1, 32>}, {pipeline_mode = #tpu.pipeline_mode<synchronous>, transform_indices = @transform_8, window_bounds = array<i64: 32, 32>}, {pipeline_mode = #tpu.pipeline_mode<synchronous>, transform_indices = @transform_9, window_bounds = array<i64: 1, 32>}, {pipeline_mode = #tpu.pipeline_mode<synchronous>, transform_indices = @transform_10, window_bounds = array<i64: 32, 4>}, {pipeline_mode = #tpu.pipeline_mode<synchronous>, transform_indices = @transform_11, window_bounds = array<i64: 1, 4>}, {pipeline_mode = #tpu.pipeline_mode<synchronous>, transform_indices = @transform_12, window_bounds = array<i64: 8, 8, 1>}, {pipeline_mode = #tpu.pipeline_mode<synchronous>, transform_indices = @transform_13, window_bounds = array<i64: 8, 4>}]} {
    %c0_i32 = arith.constant 0 : i32
    %0 = arith.cmpi eq, %arg1, %c0_i32 : i32
    %1 = arith.extui %0 : i1 to i32
    %c0_i32_0 = arith.constant 0 : i32
    %2 = arith.cmpi ne, %1, %c0_i32_0 : i32
    scf.if %2 {
      %cst = arith.constant 0.000000e+00 : f32
      %20 = vector.broadcast %cst : f32 to vector<8x8x16xf32>
      %c0_14 = arith.constant 0 : index
      %c0_15 = arith.constant 0 : index
      %c0_16 = arith.constant 0 : index
      %21 = vector.load %arg16[%c0_14, %c0_15, %c0_16] : memref<8x8x16xf32, #tpu.memory_space<vmem>>, vector<8x8x16xf32>
      tpu.vector_store %arg16[%c0_14, %c0_15, %c0_16], %20 {strides = array<i32>} : memref<8x8x16xf32, #tpu.memory_space<vmem>>, vector<8x8x16xf32>,
    } else {
    }
    %3 = arith.index_cast %arg1 : i32 to index
    %4 = memref.load %arg3[%3] : memref<12xf32, #tpu.memory_space<smem>>
    %c0 = arith.constant 0 : index
    %c0_1 = arith.constant 0 : index
    %c0_2 = arith.constant 0 : index
    %5 = vector.load %arg16[%c0, %c0_1, %c0_2] : memref<8x8x16xf32, #tpu.memory_space<vmem>>, vector<2x8x16xf32>
    %c0_3 = arith.constant 0 : index
    %c0_4 = arith.constant 0 : index
    %c0_5 = arith.constant 0 : index
    %c0_6 = arith.constant 0 : index
    %6 = vector.load %arg2[%c0_3, %c0_4, %c0_5, %c0_6] : memref<2x1x8x16xf32, #tpu.memory_space<vmem>>, vector<2x1x8x16xf32>
    %7 = vector.shape_cast %6 : vector<2x1x8x16xf32> to vector<2x8x16xf32>
    %8 = vector.broadcast %4 : f32 to vector<2x8x16xf32>
    %9 = arith.mulf %8, %7 : vector<2x8x16xf32>
    %10 = arith.addf %5, %9 : vector<2x8x16xf32>
    %c0_7 = arith.constant 0 : index
    %c0_8 = arith.constant 0 : index
    %c0_9 = arith.constant 0 : index
    %11 = vector.load %arg16[%c0_7, %c0_8, %c0_9] : memref<8x8x16xf32, #tpu.memory_space<vmem>>, vector<2x8x16xf32>
    tpu.vector_store %arg16[%c0_7, %c0_8, %c0_9], %10 {strides = array<i32>} : memref<8x8x16xf32, #tpu.memory_space<vmem>>, vector<2x8x16xf32>,
    %c11_i32 = arith.constant 11 : i32
    %12 = arith.cmpi eq, %arg1, %c11_i32 : i32
    %13 = arith.extui %12 : i1 to i32
    %c0_i32_10 = arith.constant 0 : i32
    %14 = arith.cmpi ne, %13, %c0_i32_10 : i32
    scf.if %14 {
      %c0_14 = arith.constant 0 : index
      %c0_15 = arith.constant 0 : index
      %20 = vector.load %arg4[%c0_14, %c0_15] : memref<16x32xf32, #tpu.memory_space<vmem>>, vector<16x32xf32>
      %c0_16 = arith.constant 0 : index
      %c0_17 = arith.constant 0 : index
      %21 = vector.load %arg5[%c0_16, %c0_17] : memref<1x32xf32, #tpu.memory_space<vmem>>, vector<1x32xf32>
      %c0_18 = arith.constant 0 : index
      %c0_19 = arith.constant 0 : index
      %c0_20 = arith.constant 0 : index
      %22 = vector.load %arg6[%c0_18, %c0_19, %c0_20] : memref<3x32x32xf32, #tpu.memory_space<vmem>>, vector<1x32x32xf32>
      %23 = vector.shape_cast %22 : vector<1x32x32xf32> to vector<32x32xf32>
      %c1 = arith.constant 1 : index
      %c0_21 = arith.constant 0 : index
      %c0_22 = arith.constant 0 : index
      %24 = vector.load %arg6[%c1, %c0_21, %c0_22] : memref<3x32x32xf32, #tpu.memory_space<vmem>>, vector<1x32x32xf32>
      %25 = vector.shape_cast %24 : vector<1x32x32xf32> to vector<32x32xf32>
      %c2 = arith.constant 2 : index
      %c0_23 = arith.constant 0 : index
      %c0_24 = arith.constant 0 : index
      %26 = vector.load %arg6[%c2, %c0_23, %c0_24] : memref<3x32x32xf32, #tpu.memory_space<vmem>>, vector<1x32x32xf32>
      %27 = vector.shape_cast %26 : vector<1x32x32xf32> to vector<32x32xf32>
      %c0_25 = arith.constant 0 : index
      %c0_26 = arith.constant 0 : index
      %c0_27 = arith.constant 0 : index
      %28 = vector.load %arg7[%c0_25, %c0_26, %c0_27] : memref<3x1x32xf32, #tpu.memory_space<vmem>>, vector<1x1x32xf32>
      %29 = vector.shape_cast %28 : vector<1x1x32xf32> to vector<1x32xf32>
      %c1_28 = arith.constant 1 : index
      %c0_29 = arith.constant 0 : index
      %c0_30 = arith.constant 0 : index
      %30 = vector.load %arg7[%c1_28, %c0_29, %c0_30] : memref<3x1x32xf32, #tpu.memory_space<vmem>>, vector<1x1x32xf32>
      %31 = vector.shape_cast %30 : vector<1x1x32xf32> to vector<1x32xf32>
      %c2_31 = arith.constant 2 : index
      %c0_32 = arith.constant 0 : index
      %c0_33 = arith.constant 0 : index
      %32 = vector.load %arg7[%c2_31, %c0_32, %c0_33] : memref<3x1x32xf32, #tpu.memory_space<vmem>>, vector<1x1x32xf32>
      %33 = vector.shape_cast %32 : vector<1x1x32xf32> to vector<1x32xf32>
      %c8_i32 = arith.constant 8 : i32
      %34 = arith.muli %arg0, %c8_i32 : i32
      %c0_34 = arith.constant 0 : index
      %c0_35 = arith.constant 0 : index
      %c0_36 = arith.constant 0 : index
      %35 = vector.load %arg16[%c0_34, %c0_35, %c0_36] : memref<8x8x16xf32, #tpu.memory_space<vmem>>, vector<8x1x16xf32>
      %36 = vector.shape_cast %35 : vector<8x1x16xf32> to vector<8x16xf32>
      %cst = arith.constant dense<0.000000e+00> : vector<8x32xf32>
      %37 = tpu.matmul %36, %20, %cst {dimension_numbers = #tpu.dot_dimension_numbers<[1], [0], [0], [1], [0, 0, 1, 1], [], []>} : vector<8x16xf32>, vector<16x32xf32>, vector<8x32xf32> -> vector<8x32xf32>
      %38 = vector.broadcast %21 : vector<1x32xf32> to vector<8x32xf32>
      %39 = arith.addf %37, %38 : vector<8x32xf32>
      %cst_37 = arith.constant 0.000000e+00 : f32
      %40 = vector.broadcast %cst_37 : f32 to vector<8x32xf32>
      %41 = arith.maximumf %39, %40 : vector<8x32xf32>
      %cst_38 = arith.constant dense<0.000000e+00> : vector<8x32xf32>
      %42 = tpu.matmul %41, %23, %cst_38 {dimension_numbers = #tpu.dot_dimension_numbers<[1], [0], [0], [1], [0, 0, 1, 1], [], []>} : vector<8x32xf32>, vector<32x32xf32>, vector<8x32xf32> -> vector<8x32xf32>
      %43 = vector.broadcast %29 : vector<1x32xf32> to vector<8x32xf32>
      %44 = arith.addf %42, %43 : vector<8x32xf32>
      %c0_i32_39 = arith.constant 0 : i32
      %45 = arith.addi %34, %c0_i32_39 : i32
      %46 = arith.index_cast %45 : i32 to index
      %c0_40 = arith.constant 0 : index
      %c0_41 = arith.constant 0 : index
      %47 = vector.load %arg17[%46, %c0_40, %c0_41] : memref<8x8x32xf32, #tpu.memory_space<vmem>>, vector<1x8x32xf32>
      %48 = vector.shape_cast %47 : vector<1x8x32xf32> to vector<8x32xf32>
      %49 = vector.shape_cast %44 : vector<8x32xf32> to vector<1x8x32xf32>
      tpu.vector_store %arg17[%46, %c0_40, %c0_41], %49 {strides = array<i32>} : memref<8x8x32xf32, #tpu.memory_space<vmem>>, vector<1x8x32xf32>,
      %cst_42 = arith.constant dense<0.000000e+00> : vector<8x32xf32>
      %50 = tpu.matmul %41, %25, %cst_42 {dimension_numbers = #tpu.dot_dimension_numbers<[1], [0], [0], [1], [0, 0, 1, 1], [], []>} : vector<8x32xf32>, vector<32x32xf32>, vector<8x32xf32> -> vector<8x32xf32>
      %51 = vector.broadcast %31 : vector<1x32xf32> to vector<8x32xf32>
      %52 = arith.addf %50, %51 : vector<8x32xf32>
      %c0_i32_43 = arith.constant 0 : i32
      %53 = arith.addi %34, %c0_i32_43 : i32
      %54 = arith.index_cast %53 : i32 to index
      %c0_44 = arith.constant 0 : index
      %c0_45 = arith.constant 0 : index
      %55 = vector.load %arg18[%54, %c0_44, %c0_45] : memref<8x8x32xf32, #tpu.memory_space<vmem>>, vector<1x8x32xf32>
      %56 = vector.shape_cast %55 : vector<1x8x32xf32> to vector<8x32xf32>
      %57 = vector.shape_cast %52 : vector<8x32xf32> to vector<1x8x32xf32>
      tpu.vector_store %arg18[%54, %c0_44, %c0_45], %57 {strides = array<i32>} : memref<8x8x32xf32, #tpu.memory_space<vmem>>, vector<1x8x32xf32>,
      %cst_46 = arith.constant dense<0.000000e+00> : vector<8x32xf32>
      %58 = tpu.matmul %41, %27, %cst_46 {dimension_numbers = #tpu.dot_dimension_numbers<[1], [0], [0], [1], [0, 0, 1, 1], [], []>} : vector<8x32xf32>, vector<32x32xf32>, vector<8x32xf32> -> vector<8x32xf32>
      %59 = vector.broadcast %33 : vector<1x32xf32> to vector<8x32xf32>
      %60 = arith.addf %58, %59 : vector<8x32xf32>
      %c0_i32_47 = arith.constant 0 : i32
      %61 = arith.addi %34, %c0_i32_47 : i32
      %62 = arith.index_cast %61 : i32 to index
      %c0_48 = arith.constant 0 : index
      %c0_49 = arith.constant 0 : index
      %63 = vector.load %arg19[%62, %c0_48, %c0_49] : memref<8x8x32xf32, #tpu.memory_space<vmem>>, vector<1x8x32xf32>
      %64 = vector.shape_cast %63 : vector<1x8x32xf32> to vector<8x32xf32>
      %65 = vector.shape_cast %60 : vector<8x32xf32> to vector<1x8x32xf32>
      tpu.vector_store %arg19[%62, %c0_48, %c0_49], %65 {strides = array<i32>} : memref<8x8x32xf32, #tpu.memory_space<vmem>>, vector<1x8x32xf32>,
      %c0_50 = arith.constant 0 : index
      %c1_51 = arith.constant 1 : index
      %c0_52 = arith.constant 0 : index
      %66 = vector.load %arg16[%c0_50, %c1_51, %c0_52] : memref<8x8x16xf32, #tpu.memory_space<vmem>>, vector<8x1x16xf32>
      %67 = vector.shape_cast %66 : vector<8x1x16xf32> to vector<8x16xf32>
      %cst_53 = arith.constant dense<0.000000e+00> : vector<8x32xf32>
      %68 = tpu.matmul %67, %20, %cst_53 {dimension_numbers = #tpu.dot_dimension_numbers<[1], [0], [0], [1], [0, 0, 1, 1], [], []>} : vector<8x16xf32>, vector<16x32xf32>, vector<8x32xf32> -> vector<8x32xf32>
      %69 = vector.broadcast %21 : vector<1x32xf32> to vector<8x32xf32>
      %70 = arith.addf %68, %69 : vector<8x32xf32>
      %cst_54 = arith.constant 0.000000e+00 : f32
      %71 = vector.broadcast %cst_54 : f32 to vector<8x32xf32>
      %72 = arith.maximumf %70, %71 : vector<8x32xf32>
      %cst_55 = arith.constant dense<0.000000e+00> : vector<8x32xf32>
      %73 = tpu.matmul %72, %23, %cst_55 {dimension_numbers = #tpu.dot_dimension_numbers<[1], [0], [0], [1], [0, 0, 1, 1], [], []>} : vector<8x32xf32>, vector<32x32xf32>, vector<8x32xf32> -> vector<8x32xf32>
      %74 = vector.broadcast %29 : vector<1x32xf32> to vector<8x32xf32>
      %75 = arith.addf %73, %74 : vector<8x32xf32>
      %c1_i32 = arith.constant 1 : i32
      %76 = arith.addi %34, %c1_i32 : i32
      %77 = arith.index_cast %76 : i32 to index
      %c0_56 = arith.constant 0 : index
      %c0_57 = arith.constant 0 : index
      %78 = vector.load %arg17[%77, %c0_56, %c0_57] : memref<8x8x32xf32, #tpu.memory_space<vmem>>, vector<1x8x32xf32>
      %79 = vector.shape_cast %78 : vector<1x8x32xf32> to vector<8x32xf32>
      %80 = vector.shape_cast %75 : vector<8x32xf32> to vector<1x8x32xf32>
      tpu.vector_store %arg17[%77, %c0_56, %c0_57], %80 {strides = array<i32>} : memref<8x8x32xf32, #tpu.memory_space<vmem>>, vector<1x8x32xf32>,
      %cst_58 = arith.constant dense<0.000000e+00> : vector<8x32xf32>
      %81 = tpu.matmul %72, %25, %cst_58 {dimension_numbers = #tpu.dot_dimension_numbers<[1], [0], [0], [1], [0, 0, 1, 1], [], []>} : vector<8x32xf32>, vector<32x32xf32>, vector<8x32xf32> -> vector<8x32xf32>
      %82 = vector.broadcast %31 : vector<1x32xf32> to vector<8x32xf32>
      %83 = arith.addf %81, %82 : vector<8x32xf32>
      %c1_i32_59 = arith.constant 1 : i32
      %84 = arith.addi %34, %c1_i32_59 : i32
      %85 = arith.index_cast %84 : i32 to index
      %c0_60 = arith.constant 0 : index
      %c0_61 = arith.constant 0 : index
      %86 = vector.load %arg18[%85, %c0_60, %c0_61] : memref<8x8x32xf32, #tpu.memory_space<vmem>>, vector<1x8x32xf32>
      %87 = vector.shape_cast %86 : vector<1x8x32xf32> to vector<8x32xf32>
      %88 = vector.shape_cast %83 : vector<8x32xf32> to vector<1x8x32xf32>
      tpu.vector_store %arg18[%85, %c0_60, %c0_61], %88 {strides = array<i32>} : memref<8x8x32xf32, #tpu.memory_space<vmem>>, vector<1x8x32xf32>,
      %cst_62 = arith.constant dense<0.000000e+00> : vector<8x32xf32>
      %89 = tpu.matmul %72, %27, %cst_62 {dimension_numbers = #tpu.dot_dimension_numbers<[1], [0], [0], [1], [0, 0, 1, 1], [], []>} : vector<8x32xf32>, vector<32x32xf32>, vector<8x32xf32> -> vector<8x32xf32>
      %90 = vector.broadcast %33 : vector<1x32xf32> to vector<8x32xf32>
      %91 = arith.addf %89, %90 : vector<8x32xf32>
      %c1_i32_63 = arith.constant 1 : i32
      %92 = arith.addi %34, %c1_i32_63 : i32
      %93 = arith.index_cast %92 : i32 to index
      %c0_64 = arith.constant 0 : index
      %c0_65 = arith.constant 0 : index
      %94 = vector.load %arg19[%93, %c0_64, %c0_65] : memref<8x8x32xf32, #tpu.memory_space<vmem>>, vector<1x8x32xf32>
      %95 = vector.shape_cast %94 : vector<1x8x32xf32> to vector<8x32xf32>
      %96 = vector.shape_cast %91 : vector<8x32xf32> to vector<1x8x32xf32>
      tpu.vector_store %arg19[%93, %c0_64, %c0_65], %96 {strides = array<i32>} : memref<8x8x32xf32, #tpu.memory_space<vmem>>, vector<1x8x32xf32>,
      %c0_66 = arith.constant 0 : index
      %c2_67 = arith.constant 2 : index
      %c0_68 = arith.constant 0 : index
      %97 = vector.load %arg16[%c0_66, %c2_67, %c0_68] : memref<8x8x16xf32, #tpu.memory_space<vmem>>, vector<8x1x16xf32>
      %98 = vector.shape_cast %97 : vector<8x1x16xf32> to vector<8x16xf32>
      %cst_69 = arith.constant dense<0.000000e+00> : vector<8x32xf32>
      %99 = tpu.matmul %98, %20, %cst_69 {dimension_numbers = #tpu.dot_dimension_numbers<[1], [0], [0], [1], [0, 0, 1, 1], [], []>} : vector<8x16xf32>, vector<16x32xf32>, vector<8x32xf32> -> vector<8x32xf32>
      %100 = vector.broadcast %21 : vector<1x32xf32> to vector<8x32xf32>
      %101 = arith.addf %99, %100 : vector<8x32xf32>
      %cst_70 = arith.constant 0.000000e+00 : f32
      %102 = vector.broadcast %cst_70 : f32 to vector<8x32xf32>
      %103 = arith.maximumf %101, %102 : vector<8x32xf32>
      %cst_71 = arith.constant dense<0.000000e+00> : vector<8x32xf32>
      %104 = tpu.matmul %103, %23, %cst_71 {dimension_numbers = #tpu.dot_dimension_numbers<[1], [0], [0], [1], [0, 0, 1, 1], [], []>} : vector<8x32xf32>, vector<32x32xf32>, vector<8x32xf32> -> vector<8x32xf32>
      %105 = vector.broadcast %29 : vector<1x32xf32> to vector<8x32xf32>
      %106 = arith.addf %104, %105 : vector<8x32xf32>
      %c2_i32 = arith.constant 2 : i32
      %107 = arith.addi %34, %c2_i32 : i32
      %108 = arith.index_cast %107 : i32 to index
      %c0_72 = arith.constant 0 : index
      %c0_73 = arith.constant 0 : index
      %109 = vector.load %arg17[%108, %c0_72, %c0_73] : memref<8x8x32xf32, #tpu.memory_space<vmem>>, vector<1x8x32xf32>
      %110 = vector.shape_cast %109 : vector<1x8x32xf32> to vector<8x32xf32>
      %111 = vector.shape_cast %106 : vector<8x32xf32> to vector<1x8x32xf32>
      tpu.vector_store %arg17[%108, %c0_72, %c0_73], %111 {strides = array<i32>} : memref<8x8x32xf32, #tpu.memory_space<vmem>>, vector<1x8x32xf32>,
      %cst_74 = arith.constant dense<0.000000e+00> : vector<8x32xf32>
      %112 = tpu.matmul %103, %25, %cst_74 {dimension_numbers = #tpu.dot_dimension_numbers<[1], [0], [0], [1], [0, 0, 1, 1], [], []>} : vector<8x32xf32>, vector<32x32xf32>, vector<8x32xf32> -> vector<8x32xf32>
      %113 = vector.broadcast %31 : vector<1x32xf32> to vector<8x32xf32>
      %114 = arith.addf %112, %113 : vector<8x32xf32>
      %c2_i32_75 = arith.constant 2 : i32
      %115 = arith.addi %34, %c2_i32_75 : i32
      %116 = arith.index_cast %115 : i32 to index
      %c0_76 = arith.constant 0 : index
      %c0_77 = arith.constant 0 : index
      %117 = vector.load %arg18[%116, %c0_76, %c0_77] : memref<8x8x32xf32, #tpu.memory_space<vmem>>, vector<1x8x32xf32>
      %118 = vector.shape_cast %117 : vector<1x8x32xf32> to vector<8x32xf32>
      %119 = vector.shape_cast %114 : vector<8x32xf32> to vector<1x8x32xf32>
      tpu.vector_store %arg18[%116, %c0_76, %c0_77], %119 {strides = array<i32>} : memref<8x8x32xf32, #tpu.memory_space<vmem>>, vector<1x8x32xf32>,
      %cst_78 = arith.constant dense<0.000000e+00> : vector<8x32xf32>
      %120 = tpu.matmul %103, %27, %cst_78 {dimension_numbers = #tpu.dot_dimension_numbers<[1], [0], [0], [1], [0, 0, 1, 1], [], []>} : vector<8x32xf32>, vector<32x32xf32>, vector<8x32xf32> -> vector<8x32xf32>
      %121 = vector.broadcast %33 : vector<1x32xf32> to vector<8x32xf32>
      %122 = arith.addf %120, %121 : vector<8x32xf32>
      %c2_i32_79 = arith.constant 2 : i32
      %123 = arith.addi %34, %c2_i32_79 : i32
      %124 = arith.index_cast %123 : i32 to index
      %c0_80 = arith.constant 0 : index
      %c0_81 = arith.constant 0 : index
      %125 = vector.load %arg19[%124, %c0_80, %c0_81] : memref<8x8x32xf32, #tpu.memory_space<vmem>>, vector<1x8x32xf32>
      %126 = vector.shape_cast %125 : vector<1x8x32xf32> to vector<8x32xf32>
      %127 = vector.shape_cast %122 : vector<8x32xf32> to vector<1x8x32xf32>
      tpu.vector_store %arg19[%124, %c0_80, %c0_81], %127 {strides = array<i32>} : memref<8x8x32xf32, #tpu.memory_space<vmem>>, vector<1x8x32xf32>,
      %c0_82 = arith.constant 0 : index
      %c3 = arith.constant 3 : index
      %c0_83 = arith.constant 0 : index
      %128 = vector.load %arg16[%c0_82, %c3, %c0_83] : memref<8x8x16xf32, #tpu.memory_space<vmem>>, vector<8x1x16xf32>
      %129 = vector.shape_cast %128 : vector<8x1x16xf32> to vector<8x16xf32>
      %cst_84 = arith.constant dense<0.000000e+00> : vector<8x32xf32>
      %130 = tpu.matmul %129, %20, %cst_84 {dimension_numbers = #tpu.dot_dimension_numbers<[1], [0], [0], [1], [0, 0, 1, 1], [], []>} : vector<8x16xf32>, vector<16x32xf32>, vector<8x32xf32> -> vector<8x32xf32>
      %131 = vector.broadcast %21 : vector<1x32xf32> to vector<8x32xf32>
      %132 = arith.addf %130, %131 : vector<8x32xf32>
      %cst_85 = arith.constant 0.000000e+00 : f32
      %133 = vector.broadcast %cst_85 : f32 to vector<8x32xf32>
      %134 = arith.maximumf %132, %133 : vector<8x32xf32>
      %cst_86 = arith.constant dense<0.000000e+00> : vector<8x32xf32>
      %135 = tpu.matmul %134, %23, %cst_86 {dimension_numbers = #tpu.dot_dimension_numbers<[1], [0], [0], [1], [0, 0, 1, 1], [], []>} : vector<8x32xf32>, vector<32x32xf32>, vector<8x32xf32> -> vector<8x32xf32>
      %136 = vector.broadcast %29 : vector<1x32xf32> to vector<8x32xf32>
      %137 = arith.addf %135, %136 : vector<8x32xf32>
      %c3_i32 = arith.constant 3 : i32
      %138 = arith.addi %34, %c3_i32 : i32
      %139 = arith.index_cast %138 : i32 to index
      %c0_87 = arith.constant 0 : index
      %c0_88 = arith.constant 0 : index
      %140 = vector.load %arg17[%139, %c0_87, %c0_88] : memref<8x8x32xf32, #tpu.memory_space<vmem>>, vector<1x8x32xf32>
      %141 = vector.shape_cast %140 : vector<1x8x32xf32> to vector<8x32xf32>
      %142 = vector.shape_cast %137 : vector<8x32xf32> to vector<1x8x32xf32>
      tpu.vector_store %arg17[%139, %c0_87, %c0_88], %142 {strides = array<i32>} : memref<8x8x32xf32, #tpu.memory_space<vmem>>, vector<1x8x32xf32>,
      %cst_89 = arith.constant dense<0.000000e+00> : vector<8x32xf32>
      %143 = tpu.matmul %134, %25, %cst_89 {dimension_numbers = #tpu.dot_dimension_numbers<[1], [0], [0], [1], [0, 0, 1, 1], [], []>} : vector<8x32xf32>, vector<32x32xf32>, vector<8x32xf32> -> vector<8x32xf32>
      %144 = vector.broadcast %31 : vector<1x32xf32> to vector<8x32xf32>
      %145 = arith.addf %143, %144 : vector<8x32xf32>
      %c3_i32_90 = arith.constant 3 : i32
      %146 = arith.addi %34, %c3_i32_90 : i32
      %147 = arith.index_cast %146 : i32 to index
      %c0_91 = arith.constant 0 : index
      %c0_92 = arith.constant 0 : index
      %148 = vector.load %arg18[%147, %c0_91, %c0_92] : memref<8x8x32xf32, #tpu.memory_space<vmem>>, vector<1x8x32xf32>
      %149 = vector.shape_cast %148 : vector<1x8x32xf32> to vector<8x32xf32>
      %150 = vector.shape_cast %145 : vector<8x32xf32> to vector<1x8x32xf32>
      tpu.vector_store %arg18[%147, %c0_91, %c0_92], %150 {strides = array<i32>} : memref<8x8x32xf32, #tpu.memory_space<vmem>>, vector<1x8x32xf32>,
      %cst_93 = arith.constant dense<0.000000e+00> : vector<8x32xf32>
      %151 = tpu.matmul %134, %27, %cst_93 {dimension_numbers = #tpu.dot_dimension_numbers<[1], [0], [0], [1], [0, 0, 1, 1], [], []>} : vector<8x32xf32>, vector<32x32xf32>, vector<8x32xf32> -> vector<8x32xf32>
      %152 = vector.broadcast %33 : vector<1x32xf32> to vector<8x32xf32>
      %153 = arith.addf %151, %152 : vector<8x32xf32>
      %c3_i32_94 = arith.constant 3 : i32
      %154 = arith.addi %34, %c3_i32_94 : i32
      %155 = arith.index_cast %154 : i32 to index
      %c0_95 = arith.constant 0 : index
      %c0_96 = arith.constant 0 : index
      %156 = vector.load %arg19[%155, %c0_95, %c0_96] : memref<8x8x32xf32, #tpu.memory_space<vmem>>, vector<1x8x32xf32>
      %157 = vector.shape_cast %156 : vector<1x8x32xf32> to vector<8x32xf32>
      %158 = vector.shape_cast %153 : vector<8x32xf32> to vector<1x8x32xf32>
      tpu.vector_store %arg19[%155, %c0_95, %c0_96], %158 {strides = array<i32>} : memref<8x8x32xf32, #tpu.memory_space<vmem>>, vector<1x8x32xf32>,
      %c0_97 = arith.constant 0 : index
      %c4 = arith.constant 4 : index
      %c0_98 = arith.constant 0 : index
      %159 = vector.load %arg16[%c0_97, %c4, %c0_98] : memref<8x8x16xf32, #tpu.memory_space<vmem>>, vector<8x1x16xf32>
      %160 = vector.shape_cast %159 : vector<8x1x16xf32> to vector<8x16xf32>
      %cst_99 = arith.constant dense<0.000000e+00> : vector<8x32xf32>
      %161 = tpu.matmul %160, %20, %cst_99 {dimension_numbers = #tpu.dot_dimension_numbers<[1], [0], [0], [1], [0, 0, 1, 1], [], []>} : vector<8x16xf32>, vector<16x32xf32>, vector<8x32xf32> -> vector<8x32xf32>
      %162 = vector.broadcast %21 : vector<1x32xf32> to vector<8x32xf32>
      %163 = arith.addf %161, %162 : vector<8x32xf32>
      %cst_100 = arith.constant 0.000000e+00 : f32
      %164 = vector.broadcast %cst_100 : f32 to vector<8x32xf32>
      %165 = arith.maximumf %163, %164 : vector<8x32xf32>
      %cst_101 = arith.constant dense<0.000000e+00> : vector<8x32xf32>
      %166 = tpu.matmul %165, %23, %cst_101 {dimension_numbers = #tpu.dot_dimension_numbers<[1], [0], [0], [1], [0, 0, 1, 1], [], []>} : vector<8x32xf32>, vector<32x32xf32>, vector<8x32xf32> -> vector<8x32xf32>
      %167 = vector.broadcast %29 : vector<1x32xf32> to vector<8x32xf32>
      %168 = arith.addf %166, %167 : vector<8x32xf32>
      %c4_i32 = arith.constant 4 : i32
      %169 = arith.addi %34, %c4_i32 : i32
      %170 = arith.index_cast %169 : i32 to index
      %c0_102 = arith.constant 0 : index
      %c0_103 = arith.constant 0 : index
      %171 = vector.load %arg17[%170, %c0_102, %c0_103] : memref<8x8x32xf32, #tpu.memory_space<vmem>>, vector<1x8x32xf32>
      %172 = vector.shape_cast %171 : vector<1x8x32xf32> to vector<8x32xf32>
      %173 = vector.shape_cast %168 : vector<8x32xf32> to vector<1x8x32xf32>
      tpu.vector_store %arg17[%170, %c0_102, %c0_103], %173 {strides = array<i32>} : memref<8x8x32xf32, #tpu.memory_space<vmem>>, vector<1x8x32xf32>,
      %cst_104 = arith.constant dense<0.000000e+00> : vector<8x32xf32>
      %174 = tpu.matmul %165, %25, %cst_104 {dimension_numbers = #tpu.dot_dimension_numbers<[1], [0], [0], [1], [0, 0, 1, 1], [], []>} : vector<8x32xf32>, vector<32x32xf32>, vector<8x32xf32> -> vector<8x32xf32>
      %175 = vector.broadcast %31 : vector<1x32xf32> to vector<8x32xf32>
      %176 = arith.addf %174, %175 : vector<8x32xf32>
      %c4_i32_105 = arith.constant 4 : i32
      %177 = arith.addi %34, %c4_i32_105 : i32
      %178 = arith.index_cast %177 : i32 to index
      %c0_106 = arith.constant 0 : index
      %c0_107 = arith.constant 0 : index
      %179 = vector.load %arg18[%178, %c0_106, %c0_107] : memref<8x8x32xf32, #tpu.memory_space<vmem>>, vector<1x8x32xf32>
      %180 = vector.shape_cast %179 : vector<1x8x32xf32> to vector<8x32xf32>
      %181 = vector.shape_cast %176 : vector<8x32xf32> to vector<1x8x32xf32>
      tpu.vector_store %arg18[%178, %c0_106, %c0_107], %181 {strides = array<i32>} : memref<8x8x32xf32, #tpu.memory_space<vmem>>, vector<1x8x32xf32>,
      %cst_108 = arith.constant dense<0.000000e+00> : vector<8x32xf32>
      %182 = tpu.matmul %165, %27, %cst_108 {dimension_numbers = #tpu.dot_dimension_numbers<[1], [0], [0], [1], [0, 0, 1, 1], [], []>} : vector<8x32xf32>, vector<32x32xf32>, vector<8x32xf32> -> vector<8x32xf32>
      %183 = vector.broadcast %33 : vector<1x32xf32> to vector<8x32xf32>
      %184 = arith.addf %182, %183 : vector<8x32xf32>
      %c4_i32_109 = arith.constant 4 : i32
      %185 = arith.addi %34, %c4_i32_109 : i32
      %186 = arith.index_cast %185 : i32 to index
      %c0_110 = arith.constant 0 : index
      %c0_111 = arith.constant 0 : index
      %187 = vector.load %arg19[%186, %c0_110, %c0_111] : memref<8x8x32xf32, #tpu.memory_space<vmem>>, vector<1x8x32xf32>
      %188 = vector.shape_cast %187 : vector<1x8x32xf32> to vector<8x32xf32>
      %189 = vector.shape_cast %184 : vector<8x32xf32> to vector<1x8x32xf32>
      tpu.vector_store %arg19[%186, %c0_110, %c0_111], %189 {strides = array<i32>} : memref<8x8x32xf32, #tpu.memory_space<vmem>>, vector<1x8x32xf32>,
      %c0_112 = arith.constant 0 : index
      %c5 = arith.constant 5 : index
      %c0_113 = arith.constant 0 : index
      %190 = vector.load %arg16[%c0_112, %c5, %c0_113] : memref<8x8x16xf32, #tpu.memory_space<vmem>>, vector<8x1x16xf32>
      %191 = vector.shape_cast %190 : vector<8x1x16xf32> to vector<8x16xf32>
      %cst_114 = arith.constant dense<0.000000e+00> : vector<8x32xf32>
      %192 = tpu.matmul %191, %20, %cst_114 {dimension_numbers = #tpu.dot_dimension_numbers<[1], [0], [0], [1], [0, 0, 1, 1], [], []>} : vector<8x16xf32>, vector<16x32xf32>, vector<8x32xf32> -> vector<8x32xf32>
      %193 = vector.broadcast %21 : vector<1x32xf32> to vector<8x32xf32>
      %194 = arith.addf %192, %193 : vector<8x32xf32>
      %cst_115 = arith.constant 0.000000e+00 : f32
      %195 = vector.broadcast %cst_115 : f32 to vector<8x32xf32>
      %196 = arith.maximumf %194, %195 : vector<8x32xf32>
      %cst_116 = arith.constant dense<0.000000e+00> : vector<8x32xf32>
      %197 = tpu.matmul %196, %23, %cst_116 {dimension_numbers = #tpu.dot_dimension_numbers<[1], [0], [0], [1], [0, 0, 1, 1], [], []>} : vector<8x32xf32>, vector<32x32xf32>, vector<8x32xf32> -> vector<8x32xf32>
      %198 = vector.broadcast %29 : vector<1x32xf32> to vector<8x32xf32>
      %199 = arith.addf %197, %198 : vector<8x32xf32>
      %c5_i32 = arith.constant 5 : i32
      %200 = arith.addi %34, %c5_i32 : i32
      %201 = arith.index_cast %200 : i32 to index
      %c0_117 = arith.constant 0 : index
      %c0_118 = arith.constant 0 : index
      %202 = vector.load %arg17[%201, %c0_117, %c0_118] : memref<8x8x32xf32, #tpu.memory_space<vmem>>, vector<1x8x32xf32>
      %203 = vector.shape_cast %202 : vector<1x8x32xf32> to vector<8x32xf32>
      %204 = vector.shape_cast %199 : vector<8x32xf32> to vector<1x8x32xf32>
      tpu.vector_store %arg17[%201, %c0_117, %c0_118], %204 {strides = array<i32>} : memref<8x8x32xf32, #tpu.memory_space<vmem>>, vector<1x8x32xf32>,
      %cst_119 = arith.constant dense<0.000000e+00> : vector<8x32xf32>
      %205 = tpu.matmul %196, %25, %cst_119 {dimension_numbers = #tpu.dot_dimension_numbers<[1], [0], [0], [1], [0, 0, 1, 1], [], []>} : vector<8x32xf32>, vector<32x32xf32>, vector<8x32xf32> -> vector<8x32xf32>
      %206 = vector.broadcast %31 : vector<1x32xf32> to vector<8x32xf32>
      %207 = arith.addf %205, %206 : vector<8x32xf32>
      %c5_i32_120 = arith.constant 5 : i32
      %208 = arith.addi %34, %c5_i32_120 : i32
      %209 = arith.index_cast %208 : i32 to index
      %c0_121 = arith.constant 0 : index
      %c0_122 = arith.constant 0 : index
      %210 = vector.load %arg18[%209, %c0_121, %c0_122] : memref<8x8x32xf32, #tpu.memory_space<vmem>>, vector<1x8x32xf32>
      %211 = vector.shape_cast %210 : vector<1x8x32xf32> to vector<8x32xf32>
      %212 = vector.shape_cast %207 : vector<8x32xf32> to vector<1x8x32xf32>
      tpu.vector_store %arg18[%209, %c0_121, %c0_122], %212 {strides = array<i32>} : memref<8x8x32xf32, #tpu.memory_space<vmem>>, vector<1x8x32xf32>,
      %cst_123 = arith.constant dense<0.000000e+00> : vector<8x32xf32>
      %213 = tpu.matmul %196, %27, %cst_123 {dimension_numbers = #tpu.dot_dimension_numbers<[1], [0], [0], [1], [0, 0, 1, 1], [], []>} : vector<8x32xf32>, vector<32x32xf32>, vector<8x32xf32> -> vector<8x32xf32>
      %214 = vector.broadcast %33 : vector<1x32xf32> to vector<8x32xf32>
      %215 = arith.addf %213, %214 : vector<8x32xf32>
      %c5_i32_124 = arith.constant 5 : i32
      %216 = arith.addi %34, %c5_i32_124 : i32
      %217 = arith.index_cast %216 : i32 to index
      %c0_125 = arith.constant 0 : index
      %c0_126 = arith.constant 0 : index
      %218 = vector.load %arg19[%217, %c0_125, %c0_126] : memref<8x8x32xf32, #tpu.memory_space<vmem>>, vector<1x8x32xf32>
      %219 = vector.shape_cast %218 : vector<1x8x32xf32> to vector<8x32xf32>
      %220 = vector.shape_cast %215 : vector<8x32xf32> to vector<1x8x32xf32>
      tpu.vector_store %arg19[%217, %c0_125, %c0_126], %220 {strides = array<i32>} : memref<8x8x32xf32, #tpu.memory_space<vmem>>, vector<1x8x32xf32>,
      %c0_127 = arith.constant 0 : index
      %c6 = arith.constant 6 : index
      %c0_128 = arith.constant 0 : index
      %221 = vector.load %arg16[%c0_127, %c6, %c0_128] : memref<8x8x16xf32, #tpu.memory_space<vmem>>, vector<8x1x16xf32>
      %222 = vector.shape_cast %221 : vector<8x1x16xf32> to vector<8x16xf32>
      %cst_129 = arith.constant dense<0.000000e+00> : vector<8x32xf32>
      %223 = tpu.matmul %222, %20, %cst_129 {dimension_numbers = #tpu.dot_dimension_numbers<[1], [0], [0], [1], [0, 0, 1, 1], [], []>} : vector<8x16xf32>, vector<16x32xf32>, vector<8x32xf32> -> vector<8x32xf32>
      %224 = vector.broadcast %21 : vector<1x32xf32> to vector<8x32xf32>
      %225 = arith.addf %223, %224 : vector<8x32xf32>
      %cst_130 = arith.constant 0.000000e+00 : f32
      %226 = vector.broadcast %cst_130 : f32 to vector<8x32xf32>
      %227 = arith.maximumf %225, %226 : vector<8x32xf32>
      %cst_131 = arith.constant dense<0.000000e+00> : vector<8x32xf32>
      %228 = tpu.matmul %227, %23, %cst_131 {dimension_numbers = #tpu.dot_dimension_numbers<[1], [0], [0], [1], [0, 0, 1, 1], [], []>} : vector<8x32xf32>, vector<32x32xf32>, vector<8x32xf32> -> vector<8x32xf32>
      %229 = vector.broadcast %29 : vector<1x32xf32> to vector<8x32xf32>
      %230 = arith.addf %228, %229 : vector<8x32xf32>
      %c6_i32 = arith.constant 6 : i32
      %231 = arith.addi %34, %c6_i32 : i32
      %232 = arith.index_cast %231 : i32 to index
      %c0_132 = arith.constant 0 : index
      %c0_133 = arith.constant 0 : index
      %233 = vector.load %arg17[%232, %c0_132, %c0_133] : memref<8x8x32xf32, #tpu.memory_space<vmem>>, vector<1x8x32xf32>
      %234 = vector.shape_cast %233 : vector<1x8x32xf32> to vector<8x32xf32>
      %235 = vector.shape_cast %230 : vector<8x32xf32> to vector<1x8x32xf32>
      tpu.vector_store %arg17[%232, %c0_132, %c0_133], %235 {strides = array<i32>} : memref<8x8x32xf32, #tpu.memory_space<vmem>>, vector<1x8x32xf32>,
      %cst_134 = arith.constant dense<0.000000e+00> : vector<8x32xf32>
      %236 = tpu.matmul %227, %25, %cst_134 {dimension_numbers = #tpu.dot_dimension_numbers<[1], [0], [0], [1], [0, 0, 1, 1], [], []>} : vector<8x32xf32>, vector<32x32xf32>, vector<8x32xf32> -> vector<8x32xf32>
      %237 = vector.broadcast %31 : vector<1x32xf32> to vector<8x32xf32>
      %238 = arith.addf %236, %237 : vector<8x32xf32>
      %c6_i32_135 = arith.constant 6 : i32
      %239 = arith.addi %34, %c6_i32_135 : i32
      %240 = arith.index_cast %239 : i32 to index
      %c0_136 = arith.constant 0 : index
      %c0_137 = arith.constant 0 : index
      %241 = vector.load %arg18[%240, %c0_136, %c0_137] : memref<8x8x32xf32, #tpu.memory_space<vmem>>, vector<1x8x32xf32>
      %242 = vector.shape_cast %241 : vector<1x8x32xf32> to vector<8x32xf32>
      %243 = vector.shape_cast %238 : vector<8x32xf32> to vector<1x8x32xf32>
      tpu.vector_store %arg18[%240, %c0_136, %c0_137], %243 {strides = array<i32>} : memref<8x8x32xf32, #tpu.memory_space<vmem>>, vector<1x8x32xf32>,
      %cst_138 = arith.constant dense<0.000000e+00> : vector<8x32xf32>
      %244 = tpu.matmul %227, %27, %cst_138 {dimension_numbers = #tpu.dot_dimension_numbers<[1], [0], [0], [1], [0, 0, 1, 1], [], []>} : vector<8x32xf32>, vector<32x32xf32>, vector<8x32xf32> -> vector<8x32xf32>
      %245 = vector.broadcast %33 : vector<1x32xf32> to vector<8x32xf32>
      %246 = arith.addf %244, %245 : vector<8x32xf32>
      %c6_i32_139 = arith.constant 6 : i32
      %247 = arith.addi %34, %c6_i32_139 : i32
      %248 = arith.index_cast %247 : i32 to index
      %c0_140 = arith.constant 0 : index
      %c0_141 = arith.constant 0 : index
      %249 = vector.load %arg19[%248, %c0_140, %c0_141] : memref<8x8x32xf32, #tpu.memory_space<vmem>>, vector<1x8x32xf32>
      %250 = vector.shape_cast %249 : vector<1x8x32xf32> to vector<8x32xf32>
      %251 = vector.shape_cast %246 : vector<8x32xf32> to vector<1x8x32xf32>
      tpu.vector_store %arg19[%248, %c0_140, %c0_141], %251 {strides = array<i32>} : memref<8x8x32xf32, #tpu.memory_space<vmem>>, vector<1x8x32xf32>,
      %c0_142 = arith.constant 0 : index
      %c7 = arith.constant 7 : index
      %c0_143 = arith.constant 0 : index
      %252 = vector.load %arg16[%c0_142, %c7, %c0_143] : memref<8x8x16xf32, #tpu.memory_space<vmem>>, vector<8x1x16xf32>
      %253 = vector.shape_cast %252 : vector<8x1x16xf32> to vector<8x16xf32>
      %cst_144 = arith.constant dense<0.000000e+00> : vector<8x32xf32>
      %254 = tpu.matmul %253, %20, %cst_144 {dimension_numbers = #tpu.dot_dimension_numbers<[1], [0], [0], [1], [0, 0, 1, 1], [], []>} : vector<8x16xf32>, vector<16x32xf32>, vector<8x32xf32> -> vector<8x32xf32>
      %255 = vector.broadcast %21 : vector<1x32xf32> to vector<8x32xf32>
      %256 = arith.addf %254, %255 : vector<8x32xf32>
      %cst_145 = arith.constant 0.000000e+00 : f32
      %257 = vector.broadcast %cst_145 : f32 to vector<8x32xf32>
      %258 = arith.maximumf %256, %257 : vector<8x32xf32>
      %cst_146 = arith.constant dense<0.000000e+00> : vector<8x32xf32>
      %259 = tpu.matmul %258, %23, %cst_146 {dimension_numbers = #tpu.dot_dimension_numbers<[1], [0], [0], [1], [0, 0, 1, 1], [], []>} : vector<8x32xf32>, vector<32x32xf32>, vector<8x32xf32> -> vector<8x32xf32>
      %260 = vector.broadcast %29 : vector<1x32xf32> to vector<8x32xf32>
      %261 = arith.addf %259, %260 : vector<8x32xf32>
      %c7_i32 = arith.constant 7 : i32
      %262 = arith.addi %34, %c7_i32 : i32
      %263 = arith.index_cast %262 : i32 to index
      %c0_147 = arith.constant 0 : index
      %c0_148 = arith.constant 0 : index
      %264 = vector.load %arg17[%263, %c0_147, %c0_148] : memref<8x8x32xf32, #tpu.memory_space<vmem>>, vector<1x8x32xf32>
      %265 = vector.shape_cast %264 : vector<1x8x32xf32> to vector<8x32xf32>
      %266 = vector.shape_cast %261 : vector<8x32xf32> to vector<1x8x32xf32>
      tpu.vector_store %arg17[%263, %c0_147, %c0_148], %266 {strides = array<i32>} : memref<8x8x32xf32, #tpu.memory_space<vmem>>, vector<1x8x32xf32>,
      %cst_149 = arith.constant dense<0.000000e+00> : vector<8x32xf32>
      %267 = tpu.matmul %258, %25, %cst_149 {dimension_numbers = #tpu.dot_dimension_numbers<[1], [0], [0], [1], [0, 0, 1, 1], [], []>} : vector<8x32xf32>, vector<32x32xf32>, vector<8x32xf32> -> vector<8x32xf32>
      %268 = vector.broadcast %31 : vector<1x32xf32> to vector<8x32xf32>
      %269 = arith.addf %267, %268 : vector<8x32xf32>
      %c7_i32_150 = arith.constant 7 : i32
      %270 = arith.addi %34, %c7_i32_150 : i32
      %271 = arith.index_cast %270 : i32 to index
      %c0_151 = arith.constant 0 : index
      %c0_152 = arith.constant 0 : index
      %272 = vector.load %arg18[%271, %c0_151, %c0_152] : memref<8x8x32xf32, #tpu.memory_space<vmem>>, vector<1x8x32xf32>
      %273 = vector.shape_cast %272 : vector<1x8x32xf32> to vector<8x32xf32>
      %274 = vector.shape_cast %269 : vector<8x32xf32> to vector<1x8x32xf32>
      tpu.vector_store %arg18[%271, %c0_151, %c0_152], %274 {strides = array<i32>} : memref<8x8x32xf32, #tpu.memory_space<vmem>>, vector<1x8x32xf32>,
      %cst_153 = arith.constant dense<0.000000e+00> : vector<8x32xf32>
      %275 = tpu.matmul %258, %27, %cst_153 {dimension_numbers = #tpu.dot_dimension_numbers<[1], [0], [0], [1], [0, 0, 1, 1], [], []>} : vector<8x32xf32>, vector<32x32xf32>, vector<8x32xf32> -> vector<8x32xf32>
      %276 = vector.broadcast %33 : vector<1x32xf32> to vector<8x32xf32>
      %277 = arith.addf %275, %276 : vector<8x32xf32>
      %c7_i32_154 = arith.constant 7 : i32
      %278 = arith.addi %34, %c7_i32_154 : i32
      %279 = arith.index_cast %278 : i32 to index
      %c0_155 = arith.constant 0 : index
      %c0_156 = arith.constant 0 : index
      %280 = vector.load %arg19[%279, %c0_155, %c0_156] : memref<8x8x32xf32, #tpu.memory_space<vmem>>, vector<1x8x32xf32>
      %281 = vector.shape_cast %280 : vector<1x8x32xf32> to vector<8x32xf32>
      %282 = vector.shape_cast %277 : vector<8x32xf32> to vector<1x8x32xf32>
      tpu.vector_store %arg19[%279, %c0_155, %c0_156], %282 {strides = array<i32>} : memref<8x8x32xf32, #tpu.memory_space<vmem>>, vector<1x8x32xf32>,
    } else {
    }
    %c0_i32_11 = arith.constant 0 : i32
    %15 = arith.cmpi eq, %arg0, %c0_i32_11 : i32
    %c11_i32_12 = arith.constant 11 : i32
    %16 = arith.cmpi eq, %arg1, %c11_i32_12 : i32
    %17 = arith.andi %15, %16 : i1
    %18 = arith.extui %17 : i1 to i32
    %c0_i32_13 = arith.constant 0 : i32
    %19 = arith.cmpi ne, %18, %c0_i32_13 : i32
    scf.if %19 {
      %c0_14 = arith.constant 0 : index
      %c0_15 = arith.constant 0 : index
      %c0_16 = arith.constant 0 : index
      %20 = vector.load %arg8[%c0_14, %c0_15, %c0_16] : memref<3x32x32xf32, #tpu.memory_space<vmem>>, vector<1x32x32xf32>
      %21 = vector.shape_cast %20 : vector<1x32x32xf32> to vector<32x32xf32>
      %c1 = arith.constant 1 : index
      %c0_17 = arith.constant 0 : index
      %c0_18 = arith.constant 0 : index
      %22 = vector.load %arg8[%c1, %c0_17, %c0_18] : memref<3x32x32xf32, #tpu.memory_space<vmem>>, vector<1x32x32xf32>
      %23 = vector.shape_cast %22 : vector<1x32x32xf32> to vector<32x32xf32>
      %c2 = arith.constant 2 : index
      %c0_19 = arith.constant 0 : index
      %c0_20 = arith.constant 0 : index
      %24 = vector.load %arg8[%c2, %c0_19, %c0_20] : memref<3x32x32xf32, #tpu.memory_space<vmem>>, vector<1x32x32xf32>
      %25 = vector.shape_cast %24 : vector<1x32x32xf32> to vector<32x32xf32>
      %c0_21 = arith.constant 0 : index
      %c0_22 = arith.constant 0 : index
      %26 = vector.load %arg9[%c0_21, %c0_22] : memref<1x32xf32, #tpu.memory_space<vmem>>, vector<1x32xf32>
      %cst = arith.constant 0.000000e+00 : f32
      %27 = vector.broadcast %cst : f32 to vector<8x32xf32>
      %c0_i32_23 = arith.constant 0 : i32
      %cst_24 = arith.constant dense<0.000000e+00> : vector<8x32xf32>
      %28 = tpu.matmul %27, %21, %cst_24 {dimension_numbers = #tpu.dot_dimension_numbers<[1], [0], [0], [1], [0, 0, 1, 1], [], []>} : vector<8x32xf32>, vector<32x32xf32>, vector<8x32xf32> -> vector<8x32xf32>
      %cst_25 = arith.constant dense<0.000000e+00> : vector<8x32xf32>
      %29 = tpu.matmul %27, %23, %cst_25 {dimension_numbers = #tpu.dot_dimension_numbers<[1], [0], [0], [1], [0, 0, 1, 1], [], []>} : vector<8x32xf32>, vector<32x32xf32>, vector<8x32xf32> -> vector<8x32xf32>
      %cst_26 = arith.constant dense<0.000000e+00> : vector<8x32xf32>
      %30 = tpu.matmul %27, %25, %cst_26 {dimension_numbers = #tpu.dot_dimension_numbers<[1], [0], [0], [1], [0, 0, 1, 1], [], []>} : vector<8x32xf32>, vector<32x32xf32>, vector<8x32xf32> -> vector<8x32xf32>
      %31 = vector.broadcast %26 : vector<1x32xf32> to vector<8x32xf32>
      %32 = arith.addf %30, %31 : vector<8x32xf32>
      %33 = arith.index_cast %c0_i32_23 : i32 to index
      %c0_27 = arith.constant 0 : index
      %c0_28 = arith.constant 0 : index
      %34 = vector.load %arg17[%33, %c0_27, %c0_28] : memref<8x8x32xf32, #tpu.memory_space<vmem>>, vector<1x8x32xf32>
      %35 = vector.shape_cast %34 : vector<1x8x32xf32> to vector<8x32xf32>
      %36 = arith.addf %35, %28 : vector<8x32xf32>
      %37 = arith.negf %36 : vector<8x32xf32>
      %38 = math.exp %37 : vector<8x32xf32>
      %cst_29 = arith.constant 1.000000e+00 : f32
      %39 = vector.broadcast %cst_29 : f32 to vector<8x32xf32>
      %40 = arith.addf %39, %38 : vector<8x32xf32>
      %41 = arith.divf %39, %40 : vector<8x32xf32>
      %42 = arith.index_cast %c0_i32_23 : i32 to index
      %c0_30 = arith.constant 0 : index
      %c0_31 = arith.constant 0 : index
      %43 = vector.load %arg18[%42, %c0_30, %c0_31] : memref<8x8x32xf32, #tpu.memory_space<vmem>>, vector<1x8x32xf32>
      %44 = vector.shape_cast %43 : vector<1x8x32xf32> to vector<8x32xf32>
      %45 = arith.addf %44, %29 : vector<8x32xf32>
      %46 = arith.negf %45 : vector<8x32xf32>
      %47 = math.exp %46 : vector<8x32xf32>
      %cst_32 = arith.constant 1.000000e+00 : f32
      %48 = vector.broadcast %cst_32 : f32 to vector<8x32xf32>
      %49 = arith.addf %48, %47 : vector<8x32xf32>
      %50 = arith.divf %48, %49 : vector<8x32xf32>
      %51 = arith.index_cast %c0_i32_23 : i32 to index
      %c0_33 = arith.constant 0 : index
      %c0_34 = arith.constant 0 : index
      %52 = vector.load %arg19[%51, %c0_33, %c0_34] : memref<8x8x32xf32, #tpu.memory_space<vmem>>, vector<1x8x32xf32>
      %53 = vector.shape_cast %52 : vector<1x8x32xf32> to vector<8x32xf32>
      %54 = arith.mulf %41, %32 : vector<8x32xf32>
      %55 = arith.addf %53, %54 : vector<8x32xf32>
      %56 = math.tanh %55 : vector<8x32xf32>
      %57 = arith.subf %27, %56 : vector<8x32xf32>
      %58 = arith.mulf %50, %57 : vector<8x32xf32>
      %59 = arith.addf %56, %58 : vector<8x32xf32>
      %60 = arith.index_cast %c0_i32_23 : i32 to index
      %c0_35 = arith.constant 0 : index
      %c0_36 = arith.constant 0 : index
      %61 = vector.load %arg14[%60, %c0_35, %c0_36] : memref<8x8x1xf32, #tpu.memory_space<vmem>>, vector<1x8x1xf32>
      %62 = vector.shape_cast %61 : vector<1x8x1xf32> to vector<8x1xf32>
      %63 = arith.subf %59, %27 : vector<8x32xf32>
      %64 = vector.broadcast %62 : vector<8x1xf32> to vector<8x32xf32>
      %65 = arith.mulf %64, %63 : vector<8x32xf32>
      %66 = arith.addf %27, %65 : vector<8x32xf32>
      %c1_i32 = arith.constant 1 : i32
      %cst_37 = arith.constant dense<0.000000e+00> : vector<8x32xf32>
      %67 = tpu.matmul %66, %21, %cst_37 {dimension_numbers = #tpu.dot_dimension_numbers<[1], [0], [0], [1], [0, 0, 1, 1], [], []>} : vector<8x32xf32>, vector<32x32xf32>, vector<8x32xf32> -> vector<8x32xf32>
      %cst_38 = arith.constant dense<0.000000e+00> : vector<8x32xf32>
      %68 = tpu.matmul %66, %23, %cst_38 {dimension_numbers = #tpu.dot_dimension_numbers<[1], [0], [0], [1], [0, 0, 1, 1], [], []>} : vector<8x32xf32>, vector<32x32xf32>, vector<8x32xf32> -> vector<8x32xf32>
      %cst_39 = arith.constant dense<0.000000e+00> : vector<8x32xf32>
      %69 = tpu.matmul %66, %25, %cst_39 {dimension_numbers = #tpu.dot_dimension_numbers<[1], [0], [0], [1], [0, 0, 1, 1], [], []>} : vector<8x32xf32>, vector<32x32xf32>, vector<8x32xf32> -> vector<8x32xf32>
      %70 = vector.broadcast %26 : vector<1x32xf32> to vector<8x32xf32>
      %71 = arith.addf %69, %70 : vector<8x32xf32>
      %72 = arith.index_cast %c1_i32 : i32 to index
      %c0_40 = arith.constant 0 : index
      %c0_41 = arith.constant 0 : index
      %73 = vector.load %arg17[%72, %c0_40, %c0_41] : memref<8x8x32xf32, #tpu.memory_space<vmem>>, vector<1x8x32xf32>
      %74 = vector.shape_cast %73 : vector<1x8x32xf32> to vector<8x32xf32>
      %75 = arith.addf %74, %67 : vector<8x32xf32>
      %76 = arith.negf %75 : vector<8x32xf32>
      %77 = math.exp %76 : vector<8x32xf32>
      %cst_42 = arith.constant 1.000000e+00 : f32
      %78 = vector.broadcast %cst_42 : f32 to vector<8x32xf32>
      %79 = arith.addf %78, %77 : vector<8x32xf32>
      %80 = arith.divf %78, %79 : vector<8x32xf32>
      %81 = arith.index_cast %c1_i32 : i32 to index
      %c0_43 = arith.constant 0 : index
      %c0_44 = arith.constant 0 : index
      %82 = vector.load %arg18[%81, %c0_43, %c0_44] : memref<8x8x32xf32, #tpu.memory_space<vmem>>, vector<1x8x32xf32>
      %83 = vector.shape_cast %82 : vector<1x8x32xf32> to vector<8x32xf32>
      %84 = arith.addf %83, %68 : vector<8x32xf32>
      %85 = arith.negf %84 : vector<8x32xf32>
      %86 = math.exp %85 : vector<8x32xf32>
      %cst_45 = arith.constant 1.000000e+00 : f32
      %87 = vector.broadcast %cst_45 : f32 to vector<8x32xf32>
      %88 = arith.addf %87, %86 : vector<8x32xf32>
      %89 = arith.divf %87, %88 : vector<8x32xf32>
      %90 = arith.index_cast %c1_i32 : i32 to index
      %c0_46 = arith.constant 0 : index
      %c0_47 = arith.constant 0 : index
      %91 = vector.load %arg19[%90, %c0_46, %c0_47] : memref<8x8x32xf32, #tpu.memory_space<vmem>>, vector<1x8x32xf32>
      %92 = vector.shape_cast %91 : vector<1x8x32xf32> to vector<8x32xf32>
      %93 = arith.mulf %80, %71 : vector<8x32xf32>
      %94 = arith.addf %92, %93 : vector<8x32xf32>
      %95 = math.tanh %94 : vector<8x32xf32>
      %96 = arith.subf %66, %95 : vector<8x32xf32>
      %97 = arith.mulf %89, %96 : vector<8x32xf32>
      %98 = arith.addf %95, %97 : vector<8x32xf32>
      %99 = arith.index_cast %c1_i32 : i32 to index
      %c0_48 = arith.constant 0 : index
      %c0_49 = arith.constant 0 : index
      %100 = vector.load %arg14[%99, %c0_48, %c0_49] : memref<8x8x1xf32, #tpu.memory_space<vmem>>, vector<1x8x1xf32>
      %101 = vector.shape_cast %100 : vector<1x8x1xf32> to vector<8x1xf32>
      %102 = arith.subf %98, %66 : vector<8x32xf32>
      %103 = vector.broadcast %101 : vector<8x1xf32> to vector<8x32xf32>
      %104 = arith.mulf %103, %102 : vector<8x32xf32>
      %105 = arith.addf %66, %104 : vector<8x32xf32>
      %c2_i32 = arith.constant 2 : i32
      %cst_50 = arith.constant dense<0.000000e+00> : vector<8x32xf32>
      %106 = tpu.matmul %105, %21, %cst_50 {dimension_numbers = #tpu.dot_dimension_numbers<[1], [0], [0], [1], [0, 0, 1, 1], [], []>} : vector<8x32xf32>, vector<32x32xf32>, vector<8x32xf32> -> vector<8x32xf32>
      %cst_51 = arith.constant dense<0.000000e+00> : vector<8x32xf32>
      %107 = tpu.matmul %105, %23, %cst_51 {dimension_numbers = #tpu.dot_dimension_numbers<[1], [0], [0], [1], [0, 0, 1, 1], [], []>} : vector<8x32xf32>, vector<32x32xf32>, vector<8x32xf32> -> vector<8x32xf32>
      %cst_52 = arith.constant dense<0.000000e+00> : vector<8x32xf32>
      %108 = tpu.matmul %105, %25, %cst_52 {dimension_numbers = #tpu.dot_dimension_numbers<[1], [0], [0], [1], [0, 0, 1, 1], [], []>} : vector<8x32xf32>, vector<32x32xf32>, vector<8x32xf32> -> vector<8x32xf32>
      %109 = vector.broadcast %26 : vector<1x32xf32> to vector<8x32xf32>
      %110 = arith.addf %108, %109 : vector<8x32xf32>
      %111 = arith.index_cast %c2_i32 : i32 to index
      %c0_53 = arith.constant 0 : index
      %c0_54 = arith.constant 0 : index
      %112 = vector.load %arg17[%111, %c0_53, %c0_54] : memref<8x8x32xf32, #tpu.memory_space<vmem>>, vector<1x8x32xf32>
      %113 = vector.shape_cast %112 : vector<1x8x32xf32> to vector<8x32xf32>
      %114 = arith.addf %113, %106 : vector<8x32xf32>
      %115 = arith.negf %114 : vector<8x32xf32>
      %116 = math.exp %115 : vector<8x32xf32>
      %cst_55 = arith.constant 1.000000e+00 : f32
      %117 = vector.broadcast %cst_55 : f32 to vector<8x32xf32>
      %118 = arith.addf %117, %116 : vector<8x32xf32>
      %119 = arith.divf %117, %118 : vector<8x32xf32>
      %120 = arith.index_cast %c2_i32 : i32 to index
      %c0_56 = arith.constant 0 : index
      %c0_57 = arith.constant 0 : index
      %121 = vector.load %arg18[%120, %c0_56, %c0_57] : memref<8x8x32xf32, #tpu.memory_space<vmem>>, vector<1x8x32xf32>
      %122 = vector.shape_cast %121 : vector<1x8x32xf32> to vector<8x32xf32>
      %123 = arith.addf %122, %107 : vector<8x32xf32>
      %124 = arith.negf %123 : vector<8x32xf32>
      %125 = math.exp %124 : vector<8x32xf32>
      %cst_58 = arith.constant 1.000000e+00 : f32
      %126 = vector.broadcast %cst_58 : f32 to vector<8x32xf32>
      %127 = arith.addf %126, %125 : vector<8x32xf32>
      %128 = arith.divf %126, %127 : vector<8x32xf32>
      %129 = arith.index_cast %c2_i32 : i32 to index
      %c0_59 = arith.constant 0 : index
      %c0_60 = arith.constant 0 : index
      %130 = vector.load %arg19[%129, %c0_59, %c0_60] : memref<8x8x32xf32, #tpu.memory_space<vmem>>, vector<1x8x32xf32>
      %131 = vector.shape_cast %130 : vector<1x8x32xf32> to vector<8x32xf32>
      %132 = arith.mulf %119, %110 : vector<8x32xf32>
      %133 = arith.addf %131, %132 : vector<8x32xf32>
      %134 = math.tanh %133 : vector<8x32xf32>
      %135 = arith.subf %105, %134 : vector<8x32xf32>
      %136 = arith.mulf %128, %135 : vector<8x32xf32>
      %137 = arith.addf %134, %136 : vector<8x32xf32>
      %138 = arith.index_cast %c2_i32 : i32 to index
      %c0_61 = arith.constant 0 : index
      %c0_62 = arith.constant 0 : index
      %139 = vector.load %arg14[%138, %c0_61, %c0_62] : memref<8x8x1xf32, #tpu.memory_space<vmem>>, vector<1x8x1xf32>
      %140 = vector.shape_cast %139 : vector<1x8x1xf32> to vector<8x1xf32>
      %141 = arith.subf %137, %105 : vector<8x32xf32>
      %142 = vector.broadcast %140 : vector<8x1xf32> to vector<8x32xf32>
      %143 = arith.mulf %142, %141 : vector<8x32xf32>
      %144 = arith.addf %105, %143 : vector<8x32xf32>
      %c3_i32 = arith.constant 3 : i32
      %cst_63 = arith.constant dense<0.000000e+00> : vector<8x32xf32>
      %145 = tpu.matmul %144, %21, %cst_63 {dimension_numbers = #tpu.dot_dimension_numbers<[1], [0], [0], [1], [0, 0, 1, 1], [], []>} : vector<8x32xf32>, vector<32x32xf32>, vector<8x32xf32> -> vector<8x32xf32>
      %cst_64 = arith.constant dense<0.000000e+00> : vector<8x32xf32>
      %146 = tpu.matmul %144, %23, %cst_64 {dimension_numbers = #tpu.dot_dimension_numbers<[1], [0], [0], [1], [0, 0, 1, 1], [], []>} : vector<8x32xf32>, vector<32x32xf32>, vector<8x32xf32> -> vector<8x32xf32>
      %cst_65 = arith.constant dense<0.000000e+00> : vector<8x32xf32>
      %147 = tpu.matmul %144, %25, %cst_65 {dimension_numbers = #tpu.dot_dimension_numbers<[1], [0], [0], [1], [0, 0, 1, 1], [], []>} : vector<8x32xf32>, vector<32x32xf32>, vector<8x32xf32> -> vector<8x32xf32>
      %148 = vector.broadcast %26 : vector<1x32xf32> to vector<8x32xf32>
      %149 = arith.addf %147, %148 : vector<8x32xf32>
      %150 = arith.index_cast %c3_i32 : i32 to index
      %c0_66 = arith.constant 0 : index
      %c0_67 = arith.constant 0 : index
      %151 = vector.load %arg17[%150, %c0_66, %c0_67] : memref<8x8x32xf32, #tpu.memory_space<vmem>>, vector<1x8x32xf32>
      %152 = vector.shape_cast %151 : vector<1x8x32xf32> to vector<8x32xf32>
      %153 = arith.addf %152, %145 : vector<8x32xf32>
      %154 = arith.negf %153 : vector<8x32xf32>
      %155 = math.exp %154 : vector<8x32xf32>
      %cst_68 = arith.constant 1.000000e+00 : f32
      %156 = vector.broadcast %cst_68 : f32 to vector<8x32xf32>
      %157 = arith.addf %156, %155 : vector<8x32xf32>
      %158 = arith.divf %156, %157 : vector<8x32xf32>
      %159 = arith.index_cast %c3_i32 : i32 to index
      %c0_69 = arith.constant 0 : index
      %c0_70 = arith.constant 0 : index
      %160 = vector.load %arg18[%159, %c0_69, %c0_70] : memref<8x8x32xf32, #tpu.memory_space<vmem>>, vector<1x8x32xf32>
      %161 = vector.shape_cast %160 : vector<1x8x32xf32> to vector<8x32xf32>
      %162 = arith.addf %161, %146 : vector<8x32xf32>
      %163 = arith.negf %162 : vector<8x32xf32>
      %164 = math.exp %163 : vector<8x32xf32>
      %cst_71 = arith.constant 1.000000e+00 : f32
      %165 = vector.broadcast %cst_71 : f32 to vector<8x32xf32>
      %166 = arith.addf %165, %164 : vector<8x32xf32>
      %167 = arith.divf %165, %166 : vector<8x32xf32>
      %168 = arith.index_cast %c3_i32 : i32 to index
      %c0_72 = arith.constant 0 : index
      %c0_73 = arith.constant 0 : index
      %169 = vector.load %arg19[%168, %c0_72, %c0_73] : memref<8x8x32xf32, #tpu.memory_space<vmem>>, vector<1x8x32xf32>
      %170 = vector.shape_cast %169 : vector<1x8x32xf32> to vector<8x32xf32>
      %171 = arith.mulf %158, %149 : vector<8x32xf32>
      %172 = arith.addf %170, %171 : vector<8x32xf32>
      %173 = math.tanh %172 : vector<8x32xf32>
      %174 = arith.subf %144, %173 : vector<8x32xf32>
      %175 = arith.mulf %167, %174 : vector<8x32xf32>
      %176 = arith.addf %173, %175 : vector<8x32xf32>
      %177 = arith.index_cast %c3_i32 : i32 to index
      %c0_74 = arith.constant 0 : index
      %c0_75 = arith.constant 0 : index
      %178 = vector.load %arg14[%177, %c0_74, %c0_75] : memref<8x8x1xf32, #tpu.memory_space<vmem>>, vector<1x8x1xf32>
      %179 = vector.shape_cast %178 : vector<1x8x1xf32> to vector<8x1xf32>
      %180 = arith.subf %176, %144 : vector<8x32xf32>
      %181 = vector.broadcast %179 : vector<8x1xf32> to vector<8x32xf32>
      %182 = arith.mulf %181, %180 : vector<8x32xf32>
      %183 = arith.addf %144, %182 : vector<8x32xf32>
      %c4_i32 = arith.constant 4 : i32
      %cst_76 = arith.constant dense<0.000000e+00> : vector<8x32xf32>
      %184 = tpu.matmul %183, %21, %cst_76 {dimension_numbers = #tpu.dot_dimension_numbers<[1], [0], [0], [1], [0, 0, 1, 1], [], []>} : vector<8x32xf32>, vector<32x32xf32>, vector<8x32xf32> -> vector<8x32xf32>
      %cst_77 = arith.constant dense<0.000000e+00> : vector<8x32xf32>
      %185 = tpu.matmul %183, %23, %cst_77 {dimension_numbers = #tpu.dot_dimension_numbers<[1], [0], [0], [1], [0, 0, 1, 1], [], []>} : vector<8x32xf32>, vector<32x32xf32>, vector<8x32xf32> -> vector<8x32xf32>
      %cst_78 = arith.constant dense<0.000000e+00> : vector<8x32xf32>
      %186 = tpu.matmul %183, %25, %cst_78 {dimension_numbers = #tpu.dot_dimension_numbers<[1], [0], [0], [1], [0, 0, 1, 1], [], []>} : vector<8x32xf32>, vector<32x32xf32>, vector<8x32xf32> -> vector<8x32xf32>
      %187 = vector.broadcast %26 : vector<1x32xf32> to vector<8x32xf32>
      %188 = arith.addf %186, %187 : vector<8x32xf32>
      %189 = arith.index_cast %c4_i32 : i32 to index
      %c0_79 = arith.constant 0 : index
      %c0_80 = arith.constant 0 : index
      %190 = vector.load %arg17[%189, %c0_79, %c0_80] : memref<8x8x32xf32, #tpu.memory_space<vmem>>, vector<1x8x32xf32>
      %191 = vector.shape_cast %190 : vector<1x8x32xf32> to vector<8x32xf32>
      %192 = arith.addf %191, %184 : vector<8x32xf32>
      %193 = arith.negf %192 : vector<8x32xf32>
      %194 = math.exp %193 : vector<8x32xf32>
      %cst_81 = arith.constant 1.000000e+00 : f32
      %195 = vector.broadcast %cst_81 : f32 to vector<8x32xf32>
      %196 = arith.addf %195, %194 : vector<8x32xf32>
      %197 = arith.divf %195, %196 : vector<8x32xf32>
      %198 = arith.index_cast %c4_i32 : i32 to index
      %c0_82 = arith.constant 0 : index
      %c0_83 = arith.constant 0 : index
      %199 = vector.load %arg18[%198, %c0_82, %c0_83] : memref<8x8x32xf32, #tpu.memory_space<vmem>>, vector<1x8x32xf32>
      %200 = vector.shape_cast %199 : vector<1x8x32xf32> to vector<8x32xf32>
      %201 = arith.addf %200, %185 : vector<8x32xf32>
      %202 = arith.negf %201 : vector<8x32xf32>
      %203 = math.exp %202 : vector<8x32xf32>
      %cst_84 = arith.constant 1.000000e+00 : f32
      %204 = vector.broadcast %cst_84 : f32 to vector<8x32xf32>
      %205 = arith.addf %204, %203 : vector<8x32xf32>
      %206 = arith.divf %204, %205 : vector<8x32xf32>
      %207 = arith.index_cast %c4_i32 : i32 to index
      %c0_85 = arith.constant 0 : index
      %c0_86 = arith.constant 0 : index
      %208 = vector.load %arg19[%207, %c0_85, %c0_86] : memref<8x8x32xf32, #tpu.memory_space<vmem>>, vector<1x8x32xf32>
      %209 = vector.shape_cast %208 : vector<1x8x32xf32> to vector<8x32xf32>
      %210 = arith.mulf %197, %188 : vector<8x32xf32>
      %211 = arith.addf %209, %210 : vector<8x32xf32>
      %212 = math.tanh %211 : vector<8x32xf32>
      %213 = arith.subf %183, %212 : vector<8x32xf32>
      %214 = arith.mulf %206, %213 : vector<8x32xf32>
      %215 = arith.addf %212, %214 : vector<8x32xf32>
      %216 = arith.index_cast %c4_i32 : i32 to index
      %c0_87 = arith.constant 0 : index
      %c0_88 = arith.constant 0 : index
      %217 = vector.load %arg14[%216, %c0_87, %c0_88] : memref<8x8x1xf32, #tpu.memory_space<vmem>>, vector<1x8x1xf32>
      %218 = vector.shape_cast %217 : vector<1x8x1xf32> to vector<8x1xf32>
      %219 = arith.subf %215, %183 : vector<8x32xf32>
      %220 = vector.broadcast %218 : vector<8x1xf32> to vector<8x32xf32>
      %221 = arith.mulf %220, %219 : vector<8x32xf32>
      %222 = arith.addf %183, %221 : vector<8x32xf32>
      %c5_i32 = arith.constant 5 : i32
      %cst_89 = arith.constant dense<0.000000e+00> : vector<8x32xf32>
      %223 = tpu.matmul %222, %21, %cst_89 {dimension_numbers = #tpu.dot_dimension_numbers<[1], [0], [0], [1], [0, 0, 1, 1], [], []>} : vector<8x32xf32>, vector<32x32xf32>, vector<8x32xf32> -> vector<8x32xf32>
      %cst_90 = arith.constant dense<0.000000e+00> : vector<8x32xf32>
      %224 = tpu.matmul %222, %23, %cst_90 {dimension_numbers = #tpu.dot_dimension_numbers<[1], [0], [0], [1], [0, 0, 1, 1], [], []>} : vector<8x32xf32>, vector<32x32xf32>, vector<8x32xf32> -> vector<8x32xf32>
      %cst_91 = arith.constant dense<0.000000e+00> : vector<8x32xf32>
      %225 = tpu.matmul %222, %25, %cst_91 {dimension_numbers = #tpu.dot_dimension_numbers<[1], [0], [0], [1], [0, 0, 1, 1], [], []>} : vector<8x32xf32>, vector<32x32xf32>, vector<8x32xf32> -> vector<8x32xf32>
      %226 = vector.broadcast %26 : vector<1x32xf32> to vector<8x32xf32>
      %227 = arith.addf %225, %226 : vector<8x32xf32>
      %228 = arith.index_cast %c5_i32 : i32 to index
      %c0_92 = arith.constant 0 : index
      %c0_93 = arith.constant 0 : index
      %229 = vector.load %arg17[%228, %c0_92, %c0_93] : memref<8x8x32xf32, #tpu.memory_space<vmem>>, vector<1x8x32xf32>
      %230 = vector.shape_cast %229 : vector<1x8x32xf32> to vector<8x32xf32>
      %231 = arith.addf %230, %223 : vector<8x32xf32>
      %232 = arith.negf %231 : vector<8x32xf32>
      %233 = math.exp %232 : vector<8x32xf32>
      %cst_94 = arith.constant 1.000000e+00 : f32
      %234 = vector.broadcast %cst_94 : f32 to vector<8x32xf32>
      %235 = arith.addf %234, %233 : vector<8x32xf32>
      %236 = arith.divf %234, %235 : vector<8x32xf32>
      %237 = arith.index_cast %c5_i32 : i32 to index
      %c0_95 = arith.constant 0 : index
      %c0_96 = arith.constant 0 : index
      %238 = vector.load %arg18[%237, %c0_95, %c0_96] : memref<8x8x32xf32, #tpu.memory_space<vmem>>, vector<1x8x32xf32>
      %239 = vector.shape_cast %238 : vector<1x8x32xf32> to vector<8x32xf32>
      %240 = arith.addf %239, %224 : vector<8x32xf32>
      %241 = arith.negf %240 : vector<8x32xf32>
      %242 = math.exp %241 : vector<8x32xf32>
      %cst_97 = arith.constant 1.000000e+00 : f32
      %243 = vector.broadcast %cst_97 : f32 to vector<8x32xf32>
      %244 = arith.addf %243, %242 : vector<8x32xf32>
      %245 = arith.divf %243, %244 : vector<8x32xf32>
      %246 = arith.index_cast %c5_i32 : i32 to index
      %c0_98 = arith.constant 0 : index
      %c0_99 = arith.constant 0 : index
      %247 = vector.load %arg19[%246, %c0_98, %c0_99] : memref<8x8x32xf32, #tpu.memory_space<vmem>>, vector<1x8x32xf32>
      %248 = vector.shape_cast %247 : vector<1x8x32xf32> to vector<8x32xf32>
      %249 = arith.mulf %236, %227 : vector<8x32xf32>
      %250 = arith.addf %248, %249 : vector<8x32xf32>
      %251 = math.tanh %250 : vector<8x32xf32>
      %252 = arith.subf %222, %251 : vector<8x32xf32>
      %253 = arith.mulf %245, %252 : vector<8x32xf32>
      %254 = arith.addf %251, %253 : vector<8x32xf32>
      %255 = arith.index_cast %c5_i32 : i32 to index
      %c0_100 = arith.constant 0 : index
      %c0_101 = arith.constant 0 : index
      %256 = vector.load %arg14[%255, %c0_100, %c0_101] : memref<8x8x1xf32, #tpu.memory_space<vmem>>, vector<1x8x1xf32>
      %257 = vector.shape_cast %256 : vector<1x8x1xf32> to vector<8x1xf32>
      %258 = arith.subf %254, %222 : vector<8x32xf32>
      %259 = vector.broadcast %257 : vector<8x1xf32> to vector<8x32xf32>
      %260 = arith.mulf %259, %258 : vector<8x32xf32>
      %261 = arith.addf %222, %260 : vector<8x32xf32>
      %c6_i32 = arith.constant 6 : i32
      %cst_102 = arith.constant dense<0.000000e+00> : vector<8x32xf32>
      %262 = tpu.matmul %261, %21, %cst_102 {dimension_numbers = #tpu.dot_dimension_numbers<[1], [0], [0], [1], [0, 0, 1, 1], [], []>} : vector<8x32xf32>, vector<32x32xf32>, vector<8x32xf32> -> vector<8x32xf32>
      %cst_103 = arith.constant dense<0.000000e+00> : vector<8x32xf32>
      %263 = tpu.matmul %261, %23, %cst_103 {dimension_numbers = #tpu.dot_dimension_numbers<[1], [0], [0], [1], [0, 0, 1, 1], [], []>} : vector<8x32xf32>, vector<32x32xf32>, vector<8x32xf32> -> vector<8x32xf32>
      %cst_104 = arith.constant dense<0.000000e+00> : vector<8x32xf32>
      %264 = tpu.matmul %261, %25, %cst_104 {dimension_numbers = #tpu.dot_dimension_numbers<[1], [0], [0], [1], [0, 0, 1, 1], [], []>} : vector<8x32xf32>, vector<32x32xf32>, vector<8x32xf32> -> vector<8x32xf32>
      %265 = vector.broadcast %26 : vector<1x32xf32> to vector<8x32xf32>
      %266 = arith.addf %264, %265 : vector<8x32xf32>
      %267 = arith.index_cast %c6_i32 : i32 to index
      %c0_105 = arith.constant 0 : index
      %c0_106 = arith.constant 0 : index
      %268 = vector.load %arg17[%267, %c0_105, %c0_106] : memref<8x8x32xf32, #tpu.memory_space<vmem>>, vector<1x8x32xf32>
      %269 = vector.shape_cast %268 : vector<1x8x32xf32> to vector<8x32xf32>
      %270 = arith.addf %269, %262 : vector<8x32xf32>
      %271 = arith.negf %270 : vector<8x32xf32>
      %272 = math.exp %271 : vector<8x32xf32>
      %cst_107 = arith.constant 1.000000e+00 : f32
      %273 = vector.broadcast %cst_107 : f32 to vector<8x32xf32>
      %274 = arith.addf %273, %272 : vector<8x32xf32>
      %275 = arith.divf %273, %274 : vector<8x32xf32>
      %276 = arith.index_cast %c6_i32 : i32 to index
      %c0_108 = arith.constant 0 : index
      %c0_109 = arith.constant 0 : index
      %277 = vector.load %arg18[%276, %c0_108, %c0_109] : memref<8x8x32xf32, #tpu.memory_space<vmem>>, vector<1x8x32xf32>
      %278 = vector.shape_cast %277 : vector<1x8x32xf32> to vector<8x32xf32>
      %279 = arith.addf %278, %263 : vector<8x32xf32>
      %280 = arith.negf %279 : vector<8x32xf32>
      %281 = math.exp %280 : vector<8x32xf32>
      %cst_110 = arith.constant 1.000000e+00 : f32
      %282 = vector.broadcast %cst_110 : f32 to vector<8x32xf32>
      %283 = arith.addf %282, %281 : vector<8x32xf32>
      %284 = arith.divf %282, %283 : vector<8x32xf32>
      %285 = arith.index_cast %c6_i32 : i32 to index
      %c0_111 = arith.constant 0 : index
      %c0_112 = arith.constant 0 : index
      %286 = vector.load %arg19[%285, %c0_111, %c0_112] : memref<8x8x32xf32, #tpu.memory_space<vmem>>, vector<1x8x32xf32>
      %287 = vector.shape_cast %286 : vector<1x8x32xf32> to vector<8x32xf32>
      %288 = arith.mulf %275, %266 : vector<8x32xf32>
      %289 = arith.addf %287, %288 : vector<8x32xf32>
      %290 = math.tanh %289 : vector<8x32xf32>
      %291 = arith.subf %261, %290 : vector<8x32xf32>
      %292 = arith.mulf %284, %291 : vector<8x32xf32>
      %293 = arith.addf %290, %292 : vector<8x32xf32>
      %294 = arith.index_cast %c6_i32 : i32 to index
      %c0_113 = arith.constant 0 : index
      %c0_114 = arith.constant 0 : index
      %295 = vector.load %arg14[%294, %c0_113, %c0_114] : memref<8x8x1xf32, #tpu.memory_space<vmem>>, vector<1x8x1xf32>
      %296 = vector.shape_cast %295 : vector<1x8x1xf32> to vector<8x1xf32>
      %297 = arith.subf %293, %261 : vector<8x32xf32>
      %298 = vector.broadcast %296 : vector<8x1xf32> to vector<8x32xf32>
      %299 = arith.mulf %298, %297 : vector<8x32xf32>
      %300 = arith.addf %261, %299 : vector<8x32xf32>
      %c7_i32 = arith.constant 7 : i32
      %cst_115 = arith.constant dense<0.000000e+00> : vector<8x32xf32>
      %301 = tpu.matmul %300, %21, %cst_115 {dimension_numbers = #tpu.dot_dimension_numbers<[1], [0], [0], [1], [0, 0, 1, 1], [], []>} : vector<8x32xf32>, vector<32x32xf32>, vector<8x32xf32> -> vector<8x32xf32>
      %cst_116 = arith.constant dense<0.000000e+00> : vector<8x32xf32>
      %302 = tpu.matmul %300, %23, %cst_116 {dimension_numbers = #tpu.dot_dimension_numbers<[1], [0], [0], [1], [0, 0, 1, 1], [], []>} : vector<8x32xf32>, vector<32x32xf32>, vector<8x32xf32> -> vector<8x32xf32>
      %cst_117 = arith.constant dense<0.000000e+00> : vector<8x32xf32>
      %303 = tpu.matmul %300, %25, %cst_117 {dimension_numbers = #tpu.dot_dimension_numbers<[1], [0], [0], [1], [0, 0, 1, 1], [], []>} : vector<8x32xf32>, vector<32x32xf32>, vector<8x32xf32> -> vector<8x32xf32>
      %304 = vector.broadcast %26 : vector<1x32xf32> to vector<8x32xf32>
      %305 = arith.addf %303, %304 : vector<8x32xf32>
      %306 = arith.index_cast %c7_i32 : i32 to index
      %c0_118 = arith.constant 0 : index
      %c0_119 = arith.constant 0 : index
      %307 = vector.load %arg17[%306, %c0_118, %c0_119] : memref<8x8x32xf32, #tpu.memory_space<vmem>>, vector<1x8x32xf32>
      %308 = vector.shape_cast %307 : vector<1x8x32xf32> to vector<8x32xf32>
      %309 = arith.addf %308, %301 : vector<8x32xf32>
      %310 = arith.negf %309 : vector<8x32xf32>
      %311 = math.exp %310 : vector<8x32xf32>
      %cst_120 = arith.constant 1.000000e+00 : f32
      %312 = vector.broadcast %cst_120 : f32 to vector<8x32xf32>
      %313 = arith.addf %312, %311 : vector<8x32xf32>
      %314 = arith.divf %312, %313 : vector<8x32xf32>
      %315 = arith.index_cast %c7_i32 : i32 to index
      %c0_121 = arith.constant 0 : index
      %c0_122 = arith.constant 0 : index
      %316 = vector.load %arg18[%315, %c0_121, %c0_122] : memref<8x8x32xf32, #tpu.memory_space<vmem>>, vector<1x8x32xf32>
      %317 = vector.shape_cast %316 : vector<1x8x32xf32> to vector<8x32xf32>
      %318 = arith.addf %317, %302 : vector<8x32xf32>
      %319 = arith.negf %318 : vector<8x32xf32>
      %320 = math.exp %319 : vector<8x32xf32>
      %cst_123 = arith.constant 1.000000e+00 : f32
      %321 = vector.broadcast %cst_123 : f32 to vector<8x32xf32>
      %322 = arith.addf %321, %320 : vector<8x32xf32>
      %323 = arith.divf %321, %322 : vector<8x32xf32>
      %324 = arith.index_cast %c7_i32 : i32 to index
      %c0_124 = arith.constant 0 : index
      %c0_125 = arith.constant 0 : index
      %325 = vector.load %arg19[%324, %c0_124, %c0_125] : memref<8x8x32xf32, #tpu.memory_space<vmem>>, vector<1x8x32xf32>
      %326 = vector.shape_cast %325 : vector<1x8x32xf32> to vector<8x32xf32>
      %327 = arith.mulf %314, %305 : vector<8x32xf32>
      %328 = arith.addf %326, %327 : vector<8x32xf32>
      %329 = math.tanh %328 : vector<8x32xf32>
      %330 = arith.subf %300, %329 : vector<8x32xf32>
      %331 = arith.mulf %323, %330 : vector<8x32xf32>
      %332 = arith.addf %329, %331 : vector<8x32xf32>
      %333 = arith.index_cast %c7_i32 : i32 to index
      %c0_126 = arith.constant 0 : index
      %c0_127 = arith.constant 0 : index
      %334 = vector.load %arg14[%333, %c0_126, %c0_127] : memref<8x8x1xf32, #tpu.memory_space<vmem>>, vector<1x8x1xf32>
      %335 = vector.shape_cast %334 : vector<1x8x1xf32> to vector<8x1xf32>
      %336 = arith.subf %332, %300 : vector<8x32xf32>
      %337 = vector.broadcast %335 : vector<8x1xf32> to vector<8x32xf32>
      %338 = arith.mulf %337, %336 : vector<8x32xf32>
      %339 = arith.addf %300, %338 : vector<8x32xf32>
      %c8_i32 = arith.constant 8 : i32
      %c0_128 = arith.constant 0 : index
      %c0_129 = arith.constant 0 : index
      %340 = vector.load %arg10[%c0_128, %c0_129] : memref<32x32xf32, #tpu.memory_space<vmem>>, vector<32x32xf32>
      %cst_130 = arith.constant dense<0.000000e+00> : vector<8x32xf32>
      %341 = tpu.matmul %339, %340, %cst_130 {dimension_numbers = #tpu.dot_dimension_numbers<[1], [0], [0], [1], [0, 0, 1, 1], [], []>} : vector<8x32xf32>, vector<32x32xf32>, vector<8x32xf32> -> vector<8x32xf32>
      %c0_131 = arith.constant 0 : index
      %c0_132 = arith.constant 0 : index
      %342 = vector.load %arg11[%c0_131, %c0_132] : memref<1x32xf32, #tpu.memory_space<vmem>>, vector<1x32xf32>
      %343 = vector.broadcast %342 : vector<1x32xf32> to vector<8x32xf32>
      %344 = arith.addf %341, %343 : vector<8x32xf32>
      %cst_133 = arith.constant 0.000000e+00 : f32
      %345 = vector.broadcast %cst_133 : f32 to vector<8x32xf32>
      %346 = arith.maximumf %344, %345 : vector<8x32xf32>
      %c0_134 = arith.constant 0 : index
      %c0_135 = arith.constant 0 : index
      %347 = vector.load %arg12[%c0_134, %c0_135] : memref<32x4xf32, #tpu.memory_space<vmem>>, vector<32x4xf32>
      %cst_136 = arith.constant dense<0.000000e+00> : vector<8x4xf32>
      %348 = tpu.matmul %346, %347, %cst_136 {dimension_numbers = #tpu.dot_dimension_numbers<[1], [0], [0], [1], [0, 0, 1, 1], [], []>} : vector<8x32xf32>, vector<32x4xf32>, vector<8x4xf32> -> vector<8x4xf32>
      %c0_137 = arith.constant 0 : index
      %c0_138 = arith.constant 0 : index
      %349 = vector.load %arg13[%c0_137, %c0_138] : memref<1x4xf32, #tpu.memory_space<vmem>>, vector<1x4xf32>
      %350 = vector.broadcast %349 : vector<1x4xf32> to vector<8x4xf32>
      %351 = arith.addf %348, %350 : vector<8x4xf32>
      %cst_139 = arith.constant dense<0xFF800000> : vector<8xf32>
      %352 = vector.multi_reduction <maximumf>, %351, %cst_139 [1] : vector<8x4xf32> to vector<8xf32>
      %353 = vector.shape_cast %352 : vector<8xf32> to vector<8x1xf32>
      %354 = vector.broadcast %353 : vector<8x1xf32> to vector<8x4xf32>
      %355 = arith.subf %351, %354 : vector<8x4xf32>
      %356 = math.exp %355 : vector<8x4xf32>
      %cst_140 = arith.constant dense<0.000000e+00> : vector<8xf32>
      %357 = vector.multi_reduction <add>, %356, %cst_140 [1] : vector<8x4xf32> to vector<8xf32>
      %358 = vector.shape_cast %357 : vector<8xf32> to vector<8x1xf32>
      %359 = math.log %358 : vector<8x1xf32>
      %360 = arith.addf %353, %359 : vector<8x1xf32>
      %361 = vector.broadcast %360 : vector<8x1xf32> to vector<8x4xf32>
      %362 = arith.subf %351, %361 : vector<8x4xf32>
      %c0_141 = arith.constant 0 : index
      %c0_142 = arith.constant 0 : index
      %363 = vector.load %arg15[%c0_141, %c0_142] : memref<8x4xf32, #tpu.memory_space<vmem>>, vector<8x4xf32>
      tpu.vector_store %arg15[%c0_141, %c0_142], %362 {strides = array<i32>} : memref<8x4xf32, #tpu.memory_space<vmem>>, vector<8x4xf32>,
    } else {
    }
    return
  }
  func.func @transform_0(%arg0: i32, %arg1: i32) -> (i32, i32, i32, i32) {
    %c0_i32 = arith.constant 0 : i32
    %c0_i32_0 = arith.constant 0 : i32
    %c0_i32_1 = arith.constant 0 : i32
    return %c0_i32, %arg1, %arg0, %c0_i32_0 : i32, i32, i32, i32
  }
  func.func @transform_1(%arg0: i32, %arg1: i32) -> i32 {
    %c0_i32 = arith.constant 0 : i32
    %c0_i32_0 = arith.constant 0 : i32
    return %c0_i32 : i32
  }
  func.func @transform_2(%arg0: i32, %arg1: i32) -> (i32, i32) {
    %c0_i32 = arith.constant 0 : i32
    %c0_i32_0 = arith.constant 0 : i32
    %c0_i32_1 = arith.constant 0 : i32
    return %c0_i32, %c0_i32_0 : i32, i32
  }
  func.func @transform_3(%arg0: i32, %arg1: i32) -> (i32, i32) {
    %c0_i32 = arith.constant 0 : i32
    %c0_i32_0 = arith.constant 0 : i32
    %c0_i32_1 = arith.constant 0 : i32
    return %c0_i32, %c0_i32_0 : i32, i32
  }
  func.func @transform_4(%arg0: i32, %arg1: i32) -> (i32, i32, i32) {
    %c0_i32 = arith.constant 0 : i32
    %c0_i32_0 = arith.constant 0 : i32
    %c0_i32_1 = arith.constant 0 : i32
    %c0_i32_2 = arith.constant 0 : i32
    return %c0_i32, %c0_i32_0, %c0_i32_1 : i32, i32, i32
  }
  func.func @transform_5(%arg0: i32, %arg1: i32) -> (i32, i32, i32) {
    %c0_i32 = arith.constant 0 : i32
    %c0_i32_0 = arith.constant 0 : i32
    %c0_i32_1 = arith.constant 0 : i32
    %c0_i32_2 = arith.constant 0 : i32
    return %c0_i32, %c0_i32_0, %c0_i32_1 : i32, i32, i32
  }
  func.func @transform_6(%arg0: i32, %arg1: i32) -> (i32, i32, i32) {
    %c0_i32 = arith.constant 0 : i32
    %c0_i32_0 = arith.constant 0 : i32
    %c0_i32_1 = arith.constant 0 : i32
    %c0_i32_2 = arith.constant 0 : i32
    return %c0_i32, %c0_i32_0, %c0_i32_1 : i32, i32, i32
  }
  func.func @transform_7(%arg0: i32, %arg1: i32) -> (i32, i32) {
    %c0_i32 = arith.constant 0 : i32
    %c0_i32_0 = arith.constant 0 : i32
    %c0_i32_1 = arith.constant 0 : i32
    return %c0_i32, %c0_i32_0 : i32, i32
  }
  func.func @transform_8(%arg0: i32, %arg1: i32) -> (i32, i32) {
    %c0_i32 = arith.constant 0 : i32
    %c0_i32_0 = arith.constant 0 : i32
    %c0_i32_1 = arith.constant 0 : i32
    return %c0_i32, %c0_i32_0 : i32, i32
  }
  func.func @transform_9(%arg0: i32, %arg1: i32) -> (i32, i32) {
    %c0_i32 = arith.constant 0 : i32
    %c0_i32_0 = arith.constant 0 : i32
    %c0_i32_1 = arith.constant 0 : i32
    return %c0_i32, %c0_i32_0 : i32, i32
  }
  func.func @transform_10(%arg0: i32, %arg1: i32) -> (i32, i32) {
    %c0_i32 = arith.constant 0 : i32
    %c0_i32_0 = arith.constant 0 : i32
    %c0_i32_1 = arith.constant 0 : i32
    return %c0_i32, %c0_i32_0 : i32, i32
  }
  func.func @transform_11(%arg0: i32, %arg1: i32) -> (i32, i32) {
    %c0_i32 = arith.constant 0 : i32
    %c0_i32_0 = arith.constant 0 : i32
    %c0_i32_1 = arith.constant 0 : i32
    return %c0_i32, %c0_i32_0 : i32, i32
  }
  func.func @transform_12(%arg0: i32, %arg1: i32) -> (i32, i32, i32) {
    %c0_i32 = arith.constant 0 : i32
    %c0_i32_0 = arith.constant 0 : i32
    %c0_i32_1 = arith.constant 0 : i32
    %c0_i32_2 = arith.constant 0 : i32
    return %c0_i32, %c0_i32_0, %c0_i32_1 : i32, i32, i32
  }
  func.func @transform_13(%arg0: i32, %arg1: i32) -> (i32, i32) {
    %c0_i32 = arith.constant 0 : i32
    %c0_i32_0 = arith.constant 0 : i32
    %c0_i32_1 = arith.constant 0 : i32
    return %c0_i32, %c0_i32_0 : i32, i32
  }
}

</mosaic_0001>

<llo_original>
// kernel: tpu_custom_call.1
$region0: #{tpu_custom_call.1}
  #allocation0 [shape = 'u32[]', space=smem, size = 0x4, offset = 0x4, fixed_abs, tag = 'smem constant byte address 0x4 - core index']
  #allocation1 [shape = 'u32[144,128]{1,0:T(1,128)}', space=vmem, size = 0x12000, scoped, tag = 'internal scratch']
  #allocation2 [shape = 'f32[8,8,16]{2,1,0:T(8,128)}', space=vmem, size = 0x8000, scoped, tag = 'scratch operand']
  #allocation3 [shape = 'f32[8,8,32]{2,1,0:T(8,128)}', space=vmem, size = 0x8000, scoped, tag = 'scratch operand']
  #allocation4 [shape = 'f32[8,8,32]{2,1,0:T(8,128)}', space=vmem, size = 0x8000, scoped, tag = 'scratch operand']
  #allocation5 [shape = 'f32[8,8,32]{2,1,0:T(8,128)}', space=vmem, size = 0x8000, scoped, tag = 'scratch operand']
  %s0 = inlined_call_operand.hbm [shape: f32[2,12,8,16], index: 0, kind: input, shape index: {}]
  %s1 = inlined_call_operand.hbm [shape: f32[12], index: 1, kind: input, shape index: {}]
  %s2 = inlined_call_operand.vmem [shape: f32[16,32], index: 2, kind: input, shape index: {}]
  %s3 = inlined_call_operand.hbm [shape: f32[1,32], index: 3, kind: input, shape index: {}]
  %s4 = inlined_call_operand.vmem [shape: f32[3,32,32], index: 4, kind: input, shape index: {}]
  %s5 = inlined_call_operand.hbm [shape: f32[3,1,32], index: 5, kind: input, shape index: {}]
  %s6 = inlined_call_operand.hbm [shape: f32[3,32,32], index: 6, kind: input, shape index: {}]
  %s7 = inlined_call_operand.hbm [shape: f32[1,32], index: 7, kind: input, shape index: {}]
  %s8 = inlined_call_operand.hbm [shape: f32[32,32], index: 8, kind: input, shape index: {}]
  %s9 = inlined_call_operand.hbm [shape: f32[1,32], index: 9, kind: input, shape index: {}]
  %s10 = inlined_call_operand.vmem [shape: f32[32,4], index: 10, kind: input, shape index: {}]
  %s11 = inlined_call_operand.vmem [shape: f32[1,4], index: 11, kind: input, shape index: {}]
  %s12 = inlined_call_operand.vmem [shape: f32[8,8,1], index: 12, kind: input, shape index: {}]
  %s13 = inlined_call_operand.vmem [shape: f32[8,4], index: 13, kind: output, shape index: {}]
  %s14 = sld [smem:[#allocation0]]
  $region129: #{tpu_custom_call.1} parent=0
    _
  %s16 = ssub.s32 1, %s14
  %s17 = scalar_select 0, %s16, %s14
  $region1: #{tpu_custom_call.1} parent=0
    #allocation6 [shape = 'u8[16384]{0}', space=vmem, size = 0x4000, scoped, tag = 'input window, operand 0']
    #allocation7 [shape = 's32[2]{0}', space=sflag, size = 0x8, scoped, tag = 'scoped memory for tpu_custom_call.1']
    #allocation8 [shape = 's32[2]{0}', space=sflag, size = 0x8, scoped, tag = 'scoped memory for tpu_custom_call.1']
    #allocation9 [shape = 'u8[512]{0}', space=smem, size = 0x200, scoped, tag = 'input window, operand 1, single buffered']
    #allocation10 [shape = 'u8[512]{0}', space=vmem, size = 0x400, scoped, tag = 'input window, operand 3, single buffered']
    #allocation11 [shape = 's32[1]{0}', space=sflag, size = 0x4, scoped, tag = 'scoped memory for tpu_custom_call.1']
    #allocation12 [shape = 'u8[1536]{0}', space=vmem, size = 0x800, scoped, tag = 'input window, operand 5, single buffered']
    #allocation13 [shape = 'u8[49152]{0}', space=vmem, size = 0xc000, scoped, tag = 'input window, operand 6, single buffered']
    #allocation14 [shape = 's32[1]{0}', space=sflag, size = 0x4, scoped, tag = 'scoped memory for tpu_custom_call.1']
    #allocation15 [shape = 'u8[512]{0}', space=vmem, size = 0x400, scoped, tag = 'input window, operand 7, single buffered']
    #allocation16 [shape = 'u8[16384]{0}', space=vmem, size = 0x4000, scoped, tag = 'input window, operand 8, single buffered']
    #allocation17 [shape = 's32[1]{0}', space=sflag, size = 0x4, scoped, tag = 'scoped memory for tpu_custom_call.1']
    #allocation18 [shape = 'u8[512]{0}', space=vmem, size = 0x400, scoped, tag = 'input window, operand 9, single buffered']
    %18 = vsyncpa [#allocation7], 0
    %s19 = scalar_lea.sflag [#allocation7], 1
    %20 = vsyncpa %s19, 0
    %21 = vsyncpa [#allocation8], 0
    %22 = vsyncpa [#allocation11], 0
    %23 = vsyncpa [#allocation14], 0
    %24 = vsyncpa [#allocation17], 0
    loop: start=0, step=1, limit=14
    $region2: #{tpu_custom_call.1} parent=1 // loop_pre_header
      _
    $region3: #{tpu_custom_call.1} parent=1 // loop_header
      %s26 = sphi 0, %s30
      %p27 = scmp.ge.s32.totalorder %s26, 14
      %s33 = sphi 0, %s45
      %s34 = sphi 0, %s41
      %s35 = sphi 0, %s33
      %s36 = sphi 0, %s34
      %s37 = sphi 0, %s35
      %s38 = sphi 0, %s36
      %s50 = sphi 0, %s52
      %s53 = sphi 0, %s50
      %s54 = sphi 0, %s53
      %s70 = sphi 0, %s54
      %s74 = sphi 0, %s74
      %s76 = sphi 0, %s74
      %s77 = sphi 0, %s76
      %s91 = sphi 0, %s77
      %s95 = sphi 0, %s95
      %s97 = sphi 0, %s95
      %s98 = sphi 0, %s97
      %s112 = sphi 0, %s98
      %s116 = sphi 0, %s116
      %s118 = sphi 0, %s116
      %s119 = sphi 0, %s118
      %s133 = sphi 0, %s119
      %s137 = sphi 0, %s137
      %s139 = sphi 0, %s137
      %s140 = sphi 0, %s139
      %s154 = sphi 0, %s140
      %s158 = sphi 0, %s158
      %s160 = sphi 0, %s158
      %s161 = sphi 0, %s160
      %s175 = sphi 0, %s161
      %s179 = sphi 0, %s179
      %s181 = sphi 0, %s179
      %s182 = sphi 0, %s181
      %s196 = sphi 0, %s182
      %s200 = sphi 0, %s200
      %s202 = sphi 0, %s200
      %s203 = sphi 0, %s202
      %s217 = sphi 0, %s203
      %s221 = sphi 0, %s221
      %s223 = sphi 0, %s221
      %s224 = sphi 0, %s223
      %s238 = sphi 0, %s224
      %s242 = sphi 0, %s242
      %s244 = sphi 0, %s242
      %s245 = sphi 0, %s244
      %s259 = sphi 0, %s245
      %s263 = sphi 0, %s263
      %s265 = sphi 0, %s263
      %s266 = sphi 0, %s265
      %s280 = sphi 0, %s266
      %s284 = sphi 0, %s284
      %s286 = sphi 0, %s284
      %s287 = sphi 0, %s286
      %s301 = sphi 0, %s287
      %s305 = sphi 0, %s305
      %s307 = sphi 0, %s305
      %s308 = sphi 0, %s307
      %s322 = sphi 0, %s308
      %s326 = sphi 0, %s326
      %s328 = sphi 0, %s326
      %s329 = sphi 0, %s328
      %s343 = sphi 0, %s329
    $region4: #{tpu_custom_call.1} parent=1 // loop_header_branch
      %29 = sbr.rel (%p27) target = $region8
    $region5: #{tpu_custom_call.1} parent=1 // loop_body
      %s31 = ssub.s32 %s26, 1
      %s32 = ssub.s32 %s26, 2
      %s39 = sadd.s32 1, %s34
      %p40 = scmp.ge.s32.totalorder %s39, 12
      %s41 = scalar_select %p40, 0, %s39
      %s42 = sadd.s32 1, %s33
      %s43 = scalar_select %p40, %s42, %s33
      %p44 = scmp.ge.s32.totalorder %s43, 1
      %s45 = scalar_select %p44, 0, %s43
      %s46 = ssub.s32 %s34, %s41
      %s47 = ssub.s32 %s33, %s45
      %s48 = sor.u32 %s46, %s47
      %p49 = scmp.eq.s32.totalorder %s48, 0
      %s51 = sadd.s32 %s50, 1
      %s52 = scalar_select %p49, %s50, %s51
      %p55 = pneg %p49
      %p56 = scmp.eq.s32.totalorder %s26, 11
      %p57 = por %p55, %p56
      %p58 = scmp.ne.s32.totalorder %s50, %s53
      %p59 = scmp.eq.s32.totalorder %s26, 0
      %p60 = por %p58, %p59
      %p61 = scmp.ne.s32.totalorder %s50, %s53
      %p62 = scmp.eq.s32.totalorder %s31, 11
      %p63 = por %p61, %p62
      %p64 = scmp.ne.s32.totalorder %s53, %s54
      %p65 = scmp.eq.s32.totalorder %s31, 0
      %p66 = por %p64, %p65
      %p67 = scmp.ne.s32.totalorder %s53, %s54
      %p68 = scmp.eq.s32.totalorder %s32, 11
      %p69 = por %p67, %p68
      %p71 = scmp.ne.s32.totalorder %s54, %s70
      %p72 = scmp.eq.s32.totalorder %s32, 0
      %p73 = por %p71, %p72
      %s75 = sadd.s32 %s74, 1
      %p78 = scmp.eq.s32.totalorder %s26, 11
      %p79 = scmp.ne.s32.totalorder %s74, %s76
      %p80 = scmp.eq.s32.totalorder %s26, 0
      %p81 = por %p79, %p80
      %p82 = scmp.ne.s32.totalorder %s74, %s76
      %p83 = scmp.eq.s32.totalorder %s31, 11
      %p84 = por %p82, %p83
      %p85 = scmp.ne.s32.totalorder %s76, %s77
      %p86 = scmp.eq.s32.totalorder %s31, 0
      %p87 = por %p85, %p86
      %p88 = scmp.ne.s32.totalorder %s76, %s77
      %p89 = scmp.eq.s32.totalorder %s32, 11
      %p90 = por %p88, %p89
      %p92 = scmp.ne.s32.totalorder %s77, %s91
      %p93 = scmp.eq.s32.totalorder %s32, 0
      %p94 = por %p92, %p93
      %s96 = sadd.s32 %s95, 1
      %p99 = scmp.eq.s32.totalorder %s26, 11
      %p100 = scmp.ne.s32.totalorder %s95, %s97
      %p101 = scmp.eq.s32.totalorder %s26, 0
      %p102 = por %p100, %p101
      %p103 = scmp.ne.s32.totalorder %s95, %s97
      %p104 = scmp.eq.s32.totalorder %s31, 11
      %p105 = por %p103, %p104
      %p106 = scmp.ne.s32.totalorder %s97, %s98
      %p107 = scmp.eq.s32.totalorder %s31, 0
      %p108 = por %p106, %p107
      %p109 = scmp.ne.s32.totalorder %s97, %s98
      %p110 = scmp.eq.s32.totalorder %s32, 11
      %p111 = por %p109, %p110
      %p113 = scmp.ne.s32.totalorder %s98, %s112
      %p114 = scmp.eq.s32.totalorder %s32, 0
      %p115 = por %p113, %p114
      %s117 = sadd.s32 %s116, 1
      %p120 = scmp.eq.s32.totalorder %s26, 11
      %p121 = scmp.ne.s32.totalorder %s116, %s118
      %p122 = scmp.eq.s32.totalorder %s26, 0
      %p123 = por %p121, %p122
      %p124 = scmp.ne.s32.totalorder %s116, %s118
      %p125 = scmp.eq.s32.totalorder %s31, 11
      %p126 = por %p124, %p125
      %p127 = scmp.ne.s32.totalorder %s118, %s119
      %p128 = scmp.eq.s32.totalorder %s31, 0
      %p129 = por %p127, %p128
      %p130 = scmp.ne.s32.totalorder %s118, %s119
      %p131 = scmp.eq.s32.totalorder %s32, 11
      %p132 = por %p130, %p131
      %p134 = scmp.ne.s32.totalorder %s119, %s133
      %p135 = scmp.eq.s32.totalorder %s32, 0
      %p136 = por %p134, %p135
      %s138 = sadd.s32 %s137, 1
      %p141 = scmp.eq.s32.totalorder %s26, 11
      %p142 = scmp.ne.s32.totalorder %s137, %s139
      %p143 = scmp.eq.s32.totalorder %s26, 0
      %p144 = por %p142, %p143
      %p145 = scmp.ne.s32.totalorder %s137, %s139
      %p146 = scmp.eq.s32.totalorder %s31, 11
      %p147 = por %p145, %p146
      %p148 = scmp.ne.s32.totalorder %s139, %s140
      %p149 = scmp.eq.s32.totalorder %s31, 0
      %p150 = por %p148, %p149
      %p151 = scmp.ne.s32.totalorder %s139, %s140
      %p152 = scmp.eq.s32.totalorder %s32, 11
      %p153 = por %p151, %p152
      %p155 = scmp.ne.s32.totalorder %s140, %s154
      %p156 = scmp.eq.s32.totalorder %s32, 0
      %p157 = por %p155, %p156
      %s159 = sadd.s32 %s158, 1
      %p162 = scmp.eq.s32.totalorder %s26, 11
      %p163 = scmp.ne.s32.totalorder %s158, %s160
      %p164 = scmp.eq.s32.totalorder %s26, 0
      %p165 = por %p163, %p164
      %p166 = scmp.ne.s32.totalorder %s158, %s160
      %p167 = scmp.eq.s32.totalorder %s31, 11
      %p168 = por %p166, %p167
      %p169 = scmp.ne.s32.totalorder %s160, %s161
      %p170 = scmp.eq.s32.totalorder %s31, 0
      %p171 = por %p169, %p170
      %p172 = scmp.ne.s32.totalorder %s160, %s161
      %p173 = scmp.eq.s32.totalorder %s32, 11
      %p174 = por %p172, %p173
      %p176 = scmp.ne.s32.totalorder %s161, %s175
      %p177 = scmp.eq.s32.totalorder %s32, 0
      %p178 = por %p176, %p177
      %s180 = sadd.s32 %s179, 1
      %p183 = scmp.eq.s32.totalorder %s26, 11
      %p184 = scmp.ne.s32.totalorder %s179, %s181
      %p185 = scmp.eq.s32.totalorder %s26, 0
      %p186 = por %p184, %p185
      %p187 = scmp.ne.s32.totalorder %s179, %s181
      %p188 = scmp.eq.s32.totalorder %s31, 11
      %p189 = por %p187, %p188
      %p190 = scmp.ne.s32.totalorder %s181, %s182
      %p191 = scmp.eq.s32.totalorder %s31, 0
      %p192 = por %p190, %p191
      %p193 = scmp.ne.s32.totalorder %s181, %s182
      %p194 = scmp.eq.s32.totalorder %s32, 11
      %p195 = por %p193, %p194
      %p197 = scmp.ne.s32.totalorder %s182, %s196
      %p198 = scmp.eq.s32.totalorder %s32, 0
      %p199 = por %p197, %p198
      %s201 = sadd.s32 %s200, 1
      %p204 = scmp.eq.s32.totalorder %s26, 11
      %p205 = scmp.ne.s32.totalorder %s200, %s202
      %p206 = scmp.eq.s32.totalorder %s26, 0
      %p207 = por %p205, %p206
      %p208 = scmp.ne.s32.totalorder %s200, %s202
      %p209 = scmp.eq.s32.totalorder %s31, 11
      %p210 = por %p208, %p209
      %p211 = scmp.ne.s32.totalorder %s202, %s203
      %p212 = scmp.eq.s32.totalorder %s31, 0
      %p213 = por %p211, %p212
      %p214 = scmp.ne.s32.totalorder %s202, %s203
      %p215 = scmp.eq.s32.totalorder %s32, 11
      %p216 = por %p214, %p215
      %p218 = scmp.ne.s32.totalorder %s203, %s217
      %p219 = scmp.eq.s32.totalorder %s32, 0
      %p220 = por %p218, %p219
      %s222 = sadd.s32 %s221, 1
      %p225 = scmp.eq.s32.totalorder %s26, 11
      %p226 = scmp.ne.s32.totalorder %s221, %s223
      %p227 = scmp.eq.s32.totalorder %s26, 0
      %p228 = por %p226, %p227
      %p229 = scmp.ne.s32.totalorder %s221, %s223
      %p230 = scmp.eq.s32.totalorder %s31, 11
      %p231 = por %p229, %p230
      %p232 = scmp.ne.s32.totalorder %s223, %s224
      %p233 = scmp.eq.s32.totalorder %s31, 0
      %p234 = por %p232, %p233
      %p235 = scmp.ne.s32.totalorder %s223, %s224
      %p236 = scmp.eq.s32.totalorder %s32, 11
      %p237 = por %p235, %p236
      %p239 = scmp.ne.s32.totalorder %s224, %s238
      %p240 = scmp.eq.s32.totalorder %s32, 0
      %p241 = por %p239, %p240
      %s243 = sadd.s32 %s242, 1
      %p246 = scmp.eq.s32.totalorder %s26, 11
      %p247 = scmp.ne.s32.totalorder %s242, %s244
      %p248 = scmp.eq.s32.totalorder %s26, 0
      %p249 = por %p247, %p248
      %p250 = scmp.ne.s32.totalorder %s242, %s244
      %p251 = scmp.eq.s32.totalorder %s31, 11
      %p252 = por %p250, %p251
      %p253 = scmp.ne.s32.totalorder %s244, %s245
      %p254 = scmp.eq.s32.totalorder %s31, 0
      %p255 = por %p253, %p254
      %p256 = scmp.ne.s32.totalorder %s244, %s245
      %p257 = scmp.eq.s32.totalorder %s32, 11
      %p258 = por %p256, %p257
      %p260 = scmp.ne.s32.totalorder %s245, %s259
      %p261 = scmp.eq.s32.totalorder %s32, 0
      %p262 = por %p260, %p261
      %s264 = sadd.s32 %s263, 1
      %p267 = scmp.eq.s32.totalorder %s26, 11
      %p268 = scmp.ne.s32.totalorder %s263, %s265
      %p269 = scmp.eq.s32.totalorder %s26, 0
      %p270 = por %p268, %p269
      %p271 = scmp.ne.s32.totalorder %s263, %s265
      %p272 = scmp.eq.s32.totalorder %s31, 11
      %p273 = por %p271, %p272
      %p274 = scmp.ne.s32.totalorder %s265, %s266
      %p275 = scmp.eq.s32.totalorder %s31, 0
      %p276 = por %p274, %p275
      %p277 = scmp.ne.s32.totalorder %s265, %s266
      %p278 = scmp.eq.s32.totalorder %s32, 11
      %p279 = por %p277, %p278
      %p281 = scmp.ne.s32.totalorder %s266, %s280
      %p282 = scmp.eq.s32.totalorder %s32, 0
      %p283 = por %p281, %p282
      %s285 = sadd.s32 %s284, 1
      %p288 = scmp.eq.s32.totalorder %s26, 11
      %p289 = scmp.ne.s32.totalorder %s284, %s286
      %p290 = scmp.eq.s32.totalorder %s26, 0
      %p291 = por %p289, %p290
      %p292 = scmp.ne.s32.totalorder %s284, %s286
      %p293 = scmp.eq.s32.totalorder %s31, 11
      %p294 = por %p292, %p293
      %p295 = scmp.ne.s32.totalorder %s286, %s287
      %p296 = scmp.eq.s32.totalorder %s31, 0
      %p297 = por %p295, %p296
      %p298 = scmp.ne.s32.totalorder %s286, %s287
      %p299 = scmp.eq.s32.totalorder %s32, 11
      %p300 = por %p298, %p299
      %p302 = scmp.ne.s32.totalorder %s287, %s301
      %p303 = scmp.eq.s32.totalorder %s32, 0
      %p304 = por %p302, %p303
      %s306 = sadd.s32 %s305, 1
      %p309 = scmp.eq.s32.totalorder %s26, 11
      %p310 = scmp.ne.s32.totalorder %s305, %s307
      %p311 = scmp.eq.s32.totalorder %s26, 0
      %p312 = por %p310, %p311
      %p313 = scmp.ne.s32.totalorder %s305, %s307
      %p314 = scmp.eq.s32.totalorder %s31, 11
      %p315 = por %p313, %p314
      %p316 = scmp.ne.s32.totalorder %s307, %s308
      %p317 = scmp.eq.s32.totalorder %s31, 0
      %p318 = por %p316, %p317
      %p319 = scmp.ne.s32.totalorder %s307, %s308
      %p320 = scmp.eq.s32.totalorder %s32, 11
      %p321 = por %p319, %p320
      %p323 = scmp.ne.s32.totalorder %s308, %s322
      %p324 = scmp.eq.s32.totalorder %s32, 0
      %p325 = por %p323, %p324
      %s327 = sadd.s32 %s326, 1
      %p330 = scmp.eq.s32.totalorder %s26, 11
      %p331 = scmp.ne.s32.totalorder %s326, %s328
      %p332 = scmp.eq.s32.totalorder %s26, 0
      %p333 = por %p331, %p332
      %p334 = scmp.ne.s32.totalorder %s326, %s328
      %p335 = scmp.eq.s32.totalorder %s31, 11
      %p336 = por %p334, %p335
      %p337 = scmp.ne.s32.totalorder %s328, %s329
      %p338 = scmp.eq.s32.totalorder %s31, 0
      %p339 = por %p337, %p338
      %p340 = scmp.ne.s32.totalorder %s328, %s329
      %p341 = scmp.eq.s32.totalorder %s32, 11
      %p342 = por %p340, %p341
      %p344 = scmp.ne.s32.totalorder %s329, %s343
      %p345 = scmp.eq.s32.totalorder %s32, 0
      %p346 = por %p344, %p345
      %p347 = scmp.le.s32.totalorder 1, %s26
      %p348 = scmp.lt.s32.totalorder %s26, 13
      %p349 = pnand %p347, %p348
      %p350 = pneg %p349
      // Predicated region
      $region9: #{tpu_custom_call.1} parent=5 // pred_check
        _
      $region10: #{tpu_custom_call.1} parent=5 // pred_check_branch
        %352 = sbr.rel (%p349) target = $region12
      $region11: #{tpu_custom_call.1} parent=5 // pred_region
        %s353 = ssub.s32 %s26, 1
        // Predicated region
        $region13: #{tpu_custom_call.1} parent=11 // pred_check
          %p354 = pneg %p87
        $region14: #{tpu_custom_call.1} parent=11 // pred_check_branch
          %356 = sbr.rel (%p354) target = $region16
        $region15: #{tpu_custom_call.1} parent=11 // pred_region
          %s358 = ssub.s32 16, 16
          %359 = vsyncadd [#allocation8], %s358
          %362 = dma.hbm_to_smem %s1, 16, [#allocation9], [#allocation8]
        $region16: #{tpu_custom_call.1} parent=11 // pred_fallthru
          _
        // Predicated region
        $region17: #{tpu_custom_call.1} parent=11 // pred_check
          %p363 = pneg %p108
        $region18: #{tpu_custom_call.1} parent=11 // pred_check_branch
          %365 = sbr.rel (%p363) target = $region20
        $region19: #{tpu_custom_call.1} parent=11 // pred_region
          _
        $region20: #{tpu_custom_call.1} parent=11 // pred_fallthru
          _
        // Predicated region
        $region21: #{tpu_custom_call.1} parent=11 // pred_check
          %p366 = pneg %p129
        $region22: #{tpu_custom_call.1} parent=11 // pred_check_branch
          %368 = sbr.rel (%p366) target = $region24
        $region23: #{tpu_custom_call.1} parent=11 // pred_region
          %s370 = ssub.s32 16, 16
          %371 = vsyncadd [#allocation11], %s370
          %s373 = sshll.u32 [#allocation10], 4
          %s374 = int_to_ptr.vmem [resolvable:$true] %s373
          %376 = dma.hbm_to_vmem [thread:$0]  %s3, 16, %s374, [#allocation11]
        $region24: #{tpu_custom_call.1} parent=11 // pred_fallthru
          _
        // Predicated region
        $region25: #{tpu_custom_call.1} parent=11 // pred_check
          %p377 = pneg %p150
        $region26: #{tpu_custom_call.1} parent=11 // pred_check_branch
          %379 = sbr.rel (%p377) target = $region28
        $region27: #{tpu_custom_call.1} parent=11 // pred_region
          _
        $region28: #{tpu_custom_call.1} parent=11 // pred_fallthru
          _
        // Predicated region
        $region29: #{tpu_custom_call.1} parent=11 // pred_check
          %p380 = pneg %p171
        $region30: #{tpu_custom_call.1} parent=11 // pred_check_branch
          %382 = sbr.rel (%p380) target = $region32
        $region31: #{tpu_custom_call.1} parent=11 // pred_region
          %s384 = ssub.s32 48, 48
          %385 = vsyncadd [#allocation11], %s384
          %s386 = sshll.u32 [#allocation12], 4
          %s387 = int_to_ptr.vmem [resolvable:$true] %s386
          %392 = dma.hbm_to_vmem [thread:$0]  %s5, 48, %s387, [#allocation11], 16, 16, 1
        $region32: #{tpu_custom_call.1} parent=11 // pred_fallthru
          _
        // Predicated region
        $region33: #{tpu_custom_call.1} parent=11 // pred_check
          %p393 = pneg %p192
        $region34: #{tpu_custom_call.1} parent=11 // pred_check_branch
          %395 = sbr.rel (%p393) target = $region36
        $region35: #{tpu_custom_call.1} parent=11 // pred_region
          %s397 = ssub.s32 1536, 1536
          %398 = vsyncadd [#allocation14], %s397
          %s399 = sshll.u32 [#allocation13], 4
          %s400 = int_to_ptr.vmem [resolvable:$true] %s399
          %405 = dma.hbm_to_vmem [thread:$0]  %s6, 1536, %s400, [#allocation14], 128, 128, 8
        $region36: #{tpu_custom_call.1} parent=11 // pred_fallthru
          _
        // Predicated region
        $region37: #{tpu_custom_call.1} parent=11 // pred_check
          %p406 = pneg %p213
        $region38: #{tpu_custom_call.1} parent=11 // pred_check_branch
          %408 = sbr.rel (%p406) target = $region40
        $region39: #{tpu_custom_call.1} parent=11 // pred_region
          %s410 = ssub.s32 16, 16
          %411 = vsyncadd [#allocation14], %s410
          %s413 = sshll.u32 [#allocation15], 4
          %s414 = int_to_ptr.vmem [resolvable:$true] %s413
          %416 = dma.hbm_to_vmem [thread:$0]  %s7, 16, %s414, [#allocation14]
        $region40: #{tpu_custom_call.1} parent=11 // pred_fallthru
          _
        // Predicated region
        $region41: #{tpu_custom_call.1} parent=11 // pred_check
          %p417 = pneg %p234
        $region42: #{tpu_custom_call.1} parent=11 // pred_check_branch
          %419 = sbr.rel (%p417) target = $region44
        $region43: #{tpu_custom_call.1} parent=11 // pred_region
          %s421 = ssub.s32 512, 512
          %422 = vsyncadd [#allocation17], %s421
          %s423 = sshll.u32 [#allocation16], 4
          %s424 = int_to_ptr.vmem [resolvable:$true] %s423
          %429 = dma.hbm_to_vmem [thread:$0]  %s8, 512, %s424, [#allocation17], 128, 128, 8
        $region44: #{tpu_custom_call.1} parent=11 // pred_fallthru
          _
        // Predicated region
        $region45: #{tpu_custom_call.1} parent=11 // pred_check
          %p430 = pneg %p255
        $region46: #{tpu_custom_call.1} parent=11 // pred_check_branch
          %432 = sbr.rel (%p430) target = $region48
        $region47: #{tpu_custom_call.1} parent=11 // pred_region
          %s434 = ssub.s32 16, 16
          %435 = vsyncadd [#allocation17], %s434
          %s437 = sshll.u32 [#allocation18], 4
          %s438 = int_to_ptr.vmem [resolvable:$true] %s437
          %440 = dma.hbm_to_vmem [thread:$0]  %s9, 16, %s438, [#allocation17]
        $region48: #{tpu_custom_call.1} parent=11 // pred_fallthru
          _
        // Predicated region
        $region49: #{tpu_custom_call.1} parent=11 // pred_check
          %p441 = pneg %p276
        $region50: #{tpu_custom_call.1} parent=11 // pred_check_branch
          %443 = sbr.rel (%p441) target = $region52
        $region51: #{tpu_custom_call.1} parent=11 // pred_region
          _
        $region52: #{tpu_custom_call.1} parent=11 // pred_fallthru
          _
        // Predicated region
        $region53: #{tpu_custom_call.1} parent=11 // pred_check
          %p444 = pneg %p297
        $region54: #{tpu_custom_call.1} parent=11 // pred_check_branch
          %446 = sbr.rel (%p444) target = $region56
        $region55: #{tpu_custom_call.1} parent=11 // pred_region
          _
        $region56: #{tpu_custom_call.1} parent=11 // pred_fallthru
          _
        // Predicated region
        $region57: #{tpu_custom_call.1} parent=11 // pred_check
          %p447 = pneg %p318
        $region58: #{tpu_custom_call.1} parent=11 // pred_check_branch
          %449 = sbr.rel (%p447) target = $region60
        $region59: #{tpu_custom_call.1} parent=11 // pred_region
          _
        $region60: #{tpu_custom_call.1} parent=11 // pred_fallthru
          _
      $region12: #{tpu_custom_call.1} parent=5 // pred_fallthru
        _
      %p450 = scmp.lt.s32.totalorder %s26, 12
      // Predicated region
      $region61: #{tpu_custom_call.1} parent=5 // pred_check
        %p451 = pneg %p450
      $region62: #{tpu_custom_call.1} parent=5 // pred_check_branch
        %453 = sbr.rel (%p451) target = $region64
      $region63: #{tpu_custom_call.1} parent=5 // pred_region
        // Predicated region
        $region65: #{tpu_custom_call.1} parent=63 // pred_check
          %p454 = pneg %p60
        $region66: #{tpu_custom_call.1} parent=63 // pred_check_branch
          %456 = sbr.rel (%p454) target = $region68
        $region67: #{tpu_custom_call.1} parent=63 // pred_region
          %s457 = sand.u32 %s50, 1
          %s458 = scalar_lea.sflag [#allocation7], %s457
          %s459 = sand.u32 %s50, 1
          %s460 = smul.addr %s459, 16
          %s461 = scalar_lea.vmem [#allocation6], %s460
          %s463 = ssub.s32 256, 256
          %464 = vsyncadd %s458, %s463
          %s465 = sadd.s32 %s33, %s34
          %s466 = smul.addr %s465, 128
          %s467 = scalar_lea.hbm %s0, %s466
          %s468 = sshll.u32 %s461, 4
          %s469 = int_to_ptr.vmem [resolvable:$true] %s468
          %474 = dma.hbm_to_vmem [thread:$0]  %s467, 256, %s469, %s458, 1536, 128, 8
        $region68: #{tpu_custom_call.1} parent=63 // pred_fallthru
          _
      $region64: #{tpu_custom_call.1} parent=5 // pred_fallthru
        _
      %p475 = scmp.le.s32.totalorder 1, %s26
      %p476 = scmp.lt.s32.totalorder %s26, 13
      %p477 = pnand %p475, %p476
      %p478 = pneg %p477
      // Predicated region
      $region69: #{tpu_custom_call.1} parent=5 // pred_check
        _
      $region70: #{tpu_custom_call.1} parent=5 // pred_check_branch
        %480 = sbr.rel (%p477) target = $region72
      $region71: #{tpu_custom_call.1} parent=5 // pred_region
        %s481 = ssub.s32 %s26, 1
        %s482 = sand.u32 %s53, 1
        %s483 = scalar_lea.sflag [#allocation7], %s482
        %s484 = sand.u32 %s53, 1
        %s485 = smul.addr %s484, 16
        %s486 = scalar_lea.vmem [#allocation6], %s485
        // Predicated region
        $region73: #{tpu_custom_call.1} parent=71 // pred_check
          %p487 = pneg %p66
        $region74: #{tpu_custom_call.1} parent=71 // pred_check_branch
          %489 = sbr.rel (%p487) target = $region76
        $region75: #{tpu_custom_call.1} parent=71 // pred_region
          %490 = dma.done %s483, 256
        $region76: #{tpu_custom_call.1} parent=71 // pred_fallthru
          _
        // Predicated region
        $region77: #{tpu_custom_call.1} parent=71 // pred_check
          %p491 = pneg %p87
        $region78: #{tpu_custom_call.1} parent=71 // pred_check_branch
          %493 = sbr.rel (%p491) target = $region80
        $region79: #{tpu_custom_call.1} parent=71 // pred_region
          %494 = dma.done [#allocation8], 16
        $region80: #{tpu_custom_call.1} parent=71 // pred_fallthru
          _
        // Predicated region
        $region81: #{tpu_custom_call.1} parent=71 // pred_check
          %p495 = pneg %p129
        $region82: #{tpu_custom_call.1} parent=71 // pred_check_branch
          %497 = sbr.rel (%p495) target = $region84
        $region83: #{tpu_custom_call.1} parent=71 // pred_region
          %498 = dma.done [#allocation11], 16
        $region84: #{tpu_custom_call.1} parent=71 // pred_fallthru
          _
        // Predicated region
        $region85: #{tpu_custom_call.1} parent=71 // pred_check
          %p499 = pneg %p171
        $region86: #{tpu_custom_call.1} parent=71 // pred_check_branch
          %501 = sbr.rel (%p499) target = $region88
        $region87: #{tpu_custom_call.1} parent=71 // pred_region
          %502 = dma.done [#allocation11], 48
        $region88: #{tpu_custom_call.1} parent=71 // pred_fallthru
          _
        // Predicated region
        $region89: #{tpu_custom_call.1} parent=71 // pred_check
          %p503 = pneg %p192
        $region90: #{tpu_custom_call.1} parent=71 // pred_check_branch
          %505 = sbr.rel (%p503) target = $region92
        $region91: #{tpu_custom_call.1} parent=71 // pred_region
          %506 = dma.done [#allocation14], 1536
        $region92: #{tpu_custom_call.1} parent=71 // pred_fallthru
          _
        // Predicated region
        $region93: #{tpu_custom_call.1} parent=71 // pred_check
          %p507 = pneg %p213
        $region94: #{tpu_custom_call.1} parent=71 // pred_check_branch
          %509 = sbr.rel (%p507) target = $region96
        $region95: #{tpu_custom_call.1} parent=71 // pred_region
          %510 = dma.done [#allocation14], 16
        $region96: #{tpu_custom_call.1} parent=71 // pred_fallthru
          _
        // Predicated region
        $region97: #{tpu_custom_call.1} parent=71 // pred_check
          %p511 = pneg %p234
        $region98: #{tpu_custom_call.1} parent=71 // pred_check_branch
          %513 = sbr.rel (%p511) target = $region100
        $region99: #{tpu_custom_call.1} parent=71 // pred_region
          %514 = dma.done [#allocation17], 512
        $region100: #{tpu_custom_call.1} parent=71 // pred_fallthru
          _
        // Predicated region
        $region101: #{tpu_custom_call.1} parent=71 // pred_check
          %p515 = pneg %p255
        $region102: #{tpu_custom_call.1} parent=71 // pred_check_branch
          %517 = sbr.rel (%p515) target = $region104
        $region103: #{tpu_custom_call.1} parent=71 // pred_region
          %518 = dma.done [#allocation17], 16
        $region104: #{tpu_custom_call.1} parent=71 // pred_fallthru
          _
        %519 = sfence
        %s520 = sand.u32 %s53, 1
        %s521 = scalar_lea.sflag [#allocation7], %s520
        %s522 = sand.u32 %s53, 1
        %s523 = smul.addr %s522, 16
        %s524 = scalar_lea.vmem [#allocation6], %s523
        %p525 = pneg %p66
        %p526 = pneg %p63
        %p527 = pneg %p87
        %p528 = pneg %p84
        %p529 = pneg %p108
        %p530 = pneg %p105
        %p531 = pneg %p129
        %p532 = pneg %p126
        %p533 = pneg %p150
        %p534 = pneg %p147
        %p535 = pneg %p171
        %p536 = pneg %p168
        %p537 = pneg %p192
        %p538 = pneg %p189
        %p539 = pneg %p213
        %p540 = pneg %p210
        %p541 = pneg %p234
        %p542 = pneg %p231
        %p543 = pneg %p255
        %p544 = pneg %p252
        %p545 = pneg %p276
        %p546 = pneg %p273
        %p547 = pneg %p297
        %p548 = pneg %p294
        %p549 = pneg %p318
        %p550 = pneg %p315
        %p551 = pneg %p339
        %p552 = pneg %p336
        %p553 = scmp.eq.s32.totalorder %s36, 0
        // Predicated region
        $region105: #{tpu_custom_call.1} parent=71 // pred_check
          %p554 = pneg %p553
        $region106: #{tpu_custom_call.1} parent=71 // pred_check_branch
          %556 = sbr.rel (%p554) target = $region108
        $region107: #{tpu_custom_call.1} parent=71 // pred_region
          %vm557 = vcmask 130048
          %558 = vst.msk [vmem:[#allocation2] sm:$0xff] %vm557, 0.0
          %559 = vst.msk [vmem:[#allocation2 + $0x8] sm:$0xff] %vm557, 0.0
          %560 = vst.msk [vmem:[#allocation2 + $0x10] sm:$0xff] %vm557, 0.0
          %561 = vst.msk [vmem:[#allocation2 + $0x18] sm:$0xff] %vm557, 0.0
          %562 = vst.msk [vmem:[#allocation2 + $0x20] sm:$0xff] %vm557, 0.0
          %563 = vst.msk [vmem:[#allocation2 + $0x28] sm:$0xff] %vm557, 0.0
          %564 = vst.msk [vmem:[#allocation2 + $0x30] sm:$0xff] %vm557, 0.0
          %565 = vst.msk [vmem:[#allocation2 + $0x38] sm:$0xff] %vm557, 0.0
        $region108: #{tpu_custom_call.1} parent=71 // pred_fallthru
          _
        %s566 = sld [smem:[#allocation9 + %s36]]
        %v567 = vld [vmem:[#allocation2] sm:$0xff]
        %v568 = vld [vmem:[#allocation2 + $0x8] sm:$0xff]
        %v569 = vld [vmem:[%s486] sm:$0xff]
        %v570 = vld [vmem:[%s486 + $0x8] sm:$0xff]
        %v571 = vstv %s566
        %v572 = vmul.f32 %v571, %v569
        %v573 = vmul.f32 %v571, %v570
        %v574 = vadd.f32 %v567, %v572
        %v575 = vadd.f32 %v568, %v573
        %vm576 = vcmask 130048
        %577 = vst.msk [vmem:[#allocation2] sm:$0xff] %vm576, %v574
        %578 = vst.msk [vmem:[#allocation2 + $0x8] sm:$0xff] %vm576, %v575
        %p579 = scmp.eq.s32.totalorder %s36, 11
        // Predicated region
        $region109: #{tpu_custom_call.1} parent=71 // pred_check
          %p580 = pneg %p579
        $region110: #{tpu_custom_call.1} parent=71 // pred_check_branch
          %582 = sbr.rel (%p580) target = $region112
        $region111: #{tpu_custom_call.1} parent=71 // pred_region
          %v583 = vld [vmem:[%s2] sm:$0xff]
          %v584 = vld [vmem:[%s2 + $0x8] sm:$0xff]
          %v585 = vld [vmem:[#allocation10] sm:$0x1]
          %v586 = vld [vmem:[%s4] sm:$0xff]
          %v587 = vld [vmem:[%s4 + $0x8] sm:$0xff]
          %v588 = vld [vmem:[%s4 + $0x10] sm:$0xff]
          %v589 = vld [vmem:[%s4 + $0x18] sm:$0xff]
          %s590 = scalar_lea.vmem %s4, 32
          %v591 = vld [vmem:[%s590] sm:$0xff]
          %v592 = vld [vmem:[%s590 + $0x8] sm:$0xff]
          %v593 = vld [vmem:[%s590 + $0x10] sm:$0xff]
          %v594 = vld [vmem:[%s590 + $0x18] sm:$0xff]
          %s595 = scalar_lea.vmem %s4, 64
          %v596 = vld [vmem:[%s595] sm:$0xff]
          %v597 = vld [vmem:[%s595 + $0x8] sm:$0xff]
          %v598 = vld [vmem:[%s595 + $0x10] sm:$0xff]
          %v599 = vld [vmem:[%s595 + $0x18] sm:$0xff]
          %v600 = vld [vmem:[#allocation12] sm:$0x1]
          %s601 = scalar_lea.vmem [#allocation12], 1
          %v602 = vld [vmem:[%s601] sm:$0x1]
          %s603 = scalar_lea.vmem [#allocation12], 2
          %v604 = vld [vmem:[%s603] sm:$0x1]
          %s605 = smul.u32 %s35, 8
          %v606 = vld [vmem:[#allocation2] sm:$0x1]
          %v607 = vld [vmem:[#allocation2 + $0x8] sm:$0x1]
          %v608 = vld [vmem:[#allocation2 + $0x10] sm:$0x1]
          %v609 = vld [vmem:[#allocation2 + $0x18] sm:$0x1]
          %v610 = vld [vmem:[#allocation2 + $0x20] sm:$0x1]
          %v611 = vld [vmem:[#allocation2 + $0x28] sm:$0x1]
          %v612 = vld [vmem:[#allocation2 + $0x30] sm:$0x1]
          %v613 = vld [vmem:[#allocation2 + $0x38] sm:$0x1]
          %v615 = vlaneseq
          %v616 = vshrl.u32 %v615, 7
          %v617 = vsub.s32 0, %v616
          %v618 = vrot.slane %v585, %v617
          %v628 = vrot.slane %v607, 7
          %vm629 = vcmask 1041409
          %v630 = vsel %vm629, %v628, %v606
          %v631 = vrot.slane %v608, 6
          %vm632 = vcmask 1042434
          %v633 = vsel %vm632, %v631, %v630
          %v634 = vrot.slane %v609, 5
          %vm635 = vcmask 1043459
          %v636 = vsel %vm635, %v634, %v633
          %v637 = vrot.slane %v610, 4
          %vm638 = vcmask 1044484
          %v639 = vsel %vm638, %v637, %v636
          %v640 = vrot.slane %v611, 3
          %vm641 = vcmask 1045509
          %v642 = vsel %vm641, %v640, %v639
          %v643 = vrot.slane %v612, 2
          %vm644 = vcmask 1046534
          %v645 = vsel %vm644, %v643, %v642
          %v646 = vrot.slane %v613, 1
          %vm647 = vcmask 1047559
          %v648 = vsel %vm647, %v646, %v645
          %v649 = vsel %vm576, %v648, 0
          %651 = vmatprep.subr.mxu0 0.0
          %652 = vmatpush1.msra.mxu0 0.0
          %653 = vmatprep.subr.mxu0 0.0
          %654 = vmatpush1.msra.mxu0 0.0
          %655 = vmatprep.subr.mxu0 0.0
          %656 = vmatpush1.msra.mxu0 0.0
          %657 = vmatprep.subr.mxu0 0.0
          %658 = vmatpush1.msra.mxu0 0.0
          %659 = vmatprep.subr.mxu0 0.0
          %660 = vmatpush1.msra.mxu0 0.0
          %661 = vmatprep.subr.mxu0 0.0
          %662 = vmatpush1.msra.mxu0 0.0
          %663 = vmatprep.subr.mxu0 0.0
          %664 = vmatpush1.msra.mxu0 0.0
          %665 = vmatprep.subr.mxu0 0.0
          %666 = vmatpush1.msra.mxu0 0.0
          %667 = vmatprep.subr.mxu0 0.0
          %668 = vmatpush1.msra.mxu0 0.0
          %669 = vmatprep.subr.mxu0 0.0
          %670 = vmatpush1.msra.mxu0 0.0
          %671 = vmatprep.subr.mxu0 0.0
          %672 = vmatpush1.msra.mxu0 0.0
          %673 = vmatprep.subr.mxu0 0.0
          %674 = vmatpush1.msra.mxu0 0.0
          %675 = vmatprep.subr.mxu0 0.0
          %676 = vmatpush1.msra.mxu0 0.0
          %677 = vmatprep.subr.mxu0 0.0
          %678 = vmatpush1.msra.mxu0 0.0
          %679 = vmatprep.subr.mxu0 0.0
          %680 = vmatpush1.msra.mxu0 %v584
          %681 = vmatprep.subr.mxu0 0.0
          %682 = vmatpush1.msra.mxu0 %v583
          %683 = vmatprep.subr.mxu0 0.0
          %684 = vmatpush2.msra.mxu0 0.0
          %685 = vmatprep.subr.mxu0 0.0
          %686 = vmatpush2.msra.mxu0 0.0
          %687 = vmatprep.subr.mxu0 0.0
          %688 = vmatpush2.msra.mxu0 0.0
          %689 = vmatprep.subr.mxu0 0.0
          %690 = vmatpush2.msra.mxu0 0.0
          %691 = vmatprep.subr.mxu0 0.0
          %692 = vmatpush2.msra.mxu0 0.0
          %693 = vmatprep.subr.mxu0 0.0
          %694 = vmatpush2.msra.mxu0 0.0
          %695 = vmatprep.subr.mxu0 0.0
          %696 = vmatpush2.msra.mxu0 0.0
          %697 = vmatprep.subr.mxu0 0.0
          %698 = vmatpush2.msra.mxu0 0.0
          %699 = vmatprep.subr.mxu0 0.0
          %700 = vmatpush2.msra.mxu0 0.0
          %701 = vmatprep.subr.mxu0 0.0
          %702 = vmatpush2.msra.mxu0 0.0
          %703 = vmatprep.subr.mxu0 0.0
          %704 = vmatpush2.msra.mxu0 0.0
          %705 = vmatprep.subr.mxu0 0.0
          %706 = vmatpush2.msra.mxu0 0.0
          %707 = vmatprep.subr.mxu0 0.0
          %708 = vmatpush2.msra.mxu0 0.0
          %709 = vmatprep.subr.mxu0 0.0
          %710 = vmatpush2.msra.mxu0 0.0
          %711 = vmatprep.subr.mxu0 0.0
          %712 = vmatpush2.msra.mxu0 0.0
          %713 = vmatprep.subr.mxu0 0.0
          %714 = vmatpush2.msra.mxu0 0.0
          %715 = vmatprep.mubr.f32.mxu0 0.0
          %716 = vmatmul.mubr.f32.gmra.mxu0 %v649
          %v717 = vpop.f32.mrf.mxu0
          %v718 = vadd.f32 %v618, %v717
          %v719 = vpop.f32.mrf.mxu0
          %720 = vdwg.mxu0
          %v721 = vmax.f32 %v718, 0.0
          %v723 = vlaneseq
          %v724 = vshrl.u32 %v723, 7
          %v725 = vsub.s32 0, %v724
          %v726 = vrot.slane %v600, %v725
          %vm728 = vcmask 261120
          %v730 = vsel %vm728, %v721, 0
          %732 = vmatprep.subr.mxu0 0.0
          %733 = vmatpush1.msra.mxu0 0.0
          %734 = vmatprep.subr.mxu0 0.0
          %735 = vmatpush1.msra.mxu0 0.0
          %736 = vmatprep.subr.mxu0 0.0
          %737 = vmatpush1.msra.mxu0 0.0
          %738 = vmatprep.subr.mxu0 0.0
          %739 = vmatpush1.msra.mxu0 0.0
          %740 = vmatprep.subr.mxu0 0.0
          %741 = vmatpush1.msra.mxu0 0.0
          %742 = vmatprep.subr.mxu0 0.0
          %743 = vmatpush1.msra.mxu0 0.0
          %744 = vmatprep.subr.mxu0 0.0
          %745 = vmatpush1.msra.mxu0 0.0
          %746 = vmatprep.subr.mxu0 0.0
          %747 = vmatpush1.msra.mxu0 0.0
          %748 = vmatprep.subr.mxu0 0.0
          %749 = vmatpush1.msra.mxu0 0.0
          %750 = vmatprep.subr.mxu0 0.0
          %751 = vmatpush1.msra.mxu0 0.0
          %752 = vmatprep.subr.mxu0 0.0
          %753 = vmatpush1.msra.mxu0 0.0
          %754 = vmatprep.subr.mxu0 0.0
          %755 = vmatpush1.msra.mxu0 0.0
          %756 = vmatprep.subr.mxu0 0.0
          %757 = vmatpush1.msra.mxu0 %v589
          %758 = vmatprep.subr.mxu0 0.0
          %759 = vmatpush1.msra.mxu0 %v588
          %760 = vmatprep.subr.mxu0 0.0
          %761 = vmatpush1.msra.mxu0 %v587
          %762 = vmatprep.subr.mxu0 0.0
          %763 = vmatpush1.msra.mxu0 %v586
          %764 = vmatprep.subr.mxu0 0.0
          %765 = vmatpush2.msra.mxu0 0.0
          %766 = vmatprep.subr.mxu0 0.0
          %767 = vmatpush2.msra.mxu0 0.0
          %768 = vmatprep.subr.mxu0 0.0
          %769 = vmatpush2.msra.mxu0 0.0
          %770 = vmatprep.subr.mxu0 0.0
          %771 = vmatpush2.msra.mxu0 0.0
          %772 = vmatprep.subr.mxu0 0.0
          %773 = vmatpush2.msra.mxu0 0.0
          %774 = vmatprep.subr.mxu0 0.0
          %775 = vmatpush2.msra.mxu0 0.0
          %776 = vmatprep.subr.mxu0 0.0
          %777 = vmatpush2.msra.mxu0 0.0
          %778 = vmatprep.subr.mxu0 0.0
          %779 = vmatpush2.msra.mxu0 0.0
          %780 = vmatprep.subr.mxu0 0.0
          %781 = vmatpush2.msra.mxu0 0.0
          %782 = vmatprep.subr.mxu0 0.0
          %783 = vmatpush2.msra.mxu0 0.0
          %784 = vmatprep.subr.mxu0 0.0
          %785 = vmatpush2.msra.mxu0 0.0
          %786 = vmatprep.subr.mxu0 0.0
          %787 = vmatpush2.msra.mxu0 0.0
          %788 = vmatprep.subr.mxu0 0.0
          %789 = vmatpush2.msra.mxu0 0.0
          %790 = vmatprep.subr.mxu0 0.0
          %791 = vmatpush2.msra.mxu0 0.0
          %792 = vmatprep.subr.mxu0 0.0
          %793 = vmatpush2.msra.mxu0 0.0
          %794 = vmatprep.subr.mxu0 0.0
          %795 = vmatpush2.msra.mxu0 0.0
          %796 = vmatprep.mubr.f32.mxu0 0.0
          %797 = vmatmul.mubr.f32.gmra.mxu0 %v730
          %v798 = vpop.f32.mrf.mxu0
          %v799 = vadd.f32 %v726, %v798
          %v800 = vpop.f32.mrf.mxu0
          %801 = vdwg.mxu0
          %s802 = smul.u32 %s605, 8
          %s803 = scalar_lea.vmem [#allocation3], %s802
          %804 = vst.msk [vmem:[%s803] sm:$0xff] %vm728, %v799
          %v806 = vlaneseq
          %v807 = vshrl.u32 %v806, 7
          %v808 = vsub.s32 0, %v807
          %v809 = vrot.slane %v602, %v808
          %811 = vmatprep.subr.mxu0 0.0
          %812 = vmatpush1.msra.mxu0 0.0
          %813 = vmatprep.subr.mxu0 0.0
          %814 = vmatpush1.msra.mxu0 0.0
          %815 = vmatprep.subr.mxu0 0.0
          %816 = vmatpush1.msra.mxu0 0.0
          %817 = vmatprep.subr.mxu0 0.0
          %818 = vmatpush1.msra.mxu0 0.0
          %819 = vmatprep.subr.mxu0 0.0
          %820 = vmatpush1.msra.mxu0 0.0
          %821 = vmatprep.subr.mxu0 0.0
          %822 = vmatpush1.msra.mxu0 0.0
          %823 = vmatprep.subr.mxu0 0.0
          %824 = vmatpush1.msra.mxu0 0.0
          %825 = vmatprep.subr.mxu0 0.0
          %826 = vmatpush1.msra.mxu0 0.0
          %827 = vmatprep.subr.mxu0 0.0
          %828 = vmatpush1.msra.mxu0 0.0
          %829 = vmatprep.subr.mxu0 0.0
          %830 = vmatpush1.msra.mxu0 0.0
          %831 = vmatprep.subr.mxu0 0.0
          %832 = vmatpush1.msra.mxu0 0.0
          %833 = vmatprep.subr.mxu0 0.0
          %834 = vmatpush1.msra.mxu0 0.0
          %835 = vmatprep.subr.mxu0 0.0
          %836 = vmatpush1.msra.mxu0 %v594
          %837 = vmatprep.subr.mxu0 0.0
          %838 = vmatpush1.msra.mxu0 %v593
          %839 = vmatprep.subr.mxu0 0.0
          %840 = vmatpush1.msra.mxu0 %v592
          %841 = vmatprep.subr.mxu0 0.0
          %842 = vmatpush1.msra.mxu0 %v591
          %843 = vmatprep.subr.mxu0 0.0
          %844 = vmatpush2.msra.mxu0 0.0
          %845 = vmatprep.subr.mxu0 0.0
          %846 = vmatpush2.msra.mxu0 0.0
          %847 = vmatprep.subr.mxu0 0.0
          %848 = vmatpush2.msra.mxu0 0.0
          %849 = vmatprep.subr.mxu0 0.0
          %850 = vmatpush2.msra.mxu0 0.0
          %851 = vmatprep.subr.mxu0 0.0
          %852 = vmatpush2.msra.mxu0 0.0
          %853 = vmatprep.subr.mxu0 0.0
          %854 = vmatpush2.msra.mxu0 0.0
          %855 = vmatprep.subr.mxu0 0.0
          %856 = vmatpush2.msra.mxu0 0.0
          %857 = vmatprep.subr.mxu0 0.0
          %858 = vmatpush2.msra.mxu0 0.0
          %859 = vmatprep.subr.mxu0 0.0
          %860 = vmatpush2.msra.mxu0 0.0
          %861 = vmatprep.subr.mxu0 0.0
          %862 = vmatpush2.msra.mxu0 0.0
          %863 = vmatprep.subr.mxu0 0.0
          %864 = vmatpush2.msra.mxu0 0.0
          %865 = vmatprep.subr.mxu0 0.0
          %866 = vmatpush2.msra.mxu0 0.0
          %867 = vmatprep.subr.mxu0 0.0
          %868 = vmatpush2.msra.mxu0 0.0
          %869 = vmatprep.subr.mxu0 0.0
          %870 = vmatpush2.msra.mxu0 0.0
          %871 = vmatprep.subr.mxu0 0.0
          %872 = vmatpush2.msra.mxu0 0.0
          %873 = vmatprep.subr.mxu0 0.0
          %874 = vmatpush2.msra.mxu0 0.0
          %875 = vmatprep.mubr.f32.mxu0 0.0
          %876 = vmatmul.mubr.f32.gmra.mxu0 %v730
          %v877 = vpop.f32.mrf.mxu0
          %v878 = vadd.f32 %v809, %v877
          %v879 = vpop.f32.mrf.mxu0
          %880 = vdwg.mxu0
          %s881 = scalar_lea.vmem [#allocation4], %s802
          %882 = vst.msk [vmem:[%s881] sm:$0xff] %vm728, %v878
          %v884 = vlaneseq
          %v885 = vshrl.u32 %v884, 7
          %v886 = vsub.s32 0, %v885
          %v887 = vrot.slane %v604, %v886
          %889 = vmatprep.subr.mxu0 0.0
          %890 = vmatpush1.msra.mxu0 0.0
          %891 = vmatprep.subr.mxu0 0.0
          %892 = vmatpush1.msra.mxu0 0.0
          %893 = vmatprep.subr.mxu0 0.0
          %894 = vmatpush1.msra.mxu0 0.0
          %895 = vmatprep.subr.mxu0 0.0
          %896 = vmatpush1.msra.mxu0 0.0
          %897 = vmatprep.subr.mxu0 0.0
          %898 = vmatpush1.msra.mxu0 0.0
          %899 = vmatprep.subr.mxu0 0.0
          %900 = vmatpush1.msra.mxu0 0.0
          %901 = vmatprep.subr.mxu0 0.0
          %902 = vmatpush1.msra.mxu0 0.0
          %903 = vmatprep.subr.mxu0 0.0
          %904 = vmatpush1.msra.mxu0 0.0
          %905 = vmatprep.subr.mxu0 0.0
          %906 = vmatpush1.msra.mxu0 0.0
          %907 = vmatprep.subr.mxu0 0.0
          %908 = vmatpush1.msra.mxu0 0.0
          %909 = vmatprep.subr.mxu0 0.0
          %910 = vmatpush1.msra.mxu0 0.0
          %911 = vmatprep.subr.mxu0 0.0
          %912 = vmatpush1.msra.mxu0 0.0
          %913 = vmatprep.subr.mxu0 0.0
          %914 = vmatpush1.msra.mxu0 %v599
          %915 = vmatprep.subr.mxu0 0.0
          %916 = vmatpush1.msra.mxu0 %v598
          %917 = vmatprep.subr.mxu0 0.0
          %918 = vmatpush1.msra.mxu0 %v597
          %919 = vmatprep.subr.mxu0 0.0
          %920 = vmatpush1.msra.mxu0 %v596
          %921 = vmatprep.subr.mxu0 0.0
          %922 = vmatpush2.msra.mxu0 0.0
          %923 = vmatprep.subr.mxu0 0.0
          %924 = vmatpush2.msra.mxu0 0.0
          %925 = vmatprep.subr.mxu0 0.0
          %926 = vmatpush2.msra.mxu0 0.0
          %927 = vmatprep.subr.mxu0 0.0
          %928 = vmatpush2.msra.mxu0 0.0
          %929 = vmatprep.subr.mxu0 0.0
          %930 = vmatpush2.msra.mxu0 0.0
          %931 = vmatprep.subr.mxu0 0.0
          %932 = vmatpush2.msra.mxu0 0.0
          %933 = vmatprep.subr.mxu0 0.0
          %934 = vmatpush2.msra.mxu0 0.0
          %935 = vmatprep.subr.mxu0 0.0
          %936 = vmatpush2.msra.mxu0 0.0
          %937 = vmatprep.subr.mxu0 0.0
          %938 = vmatpush2.msra.mxu0 0.0
          %939 = vmatprep.subr.mxu0 0.0
          %940 = vmatpush2.msra.mxu0 0.0
          %941 = vmatprep.subr.mxu0 0.0
          %942 = vmatpush2.msra.mxu0 0.0
          %943 = vmatprep.subr.mxu0 0.0
          %944 = vmatpush2.msra.mxu0 0.0
          %945 = vmatprep.subr.mxu0 0.0
          %946 = vmatpush2.msra.mxu0 0.0
          %947 = vmatprep.subr.mxu0 0.0
          %948 = vmatpush2.msra.mxu0 0.0
          %949 = vmatprep.subr.mxu0 0.0
          %950 = vmatpush2.msra.mxu0 0.0
          %951 = vmatprep.subr.mxu0 0.0
          %952 = vmatpush2.msra.mxu0 0.0
          %953 = vmatprep.mubr.f32.mxu0 0.0
          %954 = vmatmul.mubr.f32.gmra.mxu0 %v730
          %v955 = vpop.f32.mrf.mxu0
          %v956 = vadd.f32 %v887, %v955
          %v957 = vpop.f32.mrf.mxu0
          %958 = vdwg.mxu0
          %s959 = scalar_lea.vmem [#allocation5], %s802
          %960 = vst.msk [vmem:[%s959] sm:$0xff] %vm728, %v956
          %v961 = vld [vmem:[#allocation2 + $0x1] sm:$0x1]
          %v962 = vld [vmem:[#allocation2 + $0x9] sm:$0x1]
          %v963 = vld [vmem:[#allocation2 + $0x11] sm:$0x1]
          %v964 = vld [vmem:[#allocation2 + $0x19] sm:$0x1]
          %v965 = vld [vmem:[#allocation2 + $0x21] sm:$0x1]
          %v966 = vld [vmem:[#allocation2 + $0x29] sm:$0x1]
          %v967 = vld [vmem:[#allocation2 + $0x31] sm:$0x1]
          %v968 = vld [vmem:[#allocation2 + $0x39] sm:$0x1]
          %v977 = vrot.slane %v962, 7
          %v978 = vsel %vm629, %v977, %v961
          %v979 = vrot.slane %v963, 6
          %v980 = vsel %vm632, %v979, %v978
          %v981 = vrot.slane %v964, 5
          %v982 = vsel %vm635, %v981, %v980
          %v983 = vrot.slane %v965, 4
          %v984 = vsel %vm638, %v983, %v982
          %v985 = vrot.slane %v966, 3
          %v986 = vsel %vm641, %v985, %v984
          %v987 = vrot.slane %v967, 2
          %v988 = vsel %vm644, %v987, %v986
          %v989 = vrot.slane %v968, 1
          %v990 = vsel %vm647, %v989, %v988
          %v991 = vsel %vm576, %v990, 0
          %993 = vmatprep.subr.mxu0 0.0
          %994 = vmatpush1.msra.mxu0 0.0
          %995 = vmatprep.subr.mxu0 0.0
          %996 = vmatpush1.msra.mxu0 0.0
          %997 = vmatprep.subr.mxu0 0.0
          %998 = vmatpush1.msra.mxu0 0.0
          %999 = vmatprep.subr.mxu0 0.0
          %1000 = vmatpush1.msra.mxu0 0.0
          %1001 = vmatprep.subr.mxu0 0.0
          %1002 = vmatpush1.msra.mxu0 0.0
          %1003 = vmatprep.subr.mxu0 0.0
          %1004 = vmatpush1.msra.mxu0 0.0
          %1005 = vmatprep.subr.mxu0 0.0
          %1006 = vmatpush1.msra.mxu0 0.0
          %1007 = vmatprep.subr.mxu0 0.0
          %1008 = vmatpush1.msra.mxu0 0.0
          %1009 = vmatprep.subr.mxu0 0.0
          %1010 = vmatpush1.msra.mxu0 0.0
          %1011 = vmatprep.subr.mxu0 0.0
          %1012 = vmatpush1.msra.mxu0 0.0
          %1013 = vmatprep.subr.mxu0 0.0
          %1014 = vmatpush1.msra.mxu0 0.0
          %1015 = vmatprep.subr.mxu0 0.0
          %1016 = vmatpush1.msra.mxu0 0.0
          %1017 = vmatprep.subr.mxu0 0.0
          %1018 = vmatpush1.msra.mxu0 0.0
          %1019 = vmatprep.subr.mxu0 0.0
          %1020 = vmatpush1.msra.mxu0 0.0
          %1021 = vmatprep.subr.mxu0 0.0
          %1022 = vmatpush1.msra.mxu0 %v584
          %1023 = vmatprep.subr.mxu0 0.0
          %1024 = vmatpush1.msra.mxu0 %v583
          %1025 = vmatprep.subr.mxu0 0.0
          %1026 = vmatpush2.msra.mxu0 0.0
          %1027 = vmatprep.subr.mxu0 0.0
          %1028 = vmatpush2.msra.mxu0 0.0
          %1029 = vmatprep.subr.mxu0 0.0
          %1030 = vmatpush2.msra.mxu0 0.0
          %1031 = vmatprep.subr.mxu0 0.0
          %1032 = vmatpush2.msra.mxu0 0.0
          %1033 = vmatprep.subr.mxu0 0.0
          %1034 = vmatpush2.msra.mxu0 0.0
          %1035 = vmatprep.subr.mxu0 0.0
          %1036 = vmatpush2.msra.mxu0 0.0
          %1037 = vmatprep.subr.mxu0 0.0
          %1038 = vmatpush2.msra.mxu0 0.0
          %1039 = vmatprep.subr.mxu0 0.0
          %1040 = vmatpush2.msra.mxu0 0.0
          %1041 = vmatprep.subr.mxu0 0.0
          %1042 = vmatpush2.msra.mxu0 0.0
          %1043 = vmatprep.subr.mxu0 0.0
          %1044 = vmatpush2.msra.mxu0 0.0
          %1045 = vmatprep.subr.mxu0 0.0
          %1046 = vmatpush2.msra.mxu0 0.0
          %1047 = vmatprep.subr.mxu0 0.0
          %1048 = vmatpush2.msra.mxu0 0.0
          %1049 = vmatprep.subr.mxu0 0.0
          %1050 = vmatpush2.msra.mxu0 0.0
          %1051 = vmatprep.subr.mxu0 0.0
          %1052 = vmatpush2.msra.mxu0 0.0
          %1053 = vmatprep.subr.mxu0 0.0
          %1054 = vmatpush2.msra.mxu0 0.0
          %1055 = vmatprep.subr.mxu0 0.0
          %1056 = vmatpush2.msra.mxu0 0.0
          %1057 = vmatprep.mubr.f32.mxu0 0.0
          %1058 = vmatmul.mubr.f32.gmra.mxu0 %v991
          %v1059 = vpop.f32.mrf.mxu0
          %v1060 = vadd.f32 %v618, %v1059
          %v1061 = vpop.f32.mrf.mxu0
          %1062 = vdwg.mxu0
          %v1063 = vmax.f32 %v1060, 0.0
          %v1065 = vsel %vm728, %v1063, 0
          %1067 = vmatprep.subr.mxu0 0.0
          %1068 = vmatpush1.msra.mxu0 0.0
          %1069 = vmatprep.subr.mxu0 0.0
          %1070 = vmatpush1.msra.mxu0 0.0
          %1071 = vmatprep.subr.mxu0 0.0
          %1072 = vmatpush1.msra.mxu0 0.0
          %1073 = vmatprep.subr.mxu0 0.0
          %1074 = vmatpush1.msra.mxu0 0.0
          %1075 = vmatprep.subr.mxu0 0.0
          %1076 = vmatpush1.msra.mxu0 0.0
          %1077 = vmatprep.subr.mxu0 0.0
          %1078 = vmatpush1.msra.mxu0 0.0
          %1079 = vmatprep.subr.mxu0 0.0
          %1080 = vmatpush1.msra.mxu0 0.0
          %1081 = vmatprep.subr.mxu0 0.0
          %1082 = vmatpush1.msra.mxu0 0.0
          %1083 = vmatprep.subr.mxu0 0.0
          %1084 = vmatpush1.msra.mxu0 0.0
          %1085 = vmatprep.subr.mxu0 0.0
          %1086 = vmatpush1.msra.mxu0 0.0
          %1087 = vmatprep.subr.mxu0 0.0
          %1088 = vmatpush1.msra.mxu0 0.0
          %1089 = vmatprep.subr.mxu0 0.0
          %1090 = vmatpush1.msra.mxu0 0.0
          %1091 = vmatprep.subr.mxu0 0.0
          %1092 = vmatpush1.msra.mxu0 %v589
          %1093 = vmatprep.subr.mxu0 0.0
          %1094 = vmatpush1.msra.mxu0 %v588
          %1095 = vmatprep.subr.mxu0 0.0
          %1096 = vmatpush1.msra.mxu0 %v587
          %1097 = vmatprep.subr.mxu0 0.0
          %1098 = vmatpush1.msra.mxu0 %v586
          %1099 = vmatprep.subr.mxu0 0.0
          %1100 = vmatpush2.msra.mxu0 0.0
          %1101 = vmatprep.subr.mxu0 0.0
          %1102 = vmatpush2.msra.mxu0 0.0
          %1103 = vmatprep.subr.mxu0 0.0
          %1104 = vmatpush2.msra.mxu0 0.0
          %1105 = vmatprep.subr.mxu0 0.0
          %1106 = vmatpush2.msra.mxu0 0.0
          %1107 = vmatprep.subr.mxu0 0.0
          %1108 = vmatpush2.msra.mxu0 0.0
          %1109 = vmatprep.subr.mxu0 0.0
          %1110 = vmatpush2.msra.mxu0 0.0
          %1111 = vmatprep.subr.mxu0 0.0
          %1112 = vmatpush2.msra.mxu0 0.0
          %1113 = vmatprep.subr.mxu0 0.0
          %1114 = vmatpush2.msra.mxu0 0.0
          %1115 = vmatprep.subr.mxu0 0.0
          %1116 = vmatpush2.msra.mxu0 0.0
          %1117 = vmatprep.subr.mxu0 0.0
          %1118 = vmatpush2.msra.mxu0 0.0
          %1119 = vmatprep.subr.mxu0 0.0
          %1120 = vmatpush2.msra.mxu0 0.0
          %1121 = vmatprep.subr.mxu0 0.0
          %1122 = vmatpush2.msra.mxu0 0.0
          %1123 = vmatprep.subr.mxu0 0.0
          %1124 = vmatpush2.msra.mxu0 0.0
          %1125 = vmatprep.subr.mxu0 0.0
          %1126 = vmatpush2.msra.mxu0 0.0
          %1127 = vmatprep.subr.mxu0 0.0
          %1128 = vmatpush2.msra.mxu0 0.0
          %1129 = vmatprep.subr.mxu0 0.0
          %1130 = vmatpush2.msra.mxu0 0.0
          %1131 = vmatprep.mubr.f32.mxu0 0.0
          %1132 = vmatmul.mubr.f32.gmra.mxu0 %v1065
          %v1133 = vpop.f32.mrf.mxu0
          %v1134 = vadd.f32 %v726, %v1133
          %v1135 = vpop.f32.mrf.mxu0
          %1136 = vdwg.mxu0
          %s1137 = sadd.s32 %s605, 1
          %s1138 = smul.u32 %s1137, 8
          %s1139 = scalar_lea.vmem [#allocation3], %s1138
          %1140 = vst.msk [vmem:[%s1139] sm:$0xff] %vm728, %v1134
          %1141 = vmatprep.subr.mxu0 0.0
          %1142 = vmatpush1.msra.mxu0 0.0
          %1143 = vmatprep.subr.mxu0 0.0
          %1144 = vmatpush1.msra.mxu0 0.0
          %1145 = vmatprep.subr.mxu0 0.0
          %1146 = vmatpush1.msra.mxu0 0.0
          %1147 = vmatprep.subr.mxu0 0.0
          %1148 = vmatpush1.msra.mxu0 0.0
          %1149 = vmatprep.subr.mxu0 0.0
          %1150 = vmatpush1.msra.mxu0 0.0
          %1151 = vmatprep.subr.mxu0 0.0
          %1152 = vmatpush1.msra.mxu0 0.0
          %1153 = vmatprep.subr.mxu0 0.0
          %1154 = vmatpush1.msra.mxu0 0.0
          %1155 = vmatprep.subr.mxu0 0.0
          %1156 = vmatpush1.msra.mxu0 0.0
          %1157 = vmatprep.subr.mxu0 0.0
          %1158 = vmatpush1.msra.mxu0 0.0
          %1159 = vmatprep.subr.mxu0 0.0
          %1160 = vmatpush1.msra.mxu0 0.0
          %1161 = vmatprep.subr.mxu0 0.0
          %1162 = vmatpush1.msra.mxu0 0.0
          %1163 = vmatprep.subr.mxu0 0.0
          %1164 = vmatpush1.msra.mxu0 0.0
          %1165 = vmatprep.subr.mxu0 0.0
          %1166 = vmatpush1.msra.mxu0 %v594
          %1167 = vmatprep.subr.mxu0 0.0
          %1168 = vmatpush1.msra.mxu0 %v593
          %1169 = vmatprep.subr.mxu0 0.0
          %1170 = vmatpush1.msra.mxu0 %v592
          %1171 = vmatprep.subr.mxu0 0.0
          %1172 = vmatpush1.msra.mxu0 %v591
          %1173 = vmatprep.subr.mxu0 0.0
          %1174 = vmatpush2.msra.mxu0 0.0
          %1175 = vmatprep.subr.mxu0 0.0
          %1176 = vmatpush2.msra.mxu0 0.0
          %1177 = vmatprep.subr.mxu0 0.0
          %1178 = vmatpush2.msra.mxu0 0.0
          %1179 = vmatprep.subr.mxu0 0.0
          %1180 = vmatpush2.msra.mxu0 0.0
          %1181 = vmatprep.subr.mxu0 0.0
          %1182 = vmatpush2.msra.mxu0 0.0
          %1183 = vmatprep.subr.mxu0 0.0
          %1184 = vmatpush2.msra.mxu0 0.0
          %1185 = vmatprep.subr.mxu0 0.0
          %1186 = vmatpush2.msra.mxu0 0.0
          %1187 = vmatprep.subr.mxu0 0.0
          %1188 = vmatpush2.msra.mxu0 0.0
          %1189 = vmatprep.subr.mxu0 0.0
          %1190 = vmatpush2.msra.mxu0 0.0
          %1191 = vmatprep.subr.mxu0 0.0
          %1192 = vmatpush2.msra.mxu0 0.0
          %1193 = vmatprep.subr.mxu0 0.0
          %1194 = vmatpush2.msra.mxu0 0.0
          %1195 = vmatprep.subr.mxu0 0.0
          %1196 = vmatpush2.msra.mxu0 0.0
          %1197 = vmatprep.subr.mxu0 0.0
          %1198 = vmatpush2.msra.mxu0 0.0
          %1199 = vmatprep.subr.mxu0 0.0
          %1200 = vmatpush2.msra.mxu0 0.0
          %1201 = vmatprep.subr.mxu0 0.0
          %1202 = vmatpush2.msra.mxu0 0.0
          %1203 = vmatprep.subr.mxu0 0.0
          %1204 = vmatpush2.msra.mxu0 0.0
          %1205 = vmatprep.mubr.f32.mxu0 0.0
          %1206 = vmatmul.mubr.f32.gmra.mxu0 %v1065
          %v1207 = vpop.f32.mrf.mxu0
          %v1208 = vadd.f32 %v809, %v1207
          %v1209 = vpop.f32.mrf.mxu0
          %1210 = vdwg.mxu0
          %s1211 = scalar_lea.vmem [#allocation4], %s1138
          %1212 = vst.msk [vmem:[%s1211] sm:$0xff] %vm728, %v1208
          %1213 = vmatprep.subr.mxu0 0.0
          %1214 = vmatpush1.msra.mxu0 0.0
          %1215 = vmatprep.subr.mxu0 0.0
          %1216 = vmatpush1.msra.mxu0 0.0
          %1217 = vmatprep.subr.mxu0 0.0
          %1218 = vmatpush1.msra.mxu0 0.0
          %1219 = vmatprep.subr.mxu0 0.0
          %1220 = vmatpush1.msra.mxu0 0.0
          %1221 = vmatprep.subr.mxu0 0.0
          %1222 = vmatpush1.msra.mxu0 0.0
          %1223 = vmatprep.subr.mxu0 0.0
          %1224 = vmatpush1.msra.mxu0 0.0
          %1225 = vmatprep.subr.mxu0 0.0
          %1226 = vmatpush1.msra.mxu0 0.0
          %1227 = vmatprep.subr.mxu0 0.0
          %1228 = vmatpush1.msra.mxu0 0.0
          %1229 = vmatprep.subr.mxu0 0.0
          %1230 = vmatpush1.msra.mxu0 0.0
          %1231 = vmatprep.subr.mxu0 0.0
          %1232 = vmatpush1.msra.mxu0 0.0
          %1233 = vmatprep.subr.mxu0 0.0
          %1234 = vmatpush1.msra.mxu0 0.0
          %1235 = vmatprep.subr.mxu0 0.0
          %1236 = vmatpush1.msra.mxu0 0.0
          %1237 = vmatprep.subr.mxu0 0.0
          %1238 = vmatpush1.msra.mxu0 %v599
          %1239 = vmatprep.subr.mxu0 0.0
          %1240 = vmatpush1.msra.mxu0 %v598
          %1241 = vmatprep.subr.mxu0 0.0
          %1242 = vmatpush1.msra.mxu0 %v597
          %1243 = vmatprep.subr.mxu0 0.0
          %1244 = vmatpush1.msra.mxu0 %v596
          %1245 = vmatprep.subr.mxu0 0.0
          %1246 = vmatpush2.msra.mxu0 0.0
          %1247 = vmatprep.subr.mxu0 0.0
          %1248 = vmatpush2.msra.mxu0 0.0
          %1249 = vmatprep.subr.mxu0 0.0
          %1250 = vmatpush2.msra.mxu0 0.0
          %1251 = vmatprep.subr.mxu0 0.0
          %1252 = vmatpush2.msra.mxu0 0.0
          %1253 = vmatprep.subr.mxu0 0.0
          %1254 = vmatpush2.msra.mxu0 0.0
          %1255 = vmatprep.subr.mxu0 0.0
          %1256 = vmatpush2.msra.mxu0 0.0
          %1257 = vmatprep.subr.mxu0 0.0
          %1258 = vmatpush2.msra.mxu0 0.0
          %1259 = vmatprep.subr.mxu0 0.0
          %1260 = vmatpush2.msra.mxu0 0.0
          %1261 = vmatprep.subr.mxu0 0.0
          %1262 = vmatpush2.msra.mxu0 0.0
          %1263 = vmatprep.subr.mxu0 0.0
          %1264 = vmatpush2.msra.mxu0 0.0
          %1265 = vmatprep.subr.mxu0 0.0
          %1266 = vmatpush2.msra.mxu0 0.0
          %1267 = vmatprep.subr.mxu0 0.0
          %1268 = vmatpush2.msra.mxu0 0.0
          %1269 = vmatprep.subr.mxu0 0.0
          %1270 = vmatpush2.msra.mxu0 0.0
          %1271 = vmatprep.subr.mxu0 0.0
          %1272 = vmatpush2.msra.mxu0 0.0
          %1273 = vmatprep.subr.mxu0 0.0
          %1274 = vmatpush2.msra.mxu0 0.0
          %1275 = vmatprep.subr.mxu0 0.0
          %1276 = vmatpush2.msra.mxu0 0.0
          %1277 = vmatprep.mubr.f32.mxu0 0.0
          %1278 = vmatmul.mubr.f32.gmra.mxu0 %v1065
          %v1279 = vpop.f32.mrf.mxu0
          %v1280 = vadd.f32 %v887, %v1279
          %v1281 = vpop.f32.mrf.mxu0
          %1282 = vdwg.mxu0
          %s1283 = scalar_lea.vmem [#allocation5], %s1138
          %1284 = vst.msk [vmem:[%s1283] sm:$0xff] %vm728, %v1280
          %v1285 = vld [vmem:[#allocation2 + $0x2] sm:$0x1]
          %v1286 = vld [vmem:[#allocation2 + $0xa] sm:$0x1]
          %v1287 = vld [vmem:[#allocation2 + $0x12] sm:$0x1]
          %v1288 = vld [vmem:[#allocation2 + $0x1a] sm:$0x1]
          %v1289 = vld [vmem:[#allocation2 + $0x22] sm:$0x1]
          %v1290 = vld [vmem:[#allocation2 + $0x2a] sm:$0x1]
          %v1291 = vld [vmem:[#allocation2 + $0x32] sm:$0x1]
          %v1292 = vld [vmem:[#allocation2 + $0x3a] sm:$0x1]
          %v1301 = vrot.slane %v1286, 7
          %v1302 = vsel %vm629, %v1301, %v1285
          %v1303 = vrot.slane %v1287, 6
          %v1304 = vsel %vm632, %v1303, %v1302
          %v1305 = vrot.slane %v1288, 5
          %v1306 = vsel %vm635, %v1305, %v1304
          %v1307 = vrot.slane %v1289, 4
          %v1308 = vsel %vm638, %v1307, %v1306
          %v1309 = vrot.slane %v1290, 3
          %v1310 = vsel %vm641, %v1309, %v1308
          %v1311 = vrot.slane %v1291, 2
          %v1312 = vsel %vm644, %v1311, %v1310
          %v1313 = vrot.slane %v1292, 1
          %v1314 = vsel %vm647, %v1313, %v1312
          %v1315 = vsel %vm576, %v1314, 0
          %1317 = vmatprep.subr.mxu0 0.0
          %1318 = vmatpush1.msra.mxu0 0.0
          %1319 = vmatprep.subr.mxu0 0.0
          %1320 = vmatpush1.msra.mxu0 0.0
          %1321 = vmatprep.subr.mxu0 0.0
          %1322 = vmatpush1.msra.mxu0 0.0
          %1323 = vmatprep.subr.mxu0 0.0
          %1324 = vmatpush1.msra.mxu0 0.0
          %1325 = vmatprep.subr.mxu0 0.0
          %1326 = vmatpush1.msra.mxu0 0.0
          %1327 = vmatprep.subr.mxu0 0.0
          %1328 = vmatpush1.msra.mxu0 0.0
          %1329 = vmatprep.subr.mxu0 0.0
          %1330 = vmatpush1.msra.mxu0 0.0
          %1331 = vmatprep.subr.mxu0 0.0
          %1332 = vmatpush1.msra.mxu0 0.0
          %1333 = vmatprep.subr.mxu0 0.0
          %1334 = vmatpush1.msra.mxu0 0.0
          %1335 = vmatprep.subr.mxu0 0.0
          %1336 = vmatpush1.msra.mxu0 0.0
          %1337 = vmatprep.subr.mxu0 0.0
          %1338 = vmatpush1.msra.mxu0 0.0
          %1339 = vmatprep.subr.mxu0 0.0
          %1340 = vmatpush1.msra.mxu0 0.0
          %1341 = vmatprep.subr.mxu0 0.0
          %1342 = vmatpush1.msra.mxu0 0.0
          %1343 = vmatprep.subr.mxu0 0.0
          %1344 = vmatpush1.msra.mxu0 0.0
          %1345 = vmatprep.subr.mxu0 0.0
          %1346 = vmatpush1.msra.mxu0 %v584
          %1347 = vmatprep.subr.mxu0 0.0
          %1348 = vmatpush1.msra.mxu0 %v583
          %1349 = vmatprep.subr.mxu0 0.0
          %1350 = vmatpush2.msra.mxu0 0.0
          %1351 = vmatprep.subr.mxu0 0.0
          %1352 = vmatpush2.msra.mxu0 0.0
          %1353 = vmatprep.subr.mxu0 0.0
          %1354 = vmatpush2.msra.mxu0 0.0
          %1355 = vmatprep.subr.mxu0 0.0
          %1356 = vmatpush2.msra.mxu0 0.0
          %1357 = vmatprep.subr.mxu0 0.0
          %1358 = vmatpush2.msra.mxu0 0.0
          %1359 = vmatprep.subr.mxu0 0.0
          %1360 = vmatpush2.msra.mxu0 0.0
          %1361 = vmatprep.subr.mxu0 0.0
          %1362 = vmatpush2.msra.mxu0 0.0
          %1363 = vmatprep.subr.mxu0 0.0
          %1364 = vmatpush2.msra.mxu0 0.0
          %1365 = vmatprep.subr.mxu0 0.0
          %1366 = vmatpush2.msra.mxu0 0.0
          %1367 = vmatprep.subr.mxu0 0.0
          %1368 = vmatpush2.msra.mxu0 0.0
          %1369 = vmatprep.subr.mxu0 0.0
          %1370 = vmatpush2.msra.mxu0 0.0
          %1371 = vmatprep.subr.mxu0 0.0
          %1372 = vmatpush2.msra.mxu0 0.0
          %1373 = vmatprep.subr.mxu0 0.0
          %1374 = vmatpush2.msra.mxu0 0.0
          %1375 = vmatprep.subr.mxu0 0.0
          %1376 = vmatpush2.msra.mxu0 0.0
          %1377 = vmatprep.subr.mxu0 0.0
          %1378 = vmatpush2.msra.mxu0 0.0
          %1379 = vmatprep.subr.mxu0 0.0
          %1380 = vmatpush2.msra.mxu0 0.0
          %1381 = vmatprep.mubr.f32.mxu0 0.0
          %1382 = vmatmul.mubr.f32.gmra.mxu0 %v1315
          %v1383 = vpop.f32.mrf.mxu0
          %v1384 = vadd.f32 %v618, %v1383
          %v1385 = vpop.f32.mrf.mxu0
          %1386 = vdwg.mxu0
          %v1387 = vmax.f32 %v1384, 0.0
          %v1389 = vsel %vm728, %v1387, 0
          %1391 = vmatprep.subr.mxu0 0.0
          %1392 = vmatpush1.msra.mxu0 0.0
          %1393 = vmatprep.subr.mxu0 0.0
          %1394 = vmatpush1.msra.mxu0 0.0
          %1395 = vmatprep.subr.mxu0 0.0
          %1396 = vmatpush1.msra.mxu0 0.0
          %1397 = vmatprep.subr.mxu0 0.0
          %1398 = vmatpush1.msra.mxu0 0.0
          %1399 = vmatprep.subr.mxu0 0.0
          %1400 = vmatpush1.msra.mxu0 0.0
          %1401 = vmatprep.subr.mxu0 0.0
          %1402 = vmatpush1.msra.mxu0 0.0
          %1403 = vmatprep.subr.mxu0 0.0
          %1404 = vmatpush1.msra.mxu0 0.0
          %1405 = vmatprep.subr.mxu0 0.0
          %1406 = vmatpush1.msra.mxu0 0.0
          %1407 = vmatprep.subr.mxu0 0.0
          %1408 = vmatpush1.msra.mxu0 0.0
          %1409 = vmatprep.subr.mxu0 0.0
          %1410 = vmatpush1.msra.mxu0 0.0
          %1411 = vmatprep.subr.mxu0 0.0
          %1412 = vmatpush1.msra.mxu0 0.0
          %1413 = vmatprep.subr.mxu0 0.0
          %1414 = vmatpush1.msra.mxu0 0.0
          %1415 = vmatprep.subr.mxu0 0.0
          %1416 = vmatpush1.msra.mxu0 %v589
          %1417 = vmatprep.subr.mxu0 0.0
          %1418 = vmatpush1.msra.mxu0 %v588
          %1419 = vmatprep.subr.mxu0 0.0
          %1420 = vmatpush1.msra.mxu0 %v587
          %1421 = vmatprep.subr.mxu0 0.0
          %1422 = vmatpush1.msra.mxu0 %v586
          %1423 = vmatprep.subr.mxu0 0.0
          %1424 = vmatpush2.msra.mxu0 0.0
          %1425 = vmatprep.subr.mxu0 0.0
          %1426 = vmatpush2.msra.mxu0 0.0
          %1427 = vmatprep.subr.mxu0 0.0
          %1428 = vmatpush2.msra.mxu0 0.0
          %1429 = vmatprep.subr.mxu0 0.0
          %1430 = vmatpush2.msra.mxu0 0.0
          %1431 = vmatprep.subr.mxu0 0.0
          %1432 = vmatpush2.msra.mxu0 0.0
          %1433 = vmatprep.subr.mxu0 0.0
          %1434 = vmatpush2.msra.mxu0 0.0
          %1435 = vmatprep.subr.mxu0 0.0
          %1436 = vmatpush2.msra.mxu0 0.0
          %1437 = vmatprep.subr.mxu0 0.0
          %1438 = vmatpush2.msra.mxu0 0.0
          %1439 = vmatprep.subr.mxu0 0.0
          %1440 = vmatpush2.msra.mxu0 0.0
          %1441 = vmatprep.subr.mxu0 0.0
          %1442 = vmatpush2.msra.mxu0 0.0
          %1443 = vmatprep.subr.mxu0 0.0
          %1444 = vmatpush2.msra.mxu0 0.0
          %1445 = vmatprep.subr.mxu0 0.0
          %1446 = vmatpush2.msra.mxu0 0.0
          %1447 = vmatprep.subr.mxu0 0.0
          %1448 = vmatpush2.msra.mxu0 0.0
          %1449 = vmatprep.subr.mxu0 0.0
          %1450 = vmatpush2.msra.mxu0 0.0
          %1451 = vmatprep.subr.mxu0 0.0
          %1452 = vmatpush2.msra.mxu0 0.0
          %1453 = vmatprep.subr.mxu0 0.0
          %1454 = vmatpush2.msra.mxu0 0.0
          %1455 = vmatprep.mubr.f32.mxu0 0.0
          %1456 = vmatmul.mubr.f32.gmra.mxu0 %v1389
          %v1457 = vpop.f32.mrf.mxu0
          %v1458 = vadd.f32 %v726, %v1457
          %v1459 = vpop.f32.mrf.mxu0
          %1460 = vdwg.mxu0
          %s1461 = sadd.s32 %s605, 2
          %s1462 = smul.u32 %s1461, 8
          %s1463 = scalar_lea.vmem [#allocation3], %s1462
          %1464 = vst.msk [vmem:[%s1463] sm:$0xff] %vm728, %v1458
          %1465 = vmatprep.subr.mxu0 0.0
          %1466 = vmatpush1.msra.mxu0 0.0
          %1467 = vmatprep.subr.mxu0 0.0
          %1468 = vmatpush1.msra.mxu0 0.0
          %1469 = vmatprep.subr.mxu0 0.0
          %1470 = vmatpush1.msra.mxu0 0.0
          %1471 = vmatprep.subr.mxu0 0.0
          %1472 = vmatpush1.msra.mxu0 0.0
          %1473 = vmatprep.subr.mxu0 0.0
          %1474 = vmatpush1.msra.mxu0 0.0
          %1475 = vmatprep.subr.mxu0 0.0
          %1476 = vmatpush1.msra.mxu0 0.0
          %1477 = vmatprep.subr.mxu0 0.0
          %1478 = vmatpush1.msra.mxu0 0.0
          %1479 = vmatprep.subr.mxu0 0.0
          %1480 = vmatpush1.msra.mxu0 0.0
          %1481 = vmatprep.subr.mxu0 0.0
          %1482 = vmatpush1.msra.mxu0 0.0
          %1483 = vmatprep.subr.mxu0 0.0
          %1484 = vmatpush1.msra.mxu0 0.0
          %1485 = vmatprep.subr.mxu0 0.0
          %1486 = vmatpush1.msra.mxu0 0.0
          %1487 = vmatprep.subr.mxu0 0.0
          %1488 = vmatpush1.msra.mxu0 0.0
          %1489 = vmatprep.subr.mxu0 0.0
          %1490 = vmatpush1.msra.mxu0 %v594
          %1491 = vmatprep.subr.mxu0 0.0
          %1492 = vmatpush1.msra.mxu0 %v593
          %1493 = vmatprep.subr.mxu0 0.0
          %1494 = vmatpush1.msra.mxu0 %v592
          %1495 = vmatprep.subr.mxu0 0.0
          %1496 = vmatpush1.msra.mxu0 %v591
          %1497 = vmatprep.subr.mxu0 0.0
          %1498 = vmatpush2.msra.mxu0 0.0
          %1499 = vmatprep.subr.mxu0 0.0
          %1500 = vmatpush2.msra.mxu0 0.0
          %1501 = vmatprep.subr.mxu0 0.0
          %1502 = vmatpush2.msra.mxu0 0.0
          %1503 = vmatprep.subr.mxu0 0.0
          %1504 = vmatpush2.msra.mxu0 0.0
          %1505 = vmatprep.subr.mxu0 0.0
          %1506 = vmatpush2.msra.mxu0 0.0
          %1507 = vmatprep.subr.mxu0 0.0
          %1508 = vmatpush2.msra.mxu0 0.0
          %1509 = vmatprep.subr.mxu0 0.0
          %1510 = vmatpush2.msra.mxu0 0.0
          %1511 = vmatprep.subr.mxu0 0.0
          %1512 = vmatpush2.msra.mxu0 0.0
          %1513 = vmatprep.subr.mxu0 0.0
          %1514 = vmatpush2.msra.mxu0 0.0
          %1515 = vmatprep.subr.mxu0 0.0
          %1516 = vmatpush2.msra.mxu0 0.0
          %1517 = vmatprep.subr.mxu0 0.0
          %1518 = vmatpush2.msra.mxu0 0.0
          %1519 = vmatprep.subr.mxu0 0.0
          %1520 = vmatpush2.msra.mxu0 0.0
          %1521 = vmatprep.subr.mxu0 0.0
          %1522 = vmatpush2.msra.mxu0 0.0
          %1523 = vmatprep.subr.mxu0 0.0
          %1524 = vmatpush2.msra.mxu0 0.0
          %1525 = vmatprep.subr.mxu0 0.0
          %1526 = vmatpush2.msra.mxu0 0.0
          %1527 = vmatprep.subr.mxu0 0.0
          %1528 = vmatpush2.msra.mxu0 0.0
          %1529 = vmatprep.mubr.f32.mxu0 0.0
          %1530 = vmatmul.mubr.f32.gmra.mxu0 %v1389
          %v1531 = vpop.f32.mrf.mxu0
          %v1532 = vadd.f32 %v809, %v1531
          %v1533 = vpop.f32.mrf.mxu0
          %1534 = vdwg.mxu0
          %s1535 = scalar_lea.vmem [#allocation4], %s1462
          %1536 = vst.msk [vmem:[%s1535] sm:$0xff] %vm728, %v1532
          %1537 = vmatprep.subr.mxu0 0.0
          %1538 = vmatpush1.msra.mxu0 0.0
          %1539 = vmatprep.subr.mxu0 0.0
          %1540 = vmatpush1.msra.mxu0 0.0
          %1541 = vmatprep.subr.mxu0 0.0
          %1542 = vmatpush1.msra.mxu0 0.0
          %1543 = vmatprep.subr.mxu0 0.0
          %1544 = vmatpush1.msra.mxu0 0.0
          %1545 = vmatprep.subr.mxu0 0.0
          %1546 = vmatpush1.msra.mxu0 0.0
          %1547 = vmatprep.subr.mxu0 0.0
          %1548 = vmatpush1.msra.mxu0 0.0
          %1549 = vmatprep.subr.mxu0 0.0
          %1550 = vmatpush1.msra.mxu0 0.0
          %1551 = vmatprep.subr.mxu0 0.0
          %1552 = vmatpush1.msra.mxu0 0.0
          %1553 = vmatprep.subr.mxu0 0.0
          %1554 = vmatpush1.msra.mxu0 0.0
          %1555 = vmatprep.subr.mxu0 0.0
          %1556 = vmatpush1.msra.mxu0 0.0
          %1557 = vmatprep.subr.mxu0 0.0
          %1558 = vmatpush1.msra.mxu0 0.0
          %1559 = vmatprep.subr.mxu0 0.0
          %1560 = vmatpush1.msra.mxu0 0.0
          %1561 = vmatprep.subr.mxu0 0.0
          %1562 = vmatpush1.msra.mxu0 %v599
          %1563 = vmatprep.subr.mxu0 0.0
          %1564 = vmatpush1.msra.mxu0 %v598
          %1565 = vmatprep.subr.mxu0 0.0
          %1566 = vmatpush1.msra.mxu0 %v597
          %1567 = vmatprep.subr.mxu0 0.0
          %1568 = vmatpush1.msra.mxu0 %v596
          %1569 = vmatprep.subr.mxu0 0.0
          %1570 = vmatpush2.msra.mxu0 0.0
          %1571 = vmatprep.subr.mxu0 0.0
          %1572 = vmatpush2.msra.mxu0 0.0
          %1573 = vmatprep.subr.mxu0 0.0
          %1574 = vmatpush2.msra.mxu0 0.0
          %1575 = vmatprep.subr.mxu0 0.0
          %1576 = vmatpush2.msra.mxu0 0.0
          %1577 = vmatprep.subr.mxu0 0.0
          %1578 = vmatpush2.msra.mxu0 0.0
          %1579 = vmatprep.subr.mxu0 0.0
          %1580 = vmatpush2.msra.mxu0 0.0
          %1581 = vmatprep.subr.mxu0 0.0
          %1582 = vmatpush2.msra.mxu0 0.0
          %1583 = vmatprep.subr.mxu0 0.0
          %1584 = vmatpush2.msra.mxu0 0.0
          %1585 = vmatprep.subr.mxu0 0.0
          %1586 = vmatpush2.msra.mxu0 0.0
          %1587 = vmatprep.subr.mxu0 0.0
          %1588 = vmatpush2.msra.mxu0 0.0
          %1589 = vmatprep.subr.mxu0 0.0
          %1590 = vmatpush2.msra.mxu0 0.0
          %1591 = vmatprep.subr.mxu0 0.0
          %1592 = vmatpush2.msra.mxu0 0.0
          %1593 = vmatprep.subr.mxu0 0.0
          %1594 = vmatpush2.msra.mxu0 0.0
          %1595 = vmatprep.subr.mxu0 0.0
          %1596 = vmatpush2.msra.mxu0 0.0
          %1597 = vmatprep.subr.mxu0 0.0
          %1598 = vmatpush2.msra.mxu0 0.0
          %1599 = vmatprep.subr.mxu0 0.0
          %1600 = vmatpush2.msra.mxu0 0.0
          %1601 = vmatprep.mubr.f32.mxu0 0.0
          %1602 = vmatmul.mubr.f32.gmra.mxu0 %v1389
          %v1603 = vpop.f32.mrf.mxu0
          %v1604 = vadd.f32 %v887, %v1603
          %v1605 = vpop.f32.mrf.mxu0
          %1606 = vdwg.mxu0
          %s1607 = scalar_lea.vmem [#allocation5], %s1462
          %1608 = vst.msk [vmem:[%s1607] sm:$0xff] %vm728, %v1604
          %v1609 = vld [vmem:[#allocation2 + $0x3] sm:$0x1]
          %v1610 = vld [vmem:[#allocation2 + $0xb] sm:$0x1]
          %v1611 = vld [vmem:[#allocation2 + $0x13] sm:$0x1]
          %v1612 = vld [vmem:[#allocation2 + $0x1b] sm:$0x1]
          %v1613 = vld [vmem:[#allocation2 + $0x23] sm:$0x1]
          %v1614 = vld [vmem:[#allocation2 + $0x2b] sm:$0x1]
          %v1615 = vld [vmem:[#allocation2 + $0x33] sm:$0x1]
          %v1616 = vld [vmem:[#allocation2 + $0x3b] sm:$0x1]
          %v1625 = vrot.slane %v1610, 7
          %v1626 = vsel %vm629, %v1625, %v1609
          %v1627 = vrot.slane %v1611, 6
          %v1628 = vsel %vm632, %v1627, %v1626
          %v1629 = vrot.slane %v1612, 5
          %v1630 = vsel %vm635, %v1629, %v1628
          %v1631 = vrot.slane %v1613, 4
          %v1632 = vsel %vm638, %v1631, %v1630
          %v1633 = vrot.slane %v1614, 3
          %v1634 = vsel %vm641, %v1633, %v1632
          %v1635 = vrot.slane %v1615, 2
          %v1636 = vsel %vm644, %v1635, %v1634
          %v1637 = vrot.slane %v1616, 1
          %v1638 = vsel %vm647, %v1637, %v1636
          %v1639 = vsel %vm576, %v1638, 0
          %1641 = vmatprep.subr.mxu0 0.0
          %1642 = vmatpush1.msra.mxu0 0.0
          %1643 = vmatprep.subr.mxu0 0.0
          %1644 = vmatpush1.msra.mxu0 0.0
          %1645 = vmatprep.subr.mxu0 0.0
          %1646 = vmatpush1.msra.mxu0 0.0
          %1647 = vmatprep.subr.mxu0 0.0
          %1648 = vmatpush1.msra.mxu0 0.0
          %1649 = vmatprep.subr.mxu0 0.0
          %1650 = vmatpush1.msra.mxu0 0.0
          %1651 = vmatprep.subr.mxu0 0.0
          %1652 = vmatpush1.msra.mxu0 0.0
          %1653 = vmatprep.subr.mxu0 0.0
          %1654 = vmatpush1.msra.mxu0 0.0
          %1655 = vmatprep.subr.mxu0 0.0
          %1656 = vmatpush1.msra.mxu0 0.0
          %1657 = vmatprep.subr.mxu0 0.0
          %1658 = vmatpush1.msra.mxu0 0.0
          %1659 = vmatprep.subr.mxu0 0.0
          %1660 = vmatpush1.msra.mxu0 0.0
          %1661 = vmatprep.subr.mxu0 0.0
          %1662 = vmatpush1.msra.mxu0 0.0
          %1663 = vmatprep.subr.mxu0 0.0
          %1664 = vmatpush1.msra.mxu0 0.0
          %1665 = vmatprep.subr.mxu0 0.0
          %1666 = vmatpush1.msra.mxu0 0.0
          %1667 = vmatprep.subr.mxu0 0.0
          %1668 = vmatpush1.msra.mxu0 0.0
          %1669 = vmatprep.subr.mxu0 0.0
          %1670 = vmatpush1.msra.mxu0 %v584
          %1671 = vmatprep.subr.mxu0 0.0
          %1672 = vmatpush1.msra.mxu0 %v583
          %1673 = vmatprep.subr.mxu0 0.0
          %1674 = vmatpush2.msra.mxu0 0.0
          %1675 = vmatprep.subr.mxu0 0.0
          %1676 = vmatpush2.msra.mxu0 0.0
          %1677 = vmatprep.subr.mxu0 0.0
          %1678 = vmatpush2.msra.mxu0 0.0
          %1679 = vmatprep.subr.mxu0 0.0
          %1680 = vmatpush2.msra.mxu0 0.0
          %1681 = vmatprep.subr.mxu0 0.0
          %1682 = vmatpush2.msra.mxu0 0.0
          %1683 = vmatprep.subr.mxu0 0.0
          %1684 = vmatpush2.msra.mxu0 0.0
          %1685 = vmatprep.subr.mxu0 0.0
          %1686 = vmatpush2.msra.mxu0 0.0
          %1687 = vmatprep.subr.mxu0 0.0
          %1688 = vmatpush2.msra.mxu0 0.0
          %1689 = vmatprep.subr.mxu0 0.0
          %1690 = vmatpush2.msra.mxu0 0.0
          %1691 = vmatprep.subr.mxu0 0.0
          %1692 = vmatpush2.msra.mxu0 0.0
          %1693 = vmatprep.subr.mxu0 0.0
          %1694 = vmatpush2.msra.mxu0 0.0
          %1695 = vmatprep.subr.mxu0 0.0
          %1696 = vmatpush2.msra.mxu0 0.0
          %1697 = vmatprep.subr.mxu0 0.0
          %1698 = vmatpush2.msra.mxu0 0.0
          %1699 = vmatprep.subr.mxu0 0.0
          %1700 = vmatpush2.msra.mxu0 0.0
          %1701 = vmatprep.subr.mxu0 0.0
          %1702 = vmatpush2.msra.mxu0 0.0
          %1703 = vmatprep.subr.mxu0 0.0
          %1704 = vmatpush2.msra.mxu0 0.0
          %1705 = vmatprep.mubr.f32.mxu0 0.0
          %1706 = vmatmul.mubr.f32.gmra.mxu0 %v1639
          %v1707 = vpop.f32.mrf.mxu0
          %v1708 = vadd.f32 %v618, %v1707
          %v1709 = vpop.f32.mrf.mxu0
          %1710 = vdwg.mxu0
          %v1711 = vmax.f32 %v1708, 0.0
          %v1713 = vsel %vm728, %v1711, 0
          %1715 = vmatprep.subr.mxu0 0.0
          %1716 = vmatpush1.msra.mxu0 0.0
          %1717 = vmatprep.subr.mxu0 0.0
          %1718 = vmatpush1.msra.mxu0 0.0
          %1719 = vmatprep.subr.mxu0 0.0
          %1720 = vmatpush1.msra.mxu0 0.0
          %1721 = vmatprep.subr.mxu0 0.0
          %1722 = vmatpush1.msra.mxu0 0.0
          %1723 = vmatprep.subr.mxu0 0.0
          %1724 = vmatpush1.msra.mxu0 0.0
          %1725 = vmatprep.subr.mxu0 0.0
          %1726 = vmatpush1.msra.mxu0 0.0
          %1727 = vmatprep.subr.mxu0 0.0
          %1728 = vmatpush1.msra.mxu0 0.0
          %1729 = vmatprep.subr.mxu0 0.0
          %1730 = vmatpush1.msra.mxu0 0.0
          %1731 = vmatprep.subr.mxu0 0.0
          %1732 = vmatpush1.msra.mxu0 0.0
          %1733 = vmatprep.subr.mxu0 0.0
          %1734 = vmatpush1.msra.mxu0 0.0
          %1735 = vmatprep.subr.mxu0 0.0
          %1736 = vmatpush1.msra.mxu0 0.0
          %1737 = vmatprep.subr.mxu0 0.0
          %1738 = vmatpush1.msra.mxu0 0.0
          %1739 = vmatprep.subr.mxu0 0.0
          %1740 = vmatpush1.msra.mxu0 %v589
          %1741 = vmatprep.subr.mxu0 0.0
          %1742 = vmatpush1.msra.mxu0 %v588
          %1743 = vmatprep.subr.mxu0 0.0
          %1744 = vmatpush1.msra.mxu0 %v587
          %1745 = vmatprep.subr.mxu0 0.0
          %1746 = vmatpush1.msra.mxu0 %v586
          %1747 = vmatprep.subr.mxu0 0.0
          %1748 = vmatpush2.msra.mxu0 0.0
          %1749 = vmatprep.subr.mxu0 0.0
          %1750 = vmatpush2.msra.mxu0 0.0
          %1751 = vmatprep.subr.mxu0 0.0
          %1752 = vmatpush2.msra.mxu0 0.0
          %1753 = vmatprep.subr.mxu0 0.0
          %1754 = vmatpush2.msra.mxu0 0.0
          %1755 = vmatprep.subr.mxu0 0.0
          %1756 = vmatpush2.msra.mxu0 0.0
          %1757 = vmatprep.subr.mxu0 0.0
          %1758 = vmatpush2.msra.mxu0 0.0
          %1759 = vmatprep.subr.mxu0 0.0
          %1760 = vmatpush2.msra.mxu0 0.0
          %1761 = vmatprep.subr.mxu0 0.0
          %1762 = vmatpush2.msra.mxu0 0.0
          %1763 = vmatprep.subr.mxu0 0.0
          %1764 = vmatpush2.msra.mxu0 0.0
          %1765 = vmatprep.subr.mxu0 0.0
          %1766 = vmatpush2.msra.mxu0 0.0
          %1767 = vmatprep.subr.mxu0 0.0
          %1768 = vmatpush2.msra.mxu0 0.0
          %1769 = vmatprep.subr.mxu0 0.0
          %1770 = vmatpush2.msra.mxu0 0.0
          %1771 = vmatprep.subr.mxu0 0.0
          %1772 = vmatpush2.msra.mxu0 0.0
          %1773 = vmatprep.subr.mxu0 0.0
          %1774 = vmatpush2.msra.mxu0 0.0
          %1775 = vmatprep.subr.mxu0 0.0
          %1776 = vmatpush2.msra.mxu0 0.0
          %1777 = vmatprep.subr.mxu0 0.0
          %1778 = vmatpush2.msra.mxu0 0.0
          %1779 = vmatprep.mubr.f32.mxu0 0.0
          %1780 = vmatmul.mubr.f32.gmra.mxu0 %v1713
          %v1781 = vpop.f32.mrf.mxu0
          %v1782 = vadd.f32 %v726, %v1781
          %v1783 = vpop.f32.mrf.mxu0
          %1784 = vdwg.mxu0
          %s1785 = sadd.s32 %s605, 3
          %s1786 = smul.u32 %s1785, 8
          %s1787 = scalar_lea.vmem [#allocation3], %s1786
          %1788 = vst.msk [vmem:[%s1787] sm:$0xff] %vm728, %v1782
          %1789 = vmatprep.subr.mxu0 0.0
          %1790 = vmatpush1.msra.mxu0 0.0
          %1791 = vmatprep.subr.mxu0 0.0
          %1792 = vmatpush1.msra.mxu0 0.0
          %1793 = vmatprep.subr.mxu0 0.0
          %1794 = vmatpush1.msra.mxu0 0.0
          %1795 = vmatprep.subr.mxu0 0.0
          %1796 = vmatpush1.msra.mxu0 0.0
          %1797 = vmatprep.subr.mxu0 0.0
          %1798 = vmatpush1.msra.mxu0 0.0
          %1799 = vmatprep.subr.mxu0 0.0
          %1800 = vmatpush1.msra.mxu0 0.0
          %1801 = vmatprep.subr.mxu0 0.0
          %1802 = vmatpush1.msra.mxu0 0.0
          %1803 = vmatprep.subr.mxu0 0.0
          %1804 = vmatpush1.msra.mxu0 0.0
          %1805 = vmatprep.subr.mxu0 0.0
          %1806 = vmatpush1.msra.mxu0 0.0
          %1807 = vmatprep.subr.mxu0 0.0
          %1808 = vmatpush1.msra.mxu0 0.0
          %1809 = vmatprep.subr.mxu0 0.0
          %1810 = vmatpush1.msra.mxu0 0.0
          %1811 = vmatprep.subr.mxu0 0.0
          %1812 = vmatpush1.msra.mxu0 0.0
          %1813 = vmatprep.subr.mxu0 0.0
          %1814 = vmatpush1.msra.mxu0 %v594
          %1815 = vmatprep.subr.mxu0 0.0
          %1816 = vmatpush1.msra.mxu0 %v593
          %1817 = vmatprep.subr.mxu0 0.0
          %1818 = vmatpush1.msra.mxu0 %v592
          %1819 = vmatprep.subr.mxu0 0.0
          %1820 = vmatpush1.msra.mxu0 %v591
          %1821 = vmatprep.subr.mxu0 0.0
          %1822 = vmatpush2.msra.mxu0 0.0
          %1823 = vmatprep.subr.mxu0 0.0
          %1824 = vmatpush2.msra.mxu0 0.0
          %1825 = vmatprep.subr.mxu0 0.0
          %1826 = vmatpush2.msra.mxu0 0.0
          %1827 = vmatprep.subr.mxu0 0.0
          %1828 = vmatpush2.msra.mxu0 0.0
          %1829 = vmatprep.subr.mxu0 0.0
          %1830 = vmatpush2.msra.mxu0 0.0
          %1831 = vmatprep.subr.mxu0 0.0
          %1832 = vmatpush2.msra.mxu0 0.0
          %1833 = vmatprep.subr.mxu0 0.0
          %1834 = vmatpush2.msra.mxu0 0.0
          %1835 = vmatprep.subr.mxu0 0.0
          %1836 = vmatpush2.msra.mxu0 0.0
          %1837 = vmatprep.subr.mxu0 0.0
          %1838 = vmatpush2.msra.mxu0 0.0
          %1839 = vmatprep.subr.mxu0 0.0
          %1840 = vmatpush2.msra.mxu0 0.0
          %1841 = vmatprep.subr.mxu0 0.0
          %1842 = vmatpush2.msra.mxu0 0.0
          %1843 = vmatprep.subr.mxu0 0.0
          %1844 = vmatpush2.msra.mxu0 0.0
          %1845 = vmatprep.subr.mxu0 0.0
          %1846 = vmatpush2.msra.mxu0 0.0
          %1847 = vmatprep.subr.mxu0 0.0
          %1848 = vmatpush2.msra.mxu0 0.0
          %1849 = vmatprep.subr.mxu0 0.0
          %1850 = vmatpush2.msra.mxu0 0.0
          %1851 = vmatprep.subr.mxu0 0.0
          %1852 = vmatpush2.msra.mxu0 0.0
          %1853 = vmatprep.mubr.f32.mxu0 0.0
          %1854 = vmatmul.mubr.f32.gmra.mxu0 %v1713
          %v1855 = vpop.f32.mrf.mxu0
          %v1856 = vadd.f32 %v809, %v1855
          %v1857 = vpop.f32.mrf.mxu0
          %1858 = vdwg.mxu0
          %s1859 = scalar_lea.vmem [#allocation4], %s1786
          %1860 = vst.msk [vmem:[%s1859] sm:$0xff] %vm728, %v1856
          %1861 = vmatprep.subr.mxu0 0.0
          %1862 = vmatpush1.msra.mxu0 0.0
          %1863 = vmatprep.subr.mxu0 0.0
          %1864 = vmatpush1.msra.mxu0 0.0
          %1865 = vmatprep.subr.mxu0 0.0
          %1866 = vmatpush1.msra.mxu0 0.0
          %1867 = vmatprep.subr.mxu0 0.0
          %1868 = vmatpush1.msra.mxu0 0.0
          %1869 = vmatprep.subr.mxu0 0.0
          %1870 = vmatpush1.msra.mxu0 0.0
          %1871 = vmatprep.subr.mxu0 0.0
          %1872 = vmatpush1.msra.mxu0 0.0
          %1873 = vmatprep.subr.mxu0 0.0
          %1874 = vmatpush1.msra.mxu0 0.0
          %1875 = vmatprep.subr.mxu0 0.0
          %1876 = vmatpush1.msra.mxu0 0.0
          %1877 = vmatprep.subr.mxu0 0.0
          %1878 = vmatpush1.msra.mxu0 0.0
          %1879 = vmatprep.subr.mxu0 0.0
          %1880 = vmatpush1.msra.mxu0 0.0
          %1881 = vmatprep.subr.mxu0 0.0
          %1882 = vmatpush1.msra.mxu0 0.0
          %1883 = vmatprep.subr.mxu0 0.0
          %1884 = vmatpush1.msra.mxu0 0.0
          %1885 = vmatprep.subr.mxu0 0.0
          %1886 = vmatpush1.msra.mxu0 %v599
          %1887 = vmatprep.subr.mxu0 0.0
          %1888 = vmatpush1.msra.mxu0 %v598
          %1889 = vmatprep.subr.mxu0 0.0
          %1890 = vmatpush1.msra.mxu0 %v597
          %1891 = vmatprep.subr.mxu0 0.0
          %1892 = vmatpush1.msra.mxu0 %v596
          %1893 = vmatprep.subr.mxu0 0.0
          %1894 = vmatpush2.msra.mxu0 0.0
          %1895 = vmatprep.subr.mxu0 0.0
          %1896 = vmatpush2.msra.mxu0 0.0
          %1897 = vmatprep.subr.mxu0 0.0
          %1898 = vmatpush2.msra.mxu0 0.0
          %1899 = vmatprep.subr.mxu0 0.0
          %1900 = vmatpush2.msra.mxu0 0.0
          %1901 = vmatprep.subr.mxu0 0.0
          %1902 = vmatpush2.msra.mxu0 0.0
          %1903 = vmatprep.subr.mxu0 0.0
          %1904 = vmatpush2.msra.mxu0 0.0
          %1905 = vmatprep.subr.mxu0 0.0
          %1906 = vmatpush2.msra.mxu0 0.0
          %1907 = vmatprep.subr.mxu0 0.0
          %1908 = vmatpush2.msra.mxu0 0.0
          %1909 = vmatprep.subr.mxu0 0.0
          %1910 = vmatpush2.msra.mxu0 0.0
          %1911 = vmatprep.subr.mxu0 0.0
          %1912 = vmatpush2.msra.mxu0 0.0
          %1913 = vmatprep.subr.mxu0 0.0
          %1914 = vmatpush2.msra.mxu0 0.0
          %1915 = vmatprep.subr.mxu0 0.0
          %1916 = vmatpush2.msra.mxu0 0.0
          %1917 = vmatprep.subr.mxu0 0.0
          %1918 = vmatpush2.msra.mxu0 0.0
          %1919 = vmatprep.subr.mxu0 0.0
          %1920 = vmatpush2.msra.mxu0 0.0
          %1921 = vmatprep.subr.mxu0 0.0
          %1922 = vmatpush2.msra.mxu0 0.0
          %1923 = vmatprep.subr.mxu0 0.0
          %1924 = vmatpush2.msra.mxu0 0.0
          %1925 = vmatprep.mubr.f32.mxu0 0.0
          %1926 = vmatmul.mubr.f32.gmra.mxu0 %v1713
          %v1927 = vpop.f32.mrf.mxu0
          %v1928 = vadd.f32 %v887, %v1927
          %v1929 = vpop.f32.mrf.mxu0
          %1930 = vdwg.mxu0
          %s1931 = scalar_lea.vmem [#allocation5], %s1786
          %1932 = vst.msk [vmem:[%s1931] sm:$0xff] %vm728, %v1928
          %v1933 = vld [vmem:[#allocation2 + $0x4] sm:$0x1]
          %v1934 = vld [vmem:[#allocation2 + $0xc] sm:$0x1]
          %v1935 = vld [vmem:[#allocation2 + $0x14] sm:$0x1]
          %v1936 = vld [vmem:[#allocation2 + $0x1c] sm:$0x1]
          %v1937 = vld [vmem:[#allocation2 + $0x24] sm:$0x1]
          %v1938 = vld [vmem:[#allocation2 + $0x2c] sm:$0x1]
          %v1939 = vld [vmem:[#allocation2 + $0x34] sm:$0x1]
          %v1940 = vld [vmem:[#allocation2 + $0x3c] sm:$0x1]
          %v1949 = vrot.slane %v1934, 7
          %v1950 = vsel %vm629, %v1949, %v1933
          %v1951 = vrot.slane %v1935, 6
          %v1952 = vsel %vm632, %v1951, %v1950
          %v1953 = vrot.slane %v1936, 5
          %v1954 = vsel %vm635, %v1953, %v1952
          %v1955 = vrot.slane %v1937, 4
          %v1956 = vsel %vm638, %v1955, %v1954
          %v1957 = vrot.slane %v1938, 3
          %v1958 = vsel %vm641, %v1957, %v1956
          %v1959 = vrot.slane %v1939, 2
          %v1960 = vsel %vm644, %v1959, %v1958
          %v1961 = vrot.slane %v1940, 1
          %v1962 = vsel %vm647, %v1961, %v1960
          %v1963 = vsel %vm576, %v1962, 0
          %1965 = vmatprep.subr.mxu0 0.0
          %1966 = vmatpush1.msra.mxu0 0.0
          %1967 = vmatprep.subr.mxu0 0.0
          %1968 = vmatpush1.msra.mxu0 0.0
          %1969 = vmatprep.subr.mxu0 0.0
          %1970 = vmatpush1.msra.mxu0 0.0
          %1971 = vmatprep.subr.mxu0 0.0
          %1972 = vmatpush1.msra.mxu0 0.0
          %1973 = vmatprep.subr.mxu0 0.0
          %1974 = vmatpush1.msra.mxu0 0.0
          %1975 = vmatprep.subr.mxu0 0.0
          %1976 = vmatpush1.msra.mxu0 0.0
          %1977 = vmatprep.subr.mxu0 0.0
          %1978 = vmatpush1.msra.mxu0 0.0
          %1979 = vmatprep.subr.mxu0 0.0
          %1980 = vmatpush1.msra.mxu0 0.0
          %1981 = vmatprep.subr.mxu0 0.0
          %1982 = vmatpush1.msra.mxu0 0.0
          %1983 = vmatprep.subr.mxu0 0.0
          %1984 = vmatpush1.msra.mxu0 0.0
          %1985 = vmatprep.subr.mxu0 0.0
          %1986 = vmatpush1.msra.mxu0 0.0
          %1987 = vmatprep.subr.mxu0 0.0
          %1988 = vmatpush1.msra.mxu0 0.0
          %1989 = vmatprep.subr.mxu0 0.0
          %1990 = vmatpush1.msra.mxu0 0.0
          %1991 = vmatprep.subr.mxu0 0.0
          %1992 = vmatpush1.msra.mxu0 0.0
          %1993 = vmatprep.subr.mxu0 0.0
          %1994 = vmatpush1.msra.mxu0 %v584
          %1995 = vmatprep.subr.mxu0 0.0
          %1996 = vmatpush1.msra.mxu0 %v583
          %1997 = vmatprep.subr.mxu0 0.0
          %1998 = vmatpush2.msra.mxu0 0.0
          %1999 = vmatprep.subr.mxu0 0.0
          %2000 = vmatpush2.msra.mxu0 0.0
          %2001 = vmatprep.subr.mxu0 0.0
          %2002 = vmatpush2.msra.mxu0 0.0
          %2003 = vmatprep.subr.mxu0 0.0
          %2004 = vmatpush2.msra.mxu0 0.0
          %2005 = vmatprep.subr.mxu0 0.0
          %2006 = vmatpush2.msra.mxu0 0.0
          %2007 = vmatprep.subr.mxu0 0.0
          %2008 = vmatpush2.msra.mxu0 0.0
          %2009 = vmatprep.subr.mxu0 0.0
          %2010 = vmatpush2.msra.mxu0 0.0
          %2011 = vmatprep.subr.mxu0 0.0
          %2012 = vmatpush2.msra.mxu0 0.0
          %2013 = vmatprep.subr.mxu0 0.0
          %2014 = vmatpush2.msra.mxu0 0.0
          %2015 = vmatprep.subr.mxu0 0.0
          %2016 = vmatpush2.msra.mxu0 0.0
          %2017 = vmatprep.subr.mxu0 0.0
          %2018 = vmatpush2.msra.mxu0 0.0
          %2019 = vmatprep.subr.mxu0 0.0
          %2020 = vmatpush2.msra.mxu0 0.0
          %2021 = vmatprep.subr.mxu0 0.0
          %2022 = vmatpush2.msra.mxu0 0.0
          %2023 = vmatprep.subr.mxu0 0.0
          %2024 = vmatpush2.msra.mxu0 0.0
          %2025 = vmatprep.subr.mxu0 0.0
          %2026 = vmatpush2.msra.mxu0 0.0
          %2027 = vmatprep.subr.mxu0 0.0
          %2028 = vmatpush2.msra.mxu0 0.0
          %2029 = vmatprep.mubr.f32.mxu0 0.0
          %2030 = vmatmul.mubr.f32.gmra.mxu0 %v1963
          %v2031 = vpop.f32.mrf.mxu0
          %v2032 = vadd.f32 %v618, %v2031
          %v2033 = vpop.f32.mrf.mxu0
          %2034 = vdwg.mxu0
          %v2035 = vmax.f32 %v2032, 0.0
          %v2037 = vsel %vm728, %v2035, 0
          %2039 = vmatprep.subr.mxu0 0.0
          %2040 = vmatpush1.msra.mxu0 0.0
          %2041 = vmatprep.subr.mxu0 0.0
          %2042 = vmatpush1.msra.mxu0 0.0
          %2043 = vmatprep.subr.mxu0 0.0
          %2044 = vmatpush1.msra.mxu0 0.0
          %2045 = vmatprep.subr.mxu0 0.0
          %2046 = vmatpush1.msra.mxu0 0.0
          %2047 = vmatprep.subr.mxu0 0.0
          %2048 = vmatpush1.msra.mxu0 0.0
          %2049 = vmatprep.subr.mxu0 0.0
          %2050 = vmatpush1.msra.mxu0 0.0
          %2051 = vmatprep.subr.mxu0 0.0
          %2052 = vmatpush1.msra.mxu0 0.0
          %2053 = vmatprep.subr.mxu0 0.0
          %2054 = vmatpush1.msra.mxu0 0.0
          %2055 = vmatprep.subr.mxu0 0.0
          %2056 = vmatpush1.msra.mxu0 0.0
          %2057 = vmatprep.subr.mxu0 0.0
          %2058 = vmatpush1.msra.mxu0 0.0
          %2059 = vmatprep.subr.mxu0 0.0
          %2060 = vmatpush1.msra.mxu0 0.0
          %2061 = vmatprep.subr.mxu0 0.0
          %2062 = vmatpush1.msra.mxu0 0.0
          %2063 = vmatprep.subr.mxu0 0.0
          %2064 = vmatpush1.msra.mxu0 %v589
          %2065 = vmatprep.subr.mxu0 0.0
          %2066 = vmatpush1.msra.mxu0 %v588
          %2067 = vmatprep.subr.mxu0 0.0
          %2068 = vmatpush1.msra.mxu0 %v587
          %2069 = vmatprep.subr.mxu0 0.0
          %2070 = vmatpush1.msra.mxu0 %v586
          %2071 = vmatprep.subr.mxu0 0.0
          %2072 = vmatpush2.msra.mxu0 0.0
          %2073 = vmatprep.subr.mxu0 0.0
          %2074 = vmatpush2.msra.mxu0 0.0
          %2075 = vmatprep.subr.mxu0 0.0
          %2076 = vmatpush2.msra.mxu0 0.0
          %2077 = vmatprep.subr.mxu0 0.0
          %2078 = vmatpush2.msra.mxu0 0.0
          %2079 = vmatprep.subr.mxu0 0.0
          %2080 = vmatpush2.msra.mxu0 0.0
          %2081 = vmatprep.subr.mxu0 0.0
          %2082 = vmatpush2.msra.mxu0 0.0
          %2083 = vmatprep.subr.mxu0 0.0
          %2084 = vmatpush2.msra.mxu0 0.0
          %2085 = vmatprep.subr.mxu0 0.0
          %2086 = vmatpush2.msra.mxu0 0.0
          %2087 = vmatprep.subr.mxu0 0.0
          %2088 = vmatpush2.msra.mxu0 0.0
          %2089 = vmatprep.subr.mxu0 0.0
          %2090 = vmatpush2.msra.mxu0 0.0
          %2091 = vmatprep.subr.mxu0 0.0
          %2092 = vmatpush2.msra.mxu0 0.0
          %2093 = vmatprep.subr.mxu0 0.0
          %2094 = vmatpush2.msra.mxu0 0.0
          %2095 = vmatprep.subr.mxu0 0.0
          %2096 = vmatpush2.msra.mxu0 0.0
          %2097 = vmatprep.subr.mxu0 0.0
          %2098 = vmatpush2.msra.mxu0 0.0
          %2099 = vmatprep.subr.mxu0 0.0
          %2100 = vmatpush2.msra.mxu0 0.0
          %2101 = vmatprep.subr.mxu0 0.0
          %2102 = vmatpush2.msra.mxu0 0.0
          %2103 = vmatprep.mubr.f32.mxu0 0.0
          %2104 = vmatmul.mubr.f32.gmra.mxu0 %v2037
          %v2105 = vpop.f32.mrf.mxu0
          %v2106 = vadd.f32 %v726, %v2105
          %v2107 = vpop.f32.mrf.mxu0
          %2108 = vdwg.mxu0
          %s2109 = sadd.s32 %s605, 4
          %s2110 = smul.u32 %s2109, 8
          %s2111 = scalar_lea.vmem [#allocation3], %s2110
          %2112 = vst.msk [vmem:[%s2111] sm:$0xff] %vm728, %v2106
          %2113 = vmatprep.subr.mxu0 0.0
          %2114 = vmatpush1.msra.mxu0 0.0
          %2115 = vmatprep.subr.mxu0 0.0
          %2116 = vmatpush1.msra.mxu0 0.0
          %2117 = vmatprep.subr.mxu0 0.0
          %2118 = vmatpush1.msra.mxu0 0.0
          %2119 = vmatprep.subr.mxu0 0.0
          %2120 = vmatpush1.msra.mxu0 0.0
          %2121 = vmatprep.subr.mxu0 0.0
          %2122 = vmatpush1.msra.mxu0 0.0
          %2123 = vmatprep.subr.mxu0 0.0
          %2124 = vmatpush1.msra.mxu0 0.0
          %2125 = vmatprep.subr.mxu0 0.0
          %2126 = vmatpush1.msra.mxu0 0.0
          %2127 = vmatprep.subr.mxu0 0.0
          %2128 = vmatpush1.msra.mxu0 0.0
          %2129 = vmatprep.subr.mxu0 0.0
          %2130 = vmatpush1.msra.mxu0 0.0
          %2131 = vmatprep.subr.mxu0 0.0
          %2132 = vmatpush1.msra.mxu0 0.0
          %2133 = vmatprep.subr.mxu0 0.0
          %2134 = vmatpush1.msra.mxu0 0.0
          %2135 = vmatprep.subr.mxu0 0.0
          %2136 = vmatpush1.msra.mxu0 0.0
          %2137 = vmatprep.subr.mxu0 0.0
          %2138 = vmatpush1.msra.mxu0 %v594
          %2139 = vmatprep.subr.mxu0 0.0
          %2140 = vmatpush1.msra.mxu0 %v593
          %2141 = vmatprep.subr.mxu0 0.0
          %2142 = vmatpush1.msra.mxu0 %v592
          %2143 = vmatprep.subr.mxu0 0.0
          %2144 = vmatpush1.msra.mxu0 %v591
          %2145 = vmatprep.subr.mxu0 0.0
          %2146 = vmatpush2.msra.mxu0 0.0
          %2147 = vmatprep.subr.mxu0 0.0
          %2148 = vmatpush2.msra.mxu0 0.0
          %2149 = vmatprep.subr.mxu0 0.0
          %2150 = vmatpush2.msra.mxu0 0.0
          %2151 = vmatprep.subr.mxu0 0.0
          %2152 = vmatpush2.msra.mxu0 0.0
          %2153 = vmatprep.subr.mxu0 0.0
          %2154 = vmatpush2.msra.mxu0 0.0
          %2155 = vmatprep.subr.mxu0 0.0
          %2156 = vmatpush2.msra.mxu0 0.0
          %2157 = vmatprep.subr.mxu0 0.0
          %2158 = vmatpush2.msra.mxu0 0.0
          %2159 = vmatprep.subr.mxu0 0.0
          %2160 = vmatpush2.msra.mxu0 0.0
          %2161 = vmatprep.subr.mxu0 0.0
          %2162 = vmatpush2.msra.mxu0 0.0
          %2163 = vmatprep.subr.mxu0 0.0
          %2164 = vmatpush2.msra.mxu0 0.0
          %2165 = vmatprep.subr.mxu0 0.0
          %2166 = vmatpush2.msra.mxu0 0.0
          %2167 = vmatprep.subr.mxu0 0.0
          %2168 = vmatpush2.msra.mxu0 0.0
          %2169 = vmatprep.subr.mxu0 0.0
          %2170 = vmatpush2.msra.mxu0 0.0
          %2171 = vmatprep.subr.mxu0 0.0
          %2172 = vmatpush2.msra.mxu0 0.0
          %2173 = vmatprep.subr.mxu0 0.0
          %2174 = vmatpush2.msra.mxu0 0.0
          %2175 = vmatprep.subr.mxu0 0.0
          %2176 = vmatpush2.msra.mxu0 0.0
          %2177 = vmatprep.mubr.f32.mxu0 0.0
          %2178 = vmatmul.mubr.f32.gmra.mxu0 %v2037
          %v2179 = vpop.f32.mrf.mxu0
          %v2180 = vadd.f32 %v809, %v2179
          %v2181 = vpop.f32.mrf.mxu0
          %2182 = vdwg.mxu0
          %s2183 = scalar_lea.vmem [#allocation4], %s2110
          %2184 = vst.msk [vmem:[%s2183] sm:$0xff] %vm728, %v2180
          %2185 = vmatprep.subr.mxu0 0.0
          %2186 = vmatpush1.msra.mxu0 0.0
          %2187 = vmatprep.subr.mxu0 0.0
          %2188 = vmatpush1.msra.mxu0 0.0
          %2189 = vmatprep.subr.mxu0 0.0
          %2190 = vmatpush1.msra.mxu0 0.0
          %2191 = vmatprep.subr.mxu0 0.0
          %2192 = vmatpush1.msra.mxu0 0.0
          %2193 = vmatprep.subr.mxu0 0.0
          %2194 = vmatpush1.msra.mxu0 0.0
          %2195 = vmatprep.subr.mxu0 0.0
          %2196 = vmatpush1.msra.mxu0 0.0
          %2197 = vmatprep.subr.mxu0 0.0
          %2198 = vmatpush1.msra.mxu0 0.0
          %2199 = vmatprep.subr.mxu0 0.0
          %2200 = vmatpush1.msra.mxu0 0.0
          %2201 = vmatprep.subr.mxu0 0.0
          %2202 = vmatpush1.msra.mxu0 0.0
          %2203 = vmatprep.subr.mxu0 0.0
          %2204 = vmatpush1.msra.mxu0 0.0
          %2205 = vmatprep.subr.mxu0 0.0
          %2206 = vmatpush1.msra.mxu0 0.0
          %2207 = vmatprep.subr.mxu0 0.0
          %2208 = vmatpush1.msra.mxu0 0.0
          %2209 = vmatprep.subr.mxu0 0.0
          %2210 = vmatpush1.msra.mxu0 %v599
          %2211 = vmatprep.subr.mxu0 0.0
          %2212 = vmatpush1.msra.mxu0 %v598
          %2213 = vmatprep.subr.mxu0 0.0
          %2214 = vmatpush1.msra.mxu0 %v597
          %2215 = vmatprep.subr.mxu0 0.0
          %2216 = vmatpush1.msra.mxu0 %v596
          %2217 = vmatprep.subr.mxu0 0.0
          %2218 = vmatpush2.msra.mxu0 0.0
          %2219 = vmatprep.subr.mxu0 0.0
          %2220 = vmatpush2.msra.mxu0 0.0
          %2221 = vmatprep.subr.mxu0 0.0
          %2222 = vmatpush2.msra.mxu0 0.0
          %2223 = vmatprep.subr.mxu0 0.0
          %2224 = vmatpush2.msra.mxu0 0.0
          %2225 = vmatprep.subr.mxu0 0.0
          %2226 = vmatpush2.msra.mxu0 0.0
          %2227 = vmatprep.subr.mxu0 0.0
          %2228 = vmatpush2.msra.mxu0 0.0
          %2229 = vmatprep.subr.mxu0 0.0
          %2230 = vmatpush2.msra.mxu0 0.0
          %2231 = vmatprep.subr.mxu0 0.0
          %2232 = vmatpush2.msra.mxu0 0.0
          %2233 = vmatprep.subr.mxu0 0.0
          %2234 = vmatpush2.msra.mxu0 0.0
          %2235 = vmatprep.subr.mxu0 0.0
          %2236 = vmatpush2.msra.mxu0 0.0
          %2237 = vmatprep.subr.mxu0 0.0
          %2238 = vmatpush2.msra.mxu0 0.0
          %2239 = vmatprep.subr.mxu0 0.0
          %2240 = vmatpush2.msra.mxu0 0.0
          %2241 = vmatprep.subr.mxu0 0.0
          %2242 = vmatpush2.msra.mxu0 0.0
          %2243 = vmatprep.subr.mxu0 0.0
          %2244 = vmatpush2.msra.mxu0 0.0
          %2245 = vmatprep.subr.mxu0 0.0
          %2246 = vmatpush2.msra.mxu0 0.0
          %2247 = vmatprep.subr.mxu0 0.0
          %2248 = vmatpush2.msra.mxu0 0.0
          %2249 = vmatprep.mubr.f32.mxu0 0.0
          %2250 = vmatmul.mubr.f32.gmra.mxu0 %v2037
          %v2251 = vpop.f32.mrf.mxu0
          %v2252 = vadd.f32 %v887, %v2251
          %v2253 = vpop.f32.mrf.mxu0
          %2254 = vdwg.mxu0
          %s2255 = scalar_lea.vmem [#allocation5], %s2110
          %2256 = vst.msk [vmem:[%s2255] sm:$0xff] %vm728, %v2252
          %v2257 = vld [vmem:[#allocation2 + $0x5] sm:$0x1]
          %v2258 = vld [vmem:[#allocation2 + $0xd] sm:$0x1]
          %v2259 = vld [vmem:[#allocation2 + $0x15] sm:$0x1]
          %v2260 = vld [vmem:[#allocation2 + $0x1d] sm:$0x1]
          %v2261 = vld [vmem:[#allocation2 + $0x25] sm:$0x1]
          %v2262 = vld [vmem:[#allocation2 + $0x2d] sm:$0x1]
          %v2263 = vld [vmem:[#allocation2 + $0x35] sm:$0x1]
          %v2264 = vld [vmem:[#allocation2 + $0x3d] sm:$0x1]
          %v2273 = vrot.slane %v2258, 7
          %v2274 = vsel %vm629, %v2273, %v2257
          %v2275 = vrot.slane %v2259, 6
          %v2276 = vsel %vm632, %v2275, %v2274
          %v2277 = vrot.slane %v2260, 5
          %v2278 = vsel %vm635, %v2277, %v2276
          %v2279 = vrot.slane %v2261, 4
          %v2280 = vsel %vm638, %v2279, %v2278
          %v2281 = vrot.slane %v2262, 3
          %v2282 = vsel %vm641, %v2281, %v2280
          %v2283 = vrot.slane %v2263, 2
          %v2284 = vsel %vm644, %v2283, %v2282
          %v2285 = vrot.slane %v2264, 1
          %v2286 = vsel %vm647, %v2285, %v2284
          %v2287 = vsel %vm576, %v2286, 0
          %2289 = vmatprep.subr.mxu0 0.0
          %2290 = vmatpush1.msra.mxu0 0.0
          %2291 = vmatprep.subr.mxu0 0.0
          %2292 = vmatpush1.msra.mxu0 0.0
          %2293 = vmatprep.subr.mxu0 0.0
          %2294 = vmatpush1.msra.mxu0 0.0
          %2295 = vmatprep.subr.mxu0 0.0
          %2296 = vmatpush1.msra.mxu0 0.0
          %2297 = vmatprep.subr.mxu0 0.0
          %2298 = vmatpush1.msra.mxu0 0.0
          %2299 = vmatprep.subr.mxu0 0.0
          %2300 = vmatpush1.msra.mxu0 0.0
          %2301 = vmatprep.subr.mxu0 0.0
          %2302 = vmatpush1.msra.mxu0 0.0
          %2303 = vmatprep.subr.mxu0 0.0
          %2304 = vmatpush1.msra.mxu0 0.0
          %2305 = vmatprep.subr.mxu0 0.0
          %2306 = vmatpush1.msra.mxu0 0.0
          %2307 = vmatprep.subr.mxu0 0.0
          %2308 = vmatpush1.msra.mxu0 0.0
          %2309 = vmatprep.subr.mxu0 0.0
          %2310 = vmatpush1.msra.mxu0 0.0
          %2311 = vmatprep.subr.mxu0 0.0
          %2312 = vmatpush1.msra.mxu0 0.0
          %2313 = vmatprep.subr.mxu0 0.0
          %2314 = vmatpush1.msra.mxu0 0.0
          %2315 = vmatprep.subr.mxu0 0.0
          %2316 = vmatpush1.msra.mxu0 0.0
          %2317 = vmatprep.subr.mxu0 0.0
          %2318 = vmatpush1.msra.mxu0 %v584
          %2319 = vmatprep.subr.mxu0 0.0
          %2320 = vmatpush1.msra.mxu0 %v583
          %2321 = vmatprep.subr.mxu0 0.0
          %2322 = vmatpush2.msra.mxu0 0.0
          %2323 = vmatprep.subr.mxu0 0.0
          %2324 = vmatpush2.msra.mxu0 0.0
          %2325 = vmatprep.subr.mxu0 0.0
          %2326 = vmatpush2.msra.mxu0 0.0
          %2327 = vmatprep.subr.mxu0 0.0
          %2328 = vmatpush2.msra.mxu0 0.0
          %2329 = vmatprep.subr.mxu0 0.0
          %2330 = vmatpush2.msra.mxu0 0.0
          %2331 = vmatprep.subr.mxu0 0.0
          %2332 = vmatpush2.msra.mxu0 0.0
          %2333 = vmatprep.subr.mxu0 0.0
          %2334 = vmatpush2.msra.mxu0 0.0
          %2335 = vmatprep.subr.mxu0 0.0
          %2336 = vmatpush2.msra.mxu0 0.0
          %2337 = vmatprep.subr.mxu0 0.0
          %2338 = vmatpush2.msra.mxu0 0.0
          %2339 = vmatprep.subr.mxu0 0.0
          %2340 = vmatpush2.msra.mxu0 0.0
          %2341 = vmatprep.subr.mxu0 0.0
          %2342 = vmatpush2.msra.mxu0 0.0
          %2343 = vmatprep.subr.mxu0 0.0
          %2344 = vmatpush2.msra.mxu0 0.0
          %2345 = vmatprep.subr.mxu0 0.0
          %2346 = vmatpush2.msra.mxu0 0.0
          %2347 = vmatprep.subr.mxu0 0.0
          %2348 = vmatpush2.msra.mxu0 0.0
          %2349 = vmatprep.subr.mxu0 0.0
          %2350 = vmatpush2.msra.mxu0 0.0
          %2351 = vmatprep.subr.mxu0 0.0
          %2352 = vmatpush2.msra.mxu0 0.0
          %2353 = vmatprep.mubr.f32.mxu0 0.0
          %2354 = vmatmul.mubr.f32.gmra.mxu0 %v2287
          %v2355 = vpop.f32.mrf.mxu0
          %v2356 = vadd.f32 %v618, %v2355
          %v2357 = vpop.f32.mrf.mxu0
          %2358 = vdwg.mxu0
          %v2359 = vmax.f32 %v2356, 0.0
          %v2361 = vsel %vm728, %v2359, 0
          %2363 = vmatprep.subr.mxu0 0.0
          %2364 = vmatpush1.msra.mxu0 0.0
          %2365 = vmatprep.subr.mxu0 0.0
          %2366 = vmatpush1.msra.mxu0 0.0
          %2367 = vmatprep.subr.mxu0 0.0
          %2368 = vmatpush1.msra.mxu0 0.0
          %2369 = vmatprep.subr.mxu0 0.0
          %2370 = vmatpush1.msra.mxu0 0.0
          %2371 = vmatprep.subr.mxu0 0.0
          %2372 = vmatpush1.msra.mxu0 0.0
          %2373 = vmatprep.subr.mxu0 0.0
          %2374 = vmatpush1.msra.mxu0 0.0
          %2375 = vmatprep.subr.mxu0 0.0
          %2376 = vmatpush1.msra.mxu0 0.0
          %2377 = vmatprep.subr.mxu0 0.0
          %2378 = vmatpush1.msra.mxu0 0.0
          %2379 = vmatprep.subr.mxu0 0.0
          %2380 = vmatpush1.msra.mxu0 0.0
          %2381 = vmatprep.subr.mxu0 0.0
          %2382 = vmatpush1.msra.mxu0 0.0
          %2383 = vmatprep.subr.mxu0 0.0
          %2384 = vmatpush1.msra.mxu0 0.0
          %2385 = vmatprep.subr.mxu0 0.0
          %2386 = vmatpush1.msra.mxu0 0.0
          %2387 = vmatprep.subr.mxu0 0.0
          %2388 = vmatpush1.msra.mxu0 %v589
          %2389 = vmatprep.subr.mxu0 0.0
          %2390 = vmatpush1.msra.mxu0 %v588
          %2391 = vmatprep.subr.mxu0 0.0
          %2392 = vmatpush1.msra.mxu0 %v587
          %2393 = vmatprep.subr.mxu0 0.0
          %2394 = vmatpush1.msra.mxu0 %v586
          %2395 = vmatprep.subr.mxu0 0.0
          %2396 = vmatpush2.msra.mxu0 0.0
          %2397 = vmatprep.subr.mxu0 0.0
          %2398 = vmatpush2.msra.mxu0 0.0
          %2399 = vmatprep.subr.mxu0 0.0
          %2400 = vmatpush2.msra.mxu0 0.0
          %2401 = vmatprep.subr.mxu0 0.0
          %2402 = vmatpush2.msra.mxu0 0.0
          %2403 = vmatprep.subr.mxu0 0.0
          %2404 = vmatpush2.msra.mxu0 0.0
          %2405 = vmatprep.subr.mxu0 0.0
          %2406 = vmatpush2.msra.mxu0 0.0
          %2407 = vmatprep.subr.mxu0 0.0
          %2408 = vmatpush2.msra.mxu0 0.0
          %2409 = vmatprep.subr.mxu0 0.0
          %2410 = vmatpush2.msra.mxu0 0.0
          %2411 = vmatprep.subr.mxu0 0.0
          %2412 = vmatpush2.msra.mxu0 0.0
          %2413 = vmatprep.subr.mxu0 0.0
          %2414 = vmatpush2.msra.mxu0 0.0
          %2415 = vmatprep.subr.mxu0 0.0
          %2416 = vmatpush2.msra.mxu0 0.0
          %2417 = vmatprep.subr.mxu0 0.0
          %2418 = vmatpush2.msra.mxu0 0.0
          %2419 = vmatprep.subr.mxu0 0.0
          %2420 = vmatpush2.msra.mxu0 0.0
          %2421 = vmatprep.subr.mxu0 0.0
          %2422 = vmatpush2.msra.mxu0 0.0
          %2423 = vmatprep.subr.mxu0 0.0
          %2424 = vmatpush2.msra.mxu0 0.0
          %2425 = vmatprep.subr.mxu0 0.0
          %2426 = vmatpush2.msra.mxu0 0.0
          %2427 = vmatprep.mubr.f32.mxu0 0.0
          %2428 = vmatmul.mubr.f32.gmra.mxu0 %v2361
          %v2429 = vpop.f32.mrf.mxu0
          %v2430 = vadd.f32 %v726, %v2429
          %v2431 = vpop.f32.mrf.mxu0
          %2432 = vdwg.mxu0
          %s2433 = sadd.s32 %s605, 5
          %s2434 = smul.u32 %s2433, 8
          %s2435 = scalar_lea.vmem [#allocation3], %s2434
          %2436 = vst.msk [vmem:[%s2435] sm:$0xff] %vm728, %v2430
          %2437 = vmatprep.subr.mxu0 0.0
          %2438 = vmatpush1.msra.mxu0 0.0
          %2439 = vmatprep.subr.mxu0 0.0
          %2440 = vmatpush1.msra.mxu0 0.0
          %2441 = vmatprep.subr.mxu0 0.0
          %2442 = vmatpush1.msra.mxu0 0.0
          %2443 = vmatprep.subr.mxu0 0.0
          %2444 = vmatpush1.msra.mxu0 0.0
          %2445 = vmatprep.subr.mxu0 0.0
          %2446 = vmatpush1.msra.mxu0 0.0
          %2447 = vmatprep.subr.mxu0 0.0
          %2448 = vmatpush1.msra.mxu0 0.0
          %2449 = vmatprep.subr.mxu0 0.0
          %2450 = vmatpush1.msra.mxu0 0.0
          %2451 = vmatprep.subr.mxu0 0.0
          %2452 = vmatpush1.msra.mxu0 0.0
          %2453 = vmatprep.subr.mxu0 0.0
          %2454 = vmatpush1.msra.mxu0 0.0
          %2455 = vmatprep.subr.mxu0 0.0
          %2456 = vmatpush1.msra.mxu0 0.0
          %2457 = vmatprep.subr.mxu0 0.0
          %2458 = vmatpush1.msra.mxu0 0.0
          %2459 = vmatprep.subr.mxu0 0.0
          %2460 = vmatpush1.msra.mxu0 0.0
          %2461 = vmatprep.subr.mxu0 0.0
          %2462 = vmatpush1.msra.mxu0 %v594
          %2463 = vmatprep.subr.mxu0 0.0
          %2464 = vmatpush1.msra.mxu0 %v593
          %2465 = vmatprep.subr.mxu0 0.0
          %2466 = vmatpush1.msra.mxu0 %v592
          %2467 = vmatprep.subr.mxu0 0.0
          %2468 = vmatpush1.msra.mxu0 %v591
          %2469 = vmatprep.subr.mxu0 0.0
          %2470 = vmatpush2.msra.mxu0 0.0
          %2471 = vmatprep.subr.mxu0 0.0
          %2472 = vmatpush2.msra.mxu0 0.0
          %2473 = vmatprep.subr.mxu0 0.0
          %2474 = vmatpush2.msra.mxu0 0.0
          %2475 = vmatprep.subr.mxu0 0.0
          %2476 = vmatpush2.msra.mxu0 0.0
          %2477 = vmatprep.subr.mxu0 0.0
          %2478 = vmatpush2.msra.mxu0 0.0
          %2479 = vmatprep.subr.mxu0 0.0
          %2480 = vmatpush2.msra.mxu0 0.0
          %2481 = vmatprep.subr.mxu0 0.0
          %2482 = vmatpush2.msra.mxu0 0.0
          %2483 = vmatprep.subr.mxu0 0.0
          %2484 = vmatpush2.msra.mxu0 0.0
          %2485 = vmatprep.subr.mxu0 0.0
          %2486 = vmatpush2.msra.mxu0 0.0
          %2487 = vmatprep.subr.mxu0 0.0
          %2488 = vmatpush2.msra.mxu0 0.0
          %2489 = vmatprep.subr.mxu0 0.0
          %2490 = vmatpush2.msra.mxu0 0.0
          %2491 = vmatprep.subr.mxu0 0.0
          %2492 = vmatpush2.msra.mxu0 0.0
          %2493 = vmatprep.subr.mxu0 0.0
          %2494 = vmatpush2.msra.mxu0 0.0
          %2495 = vmatprep.subr.mxu0 0.0
          %2496 = vmatpush2.msra.mxu0 0.0
          %2497 = vmatprep.subr.mxu0 0.0
          %2498 = vmatpush2.msra.mxu0 0.0
          %2499 = vmatprep.subr.mxu0 0.0
          %2500 = vmatpush2.msra.mxu0 0.0
          %2501 = vmatprep.mubr.f32.mxu0 0.0
          %2502 = vmatmul.mubr.f32.gmra.mxu0 %v2361
          %v2503 = vpop.f32.mrf.mxu0
          %v2504 = vadd.f32 %v809, %v2503
          %v2505 = vpop.f32.mrf.mxu0
          %2506 = vdwg.mxu0
          %s2507 = scalar_lea.vmem [#allocation4], %s2434
          %2508 = vst.msk [vmem:[%s2507] sm:$0xff] %vm728, %v2504
          %2509 = vmatprep.subr.mxu0 0.0
          %2510 = vmatpush1.msra.mxu0 0.0
          %2511 = vmatprep.subr.mxu0 0.0
          %2512 = vmatpush1.msra.mxu0 0.0
          %2513 = vmatprep.subr.mxu0 0.0
          %2514 = vmatpush1.msra.mxu0 0.0
          %2515 = vmatprep.subr.mxu0 0.0
          %2516 = vmatpush1.msra.mxu0 0.0
          %2517 = vmatprep.subr.mxu0 0.0
          %2518 = vmatpush1.msra.mxu0 0.0
          %2519 = vmatprep.subr.mxu0 0.0
          %2520 = vmatpush1.msra.mxu0 0.0
          %2521 = vmatprep.subr.mxu0 0.0
          %2522 = vmatpush1.msra.mxu0 0.0
          %2523 = vmatprep.subr.mxu0 0.0
          %2524 = vmatpush1.msra.mxu0 0.0
          %2525 = vmatprep.subr.mxu0 0.0
          %2526 = vmatpush1.msra.mxu0 0.0
          %2527 = vmatprep.subr.mxu0 0.0
          %2528 = vmatpush1.msra.mxu0 0.0
          %2529 = vmatprep.subr.mxu0 0.0
          %2530 = vmatpush1.msra.mxu0 0.0
          %2531 = vmatprep.subr.mxu0 0.0
          %2532 = vmatpush1.msra.mxu0 0.0
          %2533 = vmatprep.subr.mxu0 0.0
          %2534 = vmatpush1.msra.mxu0 %v599
          %2535 = vmatprep.subr.mxu0 0.0
          %2536 = vmatpush1.msra.mxu0 %v598
          %2537 = vmatprep.subr.mxu0 0.0
          %2538 = vmatpush1.msra.mxu0 %v597
          %2539 = vmatprep.subr.mxu0 0.0
          %2540 = vmatpush1.msra.mxu0 %v596
          %2541 = vmatprep.subr.mxu0 0.0
          %2542 = vmatpush2.msra.mxu0 0.0
          %2543 = vmatprep.subr.mxu0 0.0
          %2544 = vmatpush2.msra.mxu0 0.0
          %2545 = vmatprep.subr.mxu0 0.0
          %2546 = vmatpush2.msra.mxu0 0.0
          %2547 = vmatprep.subr.mxu0 0.0
          %2548 = vmatpush2.msra.mxu0 0.0
          %2549 = vmatprep.subr.mxu0 0.0
          %2550 = vmatpush2.msra.mxu0 0.0
          %2551 = vmatprep.subr.mxu0 0.0
          %2552 = vmatpush2.msra.mxu0 0.0
          %2553 = vmatprep.subr.mxu0 0.0
          %2554 = vmatpush2.msra.mxu0 0.0
          %2555 = vmatprep.subr.mxu0 0.0
          %2556 = vmatpush2.msra.mxu0 0.0
          %2557 = vmatprep.subr.mxu0 0.0
          %2558 = vmatpush2.msra.mxu0 0.0
          %2559 = vmatprep.subr.mxu0 0.0
          %2560 = vmatpush2.msra.mxu0 0.0
          %2561 = vmatprep.subr.mxu0 0.0
          %2562 = vmatpush2.msra.mxu0 0.0
          %2563 = vmatprep.subr.mxu0 0.0
          %2564 = vmatpush2.msra.mxu0 0.0
          %2565 = vmatprep.subr.mxu0 0.0
          %2566 = vmatpush2.msra.mxu0 0.0
          %2567 = vmatprep.subr.mxu0 0.0
          %2568 = vmatpush2.msra.mxu0 0.0
          %2569 = vmatprep.subr.mxu0 0.0
          %2570 = vmatpush2.msra.mxu0 0.0
          %2571 = vmatprep.subr.mxu0 0.0
          %2572 = vmatpush2.msra.mxu0 0.0
          %2573 = vmatprep.mubr.f32.mxu0 0.0
          %2574 = vmatmul.mubr.f32.gmra.mxu0 %v2361
          %v2575 = vpop.f32.mrf.mxu0
          %v2576 = vadd.f32 %v887, %v2575
          %v2577 = vpop.f32.mrf.mxu0
          %2578 = vdwg.mxu0
          %s2579 = scalar_lea.vmem [#allocation5], %s2434
          %2580 = vst.msk [vmem:[%s2579] sm:$0xff] %vm728, %v2576
          %v2581 = vld [vmem:[#allocation2 + $0x6] sm:$0x1]
          %v2582 = vld [vmem:[#allocation2 + $0xe] sm:$0x1]
          %v2583 = vld [vmem:[#allocation2 + $0x16] sm:$0x1]
          %v2584 = vld [vmem:[#allocation2 + $0x1e] sm:$0x1]
          %v2585 = vld [vmem:[#allocation2 + $0x26] sm:$0x1]
          %v2586 = vld [vmem:[#allocation2 + $0x2e] sm:$0x1]
          %v2587 = vld [vmem:[#allocation2 + $0x36] sm:$0x1]
          %v2588 = vld [vmem:[#allocation2 + $0x3e] sm:$0x1]
          %v2597 = vrot.slane %v2582, 7
          %v2598 = vsel %vm629, %v2597, %v2581
          %v2599 = vrot.slane %v2583, 6
          %v2600 = vsel %vm632, %v2599, %v2598
          %v2601 = vrot.slane %v2584, 5
          %v2602 = vsel %vm635, %v2601, %v2600
          %v2603 = vrot.slane %v2585, 4
          %v2604 = vsel %vm638, %v2603, %v2602
          %v2605 = vrot.slane %v2586, 3
          %v2606 = vsel %vm641, %v2605, %v2604
          %v2607 = vrot.slane %v2587, 2
          %v2608 = vsel %vm644, %v2607, %v2606
          %v2609 = vrot.slane %v2588, 1
          %v2610 = vsel %vm647, %v2609, %v2608
          %v2611 = vsel %vm576, %v2610, 0
          %2613 = vmatprep.subr.mxu0 0.0
          %2614 = vmatpush1.msra.mxu0 0.0
          %2615 = vmatprep.subr.mxu0 0.0
          %2616 = vmatpush1.msra.mxu0 0.0
          %2617 = vmatprep.subr.mxu0 0.0
          %2618 = vmatpush1.msra.mxu0 0.0
          %2619 = vmatprep.subr.mxu0 0.0
          %2620 = vmatpush1.msra.mxu0 0.0
          %2621 = vmatprep.subr.mxu0 0.0
          %2622 = vmatpush1.msra.mxu0 0.0
          %2623 = vmatprep.subr.mxu0 0.0
          %2624 = vmatpush1.msra.mxu0 0.0
          %2625 = vmatprep.subr.mxu0 0.0
          %2626 = vmatpush1.msra.mxu0 0.0
          %2627 = vmatprep.subr.mxu0 0.0
          %2628 = vmatpush1.msra.mxu0 0.0
          %2629 = vmatprep.subr.mxu0 0.0
          %2630 = vmatpush1.msra.mxu0 0.0
          %2631 = vmatprep.subr.mxu0 0.0
          %2632 = vmatpush1.msra.mxu0 0.0
          %2633 = vmatprep.subr.mxu0 0.0
          %2634 = vmatpush1.msra.mxu0 0.0
          %2635 = vmatprep.subr.mxu0 0.0
          %2636 = vmatpush1.msra.mxu0 0.0
          %2637 = vmatprep.subr.mxu0 0.0
          %2638 = vmatpush1.msra.mxu0 0.0
          %2639 = vmatprep.subr.mxu0 0.0
          %2640 = vmatpush1.msra.mxu0 0.0
          %2641 = vmatprep.subr.mxu0 0.0
          %2642 = vmatpush1.msra.mxu0 %v584
          %2643 = vmatprep.subr.mxu0 0.0
          %2644 = vmatpush1.msra.mxu0 %v583
          %2645 = vmatprep.subr.mxu0 0.0
          %2646 = vmatpush2.msra.mxu0 0.0
          %2647 = vmatprep.subr.mxu0 0.0
          %2648 = vmatpush2.msra.mxu0 0.0
          %2649 = vmatprep.subr.mxu0 0.0
          %2650 = vmatpush2.msra.mxu0 0.0
          %2651 = vmatprep.subr.mxu0 0.0
          %2652 = vmatpush2.msra.mxu0 0.0
          %2653 = vmatprep.subr.mxu0 0.0
          %2654 = vmatpush2.msra.mxu0 0.0
          %2655 = vmatprep.subr.mxu0 0.0
          %2656 = vmatpush2.msra.mxu0 0.0
          %2657 = vmatprep.subr.mxu0 0.0
          %2658 = vmatpush2.msra.mxu0 0.0
          %2659 = vmatprep.subr.mxu0 0.0
          %2660 = vmatpush2.msra.mxu0 0.0
          %2661 = vmatprep.subr.mxu0 0.0
          %2662 = vmatpush2.msra.mxu0 0.0
          %2663 = vmatprep.subr.mxu0 0.0
          %2664 = vmatpush2.msra.mxu0 0.0
          %2665 = vmatprep.subr.mxu0 0.0
          %2666 = vmatpush2.msra.mxu0 0.0
          %2667 = vmatprep.subr.mxu0 0.0
          %2668 = vmatpush2.msra.mxu0 0.0
          %2669 = vmatprep.subr.mxu0 0.0
          %2670 = vmatpush2.msra.mxu0 0.0
          %2671 = vmatprep.subr.mxu0 0.0
          %2672 = vmatpush2.msra.mxu0 0.0
          %2673 = vmatprep.subr.mxu0 0.0
          %2674 = vmatpush2.msra.mxu0 0.0
          %2675 = vmatprep.subr.mxu0 0.0
          %2676 = vmatpush2.msra.mxu0 0.0
          %2677 = vmatprep.mubr.f32.mxu0 0.0
          %2678 = vmatmul.mubr.f32.gmra.mxu0 %v2611
          %v2679 = vpop.f32.mrf.mxu0
          %v2680 = vadd.f32 %v618, %v2679
          %v2681 = vpop.f32.mrf.mxu0
          %2682 = vdwg.mxu0
          %v2683 = vmax.f32 %v2680, 0.0
          %v2685 = vsel %vm728, %v2683, 0
          %2687 = vmatprep.subr.mxu0 0.0
          %2688 = vmatpush1.msra.mxu0 0.0
          %2689 = vmatprep.subr.mxu0 0.0
          %2690 = vmatpush1.msra.mxu0 0.0
          %2691 = vmatprep.subr.mxu0 0.0
          %2692 = vmatpush1.msra.mxu0 0.0
          %2693 = vmatprep.subr.mxu0 0.0
          %2694 = vmatpush1.msra.mxu0 0.0
          %2695 = vmatprep.subr.mxu0 0.0
          %2696 = vmatpush1.msra.mxu0 0.0
          %2697 = vmatprep.subr.mxu0 0.0
          %2698 = vmatpush1.msra.mxu0 0.0
          %2699 = vmatprep.subr.mxu0 0.0
          %2700 = vmatpush1.msra.mxu0 0.0
          %2701 = vmatprep.subr.mxu0 0.0
          %2702 = vmatpush1.msra.mxu0 0.0
          %2703 = vmatprep.subr.mxu0 0.0
          %2704 = vmatpush1.msra.mxu0 0.0
          %2705 = vmatprep.subr.mxu0 0.0
          %2706 = vmatpush1.msra.mxu0 0.0
          %2707 = vmatprep.subr.mxu0 0.0
          %2708 = vmatpush1.msra.mxu0 0.0
          %2709 = vmatprep.subr.mxu0 0.0
          %2710 = vmatpush1.msra.mxu0 0.0
          %2711 = vmatprep.subr.mxu0 0.0
          %2712 = vmatpush1.msra.mxu0 %v589
          %2713 = vmatprep.subr.mxu0 0.0
          %2714 = vmatpush1.msra.mxu0 %v588
          %2715 = vmatprep.subr.mxu0 0.0
          %2716 = vmatpush1.msra.mxu0 %v587
          %2717 = vmatprep.subr.mxu0 0.0
          %2718 = vmatpush1.msra.mxu0 %v586
          %2719 = vmatprep.subr.mxu0 0.0
          %2720 = vmatpush2.msra.mxu0 0.0
          %2721 = vmatprep.subr.mxu0 0.0
          %2722 = vmatpush2.msra.mxu0 0.0
          %2723 = vmatprep.subr.mxu0 0.0
          %2724 = vmatpush2.msra.mxu0 0.0
          %2725 = vmatprep.subr.mxu0 0.0
          %2726 = vmatpush2.msra.mxu0 0.0
          %2727 = vmatprep.subr.mxu0 0.0
          %2728 = vmatpush2.msra.mxu0 0.0
          %2729 = vmatprep.subr.mxu0 0.0
          %2730 = vmatpush2.msra.mxu0 0.0
          %2731 = vmatprep.subr.mxu0 0.0
          %2732 = vmatpush2.msra.mxu0 0.0
          %2733 = vmatprep.subr.mxu0 0.0
          %2734 = vmatpush2.msra.mxu0 0.0
          %2735 = vmatprep.subr.mxu0 0.0
          %2736 = vmatpush2.msra.mxu0 0.0
          %2737 = vmatprep.subr.mxu0 0.0
          %2738 = vmatpush2.msra.mxu0 0.0
          %2739 = vmatprep.subr.mxu0 0.0
          %2740 = vmatpush2.msra.mxu0 0.0
          %2741 = vmatprep.subr.mxu0 0.0
          %2742 = vmatpush2.msra.mxu0 0.0
          %2743 = vmatprep.subr.mxu0 0.0
          %2744 = vmatpush2.msra.mxu0 0.0
          %2745 = vmatprep.subr.mxu0 0.0
          %2746 = vmatpush2.msra.mxu0 0.0
          %2747 = vmatprep.subr.mxu0 0.0
          %2748 = vmatpush2.msra.mxu0 0.0
          %2749 = vmatprep.subr.mxu0 0.0
          %2750 = vmatpush2.msra.mxu0 0.0
          %2751 = vmatprep.mubr.f32.mxu0 0.0
          %2752 = vmatmul.mubr.f32.gmra.mxu0 %v2685
          %v2753 = vpop.f32.mrf.mxu0
          %v2754 = vadd.f32 %v726, %v2753
          %v2755 = vpop.f32.mrf.mxu0
          %2756 = vdwg.mxu0
          %s2757 = sadd.s32 %s605, 6
          %s2758 = smul.u32 %s2757, 8
          %s2759 = scalar_lea.vmem [#allocation3], %s2758
          %2760 = vst.msk [vmem:[%s2759] sm:$0xff] %vm728, %v2754
          %2761 = vmatprep.subr.mxu0 0.0
          %2762 = vmatpush1.msra.mxu0 0.0
          %2763 = vmatprep.subr.mxu0 0.0
          %2764 = vmatpush1.msra.mxu0 0.0
          %2765 = vmatprep.subr.mxu0 0.0
          %2766 = vmatpush1.msra.mxu0 0.0
          %2767 = vmatprep.subr.mxu0 0.0
          %2768 = vmatpush1.msra.mxu0 0.0
          %2769 = vmatprep.subr.mxu0 0.0
          %2770 = vmatpush1.msra.mxu0 0.0
          %2771 = vmatprep.subr.mxu0 0.0
          %2772 = vmatpush1.msra.mxu0 0.0
          %2773 = vmatprep.subr.mxu0 0.0
          %2774 = vmatpush1.msra.mxu0 0.0
          %2775 = vmatprep.subr.mxu0 0.0
          %2776 = vmatpush1.msra.mxu0 0.0
          %2777 = vmatprep.subr.mxu0 0.0
          %2778 = vmatpush1.msra.mxu0 0.0
          %2779 = vmatprep.subr.mxu0 0.0
          %2780 = vmatpush1.msra.mxu0 0.0
          %2781 = vmatprep.subr.mxu0 0.0
          %2782 = vmatpush1.msra.mxu0 0.0
          %2783 = vmatprep.subr.mxu0 0.0
          %2784 = vmatpush1.msra.mxu0 0.0
          %2785 = vmatprep.subr.mxu0 0.0
          %2786 = vmatpush1.msra.mxu0 %v594
          %2787 = vmatprep.subr.mxu0 0.0
          %2788 = vmatpush1.msra.mxu0 %v593
          %2789 = vmatprep.subr.mxu0 0.0
          %2790 = vmatpush1.msra.mxu0 %v592
          %2791 = vmatprep.subr.mxu0 0.0
          %2792 = vmatpush1.msra.mxu0 %v591
          %2793 = vmatprep.subr.mxu0 0.0
          %2794 = vmatpush2.msra.mxu0 0.0
          %2795 = vmatprep.subr.mxu0 0.0
          %2796 = vmatpush2.msra.mxu0 0.0
          %2797 = vmatprep.subr.mxu0 0.0
          %2798 = vmatpush2.msra.mxu0 0.0
          %2799 = vmatprep.subr.mxu0 0.0
          %2800 = vmatpush2.msra.mxu0 0.0
          %2801 = vmatprep.subr.mxu0 0.0
          %2802 = vmatpush2.msra.mxu0 0.0
          %2803 = vmatprep.subr.mxu0 0.0
          %2804 = vmatpush2.msra.mxu0 0.0
          %2805 = vmatprep.subr.mxu0 0.0
          %2806 = vmatpush2.msra.mxu0 0.0
          %2807 = vmatprep.subr.mxu0 0.0
          %2808 = vmatpush2.msra.mxu0 0.0
          %2809 = vmatprep.subr.mxu0 0.0
          %2810 = vmatpush2.msra.mxu0 0.0
          %2811 = vmatprep.subr.mxu0 0.0
          %2812 = vmatpush2.msra.mxu0 0.0
          %2813 = vmatprep.subr.mxu0 0.0
          %2814 = vmatpush2.msra.mxu0 0.0
          %2815 = vmatprep.subr.mxu0 0.0
          %2816 = vmatpush2.msra.mxu0 0.0
          %2817 = vmatprep.subr.mxu0 0.0
          %2818 = vmatpush2.msra.mxu0 0.0
          %2819 = vmatprep.subr.mxu0 0.0
          %2820 = vmatpush2.msra.mxu0 0.0
          %2821 = vmatprep.subr.mxu0 0.0
          %2822 = vmatpush2.msra.mxu0 0.0
          %2823 = vmatprep.subr.mxu0 0.0
          %2824 = vmatpush2.msra.mxu0 0.0
          %2825 = vmatprep.mubr.f32.mxu0 0.0
          %2826 = vmatmul.mubr.f32.gmra.mxu0 %v2685
          %v2827 = vpop.f32.mrf.mxu0
          %v2828 = vadd.f32 %v809, %v2827
          %v2829 = vpop.f32.mrf.mxu0
          %2830 = vdwg.mxu0
          %s2831 = scalar_lea.vmem [#allocation4], %s2758
          %2832 = vst.msk [vmem:[%s2831] sm:$0xff] %vm728, %v2828
          %2833 = vmatprep.subr.mxu0 0.0
          %2834 = vmatpush1.msra.mxu0 0.0
          %2835 = vmatprep.subr.mxu0 0.0
          %2836 = vmatpush1.msra.mxu0 0.0
          %2837 = vmatprep.subr.mxu0 0.0
          %2838 = vmatpush1.msra.mxu0 0.0
          %2839 = vmatprep.subr.mxu0 0.0
          %2840 = vmatpush1.msra.mxu0 0.0
          %2841 = vmatprep.subr.mxu0 0.0
          %2842 = vmatpush1.msra.mxu0 0.0
          %2843 = vmatprep.subr.mxu0 0.0
          %2844 = vmatpush1.msra.mxu0 0.0
          %2845 = vmatprep.subr.mxu0 0.0
          %2846 = vmatpush1.msra.mxu0 0.0
          %2847 = vmatprep.subr.mxu0 0.0
          %2848 = vmatpush1.msra.mxu0 0.0
          %2849 = vmatprep.subr.mxu0 0.0
          %2850 = vmatpush1.msra.mxu0 0.0
          %2851 = vmatprep.subr.mxu0 0.0
          %2852 = vmatpush1.msra.mxu0 0.0
          %2853 = vmatprep.subr.mxu0 0.0
          %2854 = vmatpush1.msra.mxu0 0.0
          %2855 = vmatprep.subr.mxu0 0.0
          %2856 = vmatpush1.msra.mxu0 0.0
          %2857 = vmatprep.subr.mxu0 0.0
          %2858 = vmatpush1.msra.mxu0 %v599
          %2859 = vmatprep.subr.mxu0 0.0
          %2860 = vmatpush1.msra.mxu0 %v598
          %2861 = vmatprep.subr.mxu0 0.0
          %2862 = vmatpush1.msra.mxu0 %v597
          %2863 = vmatprep.subr.mxu0 0.0
          %2864 = vmatpush1.msra.mxu0 %v596
          %2865 = vmatprep.subr.mxu0 0.0
          %2866 = vmatpush2.msra.mxu0 0.0
          %2867 = vmatprep.subr.mxu0 0.0
          %2868 = vmatpush2.msra.mxu0 0.0
          %2869 = vmatprep.subr.mxu0 0.0
          %2870 = vmatpush2.msra.mxu0 0.0
          %2871 = vmatprep.subr.mxu0 0.0
          %2872 = vmatpush2.msra.mxu0 0.0
          %2873 = vmatprep.subr.mxu0 0.0
          %2874 = vmatpush2.msra.mxu0 0.0
          %2875 = vmatprep.subr.mxu0 0.0
          %2876 = vmatpush2.msra.mxu0 0.0
          %2877 = vmatprep.subr.mxu0 0.0
          %2878 = vmatpush2.msra.mxu0 0.0
          %2879 = vmatprep.subr.mxu0 0.0
          %2880 = vmatpush2.msra.mxu0 0.0
          %2881 = vmatprep.subr.mxu0 0.0
          %2882 = vmatpush2.msra.mxu0 0.0
          %2883 = vmatprep.subr.mxu0 0.0
          %2884 = vmatpush2.msra.mxu0 0.0
          %2885 = vmatprep.subr.mxu0 0.0
          %2886 = vmatpush2.msra.mxu0 0.0
          %2887 = vmatprep.subr.mxu0 0.0
          %2888 = vmatpush2.msra.mxu0 0.0
          %2889 = vmatprep.subr.mxu0 0.0
          %2890 = vmatpush2.msra.mxu0 0.0
          %2891 = vmatprep.subr.mxu0 0.0
          %2892 = vmatpush2.msra.mxu0 0.0
          %2893 = vmatprep.subr.mxu0 0.0
          %2894 = vmatpush2.msra.mxu0 0.0
          %2895 = vmatprep.subr.mxu0 0.0
          %2896 = vmatpush2.msra.mxu0 0.0
          %2897 = vmatprep.mubr.f32.mxu0 0.0
          %2898 = vmatmul.mubr.f32.gmra.mxu0 %v2685
          %v2899 = vpop.f32.mrf.mxu0
          %v2900 = vadd.f32 %v887, %v2899
          %v2901 = vpop.f32.mrf.mxu0
          %2902 = vdwg.mxu0
          %s2903 = scalar_lea.vmem [#allocation5], %s2758
          %2904 = vst.msk [vmem:[%s2903] sm:$0xff] %vm728, %v2900
          %v2905 = vld [vmem:[#allocation2 + $0x7] sm:$0x1]
          %v2906 = vld [vmem:[#allocation2 + $0xf] sm:$0x1]
          %v2907 = vld [vmem:[#allocation2 + $0x17] sm:$0x1]
          %v2908 = vld [vmem:[#allocation2 + $0x1f] sm:$0x1]
          %v2909 = vld [vmem:[#allocation2 + $0x27] sm:$0x1]
          %v2910 = vld [vmem:[#allocation2 + $0x2f] sm:$0x1]
          %v2911 = vld [vmem:[#allocation2 + $0x37] sm:$0x1]
          %v2912 = vld [vmem:[#allocation2 + $0x3f] sm:$0x1]
          %v2921 = vrot.slane %v2906, 7
          %v2922 = vsel %vm629, %v2921, %v2905
          %v2923 = vrot.slane %v2907, 6
          %v2924 = vsel %vm632, %v2923, %v2922
          %v2925 = vrot.slane %v2908, 5
          %v2926 = vsel %vm635, %v2925, %v2924
          %v2927 = vrot.slane %v2909, 4
          %v2928 = vsel %vm638, %v2927, %v2926
          %v2929 = vrot.slane %v2910, 3
          %v2930 = vsel %vm641, %v2929, %v2928
          %v2931 = vrot.slane %v2911, 2
          %v2932 = vsel %vm644, %v2931, %v2930
          %v2933 = vrot.slane %v2912, 1
          %v2934 = vsel %vm647, %v2933, %v2932
          %v2935 = vsel %vm576, %v2934, 0
          %2937 = vmatprep.subr.mxu0 0.0
          %2938 = vmatpush1.msra.mxu0 0.0
          %2939 = vmatprep.subr.mxu0 0.0
          %2940 = vmatpush1.msra.mxu0 0.0
          %2941 = vmatprep.subr.mxu0 0.0
          %2942 = vmatpush1.msra.mxu0 0.0
          %2943 = vmatprep.subr.mxu0 0.0
          %2944 = vmatpush1.msra.mxu0 0.0
          %2945 = vmatprep.subr.mxu0 0.0
          %2946 = vmatpush1.msra.mxu0 0.0
          %2947 = vmatprep.subr.mxu0 0.0
          %2948 = vmatpush1.msra.mxu0 0.0
          %2949 = vmatprep.subr.mxu0 0.0
          %2950 = vmatpush1.msra.mxu0 0.0
          %2951 = vmatprep.subr.mxu0 0.0
          %2952 = vmatpush1.msra.mxu0 0.0
          %2953 = vmatprep.subr.mxu0 0.0
          %2954 = vmatpush1.msra.mxu0 0.0
          %2955 = vmatprep.subr.mxu0 0.0
          %2956 = vmatpush1.msra.mxu0 0.0
          %2957 = vmatprep.subr.mxu0 0.0
          %2958 = vmatpush1.msra.mxu0 0.0
          %2959 = vmatprep.subr.mxu0 0.0
          %2960 = vmatpush1.msra.mxu0 0.0
          %2961 = vmatprep.subr.mxu0 0.0
          %2962 = vmatpush1.msra.mxu0 0.0
          %2963 = vmatprep.subr.mxu0 0.0
          %2964 = vmatpush1.msra.mxu0 0.0
          %2965 = vmatprep.subr.mxu0 0.0
          %2966 = vmatpush1.msra.mxu0 %v584
          %2967 = vmatprep.subr.mxu0 0.0
          %2968 = vmatpush1.msra.mxu0 %v583
          %2969 = vmatprep.subr.mxu0 0.0
          %2970 = vmatpush2.msra.mxu0 0.0
          %2971 = vmatprep.subr.mxu0 0.0
          %2972 = vmatpush2.msra.mxu0 0.0
          %2973 = vmatprep.subr.mxu0 0.0
          %2974 = vmatpush2.msra.mxu0 0.0
          %2975 = vmatprep.subr.mxu0 0.0
          %2976 = vmatpush2.msra.mxu0 0.0
          %2977 = vmatprep.subr.mxu0 0.0
          %2978 = vmatpush2.msra.mxu0 0.0
          %2979 = vmatprep.subr.mxu0 0.0
          %2980 = vmatpush2.msra.mxu0 0.0
          %2981 = vmatprep.subr.mxu0 0.0
          %2982 = vmatpush2.msra.mxu0 0.0
          %2983 = vmatprep.subr.mxu0 0.0
          %2984 = vmatpush2.msra.mxu0 0.0
          %2985 = vmatprep.subr.mxu0 0.0
          %2986 = vmatpush2.msra.mxu0 0.0
          %2987 = vmatprep.subr.mxu0 0.0
          %2988 = vmatpush2.msra.mxu0 0.0
          %2989 = vmatprep.subr.mxu0 0.0
          %2990 = vmatpush2.msra.mxu0 0.0
          %2991 = vmatprep.subr.mxu0 0.0
          %2992 = vmatpush2.msra.mxu0 0.0
          %2993 = vmatprep.subr.mxu0 0.0
          %2994 = vmatpush2.msra.mxu0 0.0
          %2995 = vmatprep.subr.mxu0 0.0
          %2996 = vmatpush2.msra.mxu0 0.0
          %2997 = vmatprep.subr.mxu0 0.0
          %2998 = vmatpush2.msra.mxu0 0.0
          %2999 = vmatprep.subr.mxu0 0.0
          %3000 = vmatpush2.msra.mxu0 0.0
          %3001 = vmatprep.mubr.f32.mxu0 0.0
          %3002 = vmatmul.mubr.f32.gmra.mxu0 %v2935
          %v3003 = vpop.f32.mrf.mxu0
          %v3004 = vadd.f32 %v618, %v3003
          %v3005 = vpop.f32.mrf.mxu0
          %3006 = vdwg.mxu0
          %v3007 = vmax.f32 %v3004, 0.0
          %v3009 = vsel %vm728, %v3007, 0
          %3011 = vmatprep.subr.mxu0 0.0
          %3012 = vmatpush1.msra.mxu0 0.0
          %3013 = vmatprep.subr.mxu0 0.0
          %3014 = vmatpush1.msra.mxu0 0.0
          %3015 = vmatprep.subr.mxu0 0.0
          %3016 = vmatpush1.msra.mxu0 0.0
          %3017 = vmatprep.subr.mxu0 0.0
          %3018 = vmatpush1.msra.mxu0 0.0
          %3019 = vmatprep.subr.mxu0 0.0
          %3020 = vmatpush1.msra.mxu0 0.0
          %3021 = vmatprep.subr.mxu0 0.0
          %3022 = vmatpush1.msra.mxu0 0.0
          %3023 = vmatprep.subr.mxu0 0.0
          %3024 = vmatpush1.msra.mxu0 0.0
          %3025 = vmatprep.subr.mxu0 0.0
          %3026 = vmatpush1.msra.mxu0 0.0
          %3027 = vmatprep.subr.mxu0 0.0
          %3028 = vmatpush1.msra.mxu0 0.0
          %3029 = vmatprep.subr.mxu0 0.0
          %3030 = vmatpush1.msra.mxu0 0.0
          %3031 = vmatprep.subr.mxu0 0.0
          %3032 = vmatpush1.msra.mxu0 0.0
          %3033 = vmatprep.subr.mxu0 0.0
          %3034 = vmatpush1.msra.mxu0 0.0
          %3035 = vmatprep.subr.mxu0 0.0
          %3036 = vmatpush1.msra.mxu0 %v589
          %3037 = vmatprep.subr.mxu0 0.0
          %3038 = vmatpush1.msra.mxu0 %v588
          %3039 = vmatprep.subr.mxu0 0.0
          %3040 = vmatpush1.msra.mxu0 %v587
          %3041 = vmatprep.subr.mxu0 0.0
          %3042 = vmatpush1.msra.mxu0 %v586
          %3043 = vmatprep.subr.mxu0 0.0
          %3044 = vmatpush2.msra.mxu0 0.0
          %3045 = vmatprep.subr.mxu0 0.0
          %3046 = vmatpush2.msra.mxu0 0.0
          %3047 = vmatprep.subr.mxu0 0.0
          %3048 = vmatpush2.msra.mxu0 0.0
          %3049 = vmatprep.subr.mxu0 0.0
          %3050 = vmatpush2.msra.mxu0 0.0
          %3051 = vmatprep.subr.mxu0 0.0
          %3052 = vmatpush2.msra.mxu0 0.0
          %3053 = vmatprep.subr.mxu0 0.0
          %3054 = vmatpush2.msra.mxu0 0.0
          %3055 = vmatprep.subr.mxu0 0.0
          %3056 = vmatpush2.msra.mxu0 0.0
          %3057 = vmatprep.subr.mxu0 0.0
          %3058 = vmatpush2.msra.mxu0 0.0
          %3059 = vmatprep.subr.mxu0 0.0
          %3060 = vmatpush2.msra.mxu0 0.0
          %3061 = vmatprep.subr.mxu0 0.0
          %3062 = vmatpush2.msra.mxu0 0.0
          %3063 = vmatprep.subr.mxu0 0.0
          %3064 = vmatpush2.msra.mxu0 0.0
          %3065 = vmatprep.subr.mxu0 0.0
          %3066 = vmatpush2.msra.mxu0 0.0
          %3067 = vmatprep.subr.mxu0 0.0
          %3068 = vmatpush2.msra.mxu0 0.0
          %3069 = vmatprep.subr.mxu0 0.0
          %3070 = vmatpush2.msra.mxu0 0.0
          %3071 = vmatprep.subr.mxu0 0.0
          %3072 = vmatpush2.msra.mxu0 0.0
          %3073 = vmatprep.subr.mxu0 0.0
          %3074 = vmatpush2.msra.mxu0 0.0
          %3075 = vmatprep.mubr.f32.mxu0 0.0
          %3076 = vmatmul.mubr.f32.gmra.mxu0 %v3009
          %v3077 = vpop.f32.mrf.mxu0
          %v3078 = vadd.f32 %v726, %v3077
          %v3079 = vpop.f32.mrf.mxu0
          %3080 = vdwg.mxu0
          %s3081 = sadd.s32 %s605, 7
          %s3082 = smul.u32 %s3081, 8
          %s3083 = scalar_lea.vmem [#allocation3], %s3082
          %3084 = vst.msk [vmem:[%s3083] sm:$0xff] %vm728, %v3078
          %3085 = vmatprep.subr.mxu0 0.0
          %3086 = vmatpush1.msra.mxu0 0.0
          %3087 = vmatprep.subr.mxu0 0.0
          %3088 = vmatpush1.msra.mxu0 0.0
          %3089 = vmatprep.subr.mxu0 0.0
          %3090 = vmatpush1.msra.mxu0 0.0
          %3091 = vmatprep.subr.mxu0 0.0
          %3092 = vmatpush1.msra.mxu0 0.0
          %3093 = vmatprep.subr.mxu0 0.0
          %3094 = vmatpush1.msra.mxu0 0.0
          %3095 = vmatprep.subr.mxu0 0.0
          %3096 = vmatpush1.msra.mxu0 0.0
          %3097 = vmatprep.subr.mxu0 0.0
          %3098 = vmatpush1.msra.mxu0 0.0
          %3099 = vmatprep.subr.mxu0 0.0
          %3100 = vmatpush1.msra.mxu0 0.0
          %3101 = vmatprep.subr.mxu0 0.0
          %3102 = vmatpush1.msra.mxu0 0.0
          %3103 = vmatprep.subr.mxu0 0.0
          %3104 = vmatpush1.msra.mxu0 0.0
          %3105 = vmatprep.subr.mxu0 0.0
          %3106 = vmatpush1.msra.mxu0 0.0
          %3107 = vmatprep.subr.mxu0 0.0
          %3108 = vmatpush1.msra.mxu0 0.0
          %3109 = vmatprep.subr.mxu0 0.0
          %3110 = vmatpush1.msra.mxu0 %v594
          %3111 = vmatprep.subr.mxu0 0.0
          %3112 = vmatpush1.msra.mxu0 %v593
          %3113 = vmatprep.subr.mxu0 0.0
          %3114 = vmatpush1.msra.mxu0 %v592
          %3115 = vmatprep.subr.mxu0 0.0
          %3116 = vmatpush1.msra.mxu0 %v591
          %3117 = vmatprep.subr.mxu0 0.0
          %3118 = vmatpush2.msra.mxu0 0.0
          %3119 = vmatprep.subr.mxu0 0.0
          %3120 = vmatpush2.msra.mxu0 0.0
          %3121 = vmatprep.subr.mxu0 0.0
          %3122 = vmatpush2.msra.mxu0 0.0
          %3123 = vmatprep.subr.mxu0 0.0
          %3124 = vmatpush2.msra.mxu0 0.0
          %3125 = vmatprep.subr.mxu0 0.0
          %3126 = vmatpush2.msra.mxu0 0.0
          %3127 = vmatprep.subr.mxu0 0.0
          %3128 = vmatpush2.msra.mxu0 0.0
          %3129 = vmatprep.subr.mxu0 0.0
          %3130 = vmatpush2.msra.mxu0 0.0
          %3131 = vmatprep.subr.mxu0 0.0
          %3132 = vmatpush2.msra.mxu0 0.0
          %3133 = vmatprep.subr.mxu0 0.0
          %3134 = vmatpush2.msra.mxu0 0.0
          %3135 = vmatprep.subr.mxu0 0.0
          %3136 = vmatpush2.msra.mxu0 0.0
          %3137 = vmatprep.subr.mxu0 0.0
          %3138 = vmatpush2.msra.mxu0 0.0
          %3139 = vmatprep.subr.mxu0 0.0
          %3140 = vmatpush2.msra.mxu0 0.0
          %3141 = vmatprep.subr.mxu0 0.0
          %3142 = vmatpush2.msra.mxu0 0.0
          %3143 = vmatprep.subr.mxu0 0.0
          %3144 = vmatpush2.msra.mxu0 0.0
          %3145 = vmatprep.subr.mxu0 0.0
          %3146 = vmatpush2.msra.mxu0 0.0
          %3147 = vmatprep.subr.mxu0 0.0
          %3148 = vmatpush2.msra.mxu0 0.0
          %3149 = vmatprep.mubr.f32.mxu0 0.0
          %3150 = vmatmul.mubr.f32.gmra.mxu0 %v3009
          %v3151 = vpop.f32.mrf.mxu0
          %v3152 = vadd.f32 %v809, %v3151
          %v3153 = vpop.f32.mrf.mxu0
          %3154 = vdwg.mxu0
          %s3155 = scalar_lea.vmem [#allocation4], %s3082
          %3156 = vst.msk [vmem:[%s3155] sm:$0xff] %vm728, %v3152
          %3157 = vmatprep.subr.mxu0 0.0
          %3158 = vmatpush1.msra.mxu0 0.0
          %3159 = vmatprep.subr.mxu0 0.0
          %3160 = vmatpush1.msra.mxu0 0.0
          %3161 = vmatprep.subr.mxu0 0.0
          %3162 = vmatpush1.msra.mxu0 0.0
          %3163 = vmatprep.subr.mxu0 0.0
          %3164 = vmatpush1.msra.mxu0 0.0
          %3165 = vmatprep.subr.mxu0 0.0
          %3166 = vmatpush1.msra.mxu0 0.0
          %3167 = vmatprep.subr.mxu0 0.0
          %3168 = vmatpush1.msra.mxu0 0.0
          %3169 = vmatprep.subr.mxu0 0.0
          %3170 = vmatpush1.msra.mxu0 0.0
          %3171 = vmatprep.subr.mxu0 0.0
          %3172 = vmatpush1.msra.mxu0 0.0
          %3173 = vmatprep.subr.mxu0 0.0
          %3174 = vmatpush1.msra.mxu0 0.0
          %3175 = vmatprep.subr.mxu0 0.0
          %3176 = vmatpush1.msra.mxu0 0.0
          %3177 = vmatprep.subr.mxu0 0.0
          %3178 = vmatpush1.msra.mxu0 0.0
          %3179 = vmatprep.subr.mxu0 0.0
          %3180 = vmatpush1.msra.mxu0 0.0
          %3181 = vmatprep.subr.mxu0 0.0
          %3182 = vmatpush1.msra.mxu0 %v599
          %3183 = vmatprep.subr.mxu0 0.0
          %3184 = vmatpush1.msra.mxu0 %v598
          %3185 = vmatprep.subr.mxu0 0.0
          %3186 = vmatpush1.msra.mxu0 %v597
          %3187 = vmatprep.subr.mxu0 0.0
          %3188 = vmatpush1.msra.mxu0 %v596
          %3189 = vmatprep.subr.mxu0 0.0
          %3190 = vmatpush2.msra.mxu0 0.0
          %3191 = vmatprep.subr.mxu0 0.0
          %3192 = vmatpush2.msra.mxu0 0.0
          %3193 = vmatprep.subr.mxu0 0.0
          %3194 = vmatpush2.msra.mxu0 0.0
          %3195 = vmatprep.subr.mxu0 0.0
          %3196 = vmatpush2.msra.mxu0 0.0
          %3197 = vmatprep.subr.mxu0 0.0
          %3198 = vmatpush2.msra.mxu0 0.0
          %3199 = vmatprep.subr.mxu0 0.0
          %3200 = vmatpush2.msra.mxu0 0.0
          %3201 = vmatprep.subr.mxu0 0.0
          %3202 = vmatpush2.msra.mxu0 0.0
          %3203 = vmatprep.subr.mxu0 0.0
          %3204 = vmatpush2.msra.mxu0 0.0
          %3205 = vmatprep.subr.mxu0 0.0
          %3206 = vmatpush2.msra.mxu0 0.0
          %3207 = vmatprep.subr.mxu0 0.0
          %3208 = vmatpush2.msra.mxu0 0.0
          %3209 = vmatprep.subr.mxu0 0.0
          %3210 = vmatpush2.msra.mxu0 0.0
          %3211 = vmatprep.subr.mxu0 0.0
          %3212 = vmatpush2.msra.mxu0 0.0
          %3213 = vmatprep.subr.mxu0 0.0
          %3214 = vmatpush2.msra.mxu0 0.0
          %3215 = vmatprep.subr.mxu0 0.0
          %3216 = vmatpush2.msra.mxu0 0.0
          %3217 = vmatprep.subr.mxu0 0.0
          %3218 = vmatpush2.msra.mxu0 0.0
          %3219 = vmatprep.subr.mxu0 0.0
          %3220 = vmatpush2.msra.mxu0 0.0
          %3221 = vmatprep.mubr.f32.mxu0 0.0
          %3222 = vmatmul.mubr.f32.gmra.mxu0 %v3009
          %v3223 = vpop.f32.mrf.mxu0
          %v3224 = vadd.f32 %v887, %v3223
          %v3225 = vpop.f32.mrf.mxu0
          %3226 = vdwg.mxu0
          %s3227 = scalar_lea.vmem [#allocation5], %s3082
          %3228 = vst.msk [vmem:[%s3227] sm:$0xff] %vm728, %v3224
        $region112: #{tpu_custom_call.1} parent=71 // pred_fallthru
          _
        %p3229 = scmp.eq.s32.totalorder %s35, 0
        %p3230 = pnand %p3229, %p579
        %p3231 = pneg %p3230
        // Predicated region
        $region113: #{tpu_custom_call.1} parent=71 // pred_check
          _
        $region114: #{tpu_custom_call.1} parent=71 // pred_check_branch
          %3233 = sbr.rel (%p3230) target = $region116
        $region115: #{tpu_custom_call.1} parent=71 // pred_region
          %v3234 = vld [vmem:[#allocation13] sm:$0xff]
          %v3235 = vld [vmem:[#allocation13 + $0x8] sm:$0xff]
          %v3236 = vld [vmem:[#allocation13 + $0x10] sm:$0xff]
          %v3237 = vld [vmem:[#allocation13 + $0x18] sm:$0xff]
          %s3238 = scalar_lea.vmem [#allocation13], 32
          %v3239 = vld [vmem:[%s3238] sm:$0xff]
          %v3240 = vld [vmem:[%s3238 + $0x8] sm:$0xff]
          %v3241 = vld [vmem:[%s3238 + $0x10] sm:$0xff]
          %v3242 = vld [vmem:[%s3238 + $0x18] sm:$0xff]
          %s3243 = scalar_lea.vmem [#allocation13], 64
          %v3244 = vld [vmem:[%s3243] sm:$0xff]
          %v3245 = vld [vmem:[%s3243 + $0x8] sm:$0xff]
          %v3246 = vld [vmem:[%s3243 + $0x10] sm:$0xff]
          %v3247 = vld [vmem:[%s3243 + $0x18] sm:$0xff]
          %v3248 = vld [vmem:[#allocation15] sm:$0x1]
          %vm3249 = vcmask 261120
          %v3251 = vsel %vm3249, 0.0, 0
          %3253 = vmatprep.subr.mxu0 0.0
          %3254 = vmatpush1.msra.mxu0 0.0
          %3255 = vmatprep.subr.mxu0 0.0
          %3256 = vmatpush1.msra.mxu0 0.0
          %3257 = vmatprep.subr.mxu0 0.0
          %3258 = vmatpush1.msra.mxu0 0.0
          %3259 = vmatprep.subr.mxu0 0.0
          %3260 = vmatpush1.msra.mxu0 0.0
          %3261 = vmatprep.subr.mxu0 0.0
          %3262 = vmatpush1.msra.mxu0 0.0
          %3263 = vmatprep.subr.mxu0 0.0
          %3264 = vmatpush1.msra.mxu0 0.0
          %3265 = vmatprep.subr.mxu0 0.0
          %3266 = vmatpush1.msra.mxu0 0.0
          %3267 = vmatprep.subr.mxu0 0.0
          %3268 = vmatpush1.msra.mxu0 0.0
          %3269 = vmatprep.subr.mxu0 0.0
          %3270 = vmatpush1.msra.mxu0 0.0
          %3271 = vmatprep.subr.mxu0 0.0
          %3272 = vmatpush1.msra.mxu0 0.0
          %3273 = vmatprep.subr.mxu0 0.0
          %3274 = vmatpush1.msra.mxu0 0.0
          %3275 = vmatprep.subr.mxu0 0.0
          %3276 = vmatpush1.msra.mxu0 0.0
          %3277 = vmatprep.subr.mxu0 0.0
          %3278 = vmatpush1.msra.mxu0 %v3237
          %3279 = vmatprep.subr.mxu0 0.0
          %3280 = vmatpush1.msra.mxu0 %v3236
          %3281 = vmatprep.subr.mxu0 0.0
          %3282 = vmatpush1.msra.mxu0 %v3235
          %3283 = vmatprep.subr.mxu0 0.0
          %3284 = vmatpush1.msra.mxu0 %v3234
          %3285 = vmatprep.subr.mxu0 0.0
          %3286 = vmatpush2.msra.mxu0 0.0
          %3287 = vmatprep.subr.mxu0 0.0
          %3288 = vmatpush2.msra.mxu0 0.0
          %3289 = vmatprep.subr.mxu0 0.0
          %3290 = vmatpush2.msra.mxu0 0.0
          %3291 = vmatprep.subr.mxu0 0.0
          %3292 = vmatpush2.msra.mxu0 0.0
          %3293 = vmatprep.subr.mxu0 0.0
          %3294 = vmatpush2.msra.mxu0 0.0
          %3295 = vmatprep.subr.mxu0 0.0
          %3296 = vmatpush2.msra.mxu0 0.0
          %3297 = vmatprep.subr.mxu0 0.0
          %3298 = vmatpush2.msra.mxu0 0.0
          %3299 = vmatprep.subr.mxu0 0.0
          %3300 = vmatpush2.msra.mxu0 0.0
          %3301 = vmatprep.subr.mxu0 0.0
          %3302 = vmatpush2.msra.mxu0 0.0
          %3303 = vmatprep.subr.mxu0 0.0
          %3304 = vmatpush2.msra.mxu0 0.0
          %3305 = vmatprep.subr.mxu0 0.0
          %3306 = vmatpush2.msra.mxu0 0.0
          %3307 = vmatprep.subr.mxu0 0.0
          %3308 = vmatpush2.msra.mxu0 0.0
          %3309 = vmatprep.subr.mxu0 0.0
          %3310 = vmatpush2.msra.mxu0 0.0
          %3311 = vmatprep.subr.mxu0 0.0
          %3312 = vmatpush2.msra.mxu0 0.0
          %3313 = vmatprep.subr.mxu0 0.0
          %3314 = vmatpush2.msra.mxu0 0.0
          %3315 = vmatprep.subr.mxu0 0.0
          %3316 = vmatpush2.msra.mxu0 0.0
          %3317 = vmatprep.mubr.f32.mxu0 0.0
          %3318 = vmatmul.mubr.f32.gmra.mxu0 %v3251
          %v3319 = vpop.f32.mrf.mxu0
          %v3320 = vadd.f32 0.0, %v3319
          %v3321 = vpop.f32.mrf.mxu0
          %3322 = vdwg.mxu0
          %3323 = vmatprep.subr.mxu0 0.0
          %3324 = vmatpush1.msra.mxu0 0.0
          %3325 = vmatprep.subr.mxu0 0.0
          %3326 = vmatpush1.msra.mxu0 0.0
          %3327 = vmatprep.subr.mxu0 0.0
          %3328 = vmatpush1.msra.mxu0 0.0
          %3329 = vmatprep.subr.mxu0 0.0
          %3330 = vmatpush1.msra.mxu0 0.0
          %3331 = vmatprep.subr.mxu0 0.0
          %3332 = vmatpush1.msra.mxu0 0.0
          %3333 = vmatprep.subr.mxu0 0.0
          %3334 = vmatpush1.msra.mxu0 0.0
          %3335 = vmatprep.subr.mxu0 0.0
          %3336 = vmatpush1.msra.mxu0 0.0
          %3337 = vmatprep.subr.mxu0 0.0
          %3338 = vmatpush1.msra.mxu0 0.0
          %3339 = vmatprep.subr.mxu0 0.0
          %3340 = vmatpush1.msra.mxu0 0.0
          %3341 = vmatprep.subr.mxu0 0.0
          %3342 = vmatpush1.msra.mxu0 0.0
          %3343 = vmatprep.subr.mxu0 0.0
          %3344 = vmatpush1.msra.mxu0 0.0
          %3345 = vmatprep.subr.mxu0 0.0
          %3346 = vmatpush1.msra.mxu0 0.0
          %3347 = vmatprep.subr.mxu0 0.0
          %3348 = vmatpush1.msra.mxu0 %v3242
          %3349 = vmatprep.subr.mxu0 0.0
          %3350 = vmatpush1.msra.mxu0 %v3241
          %3351 = vmatprep.subr.mxu0 0.0
          %3352 = vmatpush1.msra.mxu0 %v3240
          %3353 = vmatprep.subr.mxu0 0.0
          %3354 = vmatpush1.msra.mxu0 %v3239
          %3355 = vmatprep.subr.mxu0 0.0
          %3356 = vmatpush2.msra.mxu0 0.0
          %3357 = vmatprep.subr.mxu0 0.0
          %3358 = vmatpush2.msra.mxu0 0.0
          %3359 = vmatprep.subr.mxu0 0.0
          %3360 = vmatpush2.msra.mxu0 0.0
          %3361 = vmatprep.subr.mxu0 0.0
          %3362 = vmatpush2.msra.mxu0 0.0
          %3363 = vmatprep.subr.mxu0 0.0
          %3364 = vmatpush2.msra.mxu0 0.0
          %3365 = vmatprep.subr.mxu0 0.0
          %3366 = vmatpush2.msra.mxu0 0.0
          %3367 = vmatprep.subr.mxu0 0.0
          %3368 = vmatpush2.msra.mxu0 0.0
          %3369 = vmatprep.subr.mxu0 0.0
          %3370 = vmatpush2.msra.mxu0 0.0
          %3371 = vmatprep.subr.mxu0 0.0
          %3372 = vmatpush2.msra.mxu0 0.0
          %3373 = vmatprep.subr.mxu0 0.0
          %3374 = vmatpush2.msra.mxu0 0.0
          %3375 = vmatprep.subr.mxu0 0.0
          %3376 = vmatpush2.msra.mxu0 0.0
          %3377 = vmatprep.subr.mxu0 0.0
          %3378 = vmatpush2.msra.mxu0 0.0
          %3379 = vmatprep.subr.mxu0 0.0
          %3380 = vmatpush2.msra.mxu0 0.0
          %3381 = vmatprep.subr.mxu0 0.0
          %3382 = vmatpush2.msra.mxu0 0.0
          %3383 = vmatprep.subr.mxu0 0.0
          %3384 = vmatpush2.msra.mxu0 0.0
          %3385 = vmatprep.subr.mxu0 0.0
          %3386 = vmatpush2.msra.mxu0 0.0
          %3387 = vmatprep.mubr.f32.mxu0 0.0
          %3388 = vmatmul.mubr.f32.gmra.mxu0 %v3251
          %v3389 = vpop.f32.mrf.mxu0
          %v3390 = vadd.f32 0.0, %v3389
          %v3391 = vpop.f32.mrf.mxu0
          %3392 = vdwg.mxu0
          %v3394 = vlaneseq
          %v3395 = vshrl.u32 %v3394, 7
          %v3396 = vsub.s32 0, %v3395
          %v3397 = vrot.slane %v3248, %v3396
          %3399 = vmatprep.subr.mxu0 0.0
          %3400 = vmatpush1.msra.mxu0 0.0
          %3401 = vmatprep.subr.mxu0 0.0
          %3402 = vmatpush1.msra.mxu0 0.0
          %3403 = vmatprep.subr.mxu0 0.0
          %3404 = vmatpush1.msra.mxu0 0.0
          %3405 = vmatprep.subr.mxu0 0.0
          %3406 = vmatpush1.msra.mxu0 0.0
          %3407 = vmatprep.subr.mxu0 0.0
          %3408 = vmatpush1.msra.mxu0 0.0
          %3409 = vmatprep.subr.mxu0 0.0
          %3410 = vmatpush1.msra.mxu0 0.0
          %3411 = vmatprep.subr.mxu0 0.0
          %3412 = vmatpush1.msra.mxu0 0.0
          %3413 = vmatprep.subr.mxu0 0.0
          %3414 = vmatpush1.msra.mxu0 0.0
          %3415 = vmatprep.subr.mxu0 0.0
          %3416 = vmatpush1.msra.mxu0 0.0
          %3417 = vmatprep.subr.mxu0 0.0
          %3418 = vmatpush1.msra.mxu0 0.0
          %3419 = vmatprep.subr.mxu0 0.0
          %3420 = vmatpush1.msra.mxu0 0.0
          %3421 = vmatprep.subr.mxu0 0.0
          %3422 = vmatpush1.msra.mxu0 0.0
          %3423 = vmatprep.subr.mxu0 0.0
          %3424 = vmatpush1.msra.mxu0 %v3247
          %3425 = vmatprep.subr.mxu0 0.0
          %3426 = vmatpush1.msra.mxu0 %v3246
          %3427 = vmatprep.subr.mxu0 0.0
          %3428 = vmatpush1.msra.mxu0 %v3245
          %3429 = vmatprep.subr.mxu0 0.0
          %3430 = vmatpush1.msra.mxu0 %v3244
          %3431 = vmatprep.subr.mxu0 0.0
          %3432 = vmatpush2.msra.mxu0 0.0
          %3433 = vmatprep.subr.mxu0 0.0
          %3434 = vmatpush2.msra.mxu0 0.0
          %3435 = vmatprep.subr.mxu0 0.0
          %3436 = vmatpush2.msra.mxu0 0.0
          %3437 = vmatprep.subr.mxu0 0.0
          %3438 = vmatpush2.msra.mxu0 0.0
          %3439 = vmatprep.subr.mxu0 0.0
          %3440 = vmatpush2.msra.mxu0 0.0
          %3441 = vmatprep.subr.mxu0 0.0
          %3442 = vmatpush2.msra.mxu0 0.0
          %3443 = vmatprep.subr.mxu0 0.0
          %3444 = vmatpush2.msra.mxu0 0.0
          %3445 = vmatprep.subr.mxu0 0.0
          %3446 = vmatpush2.msra.mxu0 0.0
          %3447 = vmatprep.subr.mxu0 0.0
          %3448 = vmatpush2.msra.mxu0 0.0
          %3449 = vmatprep.subr.mxu0 0.0
          %3450 = vmatpush2.msra.mxu0 0.0
          %3451 = vmatprep.subr.mxu0 0.0
          %3452 = vmatpush2.msra.mxu0 0.0
          %3453 = vmatprep.subr.mxu0 0.0
          %3454 = vmatpush2.msra.mxu0 0.0
          %3455 = vmatprep.subr.mxu0 0.0
          %3456 = vmatpush2.msra.mxu0 0.0
          %3457 = vmatprep.subr.mxu0 0.0
          %3458 = vmatpush2.msra.mxu0 0.0
          %3459 = vmatprep.subr.mxu0 0.0
          %3460 = vmatpush2.msra.mxu0 0.0
          %3461 = vmatprep.subr.mxu0 0.0
          %3462 = vmatpush2.msra.mxu0 0.0
          %3463 = vmatprep.mubr.f32.mxu0 0.0
          %3464 = vmatmul.mubr.f32.gmra.mxu0 %v3251
          %v3465 = vpop.f32.mrf.mxu0
          %v3466 = vadd.f32 %v3397, %v3465
          %v3467 = vpop.f32.mrf.mxu0
          %3468 = vdwg.mxu0
          %v3469 = vld [vmem:[#allocation3] sm:$0xff]
          %v3470 = vadd.f32 %v3469, %v3320
          %v3471 = vxor.u32 %v3470, 2147483648
          %v3472 = vmul.f32 %v3471, 1.442695
          %v3473 = vpow.pop %v3472
          %v3474 = vadd.f32 %v3473, 1.0
          %v3475 = vrcp.pop %v3474
          %v3476 = vmul.f32 1.0, %v3475
          %v3477 = vld [vmem:[#allocation4] sm:$0xff]
          %v3478 = vadd.f32 %v3477, %v3390
          %v3479 = vxor.u32 %v3478, 2147483648
          %v3480 = vmul.f32 %v3479, 1.442695
          %v3481 = vpow.pop %v3480
          %v3482 = vadd.f32 %v3481, 1.0
          %v3483 = vrcp.pop %v3482
          %v3484 = vmul.f32 1.0, %v3483
          %v3485 = vld [vmem:[#allocation5] sm:$0xff]
          %v3486 = vmul.f32 %v3476, %v3466
          %v3487 = vadd.f32 %v3485, %v3486
          %v3488 = vtanh.pop %v3487
          %v3489 = vsub.f32 0.0, %v3488
          %v3490 = vmul.f32 %v3484, %v3489
          %v3491 = vadd.f32 %v3488, %v3490
          %v3492 = vld [vmem:[%s12] sm:$0xff]
          %3494 = vset.pattern.permute.xlu0 0
          %3495 = vperm.xlu0 %3494, %v3492
          %v3496 = vpop.permute.xlu0 %3495
          %v3498 = vmul.f32 %v3496, %v3491
          %v3499 = vadd.f32 %v3498, 0.0
          %v3501 = vsel %vm3249, %v3499, 0
          %3503 = vmatprep.subr.mxu0 0.0
          %3504 = vmatpush1.msra.mxu0 0.0
          %3505 = vmatprep.subr.mxu0 0.0
          %3506 = vmatpush1.msra.mxu0 0.0
          %3507 = vmatprep.subr.mxu0 0.0
          %3508 = vmatpush1.msra.mxu0 0.0
          %3509 = vmatprep.subr.mxu0 0.0
          %3510 = vmatpush1.msra.mxu0 0.0
          %3511 = vmatprep.subr.mxu0 0.0
          %3512 = vmatpush1.msra.mxu0 0.0
          %3513 = vmatprep.subr.mxu0 0.0
          %3514 = vmatpush1.msra.mxu0 0.0
          %3515 = vmatprep.subr.mxu0 0.0
          %3516 = vmatpush1.msra.mxu0 0.0
          %3517 = vmatprep.subr.mxu0 0.0
          %3518 = vmatpush1.msra.mxu0 0.0
          %3519 = vmatprep.subr.mxu0 0.0
          %3520 = vmatpush1.msra.mxu0 0.0
          %3521 = vmatprep.subr.mxu0 0.0
          %3522 = vmatpush1.msra.mxu0 0.0
          %3523 = vmatprep.subr.mxu0 0.0
          %3524 = vmatpush1.msra.mxu0 0.0
          %3525 = vmatprep.subr.mxu0 0.0
          %3526 = vmatpush1.msra.mxu0 0.0
          %3527 = vmatprep.subr.mxu0 0.0
          %3528 = vmatpush1.msra.mxu0 %v3237
          %3529 = vmatprep.subr.mxu0 0.0
          %3530 = vmatpush1.msra.mxu0 %v3236
          %3531 = vmatprep.subr.mxu0 0.0
          %3532 = vmatpush1.msra.mxu0 %v3235
          %3533 = vmatprep.subr.mxu0 0.0
          %3534 = vmatpush1.msra.mxu0 %v3234
          %3535 = vmatprep.subr.mxu0 0.0
          %3536 = vmatpush2.msra.mxu0 0.0
          %3537 = vmatprep.subr.mxu0 0.0
          %3538 = vmatpush2.msra.mxu0 0.0
          %3539 = vmatprep.subr.mxu0 0.0
          %3540 = vmatpush2.msra.mxu0 0.0
          %3541 = vmatprep.subr.mxu0 0.0
          %3542 = vmatpush2.msra.mxu0 0.0
          %3543 = vmatprep.subr.mxu0 0.0
          %3544 = vmatpush2.msra.mxu0 0.0
          %3545 = vmatprep.subr.mxu0 0.0
          %3546 = vmatpush2.msra.mxu0 0.0
          %3547 = vmatprep.subr.mxu0 0.0
          %3548 = vmatpush2.msra.mxu0 0.0
          %3549 = vmatprep.subr.mxu0 0.0
          %3550 = vmatpush2.msra.mxu0 0.0
          %3551 = vmatprep.subr.mxu0 0.0
          %3552 = vmatpush2.msra.mxu0 0.0
          %3553 = vmatprep.subr.mxu0 0.0
          %3554 = vmatpush2.msra.mxu0 0.0
          %3555 = vmatprep.subr.mxu0 0.0
          %3556 = vmatpush2.msra.mxu0 0.0
          %3557 = vmatprep.subr.mxu0 0.0
          %3558 = vmatpush2.msra.mxu0 0.0
          %3559 = vmatprep.subr.mxu0 0.0
          %3560 = vmatpush2.msra.mxu0 0.0
          %3561 = vmatprep.subr.mxu0 0.0
          %3562 = vmatpush2.msra.mxu0 0.0
          %3563 = vmatprep.subr.mxu0 0.0
          %3564 = vmatpush2.msra.mxu0 0.0
          %3565 = vmatprep.subr.mxu0 0.0
          %3566 = vmatpush2.msra.mxu0 0.0
          %3567 = vmatprep.mubr.f32.mxu0 0.0
          %3568 = vmatmul.mubr.f32.gmra.mxu0 %v3501
          %v3569 = vpop.f32.mrf.mxu0
          %v3570 = vadd.f32 0.0, %v3569
          %v3571 = vpop.f32.mrf.mxu0
          %3572 = vdwg.mxu0
          %3573 = vmatprep.subr.mxu0 0.0
          %3574 = vmatpush1.msra.mxu0 0.0
          %3575 = vmatprep.subr.mxu0 0.0
          %3576 = vmatpush1.msra.mxu0 0.0
          %3577 = vmatprep.subr.mxu0 0.0
          %3578 = vmatpush1.msra.mxu0 0.0
          %3579 = vmatprep.subr.mxu0 0.0
          %3580 = vmatpush1.msra.mxu0 0.0
          %3581 = vmatprep.subr.mxu0 0.0
          %3582 = vmatpush1.msra.mxu0 0.0
          %3583 = vmatprep.subr.mxu0 0.0
          %3584 = vmatpush1.msra.mxu0 0.0
          %3585 = vmatprep.subr.mxu0 0.0
          %3586 = vmatpush1.msra.mxu0 0.0
          %3587 = vmatprep.subr.mxu0 0.0
          %3588 = vmatpush1.msra.mxu0 0.0
          %3589 = vmatprep.subr.mxu0 0.0
          %3590 = vmatpush1.msra.mxu0 0.0
          %3591 = vmatprep.subr.mxu0 0.0
          %3592 = vmatpush1.msra.mxu0 0.0
          %3593 = vmatprep.subr.mxu0 0.0
          %3594 = vmatpush1.msra.mxu0 0.0
          %3595 = vmatprep.subr.mxu0 0.0
          %3596 = vmatpush1.msra.mxu0 0.0
          %3597 = vmatprep.subr.mxu0 0.0
          %3598 = vmatpush1.msra.mxu0 %v3242
          %3599 = vmatprep.subr.mxu0 0.0
          %3600 = vmatpush1.msra.mxu0 %v3241
          %3601 = vmatprep.subr.mxu0 0.0
          %3602 = vmatpush1.msra.mxu0 %v3240
          %3603 = vmatprep.subr.mxu0 0.0
          %3604 = vmatpush1.msra.mxu0 %v3239
          %3605 = vmatprep.subr.mxu0 0.0
          %3606 = vmatpush2.msra.mxu0 0.0
          %3607 = vmatprep.subr.mxu0 0.0
          %3608 = vmatpush2.msra.mxu0 0.0
          %3609 = vmatprep.subr.mxu0 0.0
          %3610 = vmatpush2.msra.mxu0 0.0
          %3611 = vmatprep.subr.mxu0 0.0
          %3612 = vmatpush2.msra.mxu0 0.0
          %3613 = vmatprep.subr.mxu0 0.0
          %3614 = vmatpush2.msra.mxu0 0.0
          %3615 = vmatprep.subr.mxu0 0.0
          %3616 = vmatpush2.msra.mxu0 0.0
          %3617 = vmatprep.subr.mxu0 0.0
          %3618 = vmatpush2.msra.mxu0 0.0
          %3619 = vmatprep.subr.mxu0 0.0
          %3620 = vmatpush2.msra.mxu0 0.0
          %3621 = vmatprep.subr.mxu0 0.0
          %3622 = vmatpush2.msra.mxu0 0.0
          %3623 = vmatprep.subr.mxu0 0.0
          %3624 = vmatpush2.msra.mxu0 0.0
          %3625 = vmatprep.subr.mxu0 0.0
          %3626 = vmatpush2.msra.mxu0 0.0
          %3627 = vmatprep.subr.mxu0 0.0
          %3628 = vmatpush2.msra.mxu0 0.0
          %3629 = vmatprep.subr.mxu0 0.0
          %3630 = vmatpush2.msra.mxu0 0.0
          %3631 = vmatprep.subr.mxu0 0.0
          %3632 = vmatpush2.msra.mxu0 0.0
          %3633 = vmatprep.subr.mxu0 0.0
          %3634 = vmatpush2.msra.mxu0 0.0
          %3635 = vmatprep.subr.mxu0 0.0
          %3636 = vmatpush2.msra.mxu0 0.0
          %3637 = vmatprep.mubr.f32.mxu0 0.0
          %3638 = vmatmul.mubr.f32.gmra.mxu0 %v3501
          %v3639 = vpop.f32.mrf.mxu0
          %v3640 = vadd.f32 0.0, %v3639
          %v3641 = vpop.f32.mrf.mxu0
          %3642 = vdwg.mxu0
          %3643 = vmatprep.subr.mxu0 0.0
          %3644 = vmatpush1.msra.mxu0 0.0
          %3645 = vmatprep.subr.mxu0 0.0
          %3646 = vmatpush1.msra.mxu0 0.0
          %3647 = vmatprep.subr.mxu0 0.0
          %3648 = vmatpush1.msra.mxu0 0.0
          %3649 = vmatprep.subr.mxu0 0.0
          %3650 = vmatpush1.msra.mxu0 0.0
          %3651 = vmatprep.subr.mxu0 0.0
          %3652 = vmatpush1.msra.mxu0 0.0
          %3653 = vmatprep.subr.mxu0 0.0
          %3654 = vmatpush1.msra.mxu0 0.0
          %3655 = vmatprep.subr.mxu0 0.0
          %3656 = vmatpush1.msra.mxu0 0.0
          %3657 = vmatprep.subr.mxu0 0.0
          %3658 = vmatpush1.msra.mxu0 0.0
          %3659 = vmatprep.subr.mxu0 0.0
          %3660 = vmatpush1.msra.mxu0 0.0
          %3661 = vmatprep.subr.mxu0 0.0
          %3662 = vmatpush1.msra.mxu0 0.0
          %3663 = vmatprep.subr.mxu0 0.0
          %3664 = vmatpush1.msra.mxu0 0.0
          %3665 = vmatprep.subr.mxu0 0.0
          %3666 = vmatpush1.msra.mxu0 0.0
          %3667 = vmatprep.subr.mxu0 0.0
          %3668 = vmatpush1.msra.mxu0 %v3247
          %3669 = vmatprep.subr.mxu0 0.0
          %3670 = vmatpush1.msra.mxu0 %v3246
          %3671 = vmatprep.subr.mxu0 0.0
          %3672 = vmatpush1.msra.mxu0 %v3245
          %3673 = vmatprep.subr.mxu0 0.0
          %3674 = vmatpush1.msra.mxu0 %v3244
          %3675 = vmatprep.subr.mxu0 0.0
          %3676 = vmatpush2.msra.mxu0 0.0
          %3677 = vmatprep.subr.mxu0 0.0
          %3678 = vmatpush2.msra.mxu0 0.0
          %3679 = vmatprep.subr.mxu0 0.0
          %3680 = vmatpush2.msra.mxu0 0.0
          %3681 = vmatprep.subr.mxu0 0.0
          %3682 = vmatpush2.msra.mxu0 0.0
          %3683 = vmatprep.subr.mxu0 0.0
          %3684 = vmatpush2.msra.mxu0 0.0
          %3685 = vmatprep.subr.mxu0 0.0
          %3686 = vmatpush2.msra.mxu0 0.0
          %3687 = vmatprep.subr.mxu0 0.0
          %3688 = vmatpush2.msra.mxu0 0.0
          %3689 = vmatprep.subr.mxu0 0.0
          %3690 = vmatpush2.msra.mxu0 0.0
          %3691 = vmatprep.subr.mxu0 0.0
          %3692 = vmatpush2.msra.mxu0 0.0
          %3693 = vmatprep.subr.mxu0 0.0
          %3694 = vmatpush2.msra.mxu0 0.0
          %3695 = vmatprep.subr.mxu0 0.0
          %3696 = vmatpush2.msra.mxu0 0.0
          %3697 = vmatprep.subr.mxu0 0.0
          %3698 = vmatpush2.msra.mxu0 0.0
          %3699 = vmatprep.subr.mxu0 0.0
          %3700 = vmatpush2.msra.mxu0 0.0
          %3701 = vmatprep.subr.mxu0 0.0
          %3702 = vmatpush2.msra.mxu0 0.0
          %3703 = vmatprep.subr.mxu0 0.0
          %3704 = vmatpush2.msra.mxu0 0.0
          %3705 = vmatprep.subr.mxu0 0.0
          %3706 = vmatpush2.msra.mxu0 0.0
          %3707 = vmatprep.mubr.f32.mxu0 0.0
          %3708 = vmatmul.mubr.f32.gmra.mxu0 %v3501
          %v3709 = vpop.f32.mrf.mxu0
          %v3710 = vadd.f32 %v3397, %v3709
          %v3711 = vpop.f32.mrf.mxu0
          %3712 = vdwg.mxu0
          %s3713 = scalar_lea.vmem [#allocation3], 8
          %v3714 = vld [vmem:[%s3713] sm:$0xff]
          %v3715 = vadd.f32 %v3714, %v3570
          %v3716 = vxor.u32 %v3715, 2147483648
          %v3717 = vmul.f32 %v3716, 1.442695
          %v3718 = vpow.pop %v3717
          %v3719 = vadd.f32 %v3718, 1.0
          %v3720 = vrcp.pop %v3719
          %v3721 = vmul.f32 1.0, %v3720
          %s3722 = scalar_lea.vmem [#allocation4], 8
          %v3723 = vld [vmem:[%s3722] sm:$0xff]
          %v3724 = vadd.f32 %v3723, %v3640
          %v3725 = vxor.u32 %v3724, 2147483648
          %v3726 = vmul.f32 %v3725, 1.442695
          %v3727 = vpow.pop %v3726
          %v3728 = vadd.f32 %v3727, 1.0
          %v3729 = vrcp.pop %v3728
          %v3730 = vmul.f32 1.0, %v3729
          %s3731 = scalar_lea.vmem [#allocation5], 8
          %v3732 = vld [vmem:[%s3731] sm:$0xff]
          %v3733 = vmul.f32 %v3721, %v3710
          %v3734 = vadd.f32 %v3732, %v3733
          %v3735 = vtanh.pop %v3734
          %v3736 = vsub.f32 %v3499, %v3735
          %v3737 = vmul.f32 %v3730, %v3736
          %v3738 = vadd.f32 %v3735, %v3737
          %s3739 = scalar_lea.vmem %s12, 8
          %v3740 = vld [vmem:[%s3739] sm:$0xff]
          %v3741 = vsub.f32 %v3738, %v3499
          %3743 = vset.pattern.permute.xlu0 0
          %3744 = vperm.xlu0 %3743, %v3740
          %v3745 = vpop.permute.xlu0 %3744
          %v3747 = vmul.f32 %v3745, %v3741
          %v3748 = vadd.f32 %v3499, %v3747
          %v3750 = vsel %vm3249, %v3748, 0
          %3752 = vmatprep.subr.mxu0 0.0
          %3753 = vmatpush1.msra.mxu0 0.0
          %3754 = vmatprep.subr.mxu0 0.0
          %3755 = vmatpush1.msra.mxu0 0.0
          %3756 = vmatprep.subr.mxu0 0.0
          %3757 = vmatpush1.msra.mxu0 0.0
          %3758 = vmatprep.subr.mxu0 0.0
          %3759 = vmatpush1.msra.mxu0 0.0
          %3760 = vmatprep.subr.mxu0 0.0
          %3761 = vmatpush1.msra.mxu0 0.0
          %3762 = vmatprep.subr.mxu0 0.0
          %3763 = vmatpush1.msra.mxu0 0.0
          %3764 = vmatprep.subr.mxu0 0.0
          %3765 = vmatpush1.msra.mxu0 0.0
          %3766 = vmatprep.subr.mxu0 0.0
          %3767 = vmatpush1.msra.mxu0 0.0
          %3768 = vmatprep.subr.mxu0 0.0
          %3769 = vmatpush1.msra.mxu0 0.0
          %3770 = vmatprep.subr.mxu0 0.0
          %3771 = vmatpush1.msra.mxu0 0.0
          %3772 = vmatprep.subr.mxu0 0.0
          %3773 = vmatpush1.msra.mxu0 0.0
          %3774 = vmatprep.subr.mxu0 0.0
          %3775 = vmatpush1.msra.mxu0 0.0
          %3776 = vmatprep.subr.mxu0 0.0
          %3777 = vmatpush1.msra.mxu0 %v3237
          %3778 = vmatprep.subr.mxu0 0.0
          %3779 = vmatpush1.msra.mxu0 %v3236
          %3780 = vmatprep.subr.mxu0 0.0
          %3781 = vmatpush1.msra.mxu0 %v3235
          %3782 = vmatprep.subr.mxu0 0.0
          %3783 = vmatpush1.msra.mxu0 %v3234
          %3784 = vmatprep.subr.mxu0 0.0
          %3785 = vmatpush2.msra.mxu0 0.0
          %3786 = vmatprep.subr.mxu0 0.0
          %3787 = vmatpush2.msra.mxu0 0.0
          %3788 = vmatprep.subr.mxu0 0.0
          %3789 = vmatpush2.msra.mxu0 0.0
          %3790 = vmatprep.subr.mxu0 0.0
          %3791 = vmatpush2.msra.mxu0 0.0
          %3792 = vmatprep.subr.mxu0 0.0
          %3793 = vmatpush2.msra.mxu0 0.0
          %3794 = vmatprep.subr.mxu0 0.0
          %3795 = vmatpush2.msra.mxu0 0.0
          %3796 = vmatprep.subr.mxu0 0.0
          %3797 = vmatpush2.msra.mxu0 0.0
          %3798 = vmatprep.subr.mxu0 0.0
          %3799 = vmatpush2.msra.mxu0 0.0
          %3800 = vmatprep.subr.mxu0 0.0
          %3801 = vmatpush2.msra.mxu0 0.0
          %3802 = vmatprep.subr.mxu0 0.0
          %3803 = vmatpush2.msra.mxu0 0.0
          %3804 = vmatprep.subr.mxu0 0.0
          %3805 = vmatpush2.msra.mxu0 0.0
          %3806 = vmatprep.subr.mxu0 0.0
          %3807 = vmatpush2.msra.mxu0 0.0
          %3808 = vmatprep.subr.mxu0 0.0
          %3809 = vmatpush2.msra.mxu0 0.0
          %3810 = vmatprep.subr.mxu0 0.0
          %3811 = vmatpush2.msra.mxu0 0.0
          %3812 = vmatprep.subr.mxu0 0.0
          %3813 = vmatpush2.msra.mxu0 0.0
          %3814 = vmatprep.subr.mxu0 0.0
          %3815 = vmatpush2.msra.mxu0 0.0
          %3816 = vmatprep.mubr.f32.mxu0 0.0
          %3817 = vmatmul.mubr.f32.gmra.mxu0 %v3750
          %v3818 = vpop.f32.mrf.mxu0
          %v3819 = vadd.f32 0.0, %v3818
          %v3820 = vpop.f32.mrf.mxu0
          %3821 = vdwg.mxu0
          %3822 = vmatprep.subr.mxu0 0.0
          %3823 = vmatpush1.msra.mxu0 0.0
          %3824 = vmatprep.subr.mxu0 0.0
          %3825 = vmatpush1.msra.mxu0 0.0
          %3826 = vmatprep.subr.mxu0 0.0
          %3827 = vmatpush1.msra.mxu0 0.0
          %3828 = vmatprep.subr.mxu0 0.0
          %3829 = vmatpush1.msra.mxu0 0.0
          %3830 = vmatprep.subr.mxu0 0.0
          %3831 = vmatpush1.msra.mxu0 0.0
          %3832 = vmatprep.subr.mxu0 0.0
          %3833 = vmatpush1.msra.mxu0 0.0
          %3834 = vmatprep.subr.mxu0 0.0
          %3835 = vmatpush1.msra.mxu0 0.0
          %3836 = vmatprep.subr.mxu0 0.0
          %3837 = vmatpush1.msra.mxu0 0.0
          %3838 = vmatprep.subr.mxu0 0.0
          %3839 = vmatpush1.msra.mxu0 0.0
          %3840 = vmatprep.subr.mxu0 0.0
          %3841 = vmatpush1.msra.mxu0 0.0
          %3842 = vmatprep.subr.mxu0 0.0
          %3843 = vmatpush1.msra.mxu0 0.0
          %3844 = vmatprep.subr.mxu0 0.0
          %3845 = vmatpush1.msra.mxu0 0.0
          %3846 = vmatprep.subr.mxu0 0.0
          %3847 = vmatpush1.msra.mxu0 %v3242
          %3848 = vmatprep.subr.mxu0 0.0
          %3849 = vmatpush1.msra.mxu0 %v3241
          %3850 = vmatprep.subr.mxu0 0.0
          %3851 = vmatpush1.msra.mxu0 %v3240
          %3852 = vmatprep.subr.mxu0 0.0
          %3853 = vmatpush1.msra.mxu0 %v3239
          %3854 = vmatprep.subr.mxu0 0.0
          %3855 = vmatpush2.msra.mxu0 0.0
          %3856 = vmatprep.subr.mxu0 0.0
          %3857 = vmatpush2.msra.mxu0 0.0
          %3858 = vmatprep.subr.mxu0 0.0
          %3859 = vmatpush2.msra.mxu0 0.0
          %3860 = vmatprep.subr.mxu0 0.0
          %3861 = vmatpush2.msra.mxu0 0.0
          %3862 = vmatprep.subr.mxu0 0.0
          %3863 = vmatpush2.msra.mxu0 0.0
          %3864 = vmatprep.subr.mxu0 0.0
          %3865 = vmatpush2.msra.mxu0 0.0
          %3866 = vmatprep.subr.mxu0 0.0
          %3867 = vmatpush2.msra.mxu0 0.0
          %3868 = vmatprep.subr.mxu0 0.0
          %3869 = vmatpush2.msra.mxu0 0.0
          %3870 = vmatprep.subr.mxu0 0.0
          %3871 = vmatpush2.msra.mxu0 0.0
          %3872 = vmatprep.subr.mxu0 0.0
          %3873 = vmatpush2.msra.mxu0 0.0
          %3874 = vmatprep.subr.mxu0 0.0
          %3875 = vmatpush2.msra.mxu0 0.0
          %3876 = vmatprep.subr.mxu0 0.0
          %3877 = vmatpush2.msra.mxu0 0.0
          %3878 = vmatprep.subr.mxu0 0.0
          %3879 = vmatpush2.msra.mxu0 0.0
          %3880 = vmatprep.subr.mxu0 0.0
          %3881 = vmatpush2.msra.mxu0 0.0
          %3882 = vmatprep.subr.mxu0 0.0
          %3883 = vmatpush2.msra.mxu0 0.0
          %3884 = vmatprep.subr.mxu0 0.0
          %3885 = vmatpush2.msra.mxu0 0.0
          %3886 = vmatprep.mubr.f32.mxu0 0.0
          %3887 = vmatmul.mubr.f32.gmra.mxu0 %v3750
          %v3888 = vpop.f32.mrf.mxu0
          %v3889 = vadd.f32 0.0, %v3888
          %v3890 = vpop.f32.mrf.mxu0
          %3891 = vdwg.mxu0
          %3892 = vmatprep.subr.mxu0 0.0
          %3893 = vmatpush1.msra.mxu0 0.0
          %3894 = vmatprep.subr.mxu0 0.0
          %3895 = vmatpush1.msra.mxu0 0.0
          %3896 = vmatprep.subr.mxu0 0.0
          %3897 = vmatpush1.msra.mxu0 0.0
          %3898 = vmatprep.subr.mxu0 0.0
          %3899 = vmatpush1.msra.mxu0 0.0
          %3900 = vmatprep.subr.mxu0 0.0
          %3901 = vmatpush1.msra.mxu0 0.0
          %3902 = vmatprep.subr.mxu0 0.0
          %3903 = vmatpush1.msra.mxu0 0.0
          %3904 = vmatprep.subr.mxu0 0.0
          %3905 = vmatpush1.msra.mxu0 0.0
          %3906 = vmatprep.subr.mxu0 0.0
          %3907 = vmatpush1.msra.mxu0 0.0
          %3908 = vmatprep.subr.mxu0 0.0
          %3909 = vmatpush1.msra.mxu0 0.0
          %3910 = vmatprep.subr.mxu0 0.0
          %3911 = vmatpush1.msra.mxu0 0.0
          %3912 = vmatprep.subr.mxu0 0.0
          %3913 = vmatpush1.msra.mxu0 0.0
          %3914 = vmatprep.subr.mxu0 0.0
          %3915 = vmatpush1.msra.mxu0 0.0
          %3916 = vmatprep.subr.mxu0 0.0
          %3917 = vmatpush1.msra.mxu0 %v3247
          %3918 = vmatprep.subr.mxu0 0.0
          %3919 = vmatpush1.msra.mxu0 %v3246
          %3920 = vmatprep.subr.mxu0 0.0
          %3921 = vmatpush1.msra.mxu0 %v3245
          %3922 = vmatprep.subr.mxu0 0.0
          %3923 = vmatpush1.msra.mxu0 %v3244
          %3924 = vmatprep.subr.mxu0 0.0
          %3925 = vmatpush2.msra.mxu0 0.0
          %3926 = vmatprep.subr.mxu0 0.0
          %3927 = vmatpush2.msra.mxu0 0.0
          %3928 = vmatprep.subr.mxu0 0.0
          %3929 = vmatpush2.msra.mxu0 0.0
          %3930 = vmatprep.subr.mxu0 0.0
          %3931 = vmatpush2.msra.mxu0 0.0
          %3932 = vmatprep.subr.mxu0 0.0
          %3933 = vmatpush2.msra.mxu0 0.0
          %3934 = vmatprep.subr.mxu0 0.0
          %3935 = vmatpush2.msra.mxu0 0.0
          %3936 = vmatprep.subr.mxu0 0.0
          %3937 = vmatpush2.msra.mxu0 0.0
          %3938 = vmatprep.subr.mxu0 0.0
          %3939 = vmatpush2.msra.mxu0 0.0
          %3940 = vmatprep.subr.mxu0 0.0
          %3941 = vmatpush2.msra.mxu0 0.0
          %3942 = vmatprep.subr.mxu0 0.0
          %3943 = vmatpush2.msra.mxu0 0.0
          %3944 = vmatprep.subr.mxu0 0.0
          %3945 = vmatpush2.msra.mxu0 0.0
          %3946 = vmatprep.subr.mxu0 0.0
          %3947 = vmatpush2.msra.mxu0 0.0
          %3948 = vmatprep.subr.mxu0 0.0
          %3949 = vmatpush2.msra.mxu0 0.0
          %3950 = vmatprep.subr.mxu0 0.0
          %3951 = vmatpush2.msra.mxu0 0.0
          %3952 = vmatprep.subr.mxu0 0.0
          %3953 = vmatpush2.msra.mxu0 0.0
          %3954 = vmatprep.subr.mxu0 0.0
          %3955 = vmatpush2.msra.mxu0 0.0
          %3956 = vmatprep.mubr.f32.mxu0 0.0
          %3957 = vmatmul.mubr.f32.gmra.mxu0 %v3750
          %v3958 = vpop.f32.mrf.mxu0
          %v3959 = vadd.f32 %v3397, %v3958
          %v3960 = vpop.f32.mrf.mxu0
          %3961 = vdwg.mxu0
          %s3962 = scalar_lea.vmem [#allocation3], 16
          %v3963 = vld [vmem:[%s3962] sm:$0xff]
          %v3964 = vadd.f32 %v3963, %v3819
          %v3965 = vxor.u32 %v3964, 2147483648
          %v3966 = vmul.f32 %v3965, 1.442695
          %v3967 = vpow.pop %v3966
          %v3968 = vadd.f32 %v3967, 1.0
          %v3969 = vrcp.pop %v3968
          %v3970 = vmul.f32 1.0, %v3969
          %s3971 = scalar_lea.vmem [#allocation4], 16
          %v3972 = vld [vmem:[%s3971] sm:$0xff]
          %v3973 = vadd.f32 %v3972, %v3889
          %v3974 = vxor.u32 %v3973, 2147483648
          %v3975 = vmul.f32 %v3974, 1.442695
          %v3976 = vpow.pop %v3975
          %v3977 = vadd.f32 %v3976, 1.0
          %v3978 = vrcp.pop %v3977
          %v3979 = vmul.f32 1.0, %v3978
          %s3980 = scalar_lea.vmem [#allocation5], 16
          %v3981 = vld [vmem:[%s3980] sm:$0xff]
          %v3982 = vmul.f32 %v3970, %v3959
          %v3983 = vadd.f32 %v3981, %v3982
          %v3984 = vtanh.pop %v3983
          %v3985 = vsub.f32 %v3748, %v3984
          %v3986 = vmul.f32 %v3979, %v3985
          %v3987 = vadd.f32 %v3984, %v3986
          %s3988 = scalar_lea.vmem %s12, 16
          %v3989 = vld [vmem:[%s3988] sm:$0xff]
          %v3990 = vsub.f32 %v3987, %v3748
          %3992 = vset.pattern.permute.xlu0 0
          %3993 = vperm.xlu0 %3992, %v3989
          %v3994 = vpop.permute.xlu0 %3993
          %v3996 = vmul.f32 %v3994, %v3990
          %v3997 = vadd.f32 %v3748, %v3996
          %v3999 = vsel %vm3249, %v3997, 0
          %4001 = vmatprep.subr.mxu0 0.0
          %4002 = vmatpush1.msra.mxu0 0.0
          %4003 = vmatprep.subr.mxu0 0.0
          %4004 = vmatpush1.msra.mxu0 0.0
          %4005 = vmatprep.subr.mxu0 0.0
          %4006 = vmatpush1.msra.mxu0 0.0
          %4007 = vmatprep.subr.mxu0 0.0
          %4008 = vmatpush1.msra.mxu0 0.0
          %4009 = vmatprep.subr.mxu0 0.0
          %4010 = vmatpush1.msra.mxu0 0.0
          %4011 = vmatprep.subr.mxu0 0.0
          %4012 = vmatpush1.msra.mxu0 0.0
          %4013 = vmatprep.subr.mxu0 0.0
          %4014 = vmatpush1.msra.mxu0 0.0
          %4015 = vmatprep.subr.mxu0 0.0
          %4016 = vmatpush1.msra.mxu0 0.0
          %4017 = vmatprep.subr.mxu0 0.0
          %4018 = vmatpush1.msra.mxu0 0.0
          %4019 = vmatprep.subr.mxu0 0.0
          %4020 = vmatpush1.msra.mxu0 0.0
          %4021 = vmatprep.subr.mxu0 0.0
          %4022 = vmatpush1.msra.mxu0 0.0
          %4023 = vmatprep.subr.mxu0 0.0
          %4024 = vmatpush1.msra.mxu0 0.0
          %4025 = vmatprep.subr.mxu0 0.0
          %4026 = vmatpush1.msra.mxu0 %v3237
          %4027 = vmatprep.subr.mxu0 0.0
          %4028 = vmatpush1.msra.mxu0 %v3236
          %4029 = vmatprep.subr.mxu0 0.0
          %4030 = vmatpush1.msra.mxu0 %v3235
          %4031 = vmatprep.subr.mxu0 0.0
          %4032 = vmatpush1.msra.mxu0 %v3234
          %4033 = vmatprep.subr.mxu0 0.0
          %4034 = vmatpush2.msra.mxu0 0.0
          %4035 = vmatprep.subr.mxu0 0.0
          %4036 = vmatpush2.msra.mxu0 0.0
          %4037 = vmatprep.subr.mxu0 0.0
          %4038 = vmatpush2.msra.mxu0 0.0
          %4039 = vmatprep.subr.mxu0 0.0
          %4040 = vmatpush2.msra.mxu0 0.0
          %4041 = vmatprep.subr.mxu0 0.0
          %4042 = vmatpush2.msra.mxu0 0.0
          %4043 = vmatprep.subr.mxu0 0.0
          %4044 = vmatpush2.msra.mxu0 0.0
          %4045 = vmatprep.subr.mxu0 0.0
          %4046 = vmatpush2.msra.mxu0 0.0
          %4047 = vmatprep.subr.mxu0 0.0
          %4048 = vmatpush2.msra.mxu0 0.0
          %4049 = vmatprep.subr.mxu0 0.0
          %4050 = vmatpush2.msra.mxu0 0.0
          %4051 = vmatprep.subr.mxu0 0.0
          %4052 = vmatpush2.msra.mxu0 0.0
          %4053 = vmatprep.subr.mxu0 0.0
          %4054 = vmatpush2.msra.mxu0 0.0
          %4055 = vmatprep.subr.mxu0 0.0
          %4056 = vmatpush2.msra.mxu0 0.0
          %4057 = vmatprep.subr.mxu0 0.0
          %4058 = vmatpush2.msra.mxu0 0.0
          %4059 = vmatprep.subr.mxu0 0.0
          %4060 = vmatpush2.msra.mxu0 0.0
          %4061 = vmatprep.subr.mxu0 0.0
          %4062 = vmatpush2.msra.mxu0 0.0
          %4063 = vmatprep.subr.mxu0 0.0
          %4064 = vmatpush2.msra.mxu0 0.0
          %4065 = vmatprep.mubr.f32.mxu0 0.0
          %4066 = vmatmul.mubr.f32.gmra.mxu0 %v3999
          %v4067 = vpop.f32.mrf.mxu0
          %v4068 = vadd.f32 0.0, %v4067
          %v4069 = vpop.f32.mrf.mxu0
          %4070 = vdwg.mxu0
          %4071 = vmatprep.subr.mxu0 0.0
          %4072 = vmatpush1.msra.mxu0 0.0
          %4073 = vmatprep.subr.mxu0 0.0
          %4074 = vmatpush1.msra.mxu0 0.0
          %4075 = vmatprep.subr.mxu0 0.0
          %4076 = vmatpush1.msra.mxu0 0.0
          %4077 = vmatprep.subr.mxu0 0.0
          %4078 = vmatpush1.msra.mxu0 0.0
          %4079 = vmatprep.subr.mxu0 0.0
          %4080 = vmatpush1.msra.mxu0 0.0
          %4081 = vmatprep.subr.mxu0 0.0
          %4082 = vmatpush1.msra.mxu0 0.0
          %4083 = vmatprep.subr.mxu0 0.0
          %4084 = vmatpush1.msra.mxu0 0.0
          %4085 = vmatprep.subr.mxu0 0.0
          %4086 = vmatpush1.msra.mxu0 0.0
          %4087 = vmatprep.subr.mxu0 0.0
          %4088 = vmatpush1.msra.mxu0 0.0
          %4089 = vmatprep.subr.mxu0 0.0
          %4090 = vmatpush1.msra.mxu0 0.0
          %4091 = vmatprep.subr.mxu0 0.0
          %4092 = vmatpush1.msra.mxu0 0.0
          %4093 = vmatprep.subr.mxu0 0.0
          %4094 = vmatpush1.msra.mxu0 0.0
          %4095 = vmatprep.subr.mxu0 0.0
          %4096 = vmatpush1.msra.mxu0 %v3242
          %4097 = vmatprep.subr.mxu0 0.0
          %4098 = vmatpush1.msra.mxu0 %v3241
          %4099 = vmatprep.subr.mxu0 0.0
          %4100 = vmatpush1.msra.mxu0 %v3240
          %4101 = vmatprep.subr.mxu0 0.0
          %4102 = vmatpush1.msra.mxu0 %v3239
          %4103 = vmatprep.subr.mxu0 0.0
          %4104 = vmatpush2.msra.mxu0 0.0
          %4105 = vmatprep.subr.mxu0 0.0
          %4106 = vmatpush2.msra.mxu0 0.0
          %4107 = vmatprep.subr.mxu0 0.0
          %4108 = vmatpush2.msra.mxu0 0.0
          %4109 = vmatprep.subr.mxu0 0.0
          %4110 = vmatpush2.msra.mxu0 0.0
          %4111 = vmatprep.subr.mxu0 0.0
          %4112 = vmatpush2.msra.mxu0 0.0
          %4113 = vmatprep.subr.mxu0 0.0
          %4114 = vmatpush2.msra.mxu0 0.0
          %4115 = vmatprep.subr.mxu0 0.0
          %4116 = vmatpush2.msra.mxu0 0.0
          %4117 = vmatprep.subr.mxu0 0.0
          %4118 = vmatpush2.msra.mxu0 0.0
          %4119 = vmatprep.subr.mxu0 0.0
          %4120 = vmatpush2.msra.mxu0 0.0
          %4121 = vmatprep.subr.mxu0 0.0
          %4122 = vmatpush2.msra.mxu0 0.0
          %4123 = vmatprep.subr.mxu0 0.0
          %4124 = vmatpush2.msra.mxu0 0.0
          %4125 = vmatprep.subr.mxu0 0.0
          %4126 = vmatpush2.msra.mxu0 0.0
          %4127 = vmatprep.subr.mxu0 0.0
          %4128 = vmatpush2.msra.mxu0 0.0
          %4129 = vmatprep.subr.mxu0 0.0
          %4130 = vmatpush2.msra.mxu0 0.0
          %4131 = vmatprep.subr.mxu0 0.0
          %4132 = vmatpush2.msra.mxu0 0.0
          %4133 = vmatprep.subr.mxu0 0.0
          %4134 = vmatpush2.msra.mxu0 0.0
          %4135 = vmatprep.mubr.f32.mxu0 0.0
          %4136 = vmatmul.mubr.f32.gmra.mxu0 %v3999
          %v4137 = vpop.f32.mrf.mxu0
          %v4138 = vadd.f32 0.0, %v4137
          %v4139 = vpop.f32.mrf.mxu0
          %4140 = vdwg.mxu0
          %4141 = vmatprep.subr.mxu0 0.0
          %4142 = vmatpush1.msra.mxu0 0.0
          %4143 = vmatprep.subr.mxu0 0.0
          %4144 = vmatpush1.msra.mxu0 0.0
          %4145 = vmatprep.subr.mxu0 0.0
          %4146 = vmatpush1.msra.mxu0 0.0
          %4147 = vmatprep.subr.mxu0 0.0
          %4148 = vmatpush1.msra.mxu0 0.0
          %4149 = vmatprep.subr.mxu0 0.0
          %4150 = vmatpush1.msra.mxu0 0.0
          %4151 = vmatprep.subr.mxu0 0.0
          %4152 = vmatpush1.msra.mxu0 0.0
          %4153 = vmatprep.subr.mxu0 0.0
          %4154 = vmatpush1.msra.mxu0 0.0
          %4155 = vmatprep.subr.mxu0 0.0
          %4156 = vmatpush1.msra.mxu0 0.0
          %4157 = vmatprep.subr.mxu0 0.0
          %4158 = vmatpush1.msra.mxu0 0.0
          %4159 = vmatprep.subr.mxu0 0.0
          %4160 = vmatpush1.msra.mxu0 0.0
          %4161 = vmatprep.subr.mxu0 0.0
          %4162 = vmatpush1.msra.mxu0 0.0
          %4163 = vmatprep.subr.mxu0 0.0
          %4164 = vmatpush1.msra.mxu0 0.0
          %4165 = vmatprep.subr.mxu0 0.0
          %4166 = vmatpush1.msra.mxu0 %v3247
          %4167 = vmatprep.subr.mxu0 0.0
          %4168 = vmatpush1.msra.mxu0 %v3246
          %4169 = vmatprep.subr.mxu0 0.0
          %4170 = vmatpush1.msra.mxu0 %v3245
          %4171 = vmatprep.subr.mxu0 0.0
          %4172 = vmatpush1.msra.mxu0 %v3244
          %4173 = vmatprep.subr.mxu0 0.0
          %4174 = vmatpush2.msra.mxu0 0.0
          %4175 = vmatprep.subr.mxu0 0.0
          %4176 = vmatpush2.msra.mxu0 0.0
          %4177 = vmatprep.subr.mxu0 0.0
          %4178 = vmatpush2.msra.mxu0 0.0
          %4179 = vmatprep.subr.mxu0 0.0
          %4180 = vmatpush2.msra.mxu0 0.0
          %4181 = vmatprep.subr.mxu0 0.0
          %4182 = vmatpush2.msra.mxu0 0.0
          %4183 = vmatprep.subr.mxu0 0.0
          %4184 = vmatpush2.msra.mxu0 0.0
          %4185 = vmatprep.subr.mxu0 0.0
          %4186 = vmatpush2.msra.mxu0 0.0
          %4187 = vmatprep.subr.mxu0 0.0
          %4188 = vmatpush2.msra.mxu0 0.0
          %4189 = vmatprep.subr.mxu0 0.0
          %4190 = vmatpush2.msra.mxu0 0.0
          %4191 = vmatprep.subr.mxu0 0.0
          %4192 = vmatpush2.msra.mxu0 0.0
          %4193 = vmatprep.subr.mxu0 0.0
          %4194 = vmatpush2.msra.mxu0 0.0
          %4195 = vmatprep.subr.mxu0 0.0
          %4196 = vmatpush2.msra.mxu0 0.0
          %4197 = vmatprep.subr.mxu0 0.0
          %4198 = vmatpush2.msra.mxu0 0.0
          %4199 = vmatprep.subr.mxu0 0.0
          %4200 = vmatpush2.msra.mxu0 0.0
          %4201 = vmatprep.subr.mxu0 0.0
          %4202 = vmatpush2.msra.mxu0 0.0
          %4203 = vmatprep.subr.mxu0 0.0
          %4204 = vmatpush2.msra.mxu0 0.0
          %4205 = vmatprep.mubr.f32.mxu0 0.0
          %4206 = vmatmul.mubr.f32.gmra.mxu0 %v3999
          %v4207 = vpop.f32.mrf.mxu0
          %v4208 = vadd.f32 %v3397, %v4207
          %v4209 = vpop.f32.mrf.mxu0
          %4210 = vdwg.mxu0
          %s4211 = scalar_lea.vmem [#allocation3], 24
          %v4212 = vld [vmem:[%s4211] sm:$0xff]
          %v4213 = vadd.f32 %v4212, %v4068
          %v4214 = vxor.u32 %v4213, 2147483648
          %v4215 = vmul.f32 %v4214, 1.442695
          %v4216 = vpow.pop %v4215
          %v4217 = vadd.f32 %v4216, 1.0
          %v4218 = vrcp.pop %v4217
          %v4219 = vmul.f32 1.0, %v4218
          %s4220 = scalar_lea.vmem [#allocation4], 24
          %v4221 = vld [vmem:[%s4220] sm:$0xff]
          %v4222 = vadd.f32 %v4221, %v4138
          %v4223 = vxor.u32 %v4222, 2147483648
          %v4224 = vmul.f32 %v4223, 1.442695
          %v4225 = vpow.pop %v4224
          %v4226 = vadd.f32 %v4225, 1.0
          %v4227 = vrcp.pop %v4226
          %v4228 = vmul.f32 1.0, %v4227
          %s4229 = scalar_lea.vmem [#allocation5], 24
          %v4230 = vld [vmem:[%s4229] sm:$0xff]
          %v4231 = vmul.f32 %v4219, %v4208
          %v4232 = vadd.f32 %v4230, %v4231
          %v4233 = vtanh.pop %v4232
          %v4234 = vsub.f32 %v3997, %v4233
          %v4235 = vmul.f32 %v4228, %v4234
          %v4236 = vadd.f32 %v4233, %v4235
          %s4237 = scalar_lea.vmem %s12, 24
          %v4238 = vld [vmem:[%s4237] sm:$0xff]
          %v4239 = vsub.f32 %v4236, %v3997
          %4241 = vset.pattern.permute.xlu0 0
          %4242 = vperm.xlu0 %4241, %v4238
          %v4243 = vpop.permute.xlu0 %4242
          %v4245 = vmul.f32 %v4243, %v4239
          %v4246 = vadd.f32 %v3997, %v4245
          %v4248 = vsel %vm3249, %v4246, 0
          %4250 = vmatprep.subr.mxu0 0.0
          %4251 = vmatpush1.msra.mxu0 0.0
          %4252 = vmatprep.subr.mxu0 0.0
          %4253 = vmatpush1.msra.mxu0 0.0
          %4254 = vmatprep.subr.mxu0 0.0
          %4255 = vmatpush1.msra.mxu0 0.0
          %4256 = vmatprep.subr.mxu0 0.0
          %4257 = vmatpush1.msra.mxu0 0.0
          %4258 = vmatprep.subr.mxu0 0.0
          %4259 = vmatpush1.msra.mxu0 0.0
          %4260 = vmatprep.subr.mxu0 0.0
          %4261 = vmatpush1.msra.mxu0 0.0
          %4262 = vmatprep.subr.mxu0 0.0
          %4263 = vmatpush1.msra.mxu0 0.0
          %4264 = vmatprep.subr.mxu0 0.0
          %4265 = vmatpush1.msra.mxu0 0.0
          %4266 = vmatprep.subr.mxu0 0.0
          %4267 = vmatpush1.msra.mxu0 0.0
          %4268 = vmatprep.subr.mxu0 0.0
          %4269 = vmatpush1.msra.mxu0 0.0
          %4270 = vmatprep.subr.mxu0 0.0
          %4271 = vmatpush1.msra.mxu0 0.0
          %4272 = vmatprep.subr.mxu0 0.0
          %4273 = vmatpush1.msra.mxu0 0.0
          %4274 = vmatprep.subr.mxu0 0.0
          %4275 = vmatpush1.msra.mxu0 %v3237
          %4276 = vmatprep.subr.mxu0 0.0
          %4277 = vmatpush1.msra.mxu0 %v3236
          %4278 = vmatprep.subr.mxu0 0.0
          %4279 = vmatpush1.msra.mxu0 %v3235
          %4280 = vmatprep.subr.mxu0 0.0
          %4281 = vmatpush1.msra.mxu0 %v3234
          %4282 = vmatprep.subr.mxu0 0.0
          %4283 = vmatpush2.msra.mxu0 0.0
          %4284 = vmatprep.subr.mxu0 0.0
          %4285 = vmatpush2.msra.mxu0 0.0
          %4286 = vmatprep.subr.mxu0 0.0
          %4287 = vmatpush2.msra.mxu0 0.0
          %4288 = vmatprep.subr.mxu0 0.0
          %4289 = vmatpush2.msra.mxu0 0.0
          %4290 = vmatprep.subr.mxu0 0.0
          %4291 = vmatpush2.msra.mxu0 0.0
          %4292 = vmatprep.subr.mxu0 0.0
          %4293 = vmatpush2.msra.mxu0 0.0
          %4294 = vmatprep.subr.mxu0 0.0
          %4295 = vmatpush2.msra.mxu0 0.0
          %4296 = vmatprep.subr.mxu0 0.0
          %4297 = vmatpush2.msra.mxu0 0.0
          %4298 = vmatprep.subr.mxu0 0.0
          %4299 = vmatpush2.msra.mxu0 0.0
          %4300 = vmatprep.subr.mxu0 0.0
          %4301 = vmatpush2.msra.mxu0 0.0
          %4302 = vmatprep.subr.mxu0 0.0
          %4303 = vmatpush2.msra.mxu0 0.0
          %4304 = vmatprep.subr.mxu0 0.0
          %4305 = vmatpush2.msra.mxu0 0.0
          %4306 = vmatprep.subr.mxu0 0.0
          %4307 = vmatpush2.msra.mxu0 0.0
          %4308 = vmatprep.subr.mxu0 0.0
          %4309 = vmatpush2.msra.mxu0 0.0
          %4310 = vmatprep.subr.mxu0 0.0
          %4311 = vmatpush2.msra.mxu0 0.0
          %4312 = vmatprep.subr.mxu0 0.0
          %4313 = vmatpush2.msra.mxu0 0.0
          %4314 = vmatprep.mubr.f32.mxu0 0.0
          %4315 = vmatmul.mubr.f32.gmra.mxu0 %v4248
          %v4316 = vpop.f32.mrf.mxu0
          %v4317 = vadd.f32 0.0, %v4316
          %v4318 = vpop.f32.mrf.mxu0
          %4319 = vdwg.mxu0
          %4320 = vmatprep.subr.mxu0 0.0
          %4321 = vmatpush1.msra.mxu0 0.0
          %4322 = vmatprep.subr.mxu0 0.0
          %4323 = vmatpush1.msra.mxu0 0.0
          %4324 = vmatprep.subr.mxu0 0.0
          %4325 = vmatpush1.msra.mxu0 0.0
          %4326 = vmatprep.subr.mxu0 0.0
          %4327 = vmatpush1.msra.mxu0 0.0
          %4328 = vmatprep.subr.mxu0 0.0
          %4329 = vmatpush1.msra.mxu0 0.0
          %4330 = vmatprep.subr.mxu0 0.0
          %4331 = vmatpush1.msra.mxu0 0.0
          %4332 = vmatprep.subr.mxu0 0.0
          %4333 = vmatpush1.msra.mxu0 0.0
          %4334 = vmatprep.subr.mxu0 0.0
          %4335 = vmatpush1.msra.mxu0 0.0
          %4336 = vmatprep.subr.mxu0 0.0
          %4337 = vmatpush1.msra.mxu0 0.0
          %4338 = vmatprep.subr.mxu0 0.0
          %4339 = vmatpush1.msra.mxu0 0.0
          %4340 = vmatprep.subr.mxu0 0.0
          %4341 = vmatpush1.msra.mxu0 0.0
          %4342 = vmatprep.subr.mxu0 0.0
          %4343 = vmatpush1.msra.mxu0 0.0
          %4344 = vmatprep.subr.mxu0 0.0
          %4345 = vmatpush1.msra.mxu0 %v3242
          %4346 = vmatprep.subr.mxu0 0.0
          %4347 = vmatpush1.msra.mxu0 %v3241
          %4348 = vmatprep.subr.mxu0 0.0
          %4349 = vmatpush1.msra.mxu0 %v3240
          %4350 = vmatprep.subr.mxu0 0.0
          %4351 = vmatpush1.msra.mxu0 %v3239
          %4352 = vmatprep.subr.mxu0 0.0
          %4353 = vmatpush2.msra.mxu0 0.0
          %4354 = vmatprep.subr.mxu0 0.0
          %4355 = vmatpush2.msra.mxu0 0.0
          %4356 = vmatprep.subr.mxu0 0.0
          %4357 = vmatpush2.msra.mxu0 0.0
          %4358 = vmatprep.subr.mxu0 0.0
          %4359 = vmatpush2.msra.mxu0 0.0
          %4360 = vmatprep.subr.mxu0 0.0
          %4361 = vmatpush2.msra.mxu0 0.0
          %4362 = vmatprep.subr.mxu0 0.0
          %4363 = vmatpush2.msra.mxu0 0.0
          %4364 = vmatprep.subr.mxu0 0.0
          %4365 = vmatpush2.msra.mxu0 0.0
          %4366 = vmatprep.subr.mxu0 0.0
          %4367 = vmatpush2.msra.mxu0 0.0
          %4368 = vmatprep.subr.mxu0 0.0
          %4369 = vmatpush2.msra.mxu0 0.0
          %4370 = vmatprep.subr.mxu0 0.0
          %4371 = vmatpush2.msra.mxu0 0.0
          %4372 = vmatprep.subr.mxu0 0.0
          %4373 = vmatpush2.msra.mxu0 0.0
          %4374 = vmatprep.subr.mxu0 0.0
          %4375 = vmatpush2.msra.mxu0 0.0
          %4376 = vmatprep.subr.mxu0 0.0
          %4377 = vmatpush2.msra.mxu0 0.0
          %4378 = vmatprep.subr.mxu0 0.0
          %4379 = vmatpush2.msra.mxu0 0.0
          %4380 = vmatprep.subr.mxu0 0.0
          %4381 = vmatpush2.msra.mxu0 0.0
          %4382 = vmatprep.subr.mxu0 0.0
          %4383 = vmatpush2.msra.mxu0 0.0
          %4384 = vmatprep.mubr.f32.mxu0 0.0
          %4385 = vmatmul.mubr.f32.gmra.mxu0 %v4248
          %v4386 = vpop.f32.mrf.mxu0
          %v4387 = vadd.f32 0.0, %v4386
          %v4388 = vpop.f32.mrf.mxu0
          %4389 = vdwg.mxu0
          %4390 = vmatprep.subr.mxu0 0.0
          %4391 = vmatpush1.msra.mxu0 0.0
          %4392 = vmatprep.subr.mxu0 0.0
          %4393 = vmatpush1.msra.mxu0 0.0
          %4394 = vmatprep.subr.mxu0 0.0
          %4395 = vmatpush1.msra.mxu0 0.0
          %4396 = vmatprep.subr.mxu0 0.0
          %4397 = vmatpush1.msra.mxu0 0.0
          %4398 = vmatprep.subr.mxu0 0.0
          %4399 = vmatpush1.msra.mxu0 0.0
          %4400 = vmatprep.subr.mxu0 0.0
          %4401 = vmatpush1.msra.mxu0 0.0
          %4402 = vmatprep.subr.mxu0 0.0
          %4403 = vmatpush1.msra.mxu0 0.0
          %4404 = vmatprep.subr.mxu0 0.0
          %4405 = vmatpush1.msra.mxu0 0.0
          %4406 = vmatprep.subr.mxu0 0.0
          %4407 = vmatpush1.msra.mxu0 0.0
          %4408 = vmatprep.subr.mxu0 0.0
          %4409 = vmatpush1.msra.mxu0 0.0
          %4410 = vmatprep.subr.mxu0 0.0
          %4411 = vmatpush1.msra.mxu0 0.0
          %4412 = vmatprep.subr.mxu0 0.0
          %4413 = vmatpush1.msra.mxu0 0.0
          %4414 = vmatprep.subr.mxu0 0.0
          %4415 = vmatpush1.msra.mxu0 %v3247
          %4416 = vmatprep.subr.mxu0 0.0
          %4417 = vmatpush1.msra.mxu0 %v3246
          %4418 = vmatprep.subr.mxu0 0.0
          %4419 = vmatpush1.msra.mxu0 %v3245
          %4420 = vmatprep.subr.mxu0 0.0
          %4421 = vmatpush1.msra.mxu0 %v3244
          %4422 = vmatprep.subr.mxu0 0.0
          %4423 = vmatpush2.msra.mxu0 0.0
          %4424 = vmatprep.subr.mxu0 0.0
          %4425 = vmatpush2.msra.mxu0 0.0
          %4426 = vmatprep.subr.mxu0 0.0
          %4427 = vmatpush2.msra.mxu0 0.0
          %4428 = vmatprep.subr.mxu0 0.0
          %4429 = vmatpush2.msra.mxu0 0.0
          %4430 = vmatprep.subr.mxu0 0.0
          %4431 = vmatpush2.msra.mxu0 0.0
          %4432 = vmatprep.subr.mxu0 0.0
          %4433 = vmatpush2.msra.mxu0 0.0
          %4434 = vmatprep.subr.mxu0 0.0
          %4435 = vmatpush2.msra.mxu0 0.0
          %4436 = vmatprep.subr.mxu0 0.0
          %4437 = vmatpush2.msra.mxu0 0.0
          %4438 = vmatprep.subr.mxu0 0.0
          %4439 = vmatpush2.msra.mxu0 0.0
          %4440 = vmatprep.subr.mxu0 0.0
          %4441 = vmatpush2.msra.mxu0 0.0
          %4442 = vmatprep.subr.mxu0 0.0
          %4443 = vmatpush2.msra.mxu0 0.0
          %4444 = vmatprep.subr.mxu0 0.0
          %4445 = vmatpush2.msra.mxu0 0.0
          %4446 = vmatprep.subr.mxu0 0.0
          %4447 = vmatpush2.msra.mxu0 0.0
          %4448 = vmatprep.subr.mxu0 0.0
          %4449 = vmatpush2.msra.mxu0 0.0
          %4450 = vmatprep.subr.mxu0 0.0
          %4451 = vmatpush2.msra.mxu0 0.0
          %4452 = vmatprep.subr.mxu0 0.0
          %4453 = vmatpush2.msra.mxu0 0.0
          %4454 = vmatprep.mubr.f32.mxu0 0.0
          %4455 = vmatmul.mubr.f32.gmra.mxu0 %v4248
          %v4456 = vpop.f32.mrf.mxu0
          %v4457 = vadd.f32 %v3397, %v4456
          %v4458 = vpop.f32.mrf.mxu0
          %4459 = vdwg.mxu0
          %s4460 = scalar_lea.vmem [#allocation3], 32
          %v4461 = vld [vmem:[%s4460] sm:$0xff]
          %v4462 = vadd.f32 %v4461, %v4317
          %v4463 = vxor.u32 %v4462, 2147483648
          %v4464 = vmul.f32 %v4463, 1.442695
          %v4465 = vpow.pop %v4464
          %v4466 = vadd.f32 %v4465, 1.0
          %v4467 = vrcp.pop %v4466
          %v4468 = vmul.f32 1.0, %v4467
          %s4469 = scalar_lea.vmem [#allocation4], 32
          %v4470 = vld [vmem:[%s4469] sm:$0xff]
          %v4471 = vadd.f32 %v4470, %v4387
          %v4472 = vxor.u32 %v4471, 2147483648
          %v4473 = vmul.f32 %v4472, 1.442695
          %v4474 = vpow.pop %v4473
          %v4475 = vadd.f32 %v4474, 1.0
          %v4476 = vrcp.pop %v4475
          %v4477 = vmul.f32 1.0, %v4476
          %s4478 = scalar_lea.vmem [#allocation5], 32
          %v4479 = vld [vmem:[%s4478] sm:$0xff]
          %v4480 = vmul.f32 %v4468, %v4457
          %v4481 = vadd.f32 %v4479, %v4480
          %v4482 = vtanh.pop %v4481
          %v4483 = vsub.f32 %v4246, %v4482
          %v4484 = vmul.f32 %v4477, %v4483
          %v4485 = vadd.f32 %v4482, %v4484
          %s4486 = scalar_lea.vmem %s12, 32
          %v4487 = vld [vmem:[%s4486] sm:$0xff]
          %v4488 = vsub.f32 %v4485, %v4246
          %4490 = vset.pattern.permute.xlu0 0
          %4491 = vperm.xlu0 %4490, %v4487
          %v4492 = vpop.permute.xlu0 %4491
          %v4494 = vmul.f32 %v4492, %v4488
          %v4495 = vadd.f32 %v4246, %v4494
          %v4497 = vsel %vm3249, %v4495, 0
          %4499 = vmatprep.subr.mxu0 0.0
          %4500 = vmatpush1.msra.mxu0 0.0
          %4501 = vmatprep.subr.mxu0 0.0
          %4502 = vmatpush1.msra.mxu0 0.0
          %4503 = vmatprep.subr.mxu0 0.0
          %4504 = vmatpush1.msra.mxu0 0.0
          %4505 = vmatprep.subr.mxu0 0.0
          %4506 = vmatpush1.msra.mxu0 0.0
          %4507 = vmatprep.subr.mxu0 0.0
          %4508 = vmatpush1.msra.mxu0 0.0
          %4509 = vmatprep.subr.mxu0 0.0
          %4510 = vmatpush1.msra.mxu0 0.0
          %4511 = vmatprep.subr.mxu0 0.0
          %4512 = vmatpush1.msra.mxu0 0.0
          %4513 = vmatprep.subr.mxu0 0.0
          %4514 = vmatpush1.msra.mxu0 0.0
          %4515 = vmatprep.subr.mxu0 0.0
          %4516 = vmatpush1.msra.mxu0 0.0
          %4517 = vmatprep.subr.mxu0 0.0
          %4518 = vmatpush1.msra.mxu0 0.0
          %4519 = vmatprep.subr.mxu0 0.0
          %4520 = vmatpush1.msra.mxu0 0.0
          %4521 = vmatprep.subr.mxu0 0.0
          %4522 = vmatpush1.msra.mxu0 0.0
          %4523 = vmatprep.subr.mxu0 0.0
          %4524 = vmatpush1.msra.mxu0 %v3237
          %4525 = vmatprep.subr.mxu0 0.0
          %4526 = vmatpush1.msra.mxu0 %v3236
          %4527 = vmatprep.subr.mxu0 0.0
          %4528 = vmatpush1.msra.mxu0 %v3235
          %4529 = vmatprep.subr.mxu0 0.0
          %4530 = vmatpush1.msra.mxu0 %v3234
          %4531 = vmatprep.subr.mxu0 0.0
          %4532 = vmatpush2.msra.mxu0 0.0
          %4533 = vmatprep.subr.mxu0 0.0
          %4534 = vmatpush2.msra.mxu0 0.0
          %4535 = vmatprep.subr.mxu0 0.0
          %4536 = vmatpush2.msra.mxu0 0.0
          %4537 = vmatprep.subr.mxu0 0.0
          %4538 = vmatpush2.msra.mxu0 0.0
          %4539 = vmatprep.subr.mxu0 0.0
          %4540 = vmatpush2.msra.mxu0 0.0
          %4541 = vmatprep.subr.mxu0 0.0
          %4542 = vmatpush2.msra.mxu0 0.0
          %4543 = vmatprep.subr.mxu0 0.0
          %4544 = vmatpush2.msra.mxu0 0.0
          %4545 = vmatprep.subr.mxu0 0.0
          %4546 = vmatpush2.msra.mxu0 0.0
          %4547 = vmatprep.subr.mxu0 0.0
          %4548 = vmatpush2.msra.mxu0 0.0
          %4549 = vmatprep.subr.mxu0 0.0
          %4550 = vmatpush2.msra.mxu0 0.0
          %4551 = vmatprep.subr.mxu0 0.0
          %4552 = vmatpush2.msra.mxu0 0.0
          %4553 = vmatprep.subr.mxu0 0.0
          %4554 = vmatpush2.msra.mxu0 0.0
          %4555 = vmatprep.subr.mxu0 0.0
          %4556 = vmatpush2.msra.mxu0 0.0
          %4557 = vmatprep.subr.mxu0 0.0
          %4558 = vmatpush2.msra.mxu0 0.0
          %4559 = vmatprep.subr.mxu0 0.0
          %4560 = vmatpush2.msra.mxu0 0.0
          %4561 = vmatprep.subr.mxu0 0.0
          %4562 = vmatpush2.msra.mxu0 0.0
          %4563 = vmatprep.mubr.f32.mxu0 0.0
          %4564 = vmatmul.mubr.f32.gmra.mxu0 %v4497
          %v4565 = vpop.f32.mrf.mxu0
          %v4566 = vadd.f32 0.0, %v4565
          %v4567 = vpop.f32.mrf.mxu0
          %4568 = vdwg.mxu0
          %4569 = vmatprep.subr.mxu0 0.0
          %4570 = vmatpush1.msra.mxu0 0.0
          %4571 = vmatprep.subr.mxu0 0.0
          %4572 = vmatpush1.msra.mxu0 0.0
          %4573 = vmatprep.subr.mxu0 0.0
          %4574 = vmatpush1.msra.mxu0 0.0
          %4575 = vmatprep.subr.mxu0 0.0
          %4576 = vmatpush1.msra.mxu0 0.0
          %4577 = vmatprep.subr.mxu0 0.0
          %4578 = vmatpush1.msra.mxu0 0.0
          %4579 = vmatprep.subr.mxu0 0.0
          %4580 = vmatpush1.msra.mxu0 0.0
          %4581 = vmatprep.subr.mxu0 0.0
          %4582 = vmatpush1.msra.mxu0 0.0
          %4583 = vmatprep.subr.mxu0 0.0
          %4584 = vmatpush1.msra.mxu0 0.0
          %4585 = vmatprep.subr.mxu0 0.0
          %4586 = vmatpush1.msra.mxu0 0.0
          %4587 = vmatprep.subr.mxu0 0.0
          %4588 = vmatpush1.msra.mxu0 0.0
          %4589 = vmatprep.subr.mxu0 0.0
          %4590 = vmatpush1.msra.mxu0 0.0
          %4591 = vmatprep.subr.mxu0 0.0
          %4592 = vmatpush1.msra.mxu0 0.0
          %4593 = vmatprep.subr.mxu0 0.0
          %4594 = vmatpush1.msra.mxu0 %v3242
          %4595 = vmatprep.subr.mxu0 0.0
          %4596 = vmatpush1.msra.mxu0 %v3241
          %4597 = vmatprep.subr.mxu0 0.0
          %4598 = vmatpush1.msra.mxu0 %v3240
          %4599 = vmatprep.subr.mxu0 0.0
          %4600 = vmatpush1.msra.mxu0 %v3239
          %4601 = vmatprep.subr.mxu0 0.0
          %4602 = vmatpush2.msra.mxu0 0.0
          %4603 = vmatprep.subr.mxu0 0.0
          %4604 = vmatpush2.msra.mxu0 0.0
          %4605 = vmatprep.subr.mxu0 0.0
          %4606 = vmatpush2.msra.mxu0 0.0
          %4607 = vmatprep.subr.mxu0 0.0
          %4608 = vmatpush2.msra.mxu0 0.0
          %4609 = vmatprep.subr.mxu0 0.0
          %4610 = vmatpush2.msra.mxu0 0.0
          %4611 = vmatprep.subr.mxu0 0.0
          %4612 = vmatpush2.msra.mxu0 0.0
          %4613 = vmatprep.subr.mxu0 0.0
          %4614 = vmatpush2.msra.mxu0 0.0
          %4615 = vmatprep.subr.mxu0 0.0
          %4616 = vmatpush2.msra.mxu0 0.0
          %4617 = vmatprep.subr.mxu0 0.0
          %4618 = vmatpush2.msra.mxu0 0.0
          %4619 = vmatprep.subr.mxu0 0.0
          %4620 = vmatpush2.msra.mxu0 0.0
          %4621 = vmatprep.subr.mxu0 0.0
          %4622 = vmatpush2.msra.mxu0 0.0
          %4623 = vmatprep.subr.mxu0 0.0
          %4624 = vmatpush2.msra.mxu0 0.0
          %4625 = vmatprep.subr.mxu0 0.0
          %4626 = vmatpush2.msra.mxu0 0.0
          %4627 = vmatprep.subr.mxu0 0.0
          %4628 = vmatpush2.msra.mxu0 0.0
          %4629 = vmatprep.subr.mxu0 0.0
          %4630 = vmatpush2.msra.mxu0 0.0
          %4631 = vmatprep.subr.mxu0 0.0
          %4632 = vmatpush2.msra.mxu0 0.0
          %4633 = vmatprep.mubr.f32.mxu0 0.0
          %4634 = vmatmul.mubr.f32.gmra.mxu0 %v4497
          %v4635 = vpop.f32.mrf.mxu0
          %v4636 = vadd.f32 0.0, %v4635
          %v4637 = vpop.f32.mrf.mxu0
          %4638 = vdwg.mxu0
          %4639 = vmatprep.subr.mxu0 0.0
          %4640 = vmatpush1.msra.mxu0 0.0
          %4641 = vmatprep.subr.mxu0 0.0
          %4642 = vmatpush1.msra.mxu0 0.0
          %4643 = vmatprep.subr.mxu0 0.0
          %4644 = vmatpush1.msra.mxu0 0.0
          %4645 = vmatprep.subr.mxu0 0.0
          %4646 = vmatpush1.msra.mxu0 0.0
          %4647 = vmatprep.subr.mxu0 0.0
          %4648 = vmatpush1.msra.mxu0 0.0
          %4649 = vmatprep.subr.mxu0 0.0
          %4650 = vmatpush1.msra.mxu0 0.0
          %4651 = vmatprep.subr.mxu0 0.0
          %4652 = vmatpush1.msra.mxu0 0.0
          %4653 = vmatprep.subr.mxu0 0.0
          %4654 = vmatpush1.msra.mxu0 0.0
          %4655 = vmatprep.subr.mxu0 0.0
          %4656 = vmatpush1.msra.mxu0 0.0
          %4657 = vmatprep.subr.mxu0 0.0
          %4658 = vmatpush1.msra.mxu0 0.0
          %4659 = vmatprep.subr.mxu0 0.0
          %4660 = vmatpush1.msra.mxu0 0.0
          %4661 = vmatprep.subr.mxu0 0.0
          %4662 = vmatpush1.msra.mxu0 0.0
          %4663 = vmatprep.subr.mxu0 0.0
          %4664 = vmatpush1.msra.mxu0 %v3247
          %4665 = vmatprep.subr.mxu0 0.0
          %4666 = vmatpush1.msra.mxu0 %v3246
          %4667 = vmatprep.subr.mxu0 0.0
          %4668 = vmatpush1.msra.mxu0 %v3245
          %4669 = vmatprep.subr.mxu0 0.0
          %4670 = vmatpush1.msra.mxu0 %v3244
          %4671 = vmatprep.subr.mxu0 0.0
          %4672 = vmatpush2.msra.mxu0 0.0
          %4673 = vmatprep.subr.mxu0 0.0
          %4674 = vmatpush2.msra.mxu0 0.0
          %4675 = vmatprep.subr.mxu0 0.0
          %4676 = vmatpush2.msra.mxu0 0.0
          %4677 = vmatprep.subr.mxu0 0.0
          %4678 = vmatpush2.msra.mxu0 0.0
          %4679 = vmatprep.subr.mxu0 0.0
          %4680 = vmatpush2.msra.mxu0 0.0
          %4681 = vmatprep.subr.mxu0 0.0
          %4682 = vmatpush2.msra.mxu0 0.0
          %4683 = vmatprep.subr.mxu0 0.0
          %4684 = vmatpush2.msra.mxu0 0.0
          %4685 = vmatprep.subr.mxu0 0.0
          %4686 = vmatpush2.msra.mxu0 0.0
          %4687 = vmatprep.subr.mxu0 0.0
          %4688 = vmatpush2.msra.mxu0 0.0
          %4689 = vmatprep.subr.mxu0 0.0
          %4690 = vmatpush2.msra.mxu0 0.0
          %4691 = vmatprep.subr.mxu0 0.0
          %4692 = vmatpush2.msra.mxu0 0.0
          %4693 = vmatprep.subr.mxu0 0.0
          %4694 = vmatpush2.msra.mxu0 0.0
          %4695 = vmatprep.subr.mxu0 0.0
          %4696 = vmatpush2.msra.mxu0 0.0
          %4697 = vmatprep.subr.mxu0 0.0
          %4698 = vmatpush2.msra.mxu0 0.0
          %4699 = vmatprep.subr.mxu0 0.0
          %4700 = vmatpush2.msra.mxu0 0.0
          %4701 = vmatprep.subr.mxu0 0.0
          %4702 = vmatpush2.msra.mxu0 0.0
          %4703 = vmatprep.mubr.f32.mxu0 0.0
          %4704 = vmatmul.mubr.f32.gmra.mxu0 %v4497
          %v4705 = vpop.f32.mrf.mxu0
          %v4706 = vadd.f32 %v3397, %v4705
          %v4707 = vpop.f32.mrf.mxu0
          %4708 = vdwg.mxu0
          %s4709 = scalar_lea.vmem [#allocation3], 40
          %v4710 = vld [vmem:[%s4709] sm:$0xff]
          %v4711 = vadd.f32 %v4710, %v4566
          %v4712 = vxor.u32 %v4711, 2147483648
          %v4713 = vmul.f32 %v4712, 1.442695
          %v4714 = vpow.pop %v4713
          %v4715 = vadd.f32 %v4714, 1.0
          %v4716 = vrcp.pop %v4715
          %v4717 = vmul.f32 1.0, %v4716
          %s4718 = scalar_lea.vmem [#allocation4], 40
          %v4719 = vld [vmem:[%s4718] sm:$0xff]
          %v4720 = vadd.f32 %v4719, %v4636
          %v4721 = vxor.u32 %v4720, 2147483648
          %v4722 = vmul.f32 %v4721, 1.442695
          %v4723 = vpow.pop %v4722
          %v4724 = vadd.f32 %v4723, 1.0
          %v4725 = vrcp.pop %v4724
          %v4726 = vmul.f32 1.0, %v4725
          %s4727 = scalar_lea.vmem [#allocation5], 40
          %v4728 = vld [vmem:[%s4727] sm:$0xff]
          %v4729 = vmul.f32 %v4717, %v4706
          %v4730 = vadd.f32 %v4728, %v4729
          %v4731 = vtanh.pop %v4730
          %v4732 = vsub.f32 %v4495, %v4731
          %v4733 = vmul.f32 %v4726, %v4732
          %v4734 = vadd.f32 %v4731, %v4733
          %s4735 = scalar_lea.vmem %s12, 40
          %v4736 = vld [vmem:[%s4735] sm:$0xff]
          %v4737 = vsub.f32 %v4734, %v4495
          %4739 = vset.pattern.permute.xlu0 0
          %4740 = vperm.xlu0 %4739, %v4736
          %v4741 = vpop.permute.xlu0 %4740
          %v4743 = vmul.f32 %v4741, %v4737
          %v4744 = vadd.f32 %v4495, %v4743
          %v4746 = vsel %vm3249, %v4744, 0
          %4748 = vmatprep.subr.mxu0 0.0
          %4749 = vmatpush1.msra.mxu0 0.0
          %4750 = vmatprep.subr.mxu0 0.0
          %4751 = vmatpush1.msra.mxu0 0.0
          %4752 = vmatprep.subr.mxu0 0.0
          %4753 = vmatpush1.msra.mxu0 0.0
          %4754 = vmatprep.subr.mxu0 0.0
          %4755 = vmatpush1.msra.mxu0 0.0
          %4756 = vmatprep.subr.mxu0 0.0
          %4757 = vmatpush1.msra.mxu0 0.0
          %4758 = vmatprep.subr.mxu0 0.0
          %4759 = vmatpush1.msra.mxu0 0.0
          %4760 = vmatprep.subr.mxu0 0.0
          %4761 = vmatpush1.msra.mxu0 0.0
          %4762 = vmatprep.subr.mxu0 0.0
          %4763 = vmatpush1.msra.mxu0 0.0
          %4764 = vmatprep.subr.mxu0 0.0
          %4765 = vmatpush1.msra.mxu0 0.0
          %4766 = vmatprep.subr.mxu0 0.0
          %4767 = vmatpush1.msra.mxu0 0.0
          %4768 = vmatprep.subr.mxu0 0.0
          %4769 = vmatpush1.msra.mxu0 0.0
          %4770 = vmatprep.subr.mxu0 0.0
          %4771 = vmatpush1.msra.mxu0 0.0
          %4772 = vmatprep.subr.mxu0 0.0
          %4773 = vmatpush1.msra.mxu0 %v3237
          %4774 = vmatprep.subr.mxu0 0.0
          %4775 = vmatpush1.msra.mxu0 %v3236
          %4776 = vmatprep.subr.mxu0 0.0
          %4777 = vmatpush1.msra.mxu0 %v3235
          %4778 = vmatprep.subr.mxu0 0.0
          %4779 = vmatpush1.msra.mxu0 %v3234
          %4780 = vmatprep.subr.mxu0 0.0
          %4781 = vmatpush2.msra.mxu0 0.0
          %4782 = vmatprep.subr.mxu0 0.0
          %4783 = vmatpush2.msra.mxu0 0.0
          %4784 = vmatprep.subr.mxu0 0.0
          %4785 = vmatpush2.msra.mxu0 0.0
          %4786 = vmatprep.subr.mxu0 0.0
          %4787 = vmatpush2.msra.mxu0 0.0
          %4788 = vmatprep.subr.mxu0 0.0
          %4789 = vmatpush2.msra.mxu0 0.0
          %4790 = vmatprep.subr.mxu0 0.0
          %4791 = vmatpush2.msra.mxu0 0.0
          %4792 = vmatprep.subr.mxu0 0.0
          %4793 = vmatpush2.msra.mxu0 0.0
          %4794 = vmatprep.subr.mxu0 0.0
          %4795 = vmatpush2.msra.mxu0 0.0
          %4796 = vmatprep.subr.mxu0 0.0
          %4797 = vmatpush2.msra.mxu0 0.0
          %4798 = vmatprep.subr.mxu0 0.0
          %4799 = vmatpush2.msra.mxu0 0.0
          %4800 = vmatprep.subr.mxu0 0.0
          %4801 = vmatpush2.msra.mxu0 0.0
          %4802 = vmatprep.subr.mxu0 0.0
          %4803 = vmatpush2.msra.mxu0 0.0
          %4804 = vmatprep.subr.mxu0 0.0
          %4805 = vmatpush2.msra.mxu0 0.0
          %4806 = vmatprep.subr.mxu0 0.0
          %4807 = vmatpush2.msra.mxu0 0.0
          %4808 = vmatprep.subr.mxu0 0.0
          %4809 = vmatpush2.msra.mxu0 0.0
          %4810 = vmatprep.subr.mxu0 0.0
          %4811 = vmatpush2.msra.mxu0 0.0
          %4812 = vmatprep.mubr.f32.mxu0 0.0
          %4813 = vmatmul.mubr.f32.gmra.mxu0 %v4746
          %v4814 = vpop.f32.mrf.mxu0
          %v4815 = vadd.f32 0.0, %v4814
          %v4816 = vpop.f32.mrf.mxu0
          %4817 = vdwg.mxu0
          %4818 = vmatprep.subr.mxu0 0.0
          %4819 = vmatpush1.msra.mxu0 0.0
          %4820 = vmatprep.subr.mxu0 0.0
          %4821 = vmatpush1.msra.mxu0 0.0
          %4822 = vmatprep.subr.mxu0 0.0
          %4823 = vmatpush1.msra.mxu0 0.0
          %4824 = vmatprep.subr.mxu0 0.0
          %4825 = vmatpush1.msra.mxu0 0.0
          %4826 = vmatprep.subr.mxu0 0.0
          %4827 = vmatpush1.msra.mxu0 0.0
          %4828 = vmatprep.subr.mxu0 0.0
          %4829 = vmatpush1.msra.mxu0 0.0
          %4830 = vmatprep.subr.mxu0 0.0
          %4831 = vmatpush1.msra.mxu0 0.0
          %4832 = vmatprep.subr.mxu0 0.0
          %4833 = vmatpush1.msra.mxu0 0.0
          %4834 = vmatprep.subr.mxu0 0.0
          %4835 = vmatpush1.msra.mxu0 0.0
          %4836 = vmatprep.subr.mxu0 0.0
          %4837 = vmatpush1.msra.mxu0 0.0
          %4838 = vmatprep.subr.mxu0 0.0
          %4839 = vmatpush1.msra.mxu0 0.0
          %4840 = vmatprep.subr.mxu0 0.0
          %4841 = vmatpush1.msra.mxu0 0.0
          %4842 = vmatprep.subr.mxu0 0.0
          %4843 = vmatpush1.msra.mxu0 %v3242
          %4844 = vmatprep.subr.mxu0 0.0
          %4845 = vmatpush1.msra.mxu0 %v3241
          %4846 = vmatprep.subr.mxu0 0.0
          %4847 = vmatpush1.msra.mxu0 %v3240
          %4848 = vmatprep.subr.mxu0 0.0
          %4849 = vmatpush1.msra.mxu0 %v3239
          %4850 = vmatprep.subr.mxu0 0.0
          %4851 = vmatpush2.msra.mxu0 0.0
          %4852 = vmatprep.subr.mxu0 0.0
          %4853 = vmatpush2.msra.mxu0 0.0
          %4854 = vmatprep.subr.mxu0 0.0
          %4855 = vmatpush2.msra.mxu0 0.0
          %4856 = vmatprep.subr.mxu0 0.0
          %4857 = vmatpush2.msra.mxu0 0.0
          %4858 = vmatprep.subr.mxu0 0.0
          %4859 = vmatpush2.msra.mxu0 0.0
          %4860 = vmatprep.subr.mxu0 0.0
          %4861 = vmatpush2.msra.mxu0 0.0
          %4862 = vmatprep.subr.mxu0 0.0
          %4863 = vmatpush2.msra.mxu0 0.0
          %4864 = vmatprep.subr.mxu0 0.0
          %4865 = vmatpush2.msra.mxu0 0.0
          %4866 = vmatprep.subr.mxu0 0.0
          %4867 = vmatpush2.msra.mxu0 0.0
          %4868 = vmatprep.subr.mxu0 0.0
          %4869 = vmatpush2.msra.mxu0 0.0
          %4870 = vmatprep.subr.mxu0 0.0
          %4871 = vmatpush2.msra.mxu0 0.0
          %4872 = vmatprep.subr.mxu0 0.0
          %4873 = vmatpush2.msra.mxu0 0.0
          %4874 = vmatprep.subr.mxu0 0.0
          %4875 = vmatpush2.msra.mxu0 0.0
          %4876 = vmatprep.subr.mxu0 0.0
          %4877 = vmatpush2.msra.mxu0 0.0
          %4878 = vmatprep.subr.mxu0 0.0
          %4879 = vmatpush2.msra.mxu0 0.0
          %4880 = vmatprep.subr.mxu0 0.0
          %4881 = vmatpush2.msra.mxu0 0.0
          %4882 = vmatprep.mubr.f32.mxu0 0.0
          %4883 = vmatmul.mubr.f32.gmra.mxu0 %v4746
          %v4884 = vpop.f32.mrf.mxu0
          %v4885 = vadd.f32 0.0, %v4884
          %v4886 = vpop.f32.mrf.mxu0
          %4887 = vdwg.mxu0
          %4888 = vmatprep.subr.mxu0 0.0
          %4889 = vmatpush1.msra.mxu0 0.0
          %4890 = vmatprep.subr.mxu0 0.0
          %4891 = vmatpush1.msra.mxu0 0.0
          %4892 = vmatprep.subr.mxu0 0.0
          %4893 = vmatpush1.msra.mxu0 0.0
          %4894 = vmatprep.subr.mxu0 0.0
          %4895 = vmatpush1.msra.mxu0 0.0
          %4896 = vmatprep.subr.mxu0 0.0
          %4897 = vmatpush1.msra.mxu0 0.0
          %4898 = vmatprep.subr.mxu0 0.0
          %4899 = vmatpush1.msra.mxu0 0.0
          %4900 = vmatprep.subr.mxu0 0.0
          %4901 = vmatpush1.msra.mxu0 0.0
          %4902 = vmatprep.subr.mxu0 0.0
          %4903 = vmatpush1.msra.mxu0 0.0
          %4904 = vmatprep.subr.mxu0 0.0
          %4905 = vmatpush1.msra.mxu0 0.0
          %4906 = vmatprep.subr.mxu0 0.0
          %4907 = vmatpush1.msra.mxu0 0.0
          %4908 = vmatprep.subr.mxu0 0.0
          %4909 = vmatpush1.msra.mxu0 0.0
          %4910 = vmatprep.subr.mxu0 0.0
          %4911 = vmatpush1.msra.mxu0 0.0
          %4912 = vmatprep.subr.mxu0 0.0
          %4913 = vmatpush1.msra.mxu0 %v3247
          %4914 = vmatprep.subr.mxu0 0.0
          %4915 = vmatpush1.msra.mxu0 %v3246
          %4916 = vmatprep.subr.mxu0 0.0
          %4917 = vmatpush1.msra.mxu0 %v3245
          %4918 = vmatprep.subr.mxu0 0.0
          %4919 = vmatpush1.msra.mxu0 %v3244
          %4920 = vmatprep.subr.mxu0 0.0
          %4921 = vmatpush2.msra.mxu0 0.0
          %4922 = vmatprep.subr.mxu0 0.0
          %4923 = vmatpush2.msra.mxu0 0.0
          %4924 = vmatprep.subr.mxu0 0.0
          %4925 = vmatpush2.msra.mxu0 0.0
          %4926 = vmatprep.subr.mxu0 0.0
          %4927 = vmatpush2.msra.mxu0 0.0
          %4928 = vmatprep.subr.mxu0 0.0
          %4929 = vmatpush2.msra.mxu0 0.0
          %4930 = vmatprep.subr.mxu0 0.0
          %4931 = vmatpush2.msra.mxu0 0.0
          %4932 = vmatprep.subr.mxu0 0.0
          %4933 = vmatpush2.msra.mxu0 0.0
          %4934 = vmatprep.subr.mxu0 0.0
          %4935 = vmatpush2.msra.mxu0 0.0
          %4936 = vmatprep.subr.mxu0 0.0
          %4937 = vmatpush2.msra.mxu0 0.0
          %4938 = vmatprep.subr.mxu0 0.0
          %4939 = vmatpush2.msra.mxu0 0.0
          %4940 = vmatprep.subr.mxu0 0.0
          %4941 = vmatpush2.msra.mxu0 0.0
          %4942 = vmatprep.subr.mxu0 0.0
          %4943 = vmatpush2.msra.mxu0 0.0
          %4944 = vmatprep.subr.mxu0 0.0
          %4945 = vmatpush2.msra.mxu0 0.0
          %4946 = vmatprep.subr.mxu0 0.0
          %4947 = vmatpush2.msra.mxu0 0.0
          %4948 = vmatprep.subr.mxu0 0.0
          %4949 = vmatpush2.msra.mxu0 0.0
          %4950 = vmatprep.subr.mxu0 0.0
          %4951 = vmatpush2.msra.mxu0 0.0
          %4952 = vmatprep.mubr.f32.mxu0 0.0
          %4953 = vmatmul.mubr.f32.gmra.mxu0 %v4746
          %v4954 = vpop.f32.mrf.mxu0
          %v4955 = vadd.f32 %v3397, %v4954
          %v4956 = vpop.f32.mrf.mxu0
          %4957 = vdwg.mxu0
          %s4958 = scalar_lea.vmem [#allocation3], 48
          %v4959 = vld [vmem:[%s4958] sm:$0xff]
          %v4960 = vadd.f32 %v4959, %v4815
          %v4961 = vxor.u32 %v4960, 2147483648
          %v4962 = vmul.f32 %v4961, 1.442695
          %v4963 = vpow.pop %v4962
          %v4964 = vadd.f32 %v4963, 1.0
          %v4965 = vrcp.pop %v4964
          %v4966 = vmul.f32 1.0, %v4965
          %s4967 = scalar_lea.vmem [#allocation4], 48
          %v4968 = vld [vmem:[%s4967] sm:$0xff]
          %v4969 = vadd.f32 %v4968, %v4885
          %v4970 = vxor.u32 %v4969, 2147483648
          %v4971 = vmul.f32 %v4970, 1.442695
          %v4972 = vpow.pop %v4971
          %v4973 = vadd.f32 %v4972, 1.0
          %v4974 = vrcp.pop %v4973
          %v4975 = vmul.f32 1.0, %v4974
          %s4976 = scalar_lea.vmem [#allocation5], 48
          %v4977 = vld [vmem:[%s4976] sm:$0xff]
          %v4978 = vmul.f32 %v4966, %v4955
          %v4979 = vadd.f32 %v4977, %v4978
          %v4980 = vtanh.pop %v4979
          %v4981 = vsub.f32 %v4744, %v4980
          %v4982 = vmul.f32 %v4975, %v4981
          %v4983 = vadd.f32 %v4980, %v4982
          %s4984 = scalar_lea.vmem %s12, 48
          %v4985 = vld [vmem:[%s4984] sm:$0xff]
          %v4986 = vsub.f32 %v4983, %v4744
          %4988 = vset.pattern.permute.xlu0 0
          %4989 = vperm.xlu0 %4988, %v4985
          %v4990 = vpop.permute.xlu0 %4989
          %v4992 = vmul.f32 %v4990, %v4986
          %v4993 = vadd.f32 %v4744, %v4992
          %v4995 = vsel %vm3249, %v4993, 0
          %4997 = vmatprep.subr.mxu0 0.0
          %4998 = vmatpush1.msra.mxu0 0.0
          %4999 = vmatprep.subr.mxu0 0.0
          %5000 = vmatpush1.msra.mxu0 0.0
          %5001 = vmatprep.subr.mxu0 0.0
          %5002 = vmatpush1.msra.mxu0 0.0
          %5003 = vmatprep.subr.mxu0 0.0
          %5004 = vmatpush1.msra.mxu0 0.0
          %5005 = vmatprep.subr.mxu0 0.0
          %5006 = vmatpush1.msra.mxu0 0.0
          %5007 = vmatprep.subr.mxu0 0.0
          %5008 = vmatpush1.msra.mxu0 0.0
          %5009 = vmatprep.subr.mxu0 0.0
          %5010 = vmatpush1.msra.mxu0 0.0
          %5011 = vmatprep.subr.mxu0 0.0
          %5012 = vmatpush1.msra.mxu0 0.0
          %5013 = vmatprep.subr.mxu0 0.0
          %5014 = vmatpush1.msra.mxu0 0.0
          %5015 = vmatprep.subr.mxu0 0.0
          %5016 = vmatpush1.msra.mxu0 0.0
          %5017 = vmatprep.subr.mxu0 0.0
          %5018 = vmatpush1.msra.mxu0 0.0
          %5019 = vmatprep.subr.mxu0 0.0
          %5020 = vmatpush1.msra.mxu0 0.0
          %5021 = vmatprep.subr.mxu0 0.0
          %5022 = vmatpush1.msra.mxu0 %v3237
          %5023 = vmatprep.subr.mxu0 0.0
          %5024 = vmatpush1.msra.mxu0 %v3236
          %5025 = vmatprep.subr.mxu0 0.0
          %5026 = vmatpush1.msra.mxu0 %v3235
          %5027 = vmatprep.subr.mxu0 0.0
          %5028 = vmatpush1.msra.mxu0 %v3234
          %5029 = vmatprep.subr.mxu0 0.0
          %5030 = vmatpush2.msra.mxu0 0.0
          %5031 = vmatprep.subr.mxu0 0.0
          %5032 = vmatpush2.msra.mxu0 0.0
          %5033 = vmatprep.subr.mxu0 0.0
          %5034 = vmatpush2.msra.mxu0 0.0
          %5035 = vmatprep.subr.mxu0 0.0
          %5036 = vmatpush2.msra.mxu0 0.0
          %5037 = vmatprep.subr.mxu0 0.0
          %5038 = vmatpush2.msra.mxu0 0.0
          %5039 = vmatprep.subr.mxu0 0.0
          %5040 = vmatpush2.msra.mxu0 0.0
          %5041 = vmatprep.subr.mxu0 0.0
          %5042 = vmatpush2.msra.mxu0 0.0
          %5043 = vmatprep.subr.mxu0 0.0
          %5044 = vmatpush2.msra.mxu0 0.0
          %5045 = vmatprep.subr.mxu0 0.0
          %5046 = vmatpush2.msra.mxu0 0.0
          %5047 = vmatprep.subr.mxu0 0.0
          %5048 = vmatpush2.msra.mxu0 0.0
          %5049 = vmatprep.subr.mxu0 0.0
          %5050 = vmatpush2.msra.mxu0 0.0
          %5051 = vmatprep.subr.mxu0 0.0
          %5052 = vmatpush2.msra.mxu0 0.0
          %5053 = vmatprep.subr.mxu0 0.0
          %5054 = vmatpush2.msra.mxu0 0.0
          %5055 = vmatprep.subr.mxu0 0.0
          %5056 = vmatpush2.msra.mxu0 0.0
          %5057 = vmatprep.subr.mxu0 0.0
          %5058 = vmatpush2.msra.mxu0 0.0
          %5059 = vmatprep.subr.mxu0 0.0
          %5060 = vmatpush2.msra.mxu0 0.0
          %5061 = vmatprep.mubr.f32.mxu0 0.0
          %5062 = vmatmul.mubr.f32.gmra.mxu0 %v4995
          %v5063 = vpop.f32.mrf.mxu0
          %v5064 = vadd.f32 0.0, %v5063
          %v5065 = vpop.f32.mrf.mxu0
          %5066 = vdwg.mxu0
          %5067 = vmatprep.subr.mxu0 0.0
          %5068 = vmatpush1.msra.mxu0 0.0
          %5069 = vmatprep.subr.mxu0 0.0
          %5070 = vmatpush1.msra.mxu0 0.0
          %5071 = vmatprep.subr.mxu0 0.0
          %5072 = vmatpush1.msra.mxu0 0.0
          %5073 = vmatprep.subr.mxu0 0.0
          %5074 = vmatpush1.msra.mxu0 0.0
          %5075 = vmatprep.subr.mxu0 0.0
          %5076 = vmatpush1.msra.mxu0 0.0
          %5077 = vmatprep.subr.mxu0 0.0
          %5078 = vmatpush1.msra.mxu0 0.0
          %5079 = vmatprep.subr.mxu0 0.0
          %5080 = vmatpush1.msra.mxu0 0.0
          %5081 = vmatprep.subr.mxu0 0.0
          %5082 = vmatpush1.msra.mxu0 0.0
          %5083 = vmatprep.subr.mxu0 0.0
          %5084 = vmatpush1.msra.mxu0 0.0
          %5085 = vmatprep.subr.mxu0 0.0
          %5086 = vmatpush1.msra.mxu0 0.0
          %5087 = vmatprep.subr.mxu0 0.0
          %5088 = vmatpush1.msra.mxu0 0.0
          %5089 = vmatprep.subr.mxu0 0.0
          %5090 = vmatpush1.msra.mxu0 0.0
          %5091 = vmatprep.subr.mxu0 0.0
          %5092 = vmatpush1.msra.mxu0 %v3242
          %5093 = vmatprep.subr.mxu0 0.0
          %5094 = vmatpush1.msra.mxu0 %v3241
          %5095 = vmatprep.subr.mxu0 0.0
          %5096 = vmatpush1.msra.mxu0 %v3240
          %5097 = vmatprep.subr.mxu0 0.0
          %5098 = vmatpush1.msra.mxu0 %v3239
          %5099 = vmatprep.subr.mxu0 0.0
          %5100 = vmatpush2.msra.mxu0 0.0
          %5101 = vmatprep.subr.mxu0 0.0
          %5102 = vmatpush2.msra.mxu0 0.0
          %5103 = vmatprep.subr.mxu0 0.0
          %5104 = vmatpush2.msra.mxu0 0.0
          %5105 = vmatprep.subr.mxu0 0.0
          %5106 = vmatpush2.msra.mxu0 0.0
          %5107 = vmatprep.subr.mxu0 0.0
          %5108 = vmatpush2.msra.mxu0 0.0
          %5109 = vmatprep.subr.mxu0 0.0
          %5110 = vmatpush2.msra.mxu0 0.0
          %5111 = vmatprep.subr.mxu0 0.0
          %5112 = vmatpush2.msra.mxu0 0.0
          %5113 = vmatprep.subr.mxu0 0.0
          %5114 = vmatpush2.msra.mxu0 0.0
          %5115 = vmatprep.subr.mxu0 0.0
          %5116 = vmatpush2.msra.mxu0 0.0
          %5117 = vmatprep.subr.mxu0 0.0
          %5118 = vmatpush2.msra.mxu0 0.0
          %5119 = vmatprep.subr.mxu0 0.0
          %5120 = vmatpush2.msra.mxu0 0.0
          %5121 = vmatprep.subr.mxu0 0.0
          %5122 = vmatpush2.msra.mxu0 0.0
          %5123 = vmatprep.subr.mxu0 0.0
          %5124 = vmatpush2.msra.mxu0 0.0
          %5125 = vmatprep.subr.mxu0 0.0
          %5126 = vmatpush2.msra.mxu0 0.0
          %5127 = vmatprep.subr.mxu0 0.0
          %5128 = vmatpush2.msra.mxu0 0.0
          %5129 = vmatprep.subr.mxu0 0.0
          %5130 = vmatpush2.msra.mxu0 0.0
          %5131 = vmatprep.mubr.f32.mxu0 0.0
          %5132 = vmatmul.mubr.f32.gmra.mxu0 %v4995
          %v5133 = vpop.f32.mrf.mxu0
          %v5134 = vadd.f32 0.0, %v5133
          %v5135 = vpop.f32.mrf.mxu0
          %5136 = vdwg.mxu0
          %5137 = vmatprep.subr.mxu0 0.0
          %5138 = vmatpush1.msra.mxu0 0.0
          %5139 = vmatprep.subr.mxu0 0.0
          %5140 = vmatpush1.msra.mxu0 0.0
          %5141 = vmatprep.subr.mxu0 0.0
          %5142 = vmatpush1.msra.mxu0 0.0
          %5143 = vmatprep.subr.mxu0 0.0
          %5144 = vmatpush1.msra.mxu0 0.0
          %5145 = vmatprep.subr.mxu0 0.0
          %5146 = vmatpush1.msra.mxu0 0.0
          %5147 = vmatprep.subr.mxu0 0.0
          %5148 = vmatpush1.msra.mxu0 0.0
          %5149 = vmatprep.subr.mxu0 0.0
          %5150 = vmatpush1.msra.mxu0 0.0
          %5151 = vmatprep.subr.mxu0 0.0
          %5152 = vmatpush1.msra.mxu0 0.0
          %5153 = vmatprep.subr.mxu0 0.0
          %5154 = vmatpush1.msra.mxu0 0.0
          %5155 = vmatprep.subr.mxu0 0.0
          %5156 = vmatpush1.msra.mxu0 0.0
          %5157 = vmatprep.subr.mxu0 0.0
          %5158 = vmatpush1.msra.mxu0 0.0
          %5159 = vmatprep.subr.mxu0 0.0
          %5160 = vmatpush1.msra.mxu0 0.0
          %5161 = vmatprep.subr.mxu0 0.0
          %5162 = vmatpush1.msra.mxu0 %v3247
          %5163 = vmatprep.subr.mxu0 0.0
          %5164 = vmatpush1.msra.mxu0 %v3246
          %5165 = vmatprep.subr.mxu0 0.0
          %5166 = vmatpush1.msra.mxu0 %v3245
          %5167 = vmatprep.subr.mxu0 0.0
          %5168 = vmatpush1.msra.mxu0 %v3244
          %5169 = vmatprep.subr.mxu0 0.0
          %5170 = vmatpush2.msra.mxu0 0.0
          %5171 = vmatprep.subr.mxu0 0.0
          %5172 = vmatpush2.msra.mxu0 0.0
          %5173 = vmatprep.subr.mxu0 0.0
          %5174 = vmatpush2.msra.mxu0 0.0
          %5175 = vmatprep.subr.mxu0 0.0
          %5176 = vmatpush2.msra.mxu0 0.0
          %5177 = vmatprep.subr.mxu0 0.0
          %5178 = vmatpush2.msra.mxu0 0.0
          %5179 = vmatprep.subr.mxu0 0.0
          %5180 = vmatpush2.msra.mxu0 0.0
          %5181 = vmatprep.subr.mxu0 0.0
          %5182 = vmatpush2.msra.mxu0 0.0
          %5183 = vmatprep.subr.mxu0 0.0
          %5184 = vmatpush2.msra.mxu0 0.0
          %5185 = vmatprep.subr.mxu0 0.0
          %5186 = vmatpush2.msra.mxu0 0.0
          %5187 = vmatprep.subr.mxu0 0.0
          %5188 = vmatpush2.msra.mxu0 0.0
          %5189 = vmatprep.subr.mxu0 0.0
          %5190 = vmatpush2.msra.mxu0 0.0
          %5191 = vmatprep.subr.mxu0 0.0
          %5192 = vmatpush2.msra.mxu0 0.0
          %5193 = vmatprep.subr.mxu0 0.0
          %5194 = vmatpush2.msra.mxu0 0.0
          %5195 = vmatprep.subr.mxu0 0.0
          %5196 = vmatpush2.msra.mxu0 0.0
          %5197 = vmatprep.subr.mxu0 0.0
          %5198 = vmatpush2.msra.mxu0 0.0
          %5199 = vmatprep.subr.mxu0 0.0
          %5200 = vmatpush2.msra.mxu0 0.0
          %5201 = vmatprep.mubr.f32.mxu0 0.0
          %5202 = vmatmul.mubr.f32.gmra.mxu0 %v4995
          %v5203 = vpop.f32.mrf.mxu0
          %v5204 = vadd.f32 %v3397, %v5203
          %v5205 = vpop.f32.mrf.mxu0
          %5206 = vdwg.mxu0
          %s5207 = scalar_lea.vmem [#allocation3], 56
          %v5208 = vld [vmem:[%s5207] sm:$0xff]
          %v5209 = vadd.f32 %v5208, %v5064
          %v5210 = vxor.u32 %v5209, 2147483648
          %v5211 = vmul.f32 %v5210, 1.442695
          %v5212 = vpow.pop %v5211
          %v5213 = vadd.f32 %v5212, 1.0
          %v5214 = vrcp.pop %v5213
          %v5215 = vmul.f32 1.0, %v5214
          %s5216 = scalar_lea.vmem [#allocation4], 56
          %v5217 = vld [vmem:[%s5216] sm:$0xff]
          %v5218 = vadd.f32 %v5217, %v5134
          %v5219 = vxor.u32 %v5218, 2147483648
          %v5220 = vmul.f32 %v5219, 1.442695
          %v5221 = vpow.pop %v5220
          %v5222 = vadd.f32 %v5221, 1.0
          %v5223 = vrcp.pop %v5222
          %v5224 = vmul.f32 1.0, %v5223
          %s5225 = scalar_lea.vmem [#allocation5], 56
          %v5226 = vld [vmem:[%s5225] sm:$0xff]
          %v5227 = vmul.f32 %v5215, %v5204
          %v5228 = vadd.f32 %v5226, %v5227
          %v5229 = vtanh.pop %v5228
          %v5230 = vsub.f32 %v4993, %v5229
          %v5231 = vmul.f32 %v5224, %v5230
          %v5232 = vadd.f32 %v5229, %v5231
          %s5233 = scalar_lea.vmem %s12, 56
          %v5234 = vld [vmem:[%s5233] sm:$0xff]
          %v5235 = vsub.f32 %v5232, %v4993
          %5237 = vset.pattern.permute.xlu0 0
          %5238 = vperm.xlu0 %5237, %v5234
          %v5239 = vpop.permute.xlu0 %5238
          %v5241 = vmul.f32 %v5239, %v5235
          %v5242 = vadd.f32 %v4993, %v5241
          %v5243 = vld [vmem:[#allocation16] sm:$0xff]
          %v5244 = vld [vmem:[#allocation16 + $0x8] sm:$0xff]
          %v5245 = vld [vmem:[#allocation16 + $0x10] sm:$0xff]
          %v5246 = vld [vmem:[#allocation16 + $0x18] sm:$0xff]
          %v5247 = vld [vmem:[#allocation18] sm:$0x1]
          %v5249 = vlaneseq
          %v5250 = vshrl.u32 %v5249, 7
          %v5251 = vsub.s32 0, %v5250
          %v5252 = vrot.slane %v5247, %v5251
          %v5255 = vsel %vm3249, %v5242, 0
          %5257 = vmatprep.subr.mxu0 0.0
          %5258 = vmatpush1.msra.mxu0 0.0
          %5259 = vmatprep.subr.mxu0 0.0
          %5260 = vmatpush1.msra.mxu0 0.0
          %5261 = vmatprep.subr.mxu0 0.0
          %5262 = vmatpush1.msra.mxu0 0.0
          %5263 = vmatprep.subr.mxu0 0.0
          %5264 = vmatpush1.msra.mxu0 0.0
          %5265 = vmatprep.subr.mxu0 0.0
          %5266 = vmatpush1.msra.mxu0 0.0
          %5267 = vmatprep.subr.mxu0 0.0
          %5268 = vmatpush1.msra.mxu0 0.0
          %5269 = vmatprep.subr.mxu0 0.0
          %5270 = vmatpush1.msra.mxu0 0.0
          %5271 = vmatprep.subr.mxu0 0.0
          %5272 = vmatpush1.msra.mxu0 0.0
          %5273 = vmatprep.subr.mxu0 0.0
          %5274 = vmatpush1.msra.mxu0 0.0
          %5275 = vmatprep.subr.mxu0 0.0
          %5276 = vmatpush1.msra.mxu0 0.0
          %5277 = vmatprep.subr.mxu0 0.0
          %5278 = vmatpush1.msra.mxu0 0.0
          %5279 = vmatprep.subr.mxu0 0.0
          %5280 = vmatpush1.msra.mxu0 0.0
          %5281 = vmatprep.subr.mxu0 0.0
          %5282 = vmatpush1.msra.mxu0 %v5246
          %5283 = vmatprep.subr.mxu0 0.0
          %5284 = vmatpush1.msra.mxu0 %v5245
          %5285 = vmatprep.subr.mxu0 0.0
          %5286 = vmatpush1.msra.mxu0 %v5244
          %5287 = vmatprep.subr.mxu0 0.0
          %5288 = vmatpush1.msra.mxu0 %v5243
          %5289 = vmatprep.subr.mxu0 0.0
          %5290 = vmatpush2.msra.mxu0 0.0
          %5291 = vmatprep.subr.mxu0 0.0
          %5292 = vmatpush2.msra.mxu0 0.0
          %5293 = vmatprep.subr.mxu0 0.0
          %5294 = vmatpush2.msra.mxu0 0.0
          %5295 = vmatprep.subr.mxu0 0.0
          %5296 = vmatpush2.msra.mxu0 0.0
          %5297 = vmatprep.subr.mxu0 0.0
          %5298 = vmatpush2.msra.mxu0 0.0
          %5299 = vmatprep.subr.mxu0 0.0
          %5300 = vmatpush2.msra.mxu0 0.0
          %5301 = vmatprep.subr.mxu0 0.0
          %5302 = vmatpush2.msra.mxu0 0.0
          %5303 = vmatprep.subr.mxu0 0.0
          %5304 = vmatpush2.msra.mxu0 0.0
          %5305 = vmatprep.subr.mxu0 0.0
          %5306 = vmatpush2.msra.mxu0 0.0
          %5307 = vmatprep.subr.mxu0 0.0
          %5308 = vmatpush2.msra.mxu0 0.0
          %5309 = vmatprep.subr.mxu0 0.0
          %5310 = vmatpush2.msra.mxu0 0.0
          %5311 = vmatprep.subr.mxu0 0.0
          %5312 = vmatpush2.msra.mxu0 0.0
          %5313 = vmatprep.subr.mxu0 0.0
          %5314 = vmatpush2.msra.mxu0 0.0
          %5315 = vmatprep.subr.mxu0 0.0
          %5316 = vmatpush2.msra.mxu0 0.0
          %5317 = vmatprep.subr.mxu0 0.0
          %5318 = vmatpush2.msra.mxu0 0.0
          %5319 = vmatprep.subr.mxu0 0.0
          %5320 = vmatpush2.msra.mxu0 0.0
          %5321 = vmatprep.mubr.f32.mxu0 0.0
          %5322 = vmatmul.mubr.f32.gmra.mxu0 %v5255
          %v5323 = vpop.f32.mrf.mxu0
          %v5324 = vadd.f32 %v5252, %v5323
          %v5325 = vpop.f32.mrf.mxu0
          %5326 = vdwg.mxu0
          %v5327 = vmax.f32 %v5324, 0.0
          %v5328 = vld [vmem:[%s10] sm:$0xff]
          %v5329 = vld [vmem:[%s10 + $0x8] sm:$0xff]
          %v5330 = vld [vmem:[%s10 + $0x10] sm:$0xff]
          %v5331 = vld [vmem:[%s10 + $0x18] sm:$0xff]
          %v5332 = vld [vmem:[%s11] sm:$0x1]
          %v5334 = vlaneseq
          %v5335 = vshrl.u32 %v5334, 7
          %v5336 = vsub.s32 0, %v5335
          %v5337 = vrot.slane %v5332, %v5336
          %v5340 = vsel %vm3249, %v5327, 0
          %5342 = vmatprep.subr.mxu0 0.0
          %5343 = vmatpush1.msra.mxu0 0.0
          %5344 = vmatprep.subr.mxu0 0.0
          %5345 = vmatpush1.msra.mxu0 0.0
          %5346 = vmatprep.subr.mxu0 0.0
          %5347 = vmatpush1.msra.mxu0 0.0
          %5348 = vmatprep.subr.mxu0 0.0
          %5349 = vmatpush1.msra.mxu0 0.0
          %5350 = vmatprep.subr.mxu0 0.0
          %5351 = vmatpush1.msra.mxu0 0.0
          %5352 = vmatprep.subr.mxu0 0.0
          %5353 = vmatpush1.msra.mxu0 0.0
          %5354 = vmatprep.subr.mxu0 0.0
          %5355 = vmatpush1.msra.mxu0 0.0
          %5356 = vmatprep.subr.mxu0 0.0
          %5357 = vmatpush1.msra.mxu0 0.0
          %5358 = vmatprep.subr.mxu0 0.0
          %5359 = vmatpush1.msra.mxu0 0.0
          %5360 = vmatprep.subr.mxu0 0.0
          %5361 = vmatpush1.msra.mxu0 0.0
          %5362 = vmatprep.subr.mxu0 0.0
          %5363 = vmatpush1.msra.mxu0 0.0
          %5364 = vmatprep.subr.mxu0 0.0
          %5365 = vmatpush1.msra.mxu0 0.0
          %5366 = vmatprep.subr.mxu0 0.0
          %5367 = vmatpush1.msra.mxu0 %v5331
          %5368 = vmatprep.subr.mxu0 0.0
          %5369 = vmatpush1.msra.mxu0 %v5330
          %5370 = vmatprep.subr.mxu0 0.0
          %5371 = vmatpush1.msra.mxu0 %v5329
          %5372 = vmatprep.subr.mxu0 0.0
          %5373 = vmatpush1.msra.mxu0 %v5328
          %5374 = vmatprep.subr.mxu0 0.0
          %5375 = vmatpush2.msra.mxu0 0.0
          %5376 = vmatprep.subr.mxu0 0.0
          %5377 = vmatpush2.msra.mxu0 0.0
          %5378 = vmatprep.subr.mxu0 0.0
          %5379 = vmatpush2.msra.mxu0 0.0
          %5380 = vmatprep.subr.mxu0 0.0
          %5381 = vmatpush2.msra.mxu0 0.0
          %5382 = vmatprep.subr.mxu0 0.0
          %5383 = vmatpush2.msra.mxu0 0.0
          %5384 = vmatprep.subr.mxu0 0.0
          %5385 = vmatpush2.msra.mxu0 0.0
          %5386 = vmatprep.subr.mxu0 0.0
          %5387 = vmatpush2.msra.mxu0 0.0
          %5388 = vmatprep.subr.mxu0 0.0
          %5389 = vmatpush2.msra.mxu0 0.0
          %5390 = vmatprep.subr.mxu0 0.0
          %5391 = vmatpush2.msra.mxu0 0.0
          %5392 = vmatprep.subr.mxu0 0.0
          %5393 = vmatpush2.msra.mxu0 0.0
          %5394 = vmatprep.subr.mxu0 0.0
          %5395 = vmatpush2.msra.mxu0 0.0
          %5396 = vmatprep.subr.mxu0 0.0
          %5397 = vmatpush2.msra.mxu0 0.0
          %5398 = vmatprep.subr.mxu0 0.0
          %5399 = vmatpush2.msra.mxu0 0.0
          %5400 = vmatprep.subr.mxu0 0.0
          %5401 = vmatpush2.msra.mxu0 0.0
          %5402 = vmatprep.subr.mxu0 0.0
          %5403 = vmatpush2.msra.mxu0 0.0
          %5404 = vmatprep.subr.mxu0 0.0
          %5405 = vmatpush2.msra.mxu0 0.0
          %5406 = vmatprep.mubr.f32.mxu0 0.0
          %5407 = vmatmul.mubr.f32.gmra.mxu0 %v5340
          %v5408 = vpop.f32.mrf.mxu0
          %v5409 = vadd.f32 %v5337, %v5408
          %v5410 = vpop.f32.mrf.mxu0
          %5411 = vdwg.mxu0
          %vm5412 = vcmask 31744
          %v5413 = vsel %vm5412, %v5409, -inf
          %5414 = vmax.xlane.f32.xlu0 %v5413
          %v5415 = vpop.xlane.xlu0 %5414
          %v5416 = vsub.f32 %v5409, %v5415
          %v5417 = vmul.f32 %v5416, 1.442695
          %v5418 = vpow.pop %v5417
          %v5419 = vsel %vm5412, %v5418, 0.0
          %5420 = vadd.xlane.f32.xlu0 %v5419
          %v5421 = vpop.xlane.xlu0 %5420
          %v5422 = vlog2.pop %v5421
          %v5423 = vmul.f32 %v5422, 0.6931472
          %v5424 = vadd.f32 %v5415, %v5423
          %v5425 = vsub.f32 %v5409, %v5424
          %5426 = vst.msk [vmem:[%s13] sm:$0xff] %vm5412, %v5425
        $region116: #{tpu_custom_call.1} parent=71 // pred_fallthru
          _
        // Predicated region
        $region117: #{tpu_custom_call.1} parent=71 // pred_check
          %p5427 = pneg %p336
        $region118: #{tpu_custom_call.1} parent=71 // pred_check_branch
          %5429 = sbr.rel (%p5427) target = $region120
        $region119: #{tpu_custom_call.1} parent=71 // pred_region
          _
        $region120: #{tpu_custom_call.1} parent=71 // pred_fallthru
          _
        // Predicated region
        $region121: #{tpu_custom_call.1} parent=71 // pred_check
          %p5430 = pneg %p336
        $region122: #{tpu_custom_call.1} parent=71 // pred_check_branch
          %5432 = sbr.rel (%p5430) target = $region124
        $region123: #{tpu_custom_call.1} parent=71 // pred_region
          _
        $region124: #{tpu_custom_call.1} parent=71 // pred_fallthru
          _
      $region72: #{tpu_custom_call.1} parent=5 // pred_fallthru
        _
      %p5433 = scmp.le.s32.totalorder 2, %s26
      // Predicated region
      $region125: #{tpu_custom_call.1} parent=5 // pred_check
        %p5434 = pneg %p5433
      $region126: #{tpu_custom_call.1} parent=5 // pred_check_branch
        %5436 = sbr.rel (%p5434) target = $region128
      $region127: #{tpu_custom_call.1} parent=5 // pred_region
        %s5437 = ssub.s32 %s26, 2
      $region128: #{tpu_custom_call.1} parent=5 // pred_fallthru
        _
    $region6: #{tpu_custom_call.1} parent=1 // loop_footer
      %s30 = sadd.s32 1, %s26
    $region7: #{tpu_custom_call.1} parent=1 // loop_footer_branch
      %25 = sbr.rel target = $region3
    $region8: #{tpu_custom_call.1} parent=1 // loop_exit
      _
    %5438 = vsyncpa [#allocation7], 1
    %s5439 = scalar_lea.sflag [#allocation7], 1
    %5440 = vsyncpa %s5439, 1
    %5441 = vsyncpa [#allocation11], 1
    %5442 = vsyncpa [#allocation14], 1
    %5443 = vsyncpa [#allocation17], 1
    %5444 = vsyncpa [#allocation8], 1
    %s5445 = scalar_lea.sflag [#allocation8], 1
    %5446 = vsyncpa %s5445, 1

</llo_original>
